<compile_context>
chip_gen: v6e
topology: v6e:2x2x1
jax: 0.10.0
libtpu: 0.0.40
codegen_flags: <defaults>
</compile_context>

<pallas_src>
import functools

import jax
import jax.numpy as jnp
from jax.experimental import pallas as pl
from jax.experimental.pallas import tpu as pltpu

K = 3
KK = K * K
KPAD = 8            # channel dim 3 zero-padded to 8 (zero rows in W1 keep it exact)
C1, C2, C3 = 64, 128, 1024
H1, H2 = 512, 256
OUT_PAD = 128       # lane-dense output width (first KK lanes are the real result)
BN_EPS = 1e-5

# packed-bias segment offsets (each segment starts 128-lane aligned)
B1_OFF = 0
B2_OFF = 128
B3_OFF = 256
B4_OFF = B3_OFF + C3            # 1280
B5_OFF = B4_OFF + H1            # 1792
B6_OFF = B5_OFF + H2            # 2048
BIAS_TOTAL = B6_OFF + OUT_PAD   # 2176


# ---------------------------------------------------------------------------
# Fused kernel: per-point MLP (3->64->128->1024) + running max over points
# + (at the last point-tile) global-feature bias/ReLU + head MLP + identity.
# Grid = (B, Np // tn); B is "parallel", the point axis is an "arbitrary"
# reduction with a VMEM scratch accumulator.
# ---------------------------------------------------------------------------
def tnet_kernel(x_ref, bias_ref, w1_ref, w2_ref, w3_ref, w4_ref, w5_ref, w6_ref,
                out_ref, acc_ref):
    n = pl.program_id(1)

    # ---- layer 1 on the VPU: only 3 real input channels, MXU would waste
    #      ~M/8 pushes for 0.4% of the FLOPs.  Stays in f32 (input precision).
    x = x_ref[0]                                                   # (tn, KPAD) f32
    w1 = w1_ref[...]                                               # (KPAD, C1) f32
    h = (x[:, 0:1] * w1[0:1, :]
         + x[:, 1:2] * w1[1:2, :]
         + x[:, 2:3] * w1[2:3, :])                                 # (tn, C1) f32
    h = jnp.maximum(h + bias_ref[:, B1_OFF:B1_OFF + C1], 0.0)
    h = h.astype(jnp.bfloat16)

    # ---- layer 2: MXU, bf16 inputs / f32 accumulation
    h = jnp.dot(h, w2_ref[...], preferred_element_type=jnp.float32)
    h = jnp.maximum(h + bias_ref[:, B2_OFF:B2_OFF + C2], 0.0)
    h = h.astype(jnp.bfloat16)                                     # (tn, C2)

    # ---- layer 3: MXU raw dot; bias + ReLU hoisted out of the tile loop
    #      (per-channel constant + monotone ReLU commute with the max).
    h = jnp.dot(h, w3_ref[...], preferred_element_type=jnp.float32)  # (tn, C3)
    tile_max = jnp.max(h, axis=0, keepdims=True)                     # (1, C3) f32

    @pl.when(n == 0)
    def _init():
        acc_ref[...] = jnp.full_like(acc_ref, -jnp.inf)

    acc_ref[...] = jnp.maximum(acc_ref[...], tile_max)

    # ---- finalize: global feature + fused head MLP (runs once per batch) ----
    @pl.when(n == pl.num_programs(1) - 1)
    def _finalize():
        g = jnp.maximum(acc_ref[...] + bias_ref[:, B3_OFF:B3_OFF + C3], 0.0)
        g = g.astype(jnp.bfloat16)                                    # (1, C3)
        h4 = jnp.dot(g, w4_ref[...], preferred_element_type=jnp.float32)
        h4 = jnp.maximum(h4 + bias_ref[:, B4_OFF:B4_OFF + H1], 0.0)
        h4 = h4.astype(jnp.bfloat16)                                  # (1, H1)
        h5 = jnp.dot(h4, w5_ref[...], preferred_element_type=jnp.float32)
        h5 = jnp.maximum(h5 + bias_ref[:, B5_OFF:B5_OFF + H2], 0.0)   # (1, H2) f32
        out = jnp.dot(h5, w6_ref[...], preferred_element_type=jnp.float32)
        # packed b6 segment already includes eye(K).flatten(); lanes >= KK are 0
        out_ref[0] = out + bias_ref[:, B6_OFF:B6_OFF + OUT_PAD]       # (1, OUT_PAD)


def tnet_forward_pallas(x_bnk, biases, weights, *, tn):
    """x_bnk: (B, Np, KPAD) f32 with Np % tn == 0."""
    B, Np, _ = x_bnk.shape
    nt = Np // tn
    w1, w2, w3, w4, w5, w6 = weights

    flops = (2 * B * Np * (K * C1 + C1 * C2 + C2 * C3)
             + 2 * B * (C3 * H1 + H1 * H2 + H2 * KK))
    bytes_accessed = (B * Np * KPAD * 4                                     # x (f32)
                      + 4 * (KPAD * C1 + H2 * OUT_PAD + BIAS_TOTAL)         # f32 params
                      + 2 * (C1 * C2 + C2 * C3 + C3 * H1 + H1 * H2)         # bf16 weights
                      + 4 * B * OUT_PAD)                                    # output

    const = lambda b, n: (0, 0)
    return pl.pallas_call(
        tnet_kernel,
        out_shape=jax.ShapeDtypeStruct((B, 1, OUT_PAD), jnp.float32),
        grid_spec=pltpu.PrefetchScalarGridSpec(
            num_scalar_prefetch=0,
            grid=(B, nt),
            in_specs=[
                pl.BlockSpec((1, tn, KPAD), lambda b, n: (b, n, 0)),   # x tile
                pl.BlockSpec((1, BIAS_TOTAL), const),                  # packed biases
                pl.BlockSpec((KPAD, C1), const),                       # w1 (f32, VPU)
                pl.BlockSpec((C1, C2), const),                         # w2 (bf16)
                pl.BlockSpec((C2, C3), const),                         # w3 (bf16)
                pl.BlockSpec((C3, H1), const),                         # w4 (bf16)
                pl.BlockSpec((H1, H2), const),                         # w5 (bf16)
                pl.BlockSpec((H2, OUT_PAD), const),                    # w6 (f32, padded)
            ],
            out_specs=pl.BlockSpec((1, 1, OUT_PAD), lambda b, n: (b, 0, 0)),
            scratch_shapes=[pltpu.VMEM((1, C3), jnp.float32)],   # running max of raw layer-3
        ),
        compiler_params=pltpu.CompilerParams(
            dimension_semantics=("parallel", "arbitrary"),
            vmem_limit_bytes=32 * 1024 * 1024),
        cost_estimate=pl.CostEstimate(flops=int(flops), transcendentals=0,
                                      bytes_accessed=int(bytes_accessed)),
    )(x_bnk, biases, w1, w2, w3, w4, w5, w6)


# ---------------------------------------------------------------------------
# Parameter construction (deterministic; eval-mode BatchNorm folded into the
# preceding conv/linear as scale & bias).
# ---------------------------------------------------------------------------
def _fold_bn(w, b, gamma, beta, mean, var):
    scale = gamma / jnp.sqrt(var + BN_EPS)
    w_eff = (w * scale[:, None]).T.astype(jnp.float32)       # (in, out)
    b_eff = ((b - mean) * scale + beta).astype(jnp.float32)  # (out,)
    return w_eff, b_eff.reshape(1, -1)


def make_params(key):
    def layer(key, cin, cout, with_bn):
        ks = jax.random.split(key, 6)
        w = jax.random.normal(ks[0], (cout, cin), jnp.float32) * 0.05
        b = jax.random.normal(ks[1], (cout,), jnp.float32) * 0.05
        if with_bn:
            gamma = 1.0 + 0.1 * jax.random.normal(ks[2], (cout,), jnp.float32)
            beta = 0.1 * jax.random.normal(ks[3], (cout,), jnp.float32)
            mean = 0.1 * jax.random.normal(ks[4], (cout,), jnp.float32)
            var = 0.5 + jax.random.uniform(ks[5], (cout,), jnp.float32)
            return _fold_bn(w, b, gamma, beta, mean, var)
        return w.T.astype(jnp.float32), b.reshape(1, -1).astype(jnp.float32)

    keys = jax.random.split(key, 6)
    w1, b1 = layer(keys[0], K, C1, True)       # Conv1d(3, 64, 1) + BN
    w2, b2 = layer(keys[1], C1, C2, True)      # Conv1d(64, 128, 1) + BN
    w3, b3 = layer(keys[2], C2, C3, True)      # Conv1d(128, 1024, 1) + BN
    w4, b4 = layer(keys[3], C3, H1, True)      # Linear(1024, 512) + BN
    w5, b5 = layer(keys[4], H1, H2, True)      # Linear(512, 256) + BN
    w6, b6 = layer(keys[5], H2, KK, False)     # Linear(256, 9)

    # zero-pad first-layer weight rows 3 -> KPAD (keeps padded channels exact)
    w1 = jnp.concatenate([w1, jnp.zeros((KPAD - K, C1), jnp.float32)], axis=0)

    ident = jnp.eye(K, dtype=jnp.float32).reshape(1, KK)
    return dict(w1=w1, b1=b1, w2=w2, b2=b2, w3=w3, b3=b3,
                w4=w4, b4=b4, w5=w5, b5=b5, w6=w6, b6=b6, ident=ident)


# ---------------------------------------------------------------------------
# Full forward: (B, K, N) NCW input -> (B, K, K) transform matrices.
# ---------------------------------------------------------------------------
@functools.partial(jax.jit, static_argnames=("tn",))
def transformer_forward(x_bkn, params, *, tn=1024):
    B, k, N = x_bkn.shape
    assert k == K
    # glue: NCW -> (B, N, KPAD) f32 with zero-padded channels
    x_bnk = jnp.transpose(x_bkn, (0, 2, 1)).astype(jnp.float32)
    x_bnk = jnp.pad(x_bnk, ((0, 0), (0, 0), (0, KPAD - K)))
    pad_n = (-N) % tn
    if pad_n:
        # ragged N: replicate the last point -- duplicates never change the max
        x_bnk = jnp.pad(x_bnk, ((0, 0), (0, pad_n), (0, 0)), mode="edge")

    # pack all biases into one lane-aligned f32 buffer; b6 gets eye(K) added
    biases = jnp.zeros((1, BIAS_TOTAL), jnp.float32)
    biases = biases.at[:, B1_OFF:B1_OFF + C1].set(params["b1"])
    biases = biases.at[:, B2_OFF:B2_OFF + C2].set(params["b2"])
    biases = biases.at[:, B3_OFF:B3_OFF + C3].set(params["b3"])
    biases = biases.at[:, B4_OFF:B4_OFF + H1].set(params["b4"])
    biases = biases.at[:, B5_OFF:B5_OFF + H2].set(params["b5"])
    biases = biases.at[:, B6_OFF:B6_OFF + KK].set(params["b6"] + params["ident"])

    bf16 = lambda a: a.astype(jnp.bfloat16)
    w6_pad = jnp.pad(params["w6"], ((0, 0), (0, OUT_PAD - KK)))  # (H2, 128) f32
    weights = (params["w1"],                    # f32: consumed by the VPU layer
               bf16(params["w2"]), bf16(params["w3"]),
               bf16(params["w4"]), bf16(params["w5"]),
               w6_pad)                          # f32: tiny final dot, accuracy

    out = tnet_forward_pallas(x_bnk, biases, weights, tn=tn)    # (B, 1, OUT_PAD)
    return out[:, 0, :KK].reshape(B, K, K)


# ---------------------------------------------------------------------------
# Pure-JAX references for correctness checking.
# ---------------------------------------------------------------------------
def reference_forward_f32(x_bkn, params):
    x = jnp.transpose(x_bkn, (0, 2, 1)).astype(jnp.float32)
    x = jnp.pad(x, ((0, 0), (0, 0), (0, KPAD - K)))
    h = jnp.maximum(x @ params["w1"] + params["b1"], 0.0)
    h = jnp.maximum(h @ params["w2"] + params["b2"], 0.0)
    h = jnp.maximum(h @ params["w3"] + params["b3"], 0.0)
    g = jnp.max(h, axis=1)
    h = jnp.maximum(g @ params["w4"] + params["b4"], 0.0)
    h = jnp.maximum(h @ params["w5"] + params["b5"], 0.0)
    out = h @ params["w6"] + params["b6"] + params["ident"]
    return out.reshape(-1, K, K)


def reference_forward_bf16(x_bkn, params):
    # mirrors the kernel arithmetic: layer 1 in f32 (VPU), layers 2-5 with
    # bf16 matmul inputs and f32 accumulation, final layer f32.
    bf16 = lambda a: a.astype(jnp.bfloat16)
    x = jnp.transpose(x_bkn, (0, 2, 1)).astype(jnp.float32)
    x = jnp.pad(x, ((0, 0), (0, 0), (0, KPAD - K)))
    h = jnp.maximum(x @ params["w1"] + params["b1"], 0.0).astype(jnp.bfloat16)
    h = jnp.dot(h, bf16(params["w2"]), preferred_element_type=jnp.float32)
    h = jnp.maximum(h + params["b2"], 0.0).astype(jnp.bfloat16)
    h = jnp.dot(h, bf16(params["w3"]), preferred_element_type=jnp.float32)
    g = jnp.maximum(jnp.max(h, axis=1) + params["b3"], 0.0).astype(jnp.bfloat16)
    h = jnp.dot(g, bf16(params["w4"]), preferred_element_type=jnp.float32)
    h = jnp.maximum(h + params["b4"], 0.0).astype(jnp.bfloat16)
    h = jnp.dot(h, bf16(params["w5"]), preferred_element_type=jnp.float32)
    h = jnp.maximum(h + params["b5"], 0.0)
    out = (jnp.dot(h, params["w6"], preferred_element_type=jnp.float32)
           + params["b6"] + params["ident"])
    return out.reshape(-1, K, K)


if __name__ == "__main__":
    key = jax.random.PRNGKey(0)
    k_param, k_x = jax.random.split(key)

    B, N = 2, 512  # small demo shapes (module default is num_points=12000)
    params = make_params(k_param)
    x = jax.random.normal(k_x, (B, K, N), jnp.float32)  # PyTorch NCW input

    out = transformer_forward(x, params)
    out = jax.block_until_ready(out)
    assert out.shape == (B, K, K)

    ref_bf16 = reference_forward_bf16(x, params)   # same mixed-precision math as the kernel
    ref_f32 = reference_forward_f32(x, params)     # full-precision semantics
    assert jnp.allclose(out, ref_bf16, atol=5e-3, rtol=5e-3), "mismatch vs bf16 reference"
    assert jnp.allclose(out, ref_f32, atol=5e-2, rtol=5e-2), "mismatch vs f32 reference"

    # NOTE: BatchNorm is implemented in eval mode (folded running stats);
    # TODO(synk): train-mode batch statistics are not reproduced.
    print("KERNEL_OK")
</pallas_src>

<mosaic_0001>
module attributes {stable_mosaic.version = 11 : i64} {
  func.func @tnet_kernel(%arg0: i32, %arg1: i32, %arg2: memref<1x1024x8xf32, #tpu.memory_space<vmem>>, %arg3: memref<1x2176xf32, #tpu.memory_space<vmem>>, %arg4: memref<8x64xf32, #tpu.memory_space<vmem>>, %arg5: memref<64x128xbf16, #tpu.memory_space<vmem>>, %arg6: memref<128x1024xbf16, #tpu.memory_space<vmem>>, %arg7: memref<1024x512xbf16, #tpu.memory_space<vmem>>, %arg8: memref<512x256xbf16, #tpu.memory_space<vmem>>, %arg9: memref<256x128xf32, #tpu.memory_space<vmem>>, %arg10: memref<1x1x128xf32, #tpu.memory_space<vmem>>, %arg11: memref<1x1024xf32, #tpu.memory_space<vmem>>) attributes {dimension_semantics = [#tpu.dimension_semantics<parallel>, #tpu.dimension_semantics<arbitrary>], iteration_bounds = array<i64: 2, 1>, scalar_prefetch = 0 : i64, scratch_operands = 1 : i64, tpu.core_type = #tpu.core_type<tc>, window_params = [{transform_indices = @transform_0, window_bounds = array<i64: 1, 1024, 8>}, {pipeline_mode = #tpu.pipeline_mode<synchronous>, transform_indices = @transform_1, window_bounds = array<i64: 1, 2176>}, {pipeline_mode = #tpu.pipeline_mode<synchronous>, transform_indices = @transform_2, window_bounds = array<i64: 8, 64>}, {pipeline_mode = #tpu.pipeline_mode<synchronous>, transform_indices = @transform_3, window_bounds = array<i64: 64, 128>}, {pipeline_mode = #tpu.pipeline_mode<synchronous>, transform_indices = @transform_4, window_bounds = array<i64: 128, 1024>}, {pipeline_mode = #tpu.pipeline_mode<synchronous>, transform_indices = @transform_5, window_bounds = array<i64: 1024, 512>}, {pipeline_mode = #tpu.pipeline_mode<synchronous>, transform_indices = @transform_6, window_bounds = array<i64: 512, 256>}, {pipeline_mode = #tpu.pipeline_mode<synchronous>, transform_indices = @transform_7, window_bounds = array<i64: 256, 128>}, {transform_indices = @transform_8, window_bounds = array<i64: 1, 1, 128>}]} {
    %c0 = arith.constant 0 : index
    %c0_0 = arith.constant 0 : index
    %c0_1 = arith.constant 0 : index
    %0 = vector.load %arg2[%c0, %c0_0, %c0_1] : memref<1x1024x8xf32, #tpu.memory_space<vmem>>, vector<1x1024x8xf32>
    %1 = vector.shape_cast %0 : vector<1x1024x8xf32> to vector<1024x8xf32>
    %c0_2 = arith.constant 0 : index
    %c0_3 = arith.constant 0 : index
    %2 = vector.load %arg4[%c0_2, %c0_3] : memref<8x64xf32, #tpu.memory_space<vmem>>, vector<8x64xf32>
    %3 = vector.extract_strided_slice %1 {offsets = [0, 0], sizes = [1024, 1], strides = [1, 1]} : vector<1024x8xf32> to vector<1024x1xf32>
    %4 = vector.extract_strided_slice %2 {offsets = [0, 0], sizes = [1, 64], strides = [1, 1]} : vector<8x64xf32> to vector<1x64xf32>
    %5 = vector.broadcast %3 : vector<1024x1xf32> to vector<1024x64xf32>
    %6 = vector.broadcast %4 : vector<1x64xf32> to vector<1024x64xf32>
    %7 = arith.mulf %5, %6 : vector<1024x64xf32>
    %8 = vector.extract_strided_slice %1 {offsets = [0, 1], sizes = [1024, 1], strides = [1, 1]} : vector<1024x8xf32> to vector<1024x1xf32>
    %9 = vector.extract_strided_slice %2 {offsets = [1, 0], sizes = [1, 64], strides = [1, 1]} : vector<8x64xf32> to vector<1x64xf32>
    %10 = vector.broadcast %8 : vector<1024x1xf32> to vector<1024x64xf32>
    %11 = vector.broadcast %9 : vector<1x64xf32> to vector<1024x64xf32>
    %12 = arith.mulf %10, %11 : vector<1024x64xf32>
    %13 = arith.addf %7, %12 : vector<1024x64xf32>
    %14 = vector.extract_strided_slice %1 {offsets = [0, 2], sizes = [1024, 1], strides = [1, 1]} : vector<1024x8xf32> to vector<1024x1xf32>
    %15 = vector.extract_strided_slice %2 {offsets = [2, 0], sizes = [1, 64], strides = [1, 1]} : vector<8x64xf32> to vector<1x64xf32>
    %16 = vector.broadcast %14 : vector<1024x1xf32> to vector<1024x64xf32>
    %17 = vector.broadcast %15 : vector<1x64xf32> to vector<1024x64xf32>
    %18 = arith.mulf %16, %17 : vector<1024x64xf32>
    %19 = arith.addf %13, %18 : vector<1024x64xf32>
    %c0_4 = arith.constant 0 : index
    %c0_5 = arith.constant 0 : index
    %20 = vector.load %arg3[%c0_4, %c0_5] : memref<1x2176xf32, #tpu.memory_space<vmem>>, vector<1x64xf32>
    %21 = vector.broadcast %20 : vector<1x64xf32> to vector<1024x64xf32>
    %22 = arith.addf %19, %21 : vector<1024x64xf32>
    %cst = arith.constant 0.000000e+00 : f32
    %23 = vector.broadcast %cst : f32 to vector<1024x64xf32>
    %24 = arith.maximumf %22, %23 : vector<1024x64xf32>
    %25 = arith.truncf %24 : vector<1024x64xf32> to vector<1024x64xbf16>
    %c0_6 = arith.constant 0 : index
    %c0_7 = arith.constant 0 : index
    %26 = vector.load %arg5[%c0_6, %c0_7] : memref<64x128xbf16, #tpu.memory_space<vmem>>, vector<64x128xbf16>
    %cst_8 = arith.constant dense<0.000000e+00> : vector<1024x128xf32>
    %27 = tpu.matmul %25, %26, %cst_8 {dimension_numbers = #tpu.dot_dimension_numbers<[1], [0], [0], [1], [0, 0, 1, 1], [], []>} : vector<1024x64xbf16>, vector<64x128xbf16>, vector<1024x128xf32> -> vector<1024x128xf32>
    %c0_9 = arith.constant 0 : index
    %c128 = arith.constant 128 : index
    %28 = vector.load %arg3[%c0_9, %c128] : memref<1x2176xf32, #tpu.memory_space<vmem>>, vector<1x128xf32>
    %29 = vector.broadcast %28 : vector<1x128xf32> to vector<1024x128xf32>
    %30 = arith.addf %27, %29 : vector<1024x128xf32>
    %cst_10 = arith.constant 0.000000e+00 : f32
    %31 = vector.broadcast %cst_10 : f32 to vector<1024x128xf32>
    %32 = arith.maximumf %30, %31 : vector<1024x128xf32>
    %33 = arith.truncf %32 : vector<1024x128xf32> to vector<1024x128xbf16>
    %c0_11 = arith.constant 0 : index
    %c0_12 = arith.constant 0 : index
    %34 = vector.load %arg6[%c0_11, %c0_12] : memref<128x1024xbf16, #tpu.memory_space<vmem>>, vector<128x1024xbf16>
    %cst_13 = arith.constant dense<0.000000e+00> : vector<1024x1024xf32>
    %35 = tpu.matmul %33, %34, %cst_13 {dimension_numbers = #tpu.dot_dimension_numbers<[1], [0], [0], [1], [0, 0, 1, 1], [], []>} : vector<1024x128xbf16>, vector<128x1024xbf16>, vector<1024x1024xf32> -> vector<1024x1024xf32>
    %cst_14 = arith.constant dense<0xFF800000> : vector<1024xf32>
    %36 = vector.multi_reduction <maximumf>, %35, %cst_14 [0] : vector<1024x1024xf32> to vector<1024xf32>
    %37 = vector.shape_cast %36 : vector<1024xf32> to vector<1x1024xf32>
    %c0_i32 = arith.constant 0 : i32
    %38 = arith.cmpi eq, %arg1, %c0_i32 : i32
    %39 = arith.extui %38 : i1 to i32
    %c0_i32_15 = arith.constant 0 : i32
    %40 = arith.cmpi ne, %39, %c0_i32_15 : i32
    scf.if %40 {
      %cst_22 = arith.constant 0xFF800000 : f32
      %47 = vector.broadcast %cst_22 : f32 to vector<1x1024xf32>
      %c0_23 = arith.constant 0 : index
      %c0_24 = arith.constant 0 : index
      %48 = vector.load %arg11[%c0_23, %c0_24] : memref<1x1024xf32, #tpu.memory_space<vmem>>, vector<1x1024xf32>
      tpu.vector_store %arg11[%c0_23, %c0_24], %47 {strides = array<i32>} : memref<1x1024xf32, #tpu.memory_space<vmem>>, vector<1x1024xf32>,
    } else {
    }
    %c0_16 = arith.constant 0 : index
    %c0_17 = arith.constant 0 : index
    %41 = vector.load %arg11[%c0_16, %c0_17] : memref<1x1024xf32, #tpu.memory_space<vmem>>, vector<1x1024xf32>
    %42 = arith.maximumf %41, %37 : vector<1x1024xf32>
    %c0_18 = arith.constant 0 : index
    %c0_19 = arith.constant 0 : index
    %43 = vector.load %arg11[%c0_18, %c0_19] : memref<1x1024xf32, #tpu.memory_space<vmem>>, vector<1x1024xf32>
    tpu.vector_store %arg11[%c0_18, %c0_19], %42 {strides = array<i32>} : memref<1x1024xf32, #tpu.memory_space<vmem>>, vector<1x1024xf32>,
    %c0_i32_20 = arith.constant 0 : i32
    %44 = arith.cmpi eq, %arg1, %c0_i32_20 : i32
    %45 = arith.extui %44 : i1 to i32
    %c0_i32_21 = arith.constant 0 : i32
    %46 = arith.cmpi ne, %45, %c0_i32_21 : i32
    scf.if %46 {
      %c0_22 = arith.constant 0 : index
      %c0_23 = arith.constant 0 : index
      %47 = vector.load %arg11[%c0_22, %c0_23] : memref<1x1024xf32, #tpu.memory_space<vmem>>, vector<1x1024xf32>
      %c0_24 = arith.constant 0 : index
      %c256 = arith.constant 256 : index
      %48 = vector.load %arg3[%c0_24, %c256] : memref<1x2176xf32, #tpu.memory_space<vmem>>, vector<1x1024xf32>
      %49 = arith.addf %47, %48 : vector<1x1024xf32>
      %cst_25 = arith.constant 0.000000e+00 : f32
      %50 = vector.broadcast %cst_25 : f32 to vector<1x1024xf32>
      %51 = arith.maximumf %49, %50 : vector<1x1024xf32>
      %52 = arith.truncf %51 : vector<1x1024xf32> to vector<1x1024xbf16>
      %c0_26 = arith.constant 0 : index
      %c0_27 = arith.constant 0 : index
      %53 = vector.load %arg7[%c0_26, %c0_27] : memref<1024x512xbf16, #tpu.memory_space<vmem>>, vector<1024x512xbf16>
      %cst_28 = arith.constant dense<0.000000e+00> : vector<1x512xf32>
      %54 = tpu.matmul %52, %53, %cst_28 {dimension_numbers = #tpu.dot_dimension_numbers<[1], [0], [0], [1], [0, 0, 1, 1], [], []>} : vector<1x1024xbf16>, vector<1024x512xbf16>, vector<1x512xf32> -> vector<1x512xf32>
      %c0_29 = arith.constant 0 : index
      %c1280 = arith.constant 1280 : index
      %55 = vector.load %arg3[%c0_29, %c1280] : memref<1x2176xf32, #tpu.memory_space<vmem>>, vector<1x512xf32>
      %56 = arith.addf %54, %55 : vector<1x512xf32>
      %cst_30 = arith.constant 0.000000e+00 : f32
      %57 = vector.broadcast %cst_30 : f32 to vector<1x512xf32>
      %58 = arith.maximumf %56, %57 : vector<1x512xf32>
      %59 = arith.truncf %58 : vector<1x512xf32> to vector<1x512xbf16>
      %c0_31 = arith.constant 0 : index
      %c0_32 = arith.constant 0 : index
      %60 = vector.load %arg8[%c0_31, %c0_32] : memref<512x256xbf16, #tpu.memory_space<vmem>>, vector<512x256xbf16>
      %cst_33 = arith.constant dense<0.000000e+00> : vector<1x256xf32>
      %61 = tpu.matmul %59, %60, %cst_33 {dimension_numbers = #tpu.dot_dimension_numbers<[1], [0], [0], [1], [0, 0, 1, 1], [], []>} : vector<1x512xbf16>, vector<512x256xbf16>, vector<1x256xf32> -> vector<1x256xf32>
      %c0_34 = arith.constant 0 : index
      %c1792 = arith.constant 1792 : index
      %62 = vector.load %arg3[%c0_34, %c1792] : memref<1x2176xf32, #tpu.memory_space<vmem>>, vector<1x256xf32>
      %63 = arith.addf %61, %62 : vector<1x256xf32>
      %cst_35 = arith.constant 0.000000e+00 : f32
      %64 = vector.broadcast %cst_35 : f32 to vector<1x256xf32>
      %65 = arith.maximumf %63, %64 : vector<1x256xf32>
      %c0_36 = arith.constant 0 : index
      %c0_37 = arith.constant 0 : index
      %66 = vector.load %arg9[%c0_36, %c0_37] : memref<256x128xf32, #tpu.memory_space<vmem>>, vector<256x128xf32>
      %cst_38 = arith.constant dense<0.000000e+00> : vector<1x128xf32>
      %67 = tpu.matmul %65, %66, %cst_38 {dimension_numbers = #tpu.dot_dimension_numbers<[1], [0], [0], [1], [0, 0, 1, 1], [], []>} : vector<1x256xf32>, vector<256x128xf32>, vector<1x128xf32> -> vector<1x128xf32>
      %c0_39 = arith.constant 0 : index
      %c2048 = arith.constant 2048 : index
      %68 = vector.load %arg3[%c0_39, %c2048] : memref<1x2176xf32, #tpu.memory_space<vmem>>, vector<1x128xf32>
      %69 = arith.addf %67, %68 : vector<1x128xf32>
      %c0_40 = arith.constant 0 : index
      %c0_41 = arith.constant 0 : index
      %c0_42 = arith.constant 0 : index
      %70 = vector.load %arg10[%c0_40, %c0_41, %c0_42] : memref<1x1x128xf32, #tpu.memory_space<vmem>>, vector<1x1x128xf32>
      %71 = vector.shape_cast %70 : vector<1x1x128xf32> to vector<1x128xf32>
      %72 = vector.shape_cast %69 : vector<1x128xf32> to vector<1x1x128xf32>
      tpu.vector_store %arg10[%c0_40, %c0_41, %c0_42], %72 {strides = array<i32>} : memref<1x1x128xf32, #tpu.memory_space<vmem>>, vector<1x1x128xf32>,
    } else {
    }
    return
  }
  func.func @transform_0(%arg0: i32, %arg1: i32) -> (i32, i32, i32) {
    %c0_i32 = arith.constant 0 : i32
    %c0_i32_0 = arith.constant 0 : i32
    return %arg0, %arg1, %c0_i32 : i32, i32, i32
  }
  func.func @transform_1(%arg0: i32, %arg1: i32) -> (i32, i32) {
    %c0_i32 = arith.constant 0 : i32
    %c0_i32_0 = arith.constant 0 : i32
    %c0_i32_1 = arith.constant 0 : i32
    return %c0_i32, %c0_i32_0 : i32, i32
  }
  func.func @transform_2(%arg0: i32, %arg1: i32) -> (i32, i32) {
    %c0_i32 = arith.constant 0 : i32
    %c0_i32_0 = arith.constant 0 : i32
    %c0_i32_1 = arith.constant 0 : i32
    return %c0_i32, %c0_i32_0 : i32, i32
  }
  func.func @transform_3(%arg0: i32, %arg1: i32) -> (i32, i32) {
    %c0_i32 = arith.constant 0 : i32
    %c0_i32_0 = arith.constant 0 : i32
    %c0_i32_1 = arith.constant 0 : i32
    return %c0_i32, %c0_i32_0 : i32, i32
  }
  func.func @transform_4(%arg0: i32, %arg1: i32) -> (i32, i32) {
    %c0_i32 = arith.constant 0 : i32
    %c0_i32_0 = arith.constant 0 : i32
    %c0_i32_1 = arith.constant 0 : i32
    return %c0_i32, %c0_i32_0 : i32, i32
  }
  func.func @transform_5(%arg0: i32, %arg1: i32) -> (i32, i32) {
    %c0_i32 = arith.constant 0 : i32
    %c0_i32_0 = arith.constant 0 : i32
    %c0_i32_1 = arith.constant 0 : i32
    return %c0_i32, %c0_i32_0 : i32, i32
  }
  func.func @transform_6(%arg0: i32, %arg1: i32) -> (i32, i32) {
    %c0_i32 = arith.constant 0 : i32
    %c0_i32_0 = arith.constant 0 : i32
    %c0_i32_1 = arith.constant 0 : i32
    return %c0_i32, %c0_i32_0 : i32, i32
  }
  func.func @transform_7(%arg0: i32, %arg1: i32) -> (i32, i32) {
    %c0_i32 = arith.constant 0 : i32
    %c0_i32_0 = arith.constant 0 : i32
    %c0_i32_1 = arith.constant 0 : i32
    return %c0_i32, %c0_i32_0 : i32, i32
  }
  func.func @transform_8(%arg0: i32, %arg1: i32) -> (i32, i32, i32) {
    %c0_i32 = arith.constant 0 : i32
    %c0_i32_0 = arith.constant 0 : i32
    %c0_i32_1 = arith.constant 0 : i32
    return %arg0, %c0_i32, %c0_i32_0 : i32, i32, i32
  }
}

</mosaic_0001>

<llo_original>
// kernel: squeeze.1
$region0: #{squeeze.1}
  %s0 = inlined_call_operand.vmem [shape: f32[2,9], index: 0, kind: input, shape index: {}]
  %s1 = inlined_call_operand.vmem [shape: f32[2,3,3], index: 1, kind: output, shape index: {}]
  $region1: #{squeeze.1} parent=0
    #allocation0 [shape = 'u8[8192]{0}', space=vmem, size = 0x2000, scoped, tag = 'scoped mem for output reshape']
    #allocation1 [shape = 'u8[4096]{0}', space=vmem, size = 0x1000, scoped, tag = 'scoped mem for input reshape']
    %s3 = sshll.u32 1, 2
    %s4 = ssub.s32 %s3, 1
    %v5 = vld [vmem:[%s0] sm:%s4]
    %6 = vst [vmem:[#allocation1] sm:%s4] %v5
    %v7 = vld [vmem:[#allocation1] sm:$0x3]
    %vm8 = vcmask 23552
    %9 = vst.msk [vmem:[#allocation0] ss:$8 sm:$0x3] %vm8, %v7
    %v10 = vld [vmem:[#allocation1] sm:$0x3]
    %11 = vrot.lane.b32.xlu0 %v10, 125
    %v12 = vpop.permute.xlu0 %11
    %vm13 = vcmask 23552
    %s14 = scalar_lea.vmem [#allocation0], 1
    %15 = vst.msk [vmem:[%s14] ss:$8 sm:$0x3] %vm13, %v12
    %v16 = vld [vmem:[#allocation1] sm:$0x3]
    %17 = vrot.lane.b32.xlu0 %v16, 122
    %v18 = vpop.permute.xlu0 %17
    %vm19 = vcmask 23552
    %s20 = scalar_lea.vmem [#allocation0], 2
    %21 = vst.msk [vmem:[%s20] ss:$8 sm:$0x3] %vm19, %v18
    %s23 = sshll.u32 1, 4
    %s24 = ssub.s32 %s23, 1
    %v26 = vld [vmem:[#allocation0] sm:%s24]
    %s27 = sshll.u32 1, 4
    %s28 = ssub.s32 %s27, 1
    %29 = vst [vmem:[%s1] sm:%s28] %v26
    %s30 = scalar_lea.vmem [#allocation0], 8
    %v31 = vld [vmem:[%s30] sm:%s24]
    %s32 = sshll.u32 1, 4
    %s33 = ssub.s32 %s32, 1
    %s34 = scalar_lea.vmem %s1, 4
    %35 = vst [vmem:[%s34] sm:%s33] %v31

// kernel: transformer_forward.1
$region0: #{transformer_forward.1}
  #allocation0 [shape = 'u32[]', space=smem, size = 0x4, offset = 0x4, fixed_abs, tag = 'smem constant byte address 0x4 - core index']
  #allocation1 [shape = 'u32[144,128]{1,0:T(1,128)}', space=vmem, size = 0x12000, scoped, tag = 'internal scratch']
  #allocation2 [shape = 'f32[1,1024]{1,0:T(1,128)}', space=vmem, size = 0x1000, scoped, tag = 'scratch operand']
  %s0 = inlined_call_operand.vmem [shape: f32[2,1024,8], index: 0, kind: input, shape index: {}]
  %s1 = inlined_call_operand.vmem [shape: f32[1,2176], index: 1, kind: input, shape index: {}]
  %s2 = inlined_call_operand.vmem [shape: f32[8,64], index: 2, kind: input, shape index: {}]
  %s3 = inlined_call_operand.vmem [shape: bf16[64,128], index: 3, kind: input, shape index: {}]
  %s4 = inlined_call_operand.vmem [shape: bf16[128,1024], index: 4, kind: input, shape index: {}]
  %s5 = inlined_call_operand.vmem [shape: bf16[1024,512], index: 5, kind: input, shape index: {}]
  %s6 = inlined_call_operand.vmem [shape: bf16[512,256], index: 6, kind: input, shape index: {}]
  %s7 = inlined_call_operand.vmem [shape: f32[256,128], index: 7, kind: input, shape index: {}]
  %s8 = inlined_call_operand.vmem [shape: f32[2,1,128], index: 8, kind: output, shape index: {}]
  %s9 = sld [smem:[#allocation0]]
  $region73: #{transformer_forward.1} parent=0
    _
  %s11 = ssub.s32 1, %s9
  %s12 = scalar_select 0, %s11, %s9
  loop: start=0, step=1, limit=4
  $region2: #{transformer_forward.1} parent=0 // loop_pre_header
    _
  $region3: #{transformer_forward.1} parent=0 // loop_header
    %s14 = sphi 0, %s18
    %p15 = scmp.ge.s32.totalorder %s14, 4
    %s21 = sphi 0, %s33
    %s22 = sphi 0, %s29
    %s23 = sphi 0, %s21
    %s24 = sphi 0, %s22
    %s25 = sphi 0, %s23
    %s26 = sphi 0, %s24
    %s38 = sphi 0, %s40
    %s41 = sphi 0, %s38
    %s42 = sphi 0, %s41
    %s58 = sphi 0, %s42
    %s62 = sphi 0, %s62
    %s64 = sphi 0, %s62
    %s65 = sphi 0, %s64
    %s79 = sphi 0, %s65
    %s83 = sphi 0, %s83
    %s85 = sphi 0, %s83
    %s86 = sphi 0, %s85
    %s100 = sphi 0, %s86
    %s104 = sphi 0, %s104
    %s106 = sphi 0, %s104
    %s107 = sphi 0, %s106
    %s121 = sphi 0, %s107
    %s125 = sphi 0, %s125
    %s127 = sphi 0, %s125
    %s128 = sphi 0, %s127
    %s142 = sphi 0, %s128
    %s146 = sphi 0, %s146
    %s148 = sphi 0, %s146
    %s149 = sphi 0, %s148
    %s163 = sphi 0, %s149
    %s167 = sphi 0, %s167
    %s169 = sphi 0, %s167
    %s170 = sphi 0, %s169
    %s184 = sphi 0, %s170
    %s188 = sphi 0, %s188
    %s190 = sphi 0, %s188
    %s191 = sphi 0, %s190
    %s205 = sphi 0, %s191
    %s211 = sphi 0, %s213
    %s214 = sphi 0, %s211
    %s215 = sphi 0, %s214
    %s231 = sphi 0, %s215
  $region4: #{transformer_forward.1} parent=0 // loop_header_branch
    %17 = sbr.rel (%p15) target = $region8
  $region5: #{transformer_forward.1} parent=0 // loop_body
    %s19 = ssub.s32 %s14, 1
    %s20 = ssub.s32 %s14, 2
    %s27 = sadd.s32 1, %s22
    %p28 = scmp.ge.s32.totalorder %s27, 1
    %s29 = scalar_select %p28, 0, %s27
    %s30 = sadd.s32 1, %s21
    %s31 = scalar_select %p28, %s30, %s21
    %p32 = scmp.ge.s32.totalorder %s31, 2
    %s33 = scalar_select %p32, 0, %s31
    %s34 = ssub.s32 %s21, %s33
    %s35 = ssub.s32 %s22, %s29
    %s36 = sor.u32 %s34, %s35
    %p37 = scmp.eq.s32.totalorder %s36, 0
    %s39 = sadd.s32 %s38, 1
    %s40 = scalar_select %p37, %s38, %s39
    %p43 = pneg %p37
    %p44 = scmp.eq.s32.totalorder %s14, 1
    %p45 = por %p43, %p44
    %p46 = scmp.ne.s32.totalorder %s38, %s41
    %p47 = scmp.eq.s32.totalorder %s14, 0
    %p48 = por %p46, %p47
    %p49 = scmp.ne.s32.totalorder %s38, %s41
    %p50 = scmp.eq.s32.totalorder %s19, 1
    %p51 = por %p49, %p50
    %p52 = scmp.ne.s32.totalorder %s41, %s42
    %p53 = scmp.eq.s32.totalorder %s19, 0
    %p54 = por %p52, %p53
    %p55 = scmp.ne.s32.totalorder %s41, %s42
    %p56 = scmp.eq.s32.totalorder %s20, 1
    %p57 = por %p55, %p56
    %p59 = scmp.ne.s32.totalorder %s42, %s58
    %p60 = scmp.eq.s32.totalorder %s20, 0
    %p61 = por %p59, %p60
    %s63 = sadd.s32 %s62, 1
    %p66 = scmp.eq.s32.totalorder %s14, 1
    %p67 = scmp.ne.s32.totalorder %s62, %s64
    %p68 = scmp.eq.s32.totalorder %s14, 0
    %p69 = por %p67, %p68
    %p70 = scmp.ne.s32.totalorder %s62, %s64
    %p71 = scmp.eq.s32.totalorder %s19, 1
    %p72 = por %p70, %p71
    %p73 = scmp.ne.s32.totalorder %s64, %s65
    %p74 = scmp.eq.s32.totalorder %s19, 0
    %p75 = por %p73, %p74
    %p76 = scmp.ne.s32.totalorder %s64, %s65
    %p77 = scmp.eq.s32.totalorder %s20, 1
    %p78 = por %p76, %p77
    %p80 = scmp.ne.s32.totalorder %s65, %s79
    %p81 = scmp.eq.s32.totalorder %s20, 0
    %p82 = por %p80, %p81
    %s84 = sadd.s32 %s83, 1
    %p87 = scmp.eq.s32.totalorder %s14, 1
    %p88 = scmp.ne.s32.totalorder %s83, %s85
    %p89 = scmp.eq.s32.totalorder %s14, 0
    %p90 = por %p88, %p89
    %p91 = scmp.ne.s32.totalorder %s83, %s85
    %p92 = scmp.eq.s32.totalorder %s19, 1
    %p93 = por %p91, %p92
    %p94 = scmp.ne.s32.totalorder %s85, %s86
    %p95 = scmp.eq.s32.totalorder %s19, 0
    %p96 = por %p94, %p95
    %p97 = scmp.ne.s32.totalorder %s85, %s86
    %p98 = scmp.eq.s32.totalorder %s20, 1
    %p99 = por %p97, %p98
    %p101 = scmp.ne.s32.totalorder %s86, %s100
    %p102 = scmp.eq.s32.totalorder %s20, 0
    %p103 = por %p101, %p102
    %s105 = sadd.s32 %s104, 1
    %p108 = scmp.eq.s32.totalorder %s14, 1
    %p109 = scmp.ne.s32.totalorder %s104, %s106
    %p110 = scmp.eq.s32.totalorder %s14, 0
    %p111 = por %p109, %p110
    %p112 = scmp.ne.s32.totalorder %s104, %s106
    %p113 = scmp.eq.s32.totalorder %s19, 1
    %p114 = por %p112, %p113
    %p115 = scmp.ne.s32.totalorder %s106, %s107
    %p116 = scmp.eq.s32.totalorder %s19, 0
    %p117 = por %p115, %p116
    %p118 = scmp.ne.s32.totalorder %s106, %s107
    %p119 = scmp.eq.s32.totalorder %s20, 1
    %p120 = por %p118, %p119
    %p122 = scmp.ne.s32.totalorder %s107, %s121
    %p123 = scmp.eq.s32.totalorder %s20, 0
    %p124 = por %p122, %p123
    %s126 = sadd.s32 %s125, 1
    %p129 = scmp.eq.s32.totalorder %s14, 1
    %p130 = scmp.ne.s32.totalorder %s125, %s127
    %p131 = scmp.eq.s32.totalorder %s14, 0
    %p132 = por %p130, %p131
    %p133 = scmp.ne.s32.totalorder %s125, %s127
    %p134 = scmp.eq.s32.totalorder %s19, 1
    %p135 = por %p133, %p134
    %p136 = scmp.ne.s32.totalorder %s127, %s128
    %p137 = scmp.eq.s32.totalorder %s19, 0
    %p138 = por %p136, %p137
    %p139 = scmp.ne.s32.totalorder %s127, %s128
    %p140 = scmp.eq.s32.totalorder %s20, 1
    %p141 = por %p139, %p140
    %p143 = scmp.ne.s32.totalorder %s128, %s142
    %p144 = scmp.eq.s32.totalorder %s20, 0
    %p145 = por %p143, %p144
    %s147 = sadd.s32 %s146, 1
    %p150 = scmp.eq.s32.totalorder %s14, 1
    %p151 = scmp.ne.s32.totalorder %s146, %s148
    %p152 = scmp.eq.s32.totalorder %s14, 0
    %p153 = por %p151, %p152
    %p154 = scmp.ne.s32.totalorder %s146, %s148
    %p155 = scmp.eq.s32.totalorder %s19, 1
    %p156 = por %p154, %p155
    %p157 = scmp.ne.s32.totalorder %s148, %s149
    %p158 = scmp.eq.s32.totalorder %s19, 0
    %p159 = por %p157, %p158
    %p160 = scmp.ne.s32.totalorder %s148, %s149
    %p161 = scmp.eq.s32.totalorder %s20, 1
    %p162 = por %p160, %p161
    %p164 = scmp.ne.s32.totalorder %s149, %s163
    %p165 = scmp.eq.s32.totalorder %s20, 0
    %p166 = por %p164, %p165
    %s168 = sadd.s32 %s167, 1
    %p171 = scmp.eq.s32.totalorder %s14, 1
    %p172 = scmp.ne.s32.totalorder %s167, %s169
    %p173 = scmp.eq.s32.totalorder %s14, 0
    %p174 = por %p172, %p173
    %p175 = scmp.ne.s32.totalorder %s167, %s169
    %p176 = scmp.eq.s32.totalorder %s19, 1
    %p177 = por %p175, %p176
    %p178 = scmp.ne.s32.totalorder %s169, %s170
    %p179 = scmp.eq.s32.totalorder %s19, 0
    %p180 = por %p178, %p179
    %p181 = scmp.ne.s32.totalorder %s169, %s170
    %p182 = scmp.eq.s32.totalorder %s20, 1
    %p183 = por %p181, %p182
    %p185 = scmp.ne.s32.totalorder %s170, %s184
    %p186 = scmp.eq.s32.totalorder %s20, 0
    %p187 = por %p185, %p186
    %s189 = sadd.s32 %s188, 1
    %p192 = scmp.eq.s32.totalorder %s14, 1
    %p193 = scmp.ne.s32.totalorder %s188, %s190
    %p194 = scmp.eq.s32.totalorder %s14, 0
    %p195 = por %p193, %p194
    %p196 = scmp.ne.s32.totalorder %s188, %s190
    %p197 = scmp.eq.s32.totalorder %s19, 1
    %p198 = por %p196, %p197
    %p199 = scmp.ne.s32.totalorder %s190, %s191
    %p200 = scmp.eq.s32.totalorder %s19, 0
    %p201 = por %p199, %p200
    %p202 = scmp.ne.s32.totalorder %s190, %s191
    %p203 = scmp.eq.s32.totalorder %s20, 1
    %p204 = por %p202, %p203
    %p206 = scmp.ne.s32.totalorder %s191, %s205
    %p207 = scmp.eq.s32.totalorder %s20, 0
    %p208 = por %p206, %p207
    %s209 = ssub.s32 %s21, %s33
    %p210 = scmp.eq.s32.totalorder %s209, 0
    %s212 = sadd.s32 %s211, 1
    %s213 = scalar_select %p210, %s211, %s212
    %p216 = pneg %p210
    %p217 = scmp.eq.s32.totalorder %s14, 1
    %p218 = por %p216, %p217
    %p219 = scmp.ne.s32.totalorder %s211, %s214
    %p220 = scmp.eq.s32.totalorder %s14, 0
    %p221 = por %p219, %p220
    %p222 = scmp.ne.s32.totalorder %s211, %s214
    %p223 = scmp.eq.s32.totalorder %s19, 1
    %p224 = por %p222, %p223
    %p225 = scmp.ne.s32.totalorder %s214, %s215
    %p226 = scmp.eq.s32.totalorder %s19, 0
    %p227 = por %p225, %p226
    %p228 = scmp.ne.s32.totalorder %s214, %s215
    %p229 = scmp.eq.s32.totalorder %s20, 1
    %p230 = por %p228, %p229
    %p232 = scmp.ne.s32.totalorder %s215, %s231
    %p233 = scmp.eq.s32.totalorder %s20, 0
    %p234 = por %p232, %p233
    %p235 = scmp.le.s32.totalorder 1, %s14
    %p236 = scmp.lt.s32.totalorder %s14, 3
    %p237 = pnand %p235, %p236
    %p238 = pneg %p237
    // Predicated region
    $region9: #{transformer_forward.1} parent=5 // pred_check
      _
    $region10: #{transformer_forward.1} parent=5 // pred_check_branch
      %240 = sbr.rel (%p237) target = $region12
    $region11: #{transformer_forward.1} parent=5 // pred_region
      %s241 = ssub.s32 %s14, 1
      // Predicated region
      $region13: #{transformer_forward.1} parent=11 // pred_check
        %p242 = pneg %p75
      $region14: #{transformer_forward.1} parent=11 // pred_check_branch
        %244 = sbr.rel (%p242) target = $region16
      $region15: #{transformer_forward.1} parent=11 // pred_region
        _
      $region16: #{transformer_forward.1} parent=11 // pred_fallthru
        _
      // Predicated region
      $region17: #{transformer_forward.1} parent=11 // pred_check
        %p245 = pneg %p96
      $region18: #{transformer_forward.1} parent=11 // pred_check_branch
        %247 = sbr.rel (%p245) target = $region20
      $region19: #{transformer_forward.1} parent=11 // pred_region
        _
      $region20: #{transformer_forward.1} parent=11 // pred_fallthru
        _
      // Predicated region
      $region21: #{transformer_forward.1} parent=11 // pred_check
        %p248 = pneg %p117
      $region22: #{transformer_forward.1} parent=11 // pred_check_branch
        %250 = sbr.rel (%p248) target = $region24
      $region23: #{transformer_forward.1} parent=11 // pred_region
        _
      $region24: #{transformer_forward.1} parent=11 // pred_fallthru
        _
      // Predicated region
      $region25: #{transformer_forward.1} parent=11 // pred_check
        %p251 = pneg %p138
      $region26: #{transformer_forward.1} parent=11 // pred_check_branch
        %253 = sbr.rel (%p251) target = $region28
      $region27: #{transformer_forward.1} parent=11 // pred_region
        _
      $region28: #{transformer_forward.1} parent=11 // pred_fallthru
        _
      // Predicated region
      $region29: #{transformer_forward.1} parent=11 // pred_check
        %p254 = pneg %p159
      $region30: #{transformer_forward.1} parent=11 // pred_check_branch
        %256 = sbr.rel (%p254) target = $region32
      $region31: #{transformer_forward.1} parent=11 // pred_region
        _
      $region32: #{transformer_forward.1} parent=11 // pred_fallthru
        _
      // Predicated region
      $region33: #{transformer_forward.1} parent=11 // pred_check
        %p257 = pneg %p180
      $region34: #{transformer_forward.1} parent=11 // pred_check_branch
        %259 = sbr.rel (%p257) target = $region36
      $region35: #{transformer_forward.1} parent=11 // pred_region
        _
      $region36: #{transformer_forward.1} parent=11 // pred_fallthru
        _
      // Predicated region
      $region37: #{transformer_forward.1} parent=11 // pred_check
        %p260 = pneg %p201
      $region38: #{transformer_forward.1} parent=11 // pred_check_branch
        %262 = sbr.rel (%p260) target = $region40
      $region39: #{transformer_forward.1} parent=11 // pred_region
        _
      $region40: #{transformer_forward.1} parent=11 // pred_fallthru
        _
    $region12: #{transformer_forward.1} parent=5 // pred_fallthru
      _
    %p263 = scmp.lt.s32.totalorder %s14, 2
    // Predicated region
    $region41: #{transformer_forward.1} parent=5 // pred_check
      %p264 = pneg %p263
    $region42: #{transformer_forward.1} parent=5 // pred_check_branch
      %266 = sbr.rel (%p264) target = $region44
    $region43: #{transformer_forward.1} parent=5 // pred_region
      // Predicated region
      $region45: #{transformer_forward.1} parent=43 // pred_check
        %p267 = pneg %p48
      $region46: #{transformer_forward.1} parent=43 // pred_check_branch
        %269 = sbr.rel (%p267) target = $region48
      $region47: #{transformer_forward.1} parent=43 // pred_region
        %s270 = smul.u32 128, %s22
        %p271 = scmp.lt.s32.totalorder %s21, 1
        %s272 = scalar_select %p271, %s21, 1
        %p273 = scmp.lt.s32.totalorder %s270, 127
        %s274 = scalar_select %p273, %s270, 127
        %s275 = smul.addr %s272, 128
        %s276 = sadd.s32 %s274, %s275
        %s277 = smul.addr %s276, 8
        %s278 = scalar_lea.vmem %s0, %s277
        %s279 = smul.u32 128, %s22
      $region48: #{transformer_forward.1} parent=43 // pred_fallthru
        _
    $region44: #{transformer_forward.1} parent=5 // pred_fallthru
      _
    %p280 = scmp.le.s32.totalorder 1, %s14
    %p281 = scmp.lt.s32.totalorder %s14, 3
    %p282 = pnand %p280, %p281
    %p283 = pneg %p282
    // Predicated region
    $region49: #{transformer_forward.1} parent=5 // pred_check
      _
    $region50: #{transformer_forward.1} parent=5 // pred_check_branch
      %285 = sbr.rel (%p282) target = $region52
    $region51: #{transformer_forward.1} parent=5 // pred_region
      %s286 = ssub.s32 %s14, 1
      %s287 = smul.u32 128, %s24
      %p288 = scmp.lt.s32.totalorder %s23, 1
      %s289 = scalar_select %p288, %s23, 1
      %p290 = scmp.lt.s32.totalorder %s287, 127
      %s291 = scalar_select %p290, %s287, 127
      %s292 = smul.addr %s289, 128
      %s293 = sadd.s32 %s291, %s292
      %s294 = smul.addr %s293, 8
      %s295 = scalar_lea.vmem %s0, %s294
      %p296 = pneg %p54
      %p297 = pneg %p51
      %p298 = pneg %p75
      %p299 = pneg %p72
      %p300 = pneg %p96
      %p301 = pneg %p93
      %p302 = pneg %p117
      %p303 = pneg %p114
      %p304 = pneg %p138
      %p305 = pneg %p135
      %p306 = pneg %p159
      %p307 = pneg %p156
      %p308 = pneg %p180
      %p309 = pneg %p177
      %p310 = pneg %p201
      %p311 = pneg %p198
      %p312 = pneg %p227
      %p313 = pneg %p224
      %p314 = scmp.lt.s32.totalorder %s23, 1
      %s315 = scalar_select %p314, %s23, 1
      %s316 = scalar_lea.vmem %s8, %s315
      %s317 = smul.u32 128, %s24
      %p318 = scmp.lt.s32.totalorder %s23, 1
      %s319 = scalar_select %p318, %s23, 1
      %p320 = scmp.lt.s32.totalorder %s317, 127
      %s321 = scalar_select %p320, %s317, 127
      %s322 = smul.addr %s319, 128
      %s323 = sadd.s32 %s321, %s322
      %s324 = smul.addr %s323, 8
      %s325 = scalar_lea.vmem %s0, %s324
      %s326 = smul.u32 128, %s24
      %p327 = scmp.lt.s32.totalorder %s23, 1
      %s328 = scalar_select %p327, %s23, 1
      %s329 = scalar_lea.vmem %s8, %s328
      %v331 = vld [vmem:[%s325] sm:$0xff]
      %v332 = vld [vmem:[%s325 + $0x8] sm:$0xff]
      %v333 = vld [vmem:[%s325 + $0x10] sm:$0xff]
      %v334 = vld [vmem:[%s325 + $0x18] sm:$0xff]
      %v335 = vld [vmem:[%s325 + $0x20] sm:$0xff]
      %v336 = vld [vmem:[%s325 + $0x28] sm:$0xff]
      %v337 = vld [vmem:[%s325 + $0x30] sm:$0xff]
      %v338 = vld [vmem:[%s325 + $0x38] sm:$0xff]
      %v339 = vld [vmem:[%s325 + $0x40] sm:$0xff]
      %v340 = vld [vmem:[%s325 + $0x48] sm:$0xff]
      %v341 = vld [vmem:[%s325 + $0x50] sm:$0xff]
      %v342 = vld [vmem:[%s325 + $0x58] sm:$0xff]
      %v343 = vld [vmem:[%s325 + $0x60] sm:$0xff]
      %v344 = vld [vmem:[%s325 + $0x68] sm:$0xff]
      %v345 = vld [vmem:[%s325 + $0x70] sm:$0xff]
      %v346 = vld [vmem:[%s325 + $0x78] sm:$0xff]
      %v347 = vld [vmem:[%s325 + $0x80] sm:$0xff]
      %v348 = vld [vmem:[%s325 + $0x88] sm:$0xff]
      %v349 = vld [vmem:[%s325 + $0x90] sm:$0xff]
      %v350 = vld [vmem:[%s325 + $0x98] sm:$0xff]
      %v351 = vld [vmem:[%s325 + $0xa0] sm:$0xff]
      %v352 = vld [vmem:[%s325 + $0xa8] sm:$0xff]
      %v353 = vld [vmem:[%s325 + $0xb0] sm:$0xff]
      %v354 = vld [vmem:[%s325 + $0xb8] sm:$0xff]
      %v355 = vld [vmem:[%s325 + $0xc0] sm:$0xff]
      %v356 = vld [vmem:[%s325 + $0xc8] sm:$0xff]
      %v357 = vld [vmem:[%s325 + $0xd0] sm:$0xff]
      %v358 = vld [vmem:[%s325 + $0xd8] sm:$0xff]
      %v359 = vld [vmem:[%s325 + $0xe0] sm:$0xff]
      %v360 = vld [vmem:[%s325 + $0xe8] sm:$0xff]
      %v361 = vld [vmem:[%s325 + $0xf0] sm:$0xff]
      %v362 = vld [vmem:[%s325 + $0xf8] sm:$0xff]
      %v363 = vld [vmem:[%s325 + $0x100] sm:$0xff]
      %v364 = vld [vmem:[%s325 + $0x108] sm:$0xff]
      %v365 = vld [vmem:[%s325 + $0x110] sm:$0xff]
      %v366 = vld [vmem:[%s325 + $0x118] sm:$0xff]
      %v367 = vld [vmem:[%s325 + $0x120] sm:$0xff]
      %v368 = vld [vmem:[%s325 + $0x128] sm:$0xff]
      %v369 = vld [vmem:[%s325 + $0x130] sm:$0xff]
      %v370 = vld [vmem:[%s325 + $0x138] sm:$0xff]
      %v371 = vld [vmem:[%s325 + $0x140] sm:$0xff]
      %v372 = vld [vmem:[%s325 + $0x148] sm:$0xff]
      %v373 = vld [vmem:[%s325 + $0x150] sm:$0xff]
      %v374 = vld [vmem:[%s325 + $0x158] sm:$0xff]
      %v375 = vld [vmem:[%s325 + $0x160] sm:$0xff]
      %v376 = vld [vmem:[%s325 + $0x168] sm:$0xff]
      %v377 = vld [vmem:[%s325 + $0x170] sm:$0xff]
      %v378 = vld [vmem:[%s325 + $0x178] sm:$0xff]
      %v379 = vld [vmem:[%s325 + $0x180] sm:$0xff]
      %v380 = vld [vmem:[%s325 + $0x188] sm:$0xff]
      %v381 = vld [vmem:[%s325 + $0x190] sm:$0xff]
      %v382 = vld [vmem:[%s325 + $0x198] sm:$0xff]
      %v383 = vld [vmem:[%s325 + $0x1a0] sm:$0xff]
      %v384 = vld [vmem:[%s325 + $0x1a8] sm:$0xff]
      %v385 = vld [vmem:[%s325 + $0x1b0] sm:$0xff]
      %v386 = vld [vmem:[%s325 + $0x1b8] sm:$0xff]
      %v387 = vld [vmem:[%s325 + $0x1c0] sm:$0xff]
      %v388 = vld [vmem:[%s325 + $0x1c8] sm:$0xff]
      %v389 = vld [vmem:[%s325 + $0x1d0] sm:$0xff]
      %v390 = vld [vmem:[%s325 + $0x1d8] sm:$0xff]
      %v391 = vld [vmem:[%s325 + $0x1e0] sm:$0xff]
      %v392 = vld [vmem:[%s325 + $0x1e8] sm:$0xff]
      %v393 = vld [vmem:[%s325 + $0x1f0] sm:$0xff]
      %v394 = vld [vmem:[%s325 + $0x1f8] sm:$0xff]
      %v395 = vld [vmem:[%s325 + $0x200] sm:$0xff]
      %v396 = vld [vmem:[%s325 + $0x208] sm:$0xff]
      %v397 = vld [vmem:[%s325 + $0x210] sm:$0xff]
      %v398 = vld [vmem:[%s325 + $0x218] sm:$0xff]
      %v399 = vld [vmem:[%s325 + $0x220] sm:$0xff]
      %v400 = vld [vmem:[%s325 + $0x228] sm:$0xff]
      %v401 = vld [vmem:[%s325 + $0x230] sm:$0xff]
      %v402 = vld [vmem:[%s325 + $0x238] sm:$0xff]
      %v403 = vld [vmem:[%s325 + $0x240] sm:$0xff]
      %v404 = vld [vmem:[%s325 + $0x248] sm:$0xff]
      %v405 = vld [vmem:[%s325 + $0x250] sm:$0xff]
      %v406 = vld [vmem:[%s325 + $0x258] sm:$0xff]
      %v407 = vld [vmem:[%s325 + $0x260] sm:$0xff]
      %v408 = vld [vmem:[%s325 + $0x268] sm:$0xff]
      %v409 = vld [vmem:[%s325 + $0x270] sm:$0xff]
      %v410 = vld [vmem:[%s325 + $0x278] sm:$0xff]
      %v411 = vld [vmem:[%s325 + $0x280] sm:$0xff]
      %v412 = vld [vmem:[%s325 + $0x288] sm:$0xff]
      %v413 = vld [vmem:[%s325 + $0x290] sm:$0xff]
      %v414 = vld [vmem:[%s325 + $0x298] sm:$0xff]
      %v415 = vld [vmem:[%s325 + $0x2a0] sm:$0xff]
      %v416 = vld [vmem:[%s325 + $0x2a8] sm:$0xff]
      %v417 = vld [vmem:[%s325 + $0x2b0] sm:$0xff]
      %v418 = vld [vmem:[%s325 + $0x2b8] sm:$0xff]
      %v419 = vld [vmem:[%s325 + $0x2c0] sm:$0xff]
      %v420 = vld [vmem:[%s325 + $0x2c8] sm:$0xff]
      %v421 = vld [vmem:[%s325 + $0x2d0] sm:$0xff]
      %v422 = vld [vmem:[%s325 + $0x2d8] sm:$0xff]
      %v423 = vld [vmem:[%s325 + $0x2e0] sm:$0xff]
      %v424 = vld [vmem:[%s325 + $0x2e8] sm:$0xff]
      %v425 = vld [vmem:[%s325 + $0x2f0] sm:$0xff]
      %v426 = vld [vmem:[%s325 + $0x2f8] sm:$0xff]
      %v427 = vld [vmem:[%s325 + $0x300] sm:$0xff]
      %v428 = vld [vmem:[%s325 + $0x308] sm:$0xff]
      %v429 = vld [vmem:[%s325 + $0x310] sm:$0xff]
      %v430 = vld [vmem:[%s325 + $0x318] sm:$0xff]
      %v431 = vld [vmem:[%s325 + $0x320] sm:$0xff]
      %v432 = vld [vmem:[%s325 + $0x328] sm:$0xff]
      %v433 = vld [vmem:[%s325 + $0x330] sm:$0xff]
      %v434 = vld [vmem:[%s325 + $0x338] sm:$0xff]
      %v435 = vld [vmem:[%s325 + $0x340] sm:$0xff]
      %v436 = vld [vmem:[%s325 + $0x348] sm:$0xff]
      %v437 = vld [vmem:[%s325 + $0x350] sm:$0xff]
      %v438 = vld [vmem:[%s325 + $0x358] sm:$0xff]
      %v439 = vld [vmem:[%s325 + $0x360] sm:$0xff]
      %v440 = vld [vmem:[%s325 + $0x368] sm:$0xff]
      %v441 = vld [vmem:[%s325 + $0x370] sm:$0xff]
      %v442 = vld [vmem:[%s325 + $0x378] sm:$0xff]
      %v443 = vld [vmem:[%s325 + $0x380] sm:$0xff]
      %v444 = vld [vmem:[%s325 + $0x388] sm:$0xff]
      %v445 = vld [vmem:[%s325 + $0x390] sm:$0xff]
      %v446 = vld [vmem:[%s325 + $0x398] sm:$0xff]
      %v447 = vld [vmem:[%s325 + $0x3a0] sm:$0xff]
      %v448 = vld [vmem:[%s325 + $0x3a8] sm:$0xff]
      %v449 = vld [vmem:[%s325 + $0x3b0] sm:$0xff]
      %v450 = vld [vmem:[%s325 + $0x3b8] sm:$0xff]
      %v451 = vld [vmem:[%s325 + $0x3c0] sm:$0xff]
      %v452 = vld [vmem:[%s325 + $0x3c8] sm:$0xff]
      %v453 = vld [vmem:[%s325 + $0x3d0] sm:$0xff]
      %v454 = vld [vmem:[%s325 + $0x3d8] sm:$0xff]
      %v455 = vld [vmem:[%s325 + $0x3e0] sm:$0xff]
      %v456 = vld [vmem:[%s325 + $0x3e8] sm:$0xff]
      %v457 = vld [vmem:[%s325 + $0x3f0] sm:$0xff]
      %v458 = vld [vmem:[%s325 + $0x3f8] sm:$0xff]
      %v459 = vld [vmem:[%s2] sm:$0xff]
      %461 = vset.pattern.permute.xlu0 0
      %462 = vperm.xlu0 %461, %v331
      %v463 = vpop.permute.xlu0 %462
      %466 = vset.pattern.permute.xlu0 0
      %467 = vperm.xlu0 %466, %v332
      %v468 = vpop.permute.xlu0 %467
      %471 = vset.pattern.permute.xlu0 0
      %472 = vperm.xlu0 %471, %v333
      %v473 = vpop.permute.xlu0 %472
      %476 = vset.pattern.permute.xlu0 0
      %477 = vperm.xlu0 %476, %v334
      %v478 = vpop.permute.xlu0 %477
      %481 = vset.pattern.permute.xlu0 0
      %482 = vperm.xlu0 %481, %v335
      %v483 = vpop.permute.xlu0 %482
      %486 = vset.pattern.permute.xlu0 0
      %487 = vperm.xlu0 %486, %v336
      %v488 = vpop.permute.xlu0 %487
      %491 = vset.pattern.permute.xlu0 0
      %492 = vperm.xlu0 %491, %v337
      %v493 = vpop.permute.xlu0 %492
      %496 = vset.pattern.permute.xlu0 0
      %497 = vperm.xlu0 %496, %v338
      %v498 = vpop.permute.xlu0 %497
      %501 = vset.pattern.permute.xlu0 0
      %502 = vperm.xlu0 %501, %v339
      %v503 = vpop.permute.xlu0 %502
      %506 = vset.pattern.permute.xlu0 0
      %507 = vperm.xlu0 %506, %v340
      %v508 = vpop.permute.xlu0 %507
      %511 = vset.pattern.permute.xlu0 0
      %512 = vperm.xlu0 %511, %v341
      %v513 = vpop.permute.xlu0 %512
      %516 = vset.pattern.permute.xlu0 0
      %517 = vperm.xlu0 %516, %v342
      %v518 = vpop.permute.xlu0 %517
      %521 = vset.pattern.permute.xlu0 0
      %522 = vperm.xlu0 %521, %v343
      %v523 = vpop.permute.xlu0 %522
      %526 = vset.pattern.permute.xlu0 0
      %527 = vperm.xlu0 %526, %v344
      %v528 = vpop.permute.xlu0 %527
      %531 = vset.pattern.permute.xlu0 0
      %532 = vperm.xlu0 %531, %v345
      %v533 = vpop.permute.xlu0 %532
      %536 = vset.pattern.permute.xlu0 0
      %537 = vperm.xlu0 %536, %v346
      %v538 = vpop.permute.xlu0 %537
      %541 = vset.pattern.permute.xlu0 0
      %542 = vperm.xlu0 %541, %v347
      %v543 = vpop.permute.xlu0 %542
      %546 = vset.pattern.permute.xlu0 0
      %547 = vperm.xlu0 %546, %v348
      %v548 = vpop.permute.xlu0 %547
      %551 = vset.pattern.permute.xlu0 0
      %552 = vperm.xlu0 %551, %v349
      %v553 = vpop.permute.xlu0 %552
      %556 = vset.pattern.permute.xlu0 0
      %557 = vperm.xlu0 %556, %v350
      %v558 = vpop.permute.xlu0 %557
      %561 = vset.pattern.permute.xlu0 0
      %562 = vperm.xlu0 %561, %v351
      %v563 = vpop.permute.xlu0 %562
      %566 = vset.pattern.permute.xlu0 0
      %567 = vperm.xlu0 %566, %v352
      %v568 = vpop.permute.xlu0 %567
      %571 = vset.pattern.permute.xlu0 0
      %572 = vperm.xlu0 %571, %v353
      %v573 = vpop.permute.xlu0 %572
      %576 = vset.pattern.permute.xlu0 0
      %577 = vperm.xlu0 %576, %v354
      %v578 = vpop.permute.xlu0 %577
      %581 = vset.pattern.permute.xlu0 0
      %582 = vperm.xlu0 %581, %v355
      %v583 = vpop.permute.xlu0 %582
      %586 = vset.pattern.permute.xlu0 0
      %587 = vperm.xlu0 %586, %v356
      %v588 = vpop.permute.xlu0 %587
      %591 = vset.pattern.permute.xlu0 0
      %592 = vperm.xlu0 %591, %v357
      %v593 = vpop.permute.xlu0 %592
      %596 = vset.pattern.permute.xlu0 0
      %597 = vperm.xlu0 %596, %v358
      %v598 = vpop.permute.xlu0 %597
      %601 = vset.pattern.permute.xlu0 0
      %602 = vperm.xlu0 %601, %v359
      %v603 = vpop.permute.xlu0 %602
      %606 = vset.pattern.permute.xlu0 0
      %607 = vperm.xlu0 %606, %v360
      %v608 = vpop.permute.xlu0 %607
      %611 = vset.pattern.permute.xlu0 0
      %612 = vperm.xlu0 %611, %v361
      %v613 = vpop.permute.xlu0 %612
      %616 = vset.pattern.permute.xlu0 0
      %617 = vperm.xlu0 %616, %v362
      %v618 = vpop.permute.xlu0 %617
      %621 = vset.pattern.permute.xlu0 0
      %622 = vperm.xlu0 %621, %v363
      %v623 = vpop.permute.xlu0 %622
      %626 = vset.pattern.permute.xlu0 0
      %627 = vperm.xlu0 %626, %v364
      %v628 = vpop.permute.xlu0 %627
      %631 = vset.pattern.permute.xlu0 0
      %632 = vperm.xlu0 %631, %v365
      %v633 = vpop.permute.xlu0 %632
      %636 = vset.pattern.permute.xlu0 0
      %637 = vperm.xlu0 %636, %v366
      %v638 = vpop.permute.xlu0 %637
      %641 = vset.pattern.permute.xlu0 0
      %642 = vperm.xlu0 %641, %v367
      %v643 = vpop.permute.xlu0 %642
      %646 = vset.pattern.permute.xlu0 0
      %647 = vperm.xlu0 %646, %v368
      %v648 = vpop.permute.xlu0 %647
      %651 = vset.pattern.permute.xlu0 0
      %652 = vperm.xlu0 %651, %v369
      %v653 = vpop.permute.xlu0 %652
      %656 = vset.pattern.permute.xlu0 0
      %657 = vperm.xlu0 %656, %v370
      %v658 = vpop.permute.xlu0 %657
      %661 = vset.pattern.permute.xlu0 0
      %662 = vperm.xlu0 %661, %v371
      %v663 = vpop.permute.xlu0 %662
      %666 = vset.pattern.permute.xlu0 0
      %667 = vperm.xlu0 %666, %v372
      %v668 = vpop.permute.xlu0 %667
      %671 = vset.pattern.permute.xlu0 0
      %672 = vperm.xlu0 %671, %v373
      %v673 = vpop.permute.xlu0 %672
      %676 = vset.pattern.permute.xlu0 0
      %677 = vperm.xlu0 %676, %v374
      %v678 = vpop.permute.xlu0 %677
      %681 = vset.pattern.permute.xlu0 0
      %682 = vperm.xlu0 %681, %v375
      %v683 = vpop.permute.xlu0 %682
      %686 = vset.pattern.permute.xlu0 0
      %687 = vperm.xlu0 %686, %v376
      %v688 = vpop.permute.xlu0 %687
      %691 = vset.pattern.permute.xlu0 0
      %692 = vperm.xlu0 %691, %v377
      %v693 = vpop.permute.xlu0 %692
      %696 = vset.pattern.permute.xlu0 0
      %697 = vperm.xlu0 %696, %v378
      %v698 = vpop.permute.xlu0 %697
      %701 = vset.pattern.permute.xlu0 0
      %702 = vperm.xlu0 %701, %v379
      %v703 = vpop.permute.xlu0 %702
      %706 = vset.pattern.permute.xlu0 0
      %707 = vperm.xlu0 %706, %v380
      %v708 = vpop.permute.xlu0 %707
      %711 = vset.pattern.permute.xlu0 0
      %712 = vperm.xlu0 %711, %v381
      %v713 = vpop.permute.xlu0 %712
      %716 = vset.pattern.permute.xlu0 0
      %717 = vperm.xlu0 %716, %v382
      %v718 = vpop.permute.xlu0 %717
      %721 = vset.pattern.permute.xlu0 0
      %722 = vperm.xlu0 %721, %v383
      %v723 = vpop.permute.xlu0 %722
      %726 = vset.pattern.permute.xlu0 0
      %727 = vperm.xlu0 %726, %v384
      %v728 = vpop.permute.xlu0 %727
      %731 = vset.pattern.permute.xlu0 0
      %732 = vperm.xlu0 %731, %v385
      %v733 = vpop.permute.xlu0 %732
      %736 = vset.pattern.permute.xlu0 0
      %737 = vperm.xlu0 %736, %v386
      %v738 = vpop.permute.xlu0 %737
      %741 = vset.pattern.permute.xlu0 0
      %742 = vperm.xlu0 %741, %v387
      %v743 = vpop.permute.xlu0 %742
      %746 = vset.pattern.permute.xlu0 0
      %747 = vperm.xlu0 %746, %v388
      %v748 = vpop.permute.xlu0 %747
      %751 = vset.pattern.permute.xlu0 0
      %752 = vperm.xlu0 %751, %v389
      %v753 = vpop.permute.xlu0 %752
      %756 = vset.pattern.permute.xlu0 0
      %757 = vperm.xlu0 %756, %v390
      %v758 = vpop.permute.xlu0 %757
      %761 = vset.pattern.permute.xlu0 0
      %762 = vperm.xlu0 %761, %v391
      %v763 = vpop.permute.xlu0 %762
      %766 = vset.pattern.permute.xlu0 0
      %767 = vperm.xlu0 %766, %v392
      %v768 = vpop.permute.xlu0 %767
      %771 = vset.pattern.permute.xlu0 0
      %772 = vperm.xlu0 %771, %v393
      %v773 = vpop.permute.xlu0 %772
      %776 = vset.pattern.permute.xlu0 0
      %777 = vperm.xlu0 %776, %v394
      %v778 = vpop.permute.xlu0 %777
      %781 = vset.pattern.permute.xlu0 0
      %782 = vperm.xlu0 %781, %v395
      %v783 = vpop.permute.xlu0 %782
      %786 = vset.pattern.permute.xlu0 0
      %787 = vperm.xlu0 %786, %v396
      %v788 = vpop.permute.xlu0 %787
      %791 = vset.pattern.permute.xlu0 0
      %792 = vperm.xlu0 %791, %v397
      %v793 = vpop.permute.xlu0 %792
      %796 = vset.pattern.permute.xlu0 0
      %797 = vperm.xlu0 %796, %v398
      %v798 = vpop.permute.xlu0 %797
      %801 = vset.pattern.permute.xlu0 0
      %802 = vperm.xlu0 %801, %v399
      %v803 = vpop.permute.xlu0 %802
      %806 = vset.pattern.permute.xlu0 0
      %807 = vperm.xlu0 %806, %v400
      %v808 = vpop.permute.xlu0 %807
      %811 = vset.pattern.permute.xlu0 0
      %812 = vperm.xlu0 %811, %v401
      %v813 = vpop.permute.xlu0 %812
      %816 = vset.pattern.permute.xlu0 0
      %817 = vperm.xlu0 %816, %v402
      %v818 = vpop.permute.xlu0 %817
      %821 = vset.pattern.permute.xlu0 0
      %822 = vperm.xlu0 %821, %v403
      %v823 = vpop.permute.xlu0 %822
      %826 = vset.pattern.permute.xlu0 0
      %827 = vperm.xlu0 %826, %v404
      %v828 = vpop.permute.xlu0 %827
      %831 = vset.pattern.permute.xlu0 0
      %832 = vperm.xlu0 %831, %v405
      %v833 = vpop.permute.xlu0 %832
      %836 = vset.pattern.permute.xlu0 0
      %837 = vperm.xlu0 %836, %v406
      %v838 = vpop.permute.xlu0 %837
      %841 = vset.pattern.permute.xlu0 0
      %842 = vperm.xlu0 %841, %v407
      %v843 = vpop.permute.xlu0 %842
      %846 = vset.pattern.permute.xlu0 0
      %847 = vperm.xlu0 %846, %v408
      %v848 = vpop.permute.xlu0 %847
      %851 = vset.pattern.permute.xlu0 0
      %852 = vperm.xlu0 %851, %v409
      %v853 = vpop.permute.xlu0 %852
      %856 = vset.pattern.permute.xlu0 0
      %857 = vperm.xlu0 %856, %v410
      %v858 = vpop.permute.xlu0 %857
      %861 = vset.pattern.permute.xlu0 0
      %862 = vperm.xlu0 %861, %v411
      %v863 = vpop.permute.xlu0 %862
      %866 = vset.pattern.permute.xlu0 0
      %867 = vperm.xlu0 %866, %v412
      %v868 = vpop.permute.xlu0 %867
      %871 = vset.pattern.permute.xlu0 0
      %872 = vperm.xlu0 %871, %v413
      %v873 = vpop.permute.xlu0 %872
      %876 = vset.pattern.permute.xlu0 0
      %877 = vperm.xlu0 %876, %v414
      %v878 = vpop.permute.xlu0 %877
      %881 = vset.pattern.permute.xlu0 0
      %882 = vperm.xlu0 %881, %v415
      %v883 = vpop.permute.xlu0 %882
      %886 = vset.pattern.permute.xlu0 0
      %887 = vperm.xlu0 %886, %v416
      %v888 = vpop.permute.xlu0 %887
      %891 = vset.pattern.permute.xlu0 0
      %892 = vperm.xlu0 %891, %v417
      %v893 = vpop.permute.xlu0 %892
      %896 = vset.pattern.permute.xlu0 0
      %897 = vperm.xlu0 %896, %v418
      %v898 = vpop.permute.xlu0 %897
      %901 = vset.pattern.permute.xlu0 0
      %902 = vperm.xlu0 %901, %v419
      %v903 = vpop.permute.xlu0 %902
      %906 = vset.pattern.permute.xlu0 0
      %907 = vperm.xlu0 %906, %v420
      %v908 = vpop.permute.xlu0 %907
      %911 = vset.pattern.permute.xlu0 0
      %912 = vperm.xlu0 %911, %v421
      %v913 = vpop.permute.xlu0 %912
      %916 = vset.pattern.permute.xlu0 0
      %917 = vperm.xlu0 %916, %v422
      %v918 = vpop.permute.xlu0 %917
      %921 = vset.pattern.permute.xlu0 0
      %922 = vperm.xlu0 %921, %v423
      %v923 = vpop.permute.xlu0 %922
      %926 = vset.pattern.permute.xlu0 0
      %927 = vperm.xlu0 %926, %v424
      %v928 = vpop.permute.xlu0 %927
      %931 = vset.pattern.permute.xlu0 0
      %932 = vperm.xlu0 %931, %v425
      %v933 = vpop.permute.xlu0 %932
      %936 = vset.pattern.permute.xlu0 0
      %937 = vperm.xlu0 %936, %v426
      %v938 = vpop.permute.xlu0 %937
      %941 = vset.pattern.permute.xlu0 0
      %942 = vperm.xlu0 %941, %v427
      %v943 = vpop.permute.xlu0 %942
      %946 = vset.pattern.permute.xlu0 0
      %947 = vperm.xlu0 %946, %v428
      %v948 = vpop.permute.xlu0 %947
      %951 = vset.pattern.permute.xlu0 0
      %952 = vperm.xlu0 %951, %v429
      %v953 = vpop.permute.xlu0 %952
      %956 = vset.pattern.permute.xlu0 0
      %957 = vperm.xlu0 %956, %v430
      %v958 = vpop.permute.xlu0 %957
      %961 = vset.pattern.permute.xlu0 0
      %962 = vperm.xlu0 %961, %v431
      %v963 = vpop.permute.xlu0 %962
      %966 = vset.pattern.permute.xlu0 0
      %967 = vperm.xlu0 %966, %v432
      %v968 = vpop.permute.xlu0 %967
      %971 = vset.pattern.permute.xlu0 0
      %972 = vperm.xlu0 %971, %v433
      %v973 = vpop.permute.xlu0 %972
      %976 = vset.pattern.permute.xlu0 0
      %977 = vperm.xlu0 %976, %v434
      %v978 = vpop.permute.xlu0 %977
      %981 = vset.pattern.permute.xlu0 0
      %982 = vperm.xlu0 %981, %v435
      %v983 = vpop.permute.xlu0 %982
      %986 = vset.pattern.permute.xlu0 0
      %987 = vperm.xlu0 %986, %v436
      %v988 = vpop.permute.xlu0 %987
      %991 = vset.pattern.permute.xlu0 0
      %992 = vperm.xlu0 %991, %v437
      %v993 = vpop.permute.xlu0 %992
      %996 = vset.pattern.permute.xlu0 0
      %997 = vperm.xlu0 %996, %v438
      %v998 = vpop.permute.xlu0 %997
      %1001 = vset.pattern.permute.xlu0 0
      %1002 = vperm.xlu0 %1001, %v439
      %v1003 = vpop.permute.xlu0 %1002
      %1006 = vset.pattern.permute.xlu0 0
      %1007 = vperm.xlu0 %1006, %v440
      %v1008 = vpop.permute.xlu0 %1007
      %1011 = vset.pattern.permute.xlu0 0
      %1012 = vperm.xlu0 %1011, %v441
      %v1013 = vpop.permute.xlu0 %1012
      %1016 = vset.pattern.permute.xlu0 0
      %1017 = vperm.xlu0 %1016, %v442
      %v1018 = vpop.permute.xlu0 %1017
      %1021 = vset.pattern.permute.xlu0 0
      %1022 = vperm.xlu0 %1021, %v443
      %v1023 = vpop.permute.xlu0 %1022
      %1026 = vset.pattern.permute.xlu0 0
      %1027 = vperm.xlu0 %1026, %v444
      %v1028 = vpop.permute.xlu0 %1027
      %1031 = vset.pattern.permute.xlu0 0
      %1032 = vperm.xlu0 %1031, %v445
      %v1033 = vpop.permute.xlu0 %1032
      %1036 = vset.pattern.permute.xlu0 0
      %1037 = vperm.xlu0 %1036, %v446
      %v1038 = vpop.permute.xlu0 %1037
      %1041 = vset.pattern.permute.xlu0 0
      %1042 = vperm.xlu0 %1041, %v447
      %v1043 = vpop.permute.xlu0 %1042
      %1046 = vset.pattern.permute.xlu0 0
      %1047 = vperm.xlu0 %1046, %v448
      %v1048 = vpop.permute.xlu0 %1047
      %1051 = vset.pattern.permute.xlu0 0
      %1052 = vperm.xlu0 %1051, %v449
      %v1053 = vpop.permute.xlu0 %1052
      %1056 = vset.pattern.permute.xlu0 0
      %1057 = vperm.xlu0 %1056, %v450
      %v1058 = vpop.permute.xlu0 %1057
      %1061 = vset.pattern.permute.xlu0 0
      %1062 = vperm.xlu0 %1061, %v451
      %v1063 = vpop.permute.xlu0 %1062
      %1066 = vset.pattern.permute.xlu0 0
      %1067 = vperm.xlu0 %1066, %v452
      %v1068 = vpop.permute.xlu0 %1067
      %1071 = vset.pattern.permute.xlu0 0
      %1072 = vperm.xlu0 %1071, %v453
      %v1073 = vpop.permute.xlu0 %1072
      %1076 = vset.pattern.permute.xlu0 0
      %1077 = vperm.xlu0 %1076, %v454
      %v1078 = vpop.permute.xlu0 %1077
      %1081 = vset.pattern.permute.xlu0 0
      %1082 = vperm.xlu0 %1081, %v455
      %v1083 = vpop.permute.xlu0 %1082
      %1086 = vset.pattern.permute.xlu0 0
      %1087 = vperm.xlu0 %1086, %v456
      %v1088 = vpop.permute.xlu0 %1087
      %1091 = vset.pattern.permute.xlu0 0
      %1092 = vperm.xlu0 %1091, %v457
      %v1093 = vpop.permute.xlu0 %1092
      %1096 = vset.pattern.permute.xlu0 0
      %1097 = vperm.xlu0 %1096, %v458
      %v1098 = vpop.permute.xlu0 %1097
      %v1100 = vlaneseq
      %v1101 = vshrl.u32 %v1100, 7
      %v1102 = vsub.s32 0, %v1101
      %v1103 = vrot.slane %v459, %v1102
      %v1104 = vmul.f32 %v463, %v1103
      %v1105 = vmul.f32 %v468, %v1103
      %v1106 = vmul.f32 %v473, %v1103
      %v1107 = vmul.f32 %v478, %v1103
      %v1108 = vmul.f32 %v483, %v1103
      %v1109 = vmul.f32 %v488, %v1103
      %v1110 = vmul.f32 %v493, %v1103
      %v1111 = vmul.f32 %v498, %v1103
      %v1112 = vmul.f32 %v503, %v1103
      %v1113 = vmul.f32 %v508, %v1103
      %v1114 = vmul.f32 %v513, %v1103
      %v1115 = vmul.f32 %v518, %v1103
      %v1116 = vmul.f32 %v523, %v1103
      %v1117 = vmul.f32 %v528, %v1103
      %v1118 = vmul.f32 %v533, %v1103
      %v1119 = vmul.f32 %v538, %v1103
      %v1120 = vmul.f32 %v543, %v1103
      %v1121 = vmul.f32 %v548, %v1103
      %v1122 = vmul.f32 %v553, %v1103
      %v1123 = vmul.f32 %v558, %v1103
      %v1124 = vmul.f32 %v563, %v1103
      %v1125 = vmul.f32 %v568, %v1103
      %v1126 = vmul.f32 %v573, %v1103
      %v1127 = vmul.f32 %v578, %v1103
      %v1128 = vmul.f32 %v583, %v1103
      %v1129 = vmul.f32 %v588, %v1103
      %v1130 = vmul.f32 %v593, %v1103
      %v1131 = vmul.f32 %v598, %v1103
      %v1132 = vmul.f32 %v603, %v1103
      %v1133 = vmul.f32 %v608, %v1103
      %v1134 = vmul.f32 %v613, %v1103
      %v1135 = vmul.f32 %v618, %v1103
      %v1136 = vmul.f32 %v623, %v1103
      %v1137 = vmul.f32 %v628, %v1103
      %v1138 = vmul.f32 %v633, %v1103
      %v1139 = vmul.f32 %v638, %v1103
      %v1140 = vmul.f32 %v643, %v1103
      %v1141 = vmul.f32 %v648, %v1103
      %v1142 = vmul.f32 %v653, %v1103
      %v1143 = vmul.f32 %v658, %v1103
      %v1144 = vmul.f32 %v663, %v1103
      %v1145 = vmul.f32 %v668, %v1103
      %v1146 = vmul.f32 %v673, %v1103
      %v1147 = vmul.f32 %v678, %v1103
      %v1148 = vmul.f32 %v683, %v1103
      %v1149 = vmul.f32 %v688, %v1103
      %v1150 = vmul.f32 %v693, %v1103
      %v1151 = vmul.f32 %v698, %v1103
      %v1152 = vmul.f32 %v703, %v1103
      %v1153 = vmul.f32 %v708, %v1103
      %v1154 = vmul.f32 %v713, %v1103
      %v1155 = vmul.f32 %v718, %v1103
      %v1156 = vmul.f32 %v723, %v1103
      %v1157 = vmul.f32 %v728, %v1103
      %v1158 = vmul.f32 %v733, %v1103
      %v1159 = vmul.f32 %v738, %v1103
      %v1160 = vmul.f32 %v743, %v1103
      %v1161 = vmul.f32 %v748, %v1103
      %v1162 = vmul.f32 %v753, %v1103
      %v1163 = vmul.f32 %v758, %v1103
      %v1164 = vmul.f32 %v763, %v1103
      %v1165 = vmul.f32 %v768, %v1103
      %v1166 = vmul.f32 %v773, %v1103
      %v1167 = vmul.f32 %v778, %v1103
      %v1168 = vmul.f32 %v783, %v1103
      %v1169 = vmul.f32 %v788, %v1103
      %v1170 = vmul.f32 %v793, %v1103
      %v1171 = vmul.f32 %v798, %v1103
      %v1172 = vmul.f32 %v803, %v1103
      %v1173 = vmul.f32 %v808, %v1103
      %v1174 = vmul.f32 %v813, %v1103
      %v1175 = vmul.f32 %v818, %v1103
      %v1176 = vmul.f32 %v823, %v1103
      %v1177 = vmul.f32 %v828, %v1103
      %v1178 = vmul.f32 %v833, %v1103
      %v1179 = vmul.f32 %v838, %v1103
      %v1180 = vmul.f32 %v843, %v1103
      %v1181 = vmul.f32 %v848, %v1103
      %v1182 = vmul.f32 %v853, %v1103
      %v1183 = vmul.f32 %v858, %v1103
      %v1184 = vmul.f32 %v863, %v1103
      %v1185 = vmul.f32 %v868, %v1103
      %v1186 = vmul.f32 %v873, %v1103
      %v1187 = vmul.f32 %v878, %v1103
      %v1188 = vmul.f32 %v883, %v1103
      %v1189 = vmul.f32 %v888, %v1103
      %v1190 = vmul.f32 %v893, %v1103
      %v1191 = vmul.f32 %v898, %v1103
      %v1192 = vmul.f32 %v903, %v1103
      %v1193 = vmul.f32 %v908, %v1103
      %v1194 = vmul.f32 %v913, %v1103
      %v1195 = vmul.f32 %v918, %v1103
      %v1196 = vmul.f32 %v923, %v1103
      %v1197 = vmul.f32 %v928, %v1103
      %v1198 = vmul.f32 %v933, %v1103
      %v1199 = vmul.f32 %v938, %v1103
      %v1200 = vmul.f32 %v943, %v1103
      %v1201 = vmul.f32 %v948, %v1103
      %v1202 = vmul.f32 %v953, %v1103
      %v1203 = vmul.f32 %v958, %v1103
      %v1204 = vmul.f32 %v963, %v1103
      %v1205 = vmul.f32 %v968, %v1103
      %v1206 = vmul.f32 %v973, %v1103
      %v1207 = vmul.f32 %v978, %v1103
      %v1208 = vmul.f32 %v983, %v1103
      %v1209 = vmul.f32 %v988, %v1103
      %v1210 = vmul.f32 %v993, %v1103
      %v1211 = vmul.f32 %v998, %v1103
      %v1212 = vmul.f32 %v1003, %v1103
      %v1213 = vmul.f32 %v1008, %v1103
      %v1214 = vmul.f32 %v1013, %v1103
      %v1215 = vmul.f32 %v1018, %v1103
      %v1216 = vmul.f32 %v1023, %v1103
      %v1217 = vmul.f32 %v1028, %v1103
      %v1218 = vmul.f32 %v1033, %v1103
      %v1219 = vmul.f32 %v1038, %v1103
      %v1220 = vmul.f32 %v1043, %v1103
      %v1221 = vmul.f32 %v1048, %v1103
      %v1222 = vmul.f32 %v1053, %v1103
      %v1223 = vmul.f32 %v1058, %v1103
      %v1224 = vmul.f32 %v1063, %v1103
      %v1225 = vmul.f32 %v1068, %v1103
      %v1226 = vmul.f32 %v1073, %v1103
      %v1227 = vmul.f32 %v1078, %v1103
      %v1228 = vmul.f32 %v1083, %v1103
      %v1229 = vmul.f32 %v1088, %v1103
      %v1230 = vmul.f32 %v1093, %v1103
      %v1231 = vmul.f32 %v1098, %v1103
      %1232 = vset.pattern.permute.xlu0 1
      %1233 = vperm.xlu0 %1232, %v331
      %v1234 = vpop.permute.xlu0 %1233
      %1236 = vset.pattern.permute.xlu0 1
      %1237 = vperm.xlu0 %1236, %v332
      %v1238 = vpop.permute.xlu0 %1237
      %1240 = vset.pattern.permute.xlu0 1
      %1241 = vperm.xlu0 %1240, %v333
      %v1242 = vpop.permute.xlu0 %1241
      %1244 = vset.pattern.permute.xlu0 1
      %1245 = vperm.xlu0 %1244, %v334
      %v1246 = vpop.permute.xlu0 %1245
      %1248 = vset.pattern.permute.xlu0 1
      %1249 = vperm.xlu0 %1248, %v335
      %v1250 = vpop.permute.xlu0 %1249
      %1252 = vset.pattern.permute.xlu0 1
      %1253 = vperm.xlu0 %1252, %v336
      %v1254 = vpop.permute.xlu0 %1253
      %1256 = vset.pattern.permute.xlu0 1
      %1257 = vperm.xlu0 %1256, %v337
      %v1258 = vpop.permute.xlu0 %1257
      %1260 = vset.pattern.permute.xlu0 1
      %1261 = vperm.xlu0 %1260, %v338
      %v1262 = vpop.permute.xlu0 %1261
      %1264 = vset.pattern.permute.xlu0 1
      %1265 = vperm.xlu0 %1264, %v339
      %v1266 = vpop.permute.xlu0 %1265
      %1268 = vset.pattern.permute.xlu0 1
      %1269 = vperm.xlu0 %1268, %v340
      %v1270 = vpop.permute.xlu0 %1269
      %1272 = vset.pattern.permute.xlu0 1
      %1273 = vperm.xlu0 %1272, %v341
      %v1274 = vpop.permute.xlu0 %1273
      %1276 = vset.pattern.permute.xlu0 1
      %1277 = vperm.xlu0 %1276, %v342
      %v1278 = vpop.permute.xlu0 %1277
      %1280 = vset.pattern.permute.xlu0 1
      %1281 = vperm.xlu0 %1280, %v343
      %v1282 = vpop.permute.xlu0 %1281
      %1284 = vset.pattern.permute.xlu0 1
      %1285 = vperm.xlu0 %1284, %v344
      %v1286 = vpop.permute.xlu0 %1285
      %1288 = vset.pattern.permute.xlu0 1
      %1289 = vperm.xlu0 %1288, %v345
      %v1290 = vpop.permute.xlu0 %1289
      %1292 = vset.pattern.permute.xlu0 1
      %1293 = vperm.xlu0 %1292, %v346
      %v1294 = vpop.permute.xlu0 %1293
      %1296 = vset.pattern.permute.xlu0 1
      %1297 = vperm.xlu0 %1296, %v347
      %v1298 = vpop.permute.xlu0 %1297
      %1300 = vset.pattern.permute.xlu0 1
      %1301 = vperm.xlu0 %1300, %v348
      %v1302 = vpop.permute.xlu0 %1301
      %1304 = vset.pattern.permute.xlu0 1
      %1305 = vperm.xlu0 %1304, %v349
      %v1306 = vpop.permute.xlu0 %1305
      %1308 = vset.pattern.permute.xlu0 1
      %1309 = vperm.xlu0 %1308, %v350
      %v1310 = vpop.permute.xlu0 %1309
      %1312 = vset.pattern.permute.xlu0 1
      %1313 = vperm.xlu0 %1312, %v351
      %v1314 = vpop.permute.xlu0 %1313
      %1316 = vset.pattern.permute.xlu0 1
      %1317 = vperm.xlu0 %1316, %v352
      %v1318 = vpop.permute.xlu0 %1317
      %1320 = vset.pattern.permute.xlu0 1
      %1321 = vperm.xlu0 %1320, %v353
      %v1322 = vpop.permute.xlu0 %1321
      %1324 = vset.pattern.permute.xlu0 1
      %1325 = vperm.xlu0 %1324, %v354
      %v1326 = vpop.permute.xlu0 %1325
      %1328 = vset.pattern.permute.xlu0 1
      %1329 = vperm.xlu0 %1328, %v355
      %v1330 = vpop.permute.xlu0 %1329
      %1332 = vset.pattern.permute.xlu0 1
      %1333 = vperm.xlu0 %1332, %v356
      %v1334 = vpop.permute.xlu0 %1333
      %1336 = vset.pattern.permute.xlu0 1
      %1337 = vperm.xlu0 %1336, %v357
      %v1338 = vpop.permute.xlu0 %1337
      %1340 = vset.pattern.permute.xlu0 1
      %1341 = vperm.xlu0 %1340, %v358
      %v1342 = vpop.permute.xlu0 %1341
      %1344 = vset.pattern.permute.xlu0 1
      %1345 = vperm.xlu0 %1344, %v359
      %v1346 = vpop.permute.xlu0 %1345
      %1348 = vset.pattern.permute.xlu0 1
      %1349 = vperm.xlu0 %1348, %v360
      %v1350 = vpop.permute.xlu0 %1349
      %1352 = vset.pattern.permute.xlu0 1
      %1353 = vperm.xlu0 %1352, %v361
      %v1354 = vpop.permute.xlu0 %1353
      %1356 = vset.pattern.permute.xlu0 1
      %1357 = vperm.xlu0 %1356, %v362
      %v1358 = vpop.permute.xlu0 %1357
      %1360 = vset.pattern.permute.xlu0 1
      %1361 = vperm.xlu0 %1360, %v363
      %v1362 = vpop.permute.xlu0 %1361
      %1364 = vset.pattern.permute.xlu0 1
      %1365 = vperm.xlu0 %1364, %v364
      %v1366 = vpop.permute.xlu0 %1365
      %1368 = vset.pattern.permute.xlu0 1
      %1369 = vperm.xlu0 %1368, %v365
      %v1370 = vpop.permute.xlu0 %1369
      %1372 = vset.pattern.permute.xlu0 1
      %1373 = vperm.xlu0 %1372, %v366
      %v1374 = vpop.permute.xlu0 %1373
      %1376 = vset.pattern.permute.xlu0 1
      %1377 = vperm.xlu0 %1376, %v367
      %v1378 = vpop.permute.xlu0 %1377
      %1380 = vset.pattern.permute.xlu0 1
      %1381 = vperm.xlu0 %1380, %v368
      %v1382 = vpop.permute.xlu0 %1381
      %1384 = vset.pattern.permute.xlu0 1
      %1385 = vperm.xlu0 %1384, %v369
      %v1386 = vpop.permute.xlu0 %1385
      %1388 = vset.pattern.permute.xlu0 1
      %1389 = vperm.xlu0 %1388, %v370
      %v1390 = vpop.permute.xlu0 %1389
      %1392 = vset.pattern.permute.xlu0 1
      %1393 = vperm.xlu0 %1392, %v371
      %v1394 = vpop.permute.xlu0 %1393
      %1396 = vset.pattern.permute.xlu0 1
      %1397 = vperm.xlu0 %1396, %v372
      %v1398 = vpop.permute.xlu0 %1397
      %1400 = vset.pattern.permute.xlu0 1
      %1401 = vperm.xlu0 %1400, %v373
      %v1402 = vpop.permute.xlu0 %1401
      %1404 = vset.pattern.permute.xlu0 1
      %1405 = vperm.xlu0 %1404, %v374
      %v1406 = vpop.permute.xlu0 %1405
      %1408 = vset.pattern.permute.xlu0 1
      %1409 = vperm.xlu0 %1408, %v375
      %v1410 = vpop.permute.xlu0 %1409
      %1412 = vset.pattern.permute.xlu0 1
      %1413 = vperm.xlu0 %1412, %v376
      %v1414 = vpop.permute.xlu0 %1413
      %1416 = vset.pattern.permute.xlu0 1
      %1417 = vperm.xlu0 %1416, %v377
      %v1418 = vpop.permute.xlu0 %1417
      %1420 = vset.pattern.permute.xlu0 1
      %1421 = vperm.xlu0 %1420, %v378
      %v1422 = vpop.permute.xlu0 %1421
      %1424 = vset.pattern.permute.xlu0 1
      %1425 = vperm.xlu0 %1424, %v379
      %v1426 = vpop.permute.xlu0 %1425
      %1428 = vset.pattern.permute.xlu0 1
      %1429 = vperm.xlu0 %1428, %v380
      %v1430 = vpop.permute.xlu0 %1429
      %1432 = vset.pattern.permute.xlu0 1
      %1433 = vperm.xlu0 %1432, %v381
      %v1434 = vpop.permute.xlu0 %1433
      %1436 = vset.pattern.permute.xlu0 1
      %1437 = vperm.xlu0 %1436, %v382
      %v1438 = vpop.permute.xlu0 %1437
      %1440 = vset.pattern.permute.xlu0 1
      %1441 = vperm.xlu0 %1440, %v383
      %v1442 = vpop.permute.xlu0 %1441
      %1444 = vset.pattern.permute.xlu0 1
      %1445 = vperm.xlu0 %1444, %v384
      %v1446 = vpop.permute.xlu0 %1445
      %1448 = vset.pattern.permute.xlu0 1
      %1449 = vperm.xlu0 %1448, %v385
      %v1450 = vpop.permute.xlu0 %1449
      %1452 = vset.pattern.permute.xlu0 1
      %1453 = vperm.xlu0 %1452, %v386
      %v1454 = vpop.permute.xlu0 %1453
      %1456 = vset.pattern.permute.xlu0 1
      %1457 = vperm.xlu0 %1456, %v387
      %v1458 = vpop.permute.xlu0 %1457
      %1460 = vset.pattern.permute.xlu0 1
      %1461 = vperm.xlu0 %1460, %v388
      %v1462 = vpop.permute.xlu0 %1461
      %1464 = vset.pattern.permute.xlu0 1
      %1465 = vperm.xlu0 %1464, %v389
      %v1466 = vpop.permute.xlu0 %1465
      %1468 = vset.pattern.permute.xlu0 1
      %1469 = vperm.xlu0 %1468, %v390
      %v1470 = vpop.permute.xlu0 %1469
      %1472 = vset.pattern.permute.xlu0 1
      %1473 = vperm.xlu0 %1472, %v391
      %v1474 = vpop.permute.xlu0 %1473
      %1476 = vset.pattern.permute.xlu0 1
      %1477 = vperm.xlu0 %1476, %v392
      %v1478 = vpop.permute.xlu0 %1477
      %1480 = vset.pattern.permute.xlu0 1
      %1481 = vperm.xlu0 %1480, %v393
      %v1482 = vpop.permute.xlu0 %1481
      %1484 = vset.pattern.permute.xlu0 1
      %1485 = vperm.xlu0 %1484, %v394
      %v1486 = vpop.permute.xlu0 %1485
      %1488 = vset.pattern.permute.xlu0 1
      %1489 = vperm.xlu0 %1488, %v395
      %v1490 = vpop.permute.xlu0 %1489
      %1492 = vset.pattern.permute.xlu0 1
      %1493 = vperm.xlu0 %1492, %v396
      %v1494 = vpop.permute.xlu0 %1493
      %1496 = vset.pattern.permute.xlu0 1
      %1497 = vperm.xlu0 %1496, %v397
      %v1498 = vpop.permute.xlu0 %1497
      %1500 = vset.pattern.permute.xlu0 1
      %1501 = vperm.xlu0 %1500, %v398
      %v1502 = vpop.permute.xlu0 %1501
      %1504 = vset.pattern.permute.xlu0 1
      %1505 = vperm.xlu0 %1504, %v399
      %v1506 = vpop.permute.xlu0 %1505
      %1508 = vset.pattern.permute.xlu0 1
      %1509 = vperm.xlu0 %1508, %v400
      %v1510 = vpop.permute.xlu0 %1509
      %1512 = vset.pattern.permute.xlu0 1
      %1513 = vperm.xlu0 %1512, %v401
      %v1514 = vpop.permute.xlu0 %1513
      %1516 = vset.pattern.permute.xlu0 1
      %1517 = vperm.xlu0 %1516, %v402
      %v1518 = vpop.permute.xlu0 %1517
      %1520 = vset.pattern.permute.xlu0 1
      %1521 = vperm.xlu0 %1520, %v403
      %v1522 = vpop.permute.xlu0 %1521
      %1524 = vset.pattern.permute.xlu0 1
      %1525 = vperm.xlu0 %1524, %v404
      %v1526 = vpop.permute.xlu0 %1525
      %1528 = vset.pattern.permute.xlu0 1
      %1529 = vperm.xlu0 %1528, %v405
      %v1530 = vpop.permute.xlu0 %1529
      %1532 = vset.pattern.permute.xlu0 1
      %1533 = vperm.xlu0 %1532, %v406
      %v1534 = vpop.permute.xlu0 %1533
      %1536 = vset.pattern.permute.xlu0 1
      %1537 = vperm.xlu0 %1536, %v407
      %v1538 = vpop.permute.xlu0 %1537
      %1540 = vset.pattern.permute.xlu0 1
      %1541 = vperm.xlu0 %1540, %v408
      %v1542 = vpop.permute.xlu0 %1541
      %1544 = vset.pattern.permute.xlu0 1
      %1545 = vperm.xlu0 %1544, %v409
      %v1546 = vpop.permute.xlu0 %1545
      %1548 = vset.pattern.permute.xlu0 1
      %1549 = vperm.xlu0 %1548, %v410
      %v1550 = vpop.permute.xlu0 %1549
      %1552 = vset.pattern.permute.xlu0 1
      %1553 = vperm.xlu0 %1552, %v411
      %v1554 = vpop.permute.xlu0 %1553
      %1556 = vset.pattern.permute.xlu0 1
      %1557 = vperm.xlu0 %1556, %v412
      %v1558 = vpop.permute.xlu0 %1557
      %1560 = vset.pattern.permute.xlu0 1
      %1561 = vperm.xlu0 %1560, %v413
      %v1562 = vpop.permute.xlu0 %1561
      %1564 = vset.pattern.permute.xlu0 1
      %1565 = vperm.xlu0 %1564, %v414
      %v1566 = vpop.permute.xlu0 %1565
      %1568 = vset.pattern.permute.xlu0 1
      %1569 = vperm.xlu0 %1568, %v415
      %v1570 = vpop.permute.xlu0 %1569
      %1572 = vset.pattern.permute.xlu0 1
      %1573 = vperm.xlu0 %1572, %v416
      %v1574 = vpop.permute.xlu0 %1573
      %1576 = vset.pattern.permute.xlu0 1
      %1577 = vperm.xlu0 %1576, %v417
      %v1578 = vpop.permute.xlu0 %1577
      %1580 = vset.pattern.permute.xlu0 1
      %1581 = vperm.xlu0 %1580, %v418
      %v1582 = vpop.permute.xlu0 %1581
      %1584 = vset.pattern.permute.xlu0 1
      %1585 = vperm.xlu0 %1584, %v419
      %v1586 = vpop.permute.xlu0 %1585
      %1588 = vset.pattern.permute.xlu0 1
      %1589 = vperm.xlu0 %1588, %v420
      %v1590 = vpop.permute.xlu0 %1589
      %1592 = vset.pattern.permute.xlu0 1
      %1593 = vperm.xlu0 %1592, %v421
      %v1594 = vpop.permute.xlu0 %1593
      %1596 = vset.pattern.permute.xlu0 1
      %1597 = vperm.xlu0 %1596, %v422
      %v1598 = vpop.permute.xlu0 %1597
      %1600 = vset.pattern.permute.xlu0 1
      %1601 = vperm.xlu0 %1600, %v423
      %v1602 = vpop.permute.xlu0 %1601
      %1604 = vset.pattern.permute.xlu0 1
      %1605 = vperm.xlu0 %1604, %v424
      %v1606 = vpop.permute.xlu0 %1605
      %1608 = vset.pattern.permute.xlu0 1
      %1609 = vperm.xlu0 %1608, %v425
      %v1610 = vpop.permute.xlu0 %1609
      %1612 = vset.pattern.permute.xlu0 1
      %1613 = vperm.xlu0 %1612, %v426
      %v1614 = vpop.permute.xlu0 %1613
      %1616 = vset.pattern.permute.xlu0 1
      %1617 = vperm.xlu0 %1616, %v427
      %v1618 = vpop.permute.xlu0 %1617
      %1620 = vset.pattern.permute.xlu0 1
      %1621 = vperm.xlu0 %1620, %v428
      %v1622 = vpop.permute.xlu0 %1621
      %1624 = vset.pattern.permute.xlu0 1
      %1625 = vperm.xlu0 %1624, %v429
      %v1626 = vpop.permute.xlu0 %1625
      %1628 = vset.pattern.permute.xlu0 1
      %1629 = vperm.xlu0 %1628, %v430
      %v1630 = vpop.permute.xlu0 %1629
      %1632 = vset.pattern.permute.xlu0 1
      %1633 = vperm.xlu0 %1632, %v431
      %v1634 = vpop.permute.xlu0 %1633
      %1636 = vset.pattern.permute.xlu0 1
      %1637 = vperm.xlu0 %1636, %v432
      %v1638 = vpop.permute.xlu0 %1637
      %1640 = vset.pattern.permute.xlu0 1
      %1641 = vperm.xlu0 %1640, %v433
      %v1642 = vpop.permute.xlu0 %1641
      %1644 = vset.pattern.permute.xlu0 1
      %1645 = vperm.xlu0 %1644, %v434
      %v1646 = vpop.permute.xlu0 %1645
      %1648 = vset.pattern.permute.xlu0 1
      %1649 = vperm.xlu0 %1648, %v435
      %v1650 = vpop.permute.xlu0 %1649
      %1652 = vset.pattern.permute.xlu0 1
      %1653 = vperm.xlu0 %1652, %v436
      %v1654 = vpop.permute.xlu0 %1653
      %1656 = vset.pattern.permute.xlu0 1
      %1657 = vperm.xlu0 %1656, %v437
      %v1658 = vpop.permute.xlu0 %1657
      %1660 = vset.pattern.permute.xlu0 1
      %1661 = vperm.xlu0 %1660, %v438
      %v1662 = vpop.permute.xlu0 %1661
      %1664 = vset.pattern.permute.xlu0 1
      %1665 = vperm.xlu0 %1664, %v439
      %v1666 = vpop.permute.xlu0 %1665
      %1668 = vset.pattern.permute.xlu0 1
      %1669 = vperm.xlu0 %1668, %v440
      %v1670 = vpop.permute.xlu0 %1669
      %1672 = vset.pattern.permute.xlu0 1
      %1673 = vperm.xlu0 %1672, %v441
      %v1674 = vpop.permute.xlu0 %1673
      %1676 = vset.pattern.permute.xlu0 1
      %1677 = vperm.xlu0 %1676, %v442
      %v1678 = vpop.permute.xlu0 %1677
      %1680 = vset.pattern.permute.xlu0 1
      %1681 = vperm.xlu0 %1680, %v443
      %v1682 = vpop.permute.xlu0 %1681
      %1684 = vset.pattern.permute.xlu0 1
      %1685 = vperm.xlu0 %1684, %v444
      %v1686 = vpop.permute.xlu0 %1685
      %1688 = vset.pattern.permute.xlu0 1
      %1689 = vperm.xlu0 %1688, %v445
      %v1690 = vpop.permute.xlu0 %1689
      %1692 = vset.pattern.permute.xlu0 1
      %1693 = vperm.xlu0 %1692, %v446
      %v1694 = vpop.permute.xlu0 %1693
      %1696 = vset.pattern.permute.xlu0 1
      %1697 = vperm.xlu0 %1696, %v447
      %v1698 = vpop.permute.xlu0 %1697
      %1700 = vset.pattern.permute.xlu0 1
      %1701 = vperm.xlu0 %1700, %v448
      %v1702 = vpop.permute.xlu0 %1701
      %1704 = vset.pattern.permute.xlu0 1
      %1705 = vperm.xlu0 %1704, %v449
      %v1706 = vpop.permute.xlu0 %1705
      %1708 = vset.pattern.permute.xlu0 1
      %1709 = vperm.xlu0 %1708, %v450
      %v1710 = vpop.permute.xlu0 %1709
      %1712 = vset.pattern.permute.xlu0 1
      %1713 = vperm.xlu0 %1712, %v451
      %v1714 = vpop.permute.xlu0 %1713
      %1716 = vset.pattern.permute.xlu0 1
      %1717 = vperm.xlu0 %1716, %v452
      %v1718 = vpop.permute.xlu0 %1717
      %1720 = vset.pattern.permute.xlu0 1
      %1721 = vperm.xlu0 %1720, %v453
      %v1722 = vpop.permute.xlu0 %1721
      %1724 = vset.pattern.permute.xlu0 1
      %1725 = vperm.xlu0 %1724, %v454
      %v1726 = vpop.permute.xlu0 %1725
      %1728 = vset.pattern.permute.xlu0 1
      %1729 = vperm.xlu0 %1728, %v455
      %v1730 = vpop.permute.xlu0 %1729
      %1732 = vset.pattern.permute.xlu0 1
      %1733 = vperm.xlu0 %1732, %v456
      %v1734 = vpop.permute.xlu0 %1733
      %1736 = vset.pattern.permute.xlu0 1
      %1737 = vperm.xlu0 %1736, %v457
      %v1738 = vpop.permute.xlu0 %1737
      %1740 = vset.pattern.permute.xlu0 1
      %1741 = vperm.xlu0 %1740, %v458
      %v1742 = vpop.permute.xlu0 %1741
      %v1744 = vlaneseq
      %v1745 = vshrl.u32 %v1744, 7
      %v1746 = vsub.s32 1, %v1745
      %v1747 = vrot.slane %v459, %v1746
      %v1748 = vmul.f32 %v1234, %v1747
      %v1749 = vmul.f32 %v1238, %v1747
      %v1750 = vmul.f32 %v1242, %v1747
      %v1751 = vmul.f32 %v1246, %v1747
      %v1752 = vmul.f32 %v1250, %v1747
      %v1753 = vmul.f32 %v1254, %v1747
      %v1754 = vmul.f32 %v1258, %v1747
      %v1755 = vmul.f32 %v1262, %v1747
      %v1756 = vmul.f32 %v1266, %v1747
      %v1757 = vmul.f32 %v1270, %v1747
      %v1758 = vmul.f32 %v1274, %v1747
      %v1759 = vmul.f32 %v1278, %v1747
      %v1760 = vmul.f32 %v1282, %v1747
      %v1761 = vmul.f32 %v1286, %v1747
      %v1762 = vmul.f32 %v1290, %v1747
      %v1763 = vmul.f32 %v1294, %v1747
      %v1764 = vmul.f32 %v1298, %v1747
      %v1765 = vmul.f32 %v1302, %v1747
      %v1766 = vmul.f32 %v1306, %v1747
      %v1767 = vmul.f32 %v1310, %v1747
      %v1768 = vmul.f32 %v1314, %v1747
      %v1769 = vmul.f32 %v1318, %v1747
      %v1770 = vmul.f32 %v1322, %v1747
      %v1771 = vmul.f32 %v1326, %v1747
      %v1772 = vmul.f32 %v1330, %v1747
      %v1773 = vmul.f32 %v1334, %v1747
      %v1774 = vmul.f32 %v1338, %v1747
      %v1775 = vmul.f32 %v1342, %v1747
      %v1776 = vmul.f32 %v1346, %v1747
      %v1777 = vmul.f32 %v1350, %v1747
      %v1778 = vmul.f32 %v1354, %v1747
      %v1779 = vmul.f32 %v1358, %v1747
      %v1780 = vmul.f32 %v1362, %v1747
      %v1781 = vmul.f32 %v1366, %v1747
      %v1782 = vmul.f32 %v1370, %v1747
      %v1783 = vmul.f32 %v1374, %v1747
      %v1784 = vmul.f32 %v1378, %v1747
      %v1785 = vmul.f32 %v1382, %v1747
      %v1786 = vmul.f32 %v1386, %v1747
      %v1787 = vmul.f32 %v1390, %v1747
      %v1788 = vmul.f32 %v1394, %v1747
      %v1789 = vmul.f32 %v1398, %v1747
      %v1790 = vmul.f32 %v1402, %v1747
      %v1791 = vmul.f32 %v1406, %v1747
      %v1792 = vmul.f32 %v1410, %v1747
      %v1793 = vmul.f32 %v1414, %v1747
      %v1794 = vmul.f32 %v1418, %v1747
      %v1795 = vmul.f32 %v1422, %v1747
      %v1796 = vmul.f32 %v1426, %v1747
      %v1797 = vmul.f32 %v1430, %v1747
      %v1798 = vmul.f32 %v1434, %v1747
      %v1799 = vmul.f32 %v1438, %v1747
      %v1800 = vmul.f32 %v1442, %v1747
      %v1801 = vmul.f32 %v1446, %v1747
      %v1802 = vmul.f32 %v1450, %v1747
      %v1803 = vmul.f32 %v1454, %v1747
      %v1804 = vmul.f32 %v1458, %v1747
      %v1805 = vmul.f32 %v1462, %v1747
      %v1806 = vmul.f32 %v1466, %v1747
      %v1807 = vmul.f32 %v1470, %v1747
      %v1808 = vmul.f32 %v1474, %v1747
      %v1809 = vmul.f32 %v1478, %v1747
      %v1810 = vmul.f32 %v1482, %v1747
      %v1811 = vmul.f32 %v1486, %v1747
      %v1812 = vmul.f32 %v1490, %v1747
      %v1813 = vmul.f32 %v1494, %v1747
      %v1814 = vmul.f32 %v1498, %v1747
      %v1815 = vmul.f32 %v1502, %v1747
      %v1816 = vmul.f32 %v1506, %v1747
      %v1817 = vmul.f32 %v1510, %v1747
      %v1818 = vmul.f32 %v1514, %v1747
      %v1819 = vmul.f32 %v1518, %v1747
      %v1820 = vmul.f32 %v1522, %v1747
      %v1821 = vmul.f32 %v1526, %v1747
      %v1822 = vmul.f32 %v1530, %v1747
      %v1823 = vmul.f32 %v1534, %v1747
      %v1824 = vmul.f32 %v1538, %v1747
      %v1825 = vmul.f32 %v1542, %v1747
      %v1826 = vmul.f32 %v1546, %v1747
      %v1827 = vmul.f32 %v1550, %v1747
      %v1828 = vmul.f32 %v1554, %v1747
      %v1829 = vmul.f32 %v1558, %v1747
      %v1830 = vmul.f32 %v1562, %v1747
      %v1831 = vmul.f32 %v1566, %v1747
      %v1832 = vmul.f32 %v1570, %v1747
      %v1833 = vmul.f32 %v1574, %v1747
      %v1834 = vmul.f32 %v1578, %v1747
      %v1835 = vmul.f32 %v1582, %v1747
      %v1836 = vmul.f32 %v1586, %v1747
      %v1837 = vmul.f32 %v1590, %v1747
      %v1838 = vmul.f32 %v1594, %v1747
      %v1839 = vmul.f32 %v1598, %v1747
      %v1840 = vmul.f32 %v1602, %v1747
      %v1841 = vmul.f32 %v1606, %v1747
      %v1842 = vmul.f32 %v1610, %v1747
      %v1843 = vmul.f32 %v1614, %v1747
      %v1844 = vmul.f32 %v1618, %v1747
      %v1845 = vmul.f32 %v1622, %v1747
      %v1846 = vmul.f32 %v1626, %v1747
      %v1847 = vmul.f32 %v1630, %v1747
      %v1848 = vmul.f32 %v1634, %v1747
      %v1849 = vmul.f32 %v1638, %v1747
      %v1850 = vmul.f32 %v1642, %v1747
      %v1851 = vmul.f32 %v1646, %v1747
      %v1852 = vmul.f32 %v1650, %v1747
      %v1853 = vmul.f32 %v1654, %v1747
      %v1854 = vmul.f32 %v1658, %v1747
      %v1855 = vmul.f32 %v1662, %v1747
      %v1856 = vmul.f32 %v1666, %v1747
      %v1857 = vmul.f32 %v1670, %v1747
      %v1858 = vmul.f32 %v1674, %v1747
      %v1859 = vmul.f32 %v1678, %v1747
      %v1860 = vmul.f32 %v1682, %v1747
      %v1861 = vmul.f32 %v1686, %v1747
      %v1862 = vmul.f32 %v1690, %v1747
      %v1863 = vmul.f32 %v1694, %v1747
      %v1864 = vmul.f32 %v1698, %v1747
      %v1865 = vmul.f32 %v1702, %v1747
      %v1866 = vmul.f32 %v1706, %v1747
      %v1867 = vmul.f32 %v1710, %v1747
      %v1868 = vmul.f32 %v1714, %v1747
      %v1869 = vmul.f32 %v1718, %v1747
      %v1870 = vmul.f32 %v1722, %v1747
      %v1871 = vmul.f32 %v1726, %v1747
      %v1872 = vmul.f32 %v1730, %v1747
      %v1873 = vmul.f32 %v1734, %v1747
      %v1874 = vmul.f32 %v1738, %v1747
      %v1875 = vmul.f32 %v1742, %v1747
      %v1876 = vadd.f32 %v1104, %v1748
      %v1877 = vadd.f32 %v1105, %v1749
      %v1878 = vadd.f32 %v1106, %v1750
      %v1879 = vadd.f32 %v1107, %v1751
      %v1880 = vadd.f32 %v1108, %v1752
      %v1881 = vadd.f32 %v1109, %v1753
      %v1882 = vadd.f32 %v1110, %v1754
      %v1883 = vadd.f32 %v1111, %v1755
      %v1884 = vadd.f32 %v1112, %v1756
      %v1885 = vadd.f32 %v1113, %v1757
      %v1886 = vadd.f32 %v1114, %v1758
      %v1887 = vadd.f32 %v1115, %v1759
      %v1888 = vadd.f32 %v1116, %v1760
      %v1889 = vadd.f32 %v1117, %v1761
      %v1890 = vadd.f32 %v1118, %v1762
      %v1891 = vadd.f32 %v1119, %v1763
      %v1892 = vadd.f32 %v1120, %v1764
      %v1893 = vadd.f32 %v1121, %v1765
      %v1894 = vadd.f32 %v1122, %v1766
      %v1895 = vadd.f32 %v1123, %v1767
      %v1896 = vadd.f32 %v1124, %v1768
      %v1897 = vadd.f32 %v1125, %v1769
      %v1898 = vadd.f32 %v1126, %v1770
      %v1899 = vadd.f32 %v1127, %v1771
      %v1900 = vadd.f32 %v1128, %v1772
      %v1901 = vadd.f32 %v1129, %v1773
      %v1902 = vadd.f32 %v1130, %v1774
      %v1903 = vadd.f32 %v1131, %v1775
      %v1904 = vadd.f32 %v1132, %v1776
      %v1905 = vadd.f32 %v1133, %v1777
      %v1906 = vadd.f32 %v1134, %v1778
      %v1907 = vadd.f32 %v1135, %v1779
      %v1908 = vadd.f32 %v1136, %v1780
      %v1909 = vadd.f32 %v1137, %v1781
      %v1910 = vadd.f32 %v1138, %v1782
      %v1911 = vadd.f32 %v1139, %v1783
      %v1912 = vadd.f32 %v1140, %v1784
      %v1913 = vadd.f32 %v1141, %v1785
      %v1914 = vadd.f32 %v1142, %v1786
      %v1915 = vadd.f32 %v1143, %v1787
      %v1916 = vadd.f32 %v1144, %v1788
      %v1917 = vadd.f32 %v1145, %v1789
      %v1918 = vadd.f32 %v1146, %v1790
      %v1919 = vadd.f32 %v1147, %v1791
      %v1920 = vadd.f32 %v1148, %v1792
      %v1921 = vadd.f32 %v1149, %v1793
      %v1922 = vadd.f32 %v1150, %v1794
      %v1923 = vadd.f32 %v1151, %v1795
      %v1924 = vadd.f32 %v1152, %v1796
      %v1925 = vadd.f32 %v1153, %v1797
      %v1926 = vadd.f32 %v1154, %v1798
      %v1927 = vadd.f32 %v1155, %v1799
      %v1928 = vadd.f32 %v1156, %v1800
      %v1929 = vadd.f32 %v1157, %v1801
      %v1930 = vadd.f32 %v1158, %v1802
      %v1931 = vadd.f32 %v1159, %v1803
      %v1932 = vadd.f32 %v1160, %v1804
      %v1933 = vadd.f32 %v1161, %v1805
      %v1934 = vadd.f32 %v1162, %v1806
      %v1935 = vadd.f32 %v1163, %v1807
      %v1936 = vadd.f32 %v1164, %v1808
      %v1937 = vadd.f32 %v1165, %v1809
      %v1938 = vadd.f32 %v1166, %v1810
      %v1939 = vadd.f32 %v1167, %v1811
      %v1940 = vadd.f32 %v1168, %v1812
      %v1941 = vadd.f32 %v1169, %v1813
      %v1942 = vadd.f32 %v1170, %v1814
      %v1943 = vadd.f32 %v1171, %v1815
      %v1944 = vadd.f32 %v1172, %v1816
      %v1945 = vadd.f32 %v1173, %v1817
      %v1946 = vadd.f32 %v1174, %v1818
      %v1947 = vadd.f32 %v1175, %v1819
      %v1948 = vadd.f32 %v1176, %v1820
      %v1949 = vadd.f32 %v1177, %v1821
      %v1950 = vadd.f32 %v1178, %v1822
      %v1951 = vadd.f32 %v1179, %v1823
      %v1952 = vadd.f32 %v1180, %v1824
      %v1953 = vadd.f32 %v1181, %v1825
      %v1954 = vadd.f32 %v1182, %v1826
      %v1955 = vadd.f32 %v1183, %v1827
      %v1956 = vadd.f32 %v1184, %v1828
      %v1957 = vadd.f32 %v1185, %v1829
      %v1958 = vadd.f32 %v1186, %v1830
      %v1959 = vadd.f32 %v1187, %v1831
      %v1960 = vadd.f32 %v1188, %v1832
      %v1961 = vadd.f32 %v1189, %v1833
      %v1962 = vadd.f32 %v1190, %v1834
      %v1963 = vadd.f32 %v1191, %v1835
      %v1964 = vadd.f32 %v1192, %v1836
      %v1965 = vadd.f32 %v1193, %v1837
      %v1966 = vadd.f32 %v1194, %v1838
      %v1967 = vadd.f32 %v1195, %v1839
      %v1968 = vadd.f32 %v1196, %v1840
      %v1969 = vadd.f32 %v1197, %v1841
      %v1970 = vadd.f32 %v1198, %v1842
      %v1971 = vadd.f32 %v1199, %v1843
      %v1972 = vadd.f32 %v1200, %v1844
      %v1973 = vadd.f32 %v1201, %v1845
      %v1974 = vadd.f32 %v1202, %v1846
      %v1975 = vadd.f32 %v1203, %v1847
      %v1976 = vadd.f32 %v1204, %v1848
      %v1977 = vadd.f32 %v1205, %v1849
      %v1978 = vadd.f32 %v1206, %v1850
      %v1979 = vadd.f32 %v1207, %v1851
      %v1980 = vadd.f32 %v1208, %v1852
      %v1981 = vadd.f32 %v1209, %v1853
      %v1982 = vadd.f32 %v1210, %v1854
      %v1983 = vadd.f32 %v1211, %v1855
      %v1984 = vadd.f32 %v1212, %v1856
      %v1985 = vadd.f32 %v1213, %v1857
      %v1986 = vadd.f32 %v1214, %v1858
      %v1987 = vadd.f32 %v1215, %v1859
      %v1988 = vadd.f32 %v1216, %v1860
      %v1989 = vadd.f32 %v1217, %v1861
      %v1990 = vadd.f32 %v1218, %v1862
      %v1991 = vadd.f32 %v1219, %v1863
      %v1992 = vadd.f32 %v1220, %v1864
      %v1993 = vadd.f32 %v1221, %v1865
      %v1994 = vadd.f32 %v1222, %v1866
      %v1995 = vadd.f32 %v1223, %v1867
      %v1996 = vadd.f32 %v1224, %v1868
      %v1997 = vadd.f32 %v1225, %v1869
      %v1998 = vadd.f32 %v1226, %v1870
      %v1999 = vadd.f32 %v1227, %v1871
      %v2000 = vadd.f32 %v1228, %v1872
      %v2001 = vadd.f32 %v1229, %v1873
      %v2002 = vadd.f32 %v1230, %v1874
      %v2003 = vadd.f32 %v1231, %v1875
      %2004 = vset.pattern.permute.xlu0 2
      %2005 = vperm.xlu0 %2004, %v331
      %v2006 = vpop.permute.xlu0 %2005
      %2008 = vset.pattern.permute.xlu0 2
      %2009 = vperm.xlu0 %2008, %v332
      %v2010 = vpop.permute.xlu0 %2009
      %2012 = vset.pattern.permute.xlu0 2
      %2013 = vperm.xlu0 %2012, %v333
      %v2014 = vpop.permute.xlu0 %2013
      %2016 = vset.pattern.permute.xlu0 2
      %2017 = vperm.xlu0 %2016, %v334
      %v2018 = vpop.permute.xlu0 %2017
      %2020 = vset.pattern.permute.xlu0 2
      %2021 = vperm.xlu0 %2020, %v335
      %v2022 = vpop.permute.xlu0 %2021
      %2024 = vset.pattern.permute.xlu0 2
      %2025 = vperm.xlu0 %2024, %v336
      %v2026 = vpop.permute.xlu0 %2025
      %2028 = vset.pattern.permute.xlu0 2
      %2029 = vperm.xlu0 %2028, %v337
      %v2030 = vpop.permute.xlu0 %2029
      %2032 = vset.pattern.permute.xlu0 2
      %2033 = vperm.xlu0 %2032, %v338
      %v2034 = vpop.permute.xlu0 %2033
      %2036 = vset.pattern.permute.xlu0 2
      %2037 = vperm.xlu0 %2036, %v339
      %v2038 = vpop.permute.xlu0 %2037
      %2040 = vset.pattern.permute.xlu0 2
      %2041 = vperm.xlu0 %2040, %v340
      %v2042 = vpop.permute.xlu0 %2041
      %2044 = vset.pattern.permute.xlu0 2
      %2045 = vperm.xlu0 %2044, %v341
      %v2046 = vpop.permute.xlu0 %2045
      %2048 = vset.pattern.permute.xlu0 2
      %2049 = vperm.xlu0 %2048, %v342
      %v2050 = vpop.permute.xlu0 %2049
      %2052 = vset.pattern.permute.xlu0 2
      %2053 = vperm.xlu0 %2052, %v343
      %v2054 = vpop.permute.xlu0 %2053
      %2056 = vset.pattern.permute.xlu0 2
      %2057 = vperm.xlu0 %2056, %v344
      %v2058 = vpop.permute.xlu0 %2057
      %2060 = vset.pattern.permute.xlu0 2
      %2061 = vperm.xlu0 %2060, %v345
      %v2062 = vpop.permute.xlu0 %2061
      %2064 = vset.pattern.permute.xlu0 2
      %2065 = vperm.xlu0 %2064, %v346
      %v2066 = vpop.permute.xlu0 %2065
      %2068 = vset.pattern.permute.xlu0 2
      %2069 = vperm.xlu0 %2068, %v347
      %v2070 = vpop.permute.xlu0 %2069
      %2072 = vset.pattern.permute.xlu0 2
      %2073 = vperm.xlu0 %2072, %v348
      %v2074 = vpop.permute.xlu0 %2073
      %2076 = vset.pattern.permute.xlu0 2
      %2077 = vperm.xlu0 %2076, %v349
      %v2078 = vpop.permute.xlu0 %2077
      %2080 = vset.pattern.permute.xlu0 2
      %2081 = vperm.xlu0 %2080, %v350
      %v2082 = vpop.permute.xlu0 %2081
      %2084 = vset.pattern.permute.xlu0 2
      %2085 = vperm.xlu0 %2084, %v351
      %v2086 = vpop.permute.xlu0 %2085
      %2088 = vset.pattern.permute.xlu0 2
      %2089 = vperm.xlu0 %2088, %v352
      %v2090 = vpop.permute.xlu0 %2089
      %2092 = vset.pattern.permute.xlu0 2
      %2093 = vperm.xlu0 %2092, %v353
      %v2094 = vpop.permute.xlu0 %2093
      %2096 = vset.pattern.permute.xlu0 2
      %2097 = vperm.xlu0 %2096, %v354
      %v2098 = vpop.permute.xlu0 %2097
      %2100 = vset.pattern.permute.xlu0 2
      %2101 = vperm.xlu0 %2100, %v355
      %v2102 = vpop.permute.xlu0 %2101
      %2104 = vset.pattern.permute.xlu0 2
      %2105 = vperm.xlu0 %2104, %v356
      %v2106 = vpop.permute.xlu0 %2105
      %2108 = vset.pattern.permute.xlu0 2
      %2109 = vperm.xlu0 %2108, %v357
      %v2110 = vpop.permute.xlu0 %2109
      %2112 = vset.pattern.permute.xlu0 2
      %2113 = vperm.xlu0 %2112, %v358
      %v2114 = vpop.permute.xlu0 %2113
      %2116 = vset.pattern.permute.xlu0 2
      %2117 = vperm.xlu0 %2116, %v359
      %v2118 = vpop.permute.xlu0 %2117
      %2120 = vset.pattern.permute.xlu0 2
      %2121 = vperm.xlu0 %2120, %v360
      %v2122 = vpop.permute.xlu0 %2121
      %2124 = vset.pattern.permute.xlu0 2
      %2125 = vperm.xlu0 %2124, %v361
      %v2126 = vpop.permute.xlu0 %2125
      %2128 = vset.pattern.permute.xlu0 2
      %2129 = vperm.xlu0 %2128, %v362
      %v2130 = vpop.permute.xlu0 %2129
      %2132 = vset.pattern.permute.xlu0 2
      %2133 = vperm.xlu0 %2132, %v363
      %v2134 = vpop.permute.xlu0 %2133
      %2136 = vset.pattern.permute.xlu0 2
      %2137 = vperm.xlu0 %2136, %v364
      %v2138 = vpop.permute.xlu0 %2137
      %2140 = vset.pattern.permute.xlu0 2
      %2141 = vperm.xlu0 %2140, %v365
      %v2142 = vpop.permute.xlu0 %2141
      %2144 = vset.pattern.permute.xlu0 2
      %2145 = vperm.xlu0 %2144, %v366
      %v2146 = vpop.permute.xlu0 %2145
      %2148 = vset.pattern.permute.xlu0 2
      %2149 = vperm.xlu0 %2148, %v367
      %v2150 = vpop.permute.xlu0 %2149
      %2152 = vset.pattern.permute.xlu0 2
      %2153 = vperm.xlu0 %2152, %v368
      %v2154 = vpop.permute.xlu0 %2153
      %2156 = vset.pattern.permute.xlu0 2
      %2157 = vperm.xlu0 %2156, %v369
      %v2158 = vpop.permute.xlu0 %2157
      %2160 = vset.pattern.permute.xlu0 2
      %2161 = vperm.xlu0 %2160, %v370
      %v2162 = vpop.permute.xlu0 %2161
      %2164 = vset.pattern.permute.xlu0 2
      %2165 = vperm.xlu0 %2164, %v371
      %v2166 = vpop.permute.xlu0 %2165
      %2168 = vset.pattern.permute.xlu0 2
      %2169 = vperm.xlu0 %2168, %v372
      %v2170 = vpop.permute.xlu0 %2169
      %2172 = vset.pattern.permute.xlu0 2
      %2173 = vperm.xlu0 %2172, %v373
      %v2174 = vpop.permute.xlu0 %2173
      %2176 = vset.pattern.permute.xlu0 2
      %2177 = vperm.xlu0 %2176, %v374
      %v2178 = vpop.permute.xlu0 %2177
      %2180 = vset.pattern.permute.xlu0 2
      %2181 = vperm.xlu0 %2180, %v375
      %v2182 = vpop.permute.xlu0 %2181
      %2184 = vset.pattern.permute.xlu0 2
      %2185 = vperm.xlu0 %2184, %v376
      %v2186 = vpop.permute.xlu0 %2185
      %2188 = vset.pattern.permute.xlu0 2
      %2189 = vperm.xlu0 %2188, %v377
      %v2190 = vpop.permute.xlu0 %2189
      %2192 = vset.pattern.permute.xlu0 2
      %2193 = vperm.xlu0 %2192, %v378
      %v2194 = vpop.permute.xlu0 %2193
      %2196 = vset.pattern.permute.xlu0 2
      %2197 = vperm.xlu0 %2196, %v379
      %v2198 = vpop.permute.xlu0 %2197
      %2200 = vset.pattern.permute.xlu0 2
      %2201 = vperm.xlu0 %2200, %v380
      %v2202 = vpop.permute.xlu0 %2201
      %2204 = vset.pattern.permute.xlu0 2
      %2205 = vperm.xlu0 %2204, %v381
      %v2206 = vpop.permute.xlu0 %2205
      %2208 = vset.pattern.permute.xlu0 2
      %2209 = vperm.xlu0 %2208, %v382
      %v2210 = vpop.permute.xlu0 %2209
      %2212 = vset.pattern.permute.xlu0 2
      %2213 = vperm.xlu0 %2212, %v383
      %v2214 = vpop.permute.xlu0 %2213
      %2216 = vset.pattern.permute.xlu0 2
      %2217 = vperm.xlu0 %2216, %v384
      %v2218 = vpop.permute.xlu0 %2217
      %2220 = vset.pattern.permute.xlu0 2
      %2221 = vperm.xlu0 %2220, %v385
      %v2222 = vpop.permute.xlu0 %2221
      %2224 = vset.pattern.permute.xlu0 2
      %2225 = vperm.xlu0 %2224, %v386
      %v2226 = vpop.permute.xlu0 %2225
      %2228 = vset.pattern.permute.xlu0 2
      %2229 = vperm.xlu0 %2228, %v387
      %v2230 = vpop.permute.xlu0 %2229
      %2232 = vset.pattern.permute.xlu0 2
      %2233 = vperm.xlu0 %2232, %v388
      %v2234 = vpop.permute.xlu0 %2233
      %2236 = vset.pattern.permute.xlu0 2
      %2237 = vperm.xlu0 %2236, %v389
      %v2238 = vpop.permute.xlu0 %2237
      %2240 = vset.pattern.permute.xlu0 2
      %2241 = vperm.xlu0 %2240, %v390
      %v2242 = vpop.permute.xlu0 %2241
      %2244 = vset.pattern.permute.xlu0 2
      %2245 = vperm.xlu0 %2244, %v391
      %v2246 = vpop.permute.xlu0 %2245
      %2248 = vset.pattern.permute.xlu0 2
      %2249 = vperm.xlu0 %2248, %v392
      %v2250 = vpop.permute.xlu0 %2249
      %2252 = vset.pattern.permute.xlu0 2
      %2253 = vperm.xlu0 %2252, %v393
      %v2254 = vpop.permute.xlu0 %2253
      %2256 = vset.pattern.permute.xlu0 2
      %2257 = vperm.xlu0 %2256, %v394
      %v2258 = vpop.permute.xlu0 %2257
      %2260 = vset.pattern.permute.xlu0 2
      %2261 = vperm.xlu0 %2260, %v395
      %v2262 = vpop.permute.xlu0 %2261
      %2264 = vset.pattern.permute.xlu0 2
      %2265 = vperm.xlu0 %2264, %v396
      %v2266 = vpop.permute.xlu0 %2265
      %2268 = vset.pattern.permute.xlu0 2
      %2269 = vperm.xlu0 %2268, %v397
      %v2270 = vpop.permute.xlu0 %2269
      %2272 = vset.pattern.permute.xlu0 2
      %2273 = vperm.xlu0 %2272, %v398
      %v2274 = vpop.permute.xlu0 %2273
      %2276 = vset.pattern.permute.xlu0 2
      %2277 = vperm.xlu0 %2276, %v399
      %v2278 = vpop.permute.xlu0 %2277
      %2280 = vset.pattern.permute.xlu0 2
      %2281 = vperm.xlu0 %2280, %v400
      %v2282 = vpop.permute.xlu0 %2281
      %2284 = vset.pattern.permute.xlu0 2
      %2285 = vperm.xlu0 %2284, %v401
      %v2286 = vpop.permute.xlu0 %2285
      %2288 = vset.pattern.permute.xlu0 2
      %2289 = vperm.xlu0 %2288, %v402
      %v2290 = vpop.permute.xlu0 %2289
      %2292 = vset.pattern.permute.xlu0 2
      %2293 = vperm.xlu0 %2292, %v403
      %v2294 = vpop.permute.xlu0 %2293
      %2296 = vset.pattern.permute.xlu0 2
      %2297 = vperm.xlu0 %2296, %v404
      %v2298 = vpop.permute.xlu0 %2297
      %2300 = vset.pattern.permute.xlu0 2
      %2301 = vperm.xlu0 %2300, %v405
      %v2302 = vpop.permute.xlu0 %2301
      %2304 = vset.pattern.permute.xlu0 2
      %2305 = vperm.xlu0 %2304, %v406
      %v2306 = vpop.permute.xlu0 %2305
      %2308 = vset.pattern.permute.xlu0 2
      %2309 = vperm.xlu0 %2308, %v407
      %v2310 = vpop.permute.xlu0 %2309
      %2312 = vset.pattern.permute.xlu0 2
      %2313 = vperm.xlu0 %2312, %v408
      %v2314 = vpop.permute.xlu0 %2313
      %2316 = vset.pattern.permute.xlu0 2
      %2317 = vperm.xlu0 %2316, %v409
      %v2318 = vpop.permute.xlu0 %2317
      %2320 = vset.pattern.permute.xlu0 2
      %2321 = vperm.xlu0 %2320, %v410
      %v2322 = vpop.permute.xlu0 %2321
      %2324 = vset.pattern.permute.xlu0 2
      %2325 = vperm.xlu0 %2324, %v411
      %v2326 = vpop.permute.xlu0 %2325
      %2328 = vset.pattern.permute.xlu0 2
      %2329 = vperm.xlu0 %2328, %v412
      %v2330 = vpop.permute.xlu0 %2329
      %2332 = vset.pattern.permute.xlu0 2
      %2333 = vperm.xlu0 %2332, %v413
      %v2334 = vpop.permute.xlu0 %2333
      %2336 = vset.pattern.permute.xlu0 2
      %2337 = vperm.xlu0 %2336, %v414
      %v2338 = vpop.permute.xlu0 %2337
      %2340 = vset.pattern.permute.xlu0 2
      %2341 = vperm.xlu0 %2340, %v415
      %v2342 = vpop.permute.xlu0 %2341
      %2344 = vset.pattern.permute.xlu0 2
      %2345 = vperm.xlu0 %2344, %v416
      %v2346 = vpop.permute.xlu0 %2345
      %2348 = vset.pattern.permute.xlu0 2
      %2349 = vperm.xlu0 %2348, %v417
      %v2350 = vpop.permute.xlu0 %2349
      %2352 = vset.pattern.permute.xlu0 2
      %2353 = vperm.xlu0 %2352, %v418
      %v2354 = vpop.permute.xlu0 %2353
      %2356 = vset.pattern.permute.xlu0 2
      %2357 = vperm.xlu0 %2356, %v419
      %v2358 = vpop.permute.xlu0 %2357
      %2360 = vset.pattern.permute.xlu0 2
      %2361 = vperm.xlu0 %2360, %v420
      %v2362 = vpop.permute.xlu0 %2361
      %2364 = vset.pattern.permute.xlu0 2
      %2365 = vperm.xlu0 %2364, %v421
      %v2366 = vpop.permute.xlu0 %2365
      %2368 = vset.pattern.permute.xlu0 2
      %2369 = vperm.xlu0 %2368, %v422
      %v2370 = vpop.permute.xlu0 %2369
      %2372 = vset.pattern.permute.xlu0 2
      %2373 = vperm.xlu0 %2372, %v423
      %v2374 = vpop.permute.xlu0 %2373
      %2376 = vset.pattern.permute.xlu0 2
      %2377 = vperm.xlu0 %2376, %v424
      %v2378 = vpop.permute.xlu0 %2377
      %2380 = vset.pattern.permute.xlu0 2
      %2381 = vperm.xlu0 %2380, %v425
      %v2382 = vpop.permute.xlu0 %2381
      %2384 = vset.pattern.permute.xlu0 2
      %2385 = vperm.xlu0 %2384, %v426
      %v2386 = vpop.permute.xlu0 %2385
      %2388 = vset.pattern.permute.xlu0 2
      %2389 = vperm.xlu0 %2388, %v427
      %v2390 = vpop.permute.xlu0 %2389
      %2392 = vset.pattern.permute.xlu0 2
      %2393 = vperm.xlu0 %2392, %v428
      %v2394 = vpop.permute.xlu0 %2393
      %2396 = vset.pattern.permute.xlu0 2
      %2397 = vperm.xlu0 %2396, %v429
      %v2398 = vpop.permute.xlu0 %2397
      %2400 = vset.pattern.permute.xlu0 2
      %2401 = vperm.xlu0 %2400, %v430
      %v2402 = vpop.permute.xlu0 %2401
      %2404 = vset.pattern.permute.xlu0 2
      %2405 = vperm.xlu0 %2404, %v431
      %v2406 = vpop.permute.xlu0 %2405
      %2408 = vset.pattern.permute.xlu0 2
      %2409 = vperm.xlu0 %2408, %v432
      %v2410 = vpop.permute.xlu0 %2409
      %2412 = vset.pattern.permute.xlu0 2
      %2413 = vperm.xlu0 %2412, %v433
      %v2414 = vpop.permute.xlu0 %2413
      %2416 = vset.pattern.permute.xlu0 2
      %2417 = vperm.xlu0 %2416, %v434
      %v2418 = vpop.permute.xlu0 %2417
      %2420 = vset.pattern.permute.xlu0 2
      %2421 = vperm.xlu0 %2420, %v435
      %v2422 = vpop.permute.xlu0 %2421
      %2424 = vset.pattern.permute.xlu0 2
      %2425 = vperm.xlu0 %2424, %v436
      %v2426 = vpop.permute.xlu0 %2425
      %2428 = vset.pattern.permute.xlu0 2
      %2429 = vperm.xlu0 %2428, %v437
      %v2430 = vpop.permute.xlu0 %2429
      %2432 = vset.pattern.permute.xlu0 2
      %2433 = vperm.xlu0 %2432, %v438
      %v2434 = vpop.permute.xlu0 %2433
      %2436 = vset.pattern.permute.xlu0 2
      %2437 = vperm.xlu0 %2436, %v439
      %v2438 = vpop.permute.xlu0 %2437
      %2440 = vset.pattern.permute.xlu0 2
      %2441 = vperm.xlu0 %2440, %v440
      %v2442 = vpop.permute.xlu0 %2441
      %2444 = vset.pattern.permute.xlu0 2
      %2445 = vperm.xlu0 %2444, %v441
      %v2446 = vpop.permute.xlu0 %2445
      %2448 = vset.pattern.permute.xlu0 2
      %2449 = vperm.xlu0 %2448, %v442
      %v2450 = vpop.permute.xlu0 %2449
      %2452 = vset.pattern.permute.xlu0 2
      %2453 = vperm.xlu0 %2452, %v443
      %v2454 = vpop.permute.xlu0 %2453
      %2456 = vset.pattern.permute.xlu0 2
      %2457 = vperm.xlu0 %2456, %v444
      %v2458 = vpop.permute.xlu0 %2457
      %2460 = vset.pattern.permute.xlu0 2
      %2461 = vperm.xlu0 %2460, %v445
      %v2462 = vpop.permute.xlu0 %2461
      %2464 = vset.pattern.permute.xlu0 2
      %2465 = vperm.xlu0 %2464, %v446
      %v2466 = vpop.permute.xlu0 %2465
      %2468 = vset.pattern.permute.xlu0 2
      %2469 = vperm.xlu0 %2468, %v447
      %v2470 = vpop.permute.xlu0 %2469
      %2472 = vset.pattern.permute.xlu0 2
      %2473 = vperm.xlu0 %2472, %v448
      %v2474 = vpop.permute.xlu0 %2473
      %2476 = vset.pattern.permute.xlu0 2
      %2477 = vperm.xlu0 %2476, %v449
      %v2478 = vpop.permute.xlu0 %2477
      %2480 = vset.pattern.permute.xlu0 2
      %2481 = vperm.xlu0 %2480, %v450
      %v2482 = vpop.permute.xlu0 %2481
      %2484 = vset.pattern.permute.xlu0 2
      %2485 = vperm.xlu0 %2484, %v451
      %v2486 = vpop.permute.xlu0 %2485
      %2488 = vset.pattern.permute.xlu0 2
      %2489 = vperm.xlu0 %2488, %v452
      %v2490 = vpop.permute.xlu0 %2489
      %2492 = vset.pattern.permute.xlu0 2
      %2493 = vperm.xlu0 %2492, %v453
      %v2494 = vpop.permute.xlu0 %2493
      %2496 = vset.pattern.permute.xlu0 2
      %2497 = vperm.xlu0 %2496, %v454
      %v2498 = vpop.permute.xlu0 %2497
      %2500 = vset.pattern.permute.xlu0 2
      %2501 = vperm.xlu0 %2500, %v455
      %v2502 = vpop.permute.xlu0 %2501
      %2504 = vset.pattern.permute.xlu0 2
      %2505 = vperm.xlu0 %2504, %v456
      %v2506 = vpop.permute.xlu0 %2505
      %2508 = vset.pattern.permute.xlu0 2
      %2509 = vperm.xlu0 %2508, %v457
      %v2510 = vpop.permute.xlu0 %2509
      %2512 = vset.pattern.permute.xlu0 2
      %2513 = vperm.xlu0 %2512, %v458
      %v2514 = vpop.permute.xlu0 %2513
      %v2516 = vlaneseq
      %v2517 = vshrl.u32 %v2516, 7
      %v2518 = vsub.s32 2, %v2517
      %v2519 = vrot.slane %v459, %v2518
      %v2520 = vmul.f32 %v2006, %v2519
      %v2521 = vmul.f32 %v2010, %v2519
      %v2522 = vmul.f32 %v2014, %v2519
      %v2523 = vmul.f32 %v2018, %v2519
      %v2524 = vmul.f32 %v2022, %v2519
      %v2525 = vmul.f32 %v2026, %v2519
      %v2526 = vmul.f32 %v2030, %v2519
      %v2527 = vmul.f32 %v2034, %v2519
      %v2528 = vmul.f32 %v2038, %v2519
      %v2529 = vmul.f32 %v2042, %v2519
      %v2530 = vmul.f32 %v2046, %v2519
      %v2531 = vmul.f32 %v2050, %v2519
      %v2532 = vmul.f32 %v2054, %v2519
      %v2533 = vmul.f32 %v2058, %v2519
      %v2534 = vmul.f32 %v2062, %v2519
      %v2535 = vmul.f32 %v2066, %v2519
      %v2536 = vmul.f32 %v2070, %v2519
      %v2537 = vmul.f32 %v2074, %v2519
      %v2538 = vmul.f32 %v2078, %v2519
      %v2539 = vmul.f32 %v2082, %v2519
      %v2540 = vmul.f32 %v2086, %v2519
      %v2541 = vmul.f32 %v2090, %v2519
      %v2542 = vmul.f32 %v2094, %v2519
      %v2543 = vmul.f32 %v2098, %v2519
      %v2544 = vmul.f32 %v2102, %v2519
      %v2545 = vmul.f32 %v2106, %v2519
      %v2546 = vmul.f32 %v2110, %v2519
      %v2547 = vmul.f32 %v2114, %v2519
      %v2548 = vmul.f32 %v2118, %v2519
      %v2549 = vmul.f32 %v2122, %v2519
      %v2550 = vmul.f32 %v2126, %v2519
      %v2551 = vmul.f32 %v2130, %v2519
      %v2552 = vmul.f32 %v2134, %v2519
      %v2553 = vmul.f32 %v2138, %v2519
      %v2554 = vmul.f32 %v2142, %v2519
      %v2555 = vmul.f32 %v2146, %v2519
      %v2556 = vmul.f32 %v2150, %v2519
      %v2557 = vmul.f32 %v2154, %v2519
      %v2558 = vmul.f32 %v2158, %v2519
      %v2559 = vmul.f32 %v2162, %v2519
      %v2560 = vmul.f32 %v2166, %v2519
      %v2561 = vmul.f32 %v2170, %v2519
      %v2562 = vmul.f32 %v2174, %v2519
      %v2563 = vmul.f32 %v2178, %v2519
      %v2564 = vmul.f32 %v2182, %v2519
      %v2565 = vmul.f32 %v2186, %v2519
      %v2566 = vmul.f32 %v2190, %v2519
      %v2567 = vmul.f32 %v2194, %v2519
      %v2568 = vmul.f32 %v2198, %v2519
      %v2569 = vmul.f32 %v2202, %v2519
      %v2570 = vmul.f32 %v2206, %v2519
      %v2571 = vmul.f32 %v2210, %v2519
      %v2572 = vmul.f32 %v2214, %v2519
      %v2573 = vmul.f32 %v2218, %v2519
      %v2574 = vmul.f32 %v2222, %v2519
      %v2575 = vmul.f32 %v2226, %v2519
      %v2576 = vmul.f32 %v2230, %v2519
      %v2577 = vmul.f32 %v2234, %v2519
      %v2578 = vmul.f32 %v2238, %v2519
      %v2579 = vmul.f32 %v2242, %v2519
      %v2580 = vmul.f32 %v2246, %v2519
      %v2581 = vmul.f32 %v2250, %v2519
      %v2582 = vmul.f32 %v2254, %v2519
      %v2583 = vmul.f32 %v2258, %v2519
      %v2584 = vmul.f32 %v2262, %v2519
      %v2585 = vmul.f32 %v2266, %v2519
      %v2586 = vmul.f32 %v2270, %v2519
      %v2587 = vmul.f32 %v2274, %v2519
      %v2588 = vmul.f32 %v2278, %v2519
      %v2589 = vmul.f32 %v2282, %v2519
      %v2590 = vmul.f32 %v2286, %v2519
      %v2591 = vmul.f32 %v2290, %v2519
      %v2592 = vmul.f32 %v2294, %v2519
      %v2593 = vmul.f32 %v2298, %v2519
      %v2594 = vmul.f32 %v2302, %v2519
      %v2595 = vmul.f32 %v2306, %v2519
      %v2596 = vmul.f32 %v2310, %v2519
      %v2597 = vmul.f32 %v2314, %v2519
      %v2598 = vmul.f32 %v2318, %v2519
      %v2599 = vmul.f32 %v2322, %v2519
      %v2600 = vmul.f32 %v2326, %v2519
      %v2601 = vmul.f32 %v2330, %v2519
      %v2602 = vmul.f32 %v2334, %v2519
      %v2603 = vmul.f32 %v2338, %v2519
      %v2604 = vmul.f32 %v2342, %v2519
      %v2605 = vmul.f32 %v2346, %v2519
      %v2606 = vmul.f32 %v2350, %v2519
      %v2607 = vmul.f32 %v2354, %v2519
      %v2608 = vmul.f32 %v2358, %v2519
      %v2609 = vmul.f32 %v2362, %v2519
      %v2610 = vmul.f32 %v2366, %v2519
      %v2611 = vmul.f32 %v2370, %v2519
      %v2612 = vmul.f32 %v2374, %v2519
      %v2613 = vmul.f32 %v2378, %v2519
      %v2614 = vmul.f32 %v2382, %v2519
      %v2615 = vmul.f32 %v2386, %v2519
      %v2616 = vmul.f32 %v2390, %v2519
      %v2617 = vmul.f32 %v2394, %v2519
      %v2618 = vmul.f32 %v2398, %v2519
      %v2619 = vmul.f32 %v2402, %v2519
      %v2620 = vmul.f32 %v2406, %v2519
      %v2621 = vmul.f32 %v2410, %v2519
      %v2622 = vmul.f32 %v2414, %v2519
      %v2623 = vmul.f32 %v2418, %v2519
      %v2624 = vmul.f32 %v2422, %v2519
      %v2625 = vmul.f32 %v2426, %v2519
      %v2626 = vmul.f32 %v2430, %v2519
      %v2627 = vmul.f32 %v2434, %v2519
      %v2628 = vmul.f32 %v2438, %v2519
      %v2629 = vmul.f32 %v2442, %v2519
      %v2630 = vmul.f32 %v2446, %v2519
      %v2631 = vmul.f32 %v2450, %v2519
      %v2632 = vmul.f32 %v2454, %v2519
      %v2633 = vmul.f32 %v2458, %v2519
      %v2634 = vmul.f32 %v2462, %v2519
      %v2635 = vmul.f32 %v2466, %v2519
      %v2636 = vmul.f32 %v2470, %v2519
      %v2637 = vmul.f32 %v2474, %v2519
      %v2638 = vmul.f32 %v2478, %v2519
      %v2639 = vmul.f32 %v2482, %v2519
      %v2640 = vmul.f32 %v2486, %v2519
      %v2641 = vmul.f32 %v2490, %v2519
      %v2642 = vmul.f32 %v2494, %v2519
      %v2643 = vmul.f32 %v2498, %v2519
      %v2644 = vmul.f32 %v2502, %v2519
      %v2645 = vmul.f32 %v2506, %v2519
      %v2646 = vmul.f32 %v2510, %v2519
      %v2647 = vmul.f32 %v2514, %v2519
      %v2648 = vadd.f32 %v1876, %v2520
      %v2649 = vadd.f32 %v1877, %v2521
      %v2650 = vadd.f32 %v1878, %v2522
      %v2651 = vadd.f32 %v1879, %v2523
      %v2652 = vadd.f32 %v1880, %v2524
      %v2653 = vadd.f32 %v1881, %v2525
      %v2654 = vadd.f32 %v1882, %v2526
      %v2655 = vadd.f32 %v1883, %v2527
      %v2656 = vadd.f32 %v1884, %v2528
      %v2657 = vadd.f32 %v1885, %v2529
      %v2658 = vadd.f32 %v1886, %v2530
      %v2659 = vadd.f32 %v1887, %v2531
      %v2660 = vadd.f32 %v1888, %v2532
      %v2661 = vadd.f32 %v1889, %v2533
      %v2662 = vadd.f32 %v1890, %v2534
      %v2663 = vadd.f32 %v1891, %v2535
      %v2664 = vadd.f32 %v1892, %v2536
      %v2665 = vadd.f32 %v1893, %v2537
      %v2666 = vadd.f32 %v1894, %v2538
      %v2667 = vadd.f32 %v1895, %v2539
      %v2668 = vadd.f32 %v1896, %v2540
      %v2669 = vadd.f32 %v1897, %v2541
      %v2670 = vadd.f32 %v1898, %v2542
      %v2671 = vadd.f32 %v1899, %v2543
      %v2672 = vadd.f32 %v1900, %v2544
      %v2673 = vadd.f32 %v1901, %v2545
      %v2674 = vadd.f32 %v1902, %v2546
      %v2675 = vadd.f32 %v1903, %v2547
      %v2676 = vadd.f32 %v1904, %v2548
      %v2677 = vadd.f32 %v1905, %v2549
      %v2678 = vadd.f32 %v1906, %v2550
      %v2679 = vadd.f32 %v1907, %v2551
      %v2680 = vadd.f32 %v1908, %v2552
      %v2681 = vadd.f32 %v1909, %v2553
      %v2682 = vadd.f32 %v1910, %v2554
      %v2683 = vadd.f32 %v1911, %v2555
      %v2684 = vadd.f32 %v1912, %v2556
      %v2685 = vadd.f32 %v1913, %v2557
      %v2686 = vadd.f32 %v1914, %v2558
      %v2687 = vadd.f32 %v1915, %v2559
      %v2688 = vadd.f32 %v1916, %v2560
      %v2689 = vadd.f32 %v1917, %v2561
      %v2690 = vadd.f32 %v1918, %v2562
      %v2691 = vadd.f32 %v1919, %v2563
      %v2692 = vadd.f32 %v1920, %v2564
      %v2693 = vadd.f32 %v1921, %v2565
      %v2694 = vadd.f32 %v1922, %v2566
      %v2695 = vadd.f32 %v1923, %v2567
      %v2696 = vadd.f32 %v1924, %v2568
      %v2697 = vadd.f32 %v1925, %v2569
      %v2698 = vadd.f32 %v1926, %v2570
      %v2699 = vadd.f32 %v1927, %v2571
      %v2700 = vadd.f32 %v1928, %v2572
      %v2701 = vadd.f32 %v1929, %v2573
      %v2702 = vadd.f32 %v1930, %v2574
      %v2703 = vadd.f32 %v1931, %v2575
      %v2704 = vadd.f32 %v1932, %v2576
      %v2705 = vadd.f32 %v1933, %v2577
      %v2706 = vadd.f32 %v1934, %v2578
      %v2707 = vadd.f32 %v1935, %v2579
      %v2708 = vadd.f32 %v1936, %v2580
      %v2709 = vadd.f32 %v1937, %v2581
      %v2710 = vadd.f32 %v1938, %v2582
      %v2711 = vadd.f32 %v1939, %v2583
      %v2712 = vadd.f32 %v1940, %v2584
      %v2713 = vadd.f32 %v1941, %v2585
      %v2714 = vadd.f32 %v1942, %v2586
      %v2715 = vadd.f32 %v1943, %v2587
      %v2716 = vadd.f32 %v1944, %v2588
      %v2717 = vadd.f32 %v1945, %v2589
      %v2718 = vadd.f32 %v1946, %v2590
      %v2719 = vadd.f32 %v1947, %v2591
      %v2720 = vadd.f32 %v1948, %v2592
      %v2721 = vadd.f32 %v1949, %v2593
      %v2722 = vadd.f32 %v1950, %v2594
      %v2723 = vadd.f32 %v1951, %v2595
      %v2724 = vadd.f32 %v1952, %v2596
      %v2725 = vadd.f32 %v1953, %v2597
      %v2726 = vadd.f32 %v1954, %v2598
      %v2727 = vadd.f32 %v1955, %v2599
      %v2728 = vadd.f32 %v1956, %v2600
      %v2729 = vadd.f32 %v1957, %v2601
      %v2730 = vadd.f32 %v1958, %v2602
      %v2731 = vadd.f32 %v1959, %v2603
      %v2732 = vadd.f32 %v1960, %v2604
      %v2733 = vadd.f32 %v1961, %v2605
      %v2734 = vadd.f32 %v1962, %v2606
      %v2735 = vadd.f32 %v1963, %v2607
      %v2736 = vadd.f32 %v1964, %v2608
      %v2737 = vadd.f32 %v1965, %v2609
      %v2738 = vadd.f32 %v1966, %v2610
      %v2739 = vadd.f32 %v1967, %v2611
      %v2740 = vadd.f32 %v1968, %v2612
      %v2741 = vadd.f32 %v1969, %v2613
      %v2742 = vadd.f32 %v1970, %v2614
      %v2743 = vadd.f32 %v1971, %v2615
      %v2744 = vadd.f32 %v1972, %v2616
      %v2745 = vadd.f32 %v1973, %v2617
      %v2746 = vadd.f32 %v1974, %v2618
      %v2747 = vadd.f32 %v1975, %v2619
      %v2748 = vadd.f32 %v1976, %v2620
      %v2749 = vadd.f32 %v1977, %v2621
      %v2750 = vadd.f32 %v1978, %v2622
      %v2751 = vadd.f32 %v1979, %v2623
      %v2752 = vadd.f32 %v1980, %v2624
      %v2753 = vadd.f32 %v1981, %v2625
      %v2754 = vadd.f32 %v1982, %v2626
      %v2755 = vadd.f32 %v1983, %v2627
      %v2756 = vadd.f32 %v1984, %v2628
      %v2757 = vadd.f32 %v1985, %v2629
      %v2758 = vadd.f32 %v1986, %v2630
      %v2759 = vadd.f32 %v1987, %v2631
      %v2760 = vadd.f32 %v1988, %v2632
      %v2761 = vadd.f32 %v1989, %v2633
      %v2762 = vadd.f32 %v1990, %v2634
      %v2763 = vadd.f32 %v1991, %v2635
      %v2764 = vadd.f32 %v1992, %v2636
      %v2765 = vadd.f32 %v1993, %v2637
      %v2766 = vadd.f32 %v1994, %v2638
      %v2767 = vadd.f32 %v1995, %v2639
      %v2768 = vadd.f32 %v1996, %v2640
      %v2769 = vadd.f32 %v1997, %v2641
      %v2770 = vadd.f32 %v1998, %v2642
      %v2771 = vadd.f32 %v1999, %v2643
      %v2772 = vadd.f32 %v2000, %v2644
      %v2773 = vadd.f32 %v2001, %v2645
      %v2774 = vadd.f32 %v2002, %v2646
      %v2775 = vadd.f32 %v2003, %v2647
      %v2776 = vld [vmem:[%s1] sm:$0x1]
      %v2778 = vlaneseq
      %v2779 = vshrl.u32 %v2778, 7
      %v2780 = vsub.s32 0, %v2779
      %v2781 = vrot.slane %v2776, %v2780
      %v2783 = vadd.f32 %v2648, %v2781
      %v2784 = vadd.f32 %v2649, %v2781
      %v2785 = vadd.f32 %v2650, %v2781
      %v2786 = vadd.f32 %v2651, %v2781
      %v2787 = vadd.f32 %v2652, %v2781
      %v2788 = vadd.f32 %v2653, %v2781
      %v2789 = vadd.f32 %v2654, %v2781
      %v2790 = vadd.f32 %v2655, %v2781
      %v2791 = vadd.f32 %v2656, %v2781
      %v2792 = vadd.f32 %v2657, %v2781
      %v2793 = vadd.f32 %v2658, %v2781
      %v2794 = vadd.f32 %v2659, %v2781
      %v2795 = vadd.f32 %v2660, %v2781
      %v2796 = vadd.f32 %v2661, %v2781
      %v2797 = vadd.f32 %v2662, %v2781
      %v2798 = vadd.f32 %v2663, %v2781
      %v2799 = vadd.f32 %v2664, %v2781
      %v2800 = vadd.f32 %v2665, %v2781
      %v2801 = vadd.f32 %v2666, %v2781
      %v2802 = vadd.f32 %v2667, %v2781
      %v2803 = vadd.f32 %v2668, %v2781
      %v2804 = vadd.f32 %v2669, %v2781
      %v2805 = vadd.f32 %v2670, %v2781
      %v2806 = vadd.f32 %v2671, %v2781
      %v2807 = vadd.f32 %v2672, %v2781
      %v2808 = vadd.f32 %v2673, %v2781
      %v2809 = vadd.f32 %v2674, %v2781
      %v2810 = vadd.f32 %v2675, %v2781
      %v2811 = vadd.f32 %v2676, %v2781
      %v2812 = vadd.f32 %v2677, %v2781
      %v2813 = vadd.f32 %v2678, %v2781
      %v2814 = vadd.f32 %v2679, %v2781
      %v2815 = vadd.f32 %v2680, %v2781
      %v2816 = vadd.f32 %v2681, %v2781
      %v2817 = vadd.f32 %v2682, %v2781
      %v2818 = vadd.f32 %v2683, %v2781
      %v2819 = vadd.f32 %v2684, %v2781
      %v2820 = vadd.f32 %v2685, %v2781
      %v2821 = vadd.f32 %v2686, %v2781
      %v2822 = vadd.f32 %v2687, %v2781
      %v2823 = vadd.f32 %v2688, %v2781
      %v2824 = vadd.f32 %v2689, %v2781
      %v2825 = vadd.f32 %v2690, %v2781
      %v2826 = vadd.f32 %v2691, %v2781
      %v2827 = vadd.f32 %v2692, %v2781
      %v2828 = vadd.f32 %v2693, %v2781
      %v2829 = vadd.f32 %v2694, %v2781
      %v2830 = vadd.f32 %v2695, %v2781
      %v2831 = vadd.f32 %v2696, %v2781
      %v2832 = vadd.f32 %v2697, %v2781
      %v2833 = vadd.f32 %v2698, %v2781
      %v2834 = vadd.f32 %v2699, %v2781
      %v2835 = vadd.f32 %v2700, %v2781
      %v2836 = vadd.f32 %v2701, %v2781
      %v2837 = vadd.f32 %v2702, %v2781
      %v2838 = vadd.f32 %v2703, %v2781
      %v2839 = vadd.f32 %v2704, %v2781
      %v2840 = vadd.f32 %v2705, %v2781
      %v2841 = vadd.f32 %v2706, %v2781
      %v2842 = vadd.f32 %v2707, %v2781
      %v2843 = vadd.f32 %v2708, %v2781
      %v2844 = vadd.f32 %v2709, %v2781
      %v2845 = vadd.f32 %v2710, %v2781
      %v2846 = vadd.f32 %v2711, %v2781
      %v2847 = vadd.f32 %v2712, %v2781
      %v2848 = vadd.f32 %v2713, %v2781
      %v2849 = vadd.f32 %v2714, %v2781
      %v2850 = vadd.f32 %v2715, %v2781
      %v2851 = vadd.f32 %v2716, %v2781
      %v2852 = vadd.f32 %v2717, %v2781
      %v2853 = vadd.f32 %v2718, %v2781
      %v2854 = vadd.f32 %v2719, %v2781
      %v2855 = vadd.f32 %v2720, %v2781
      %v2856 = vadd.f32 %v2721, %v2781
      %v2857 = vadd.f32 %v2722, %v2781
      %v2858 = vadd.f32 %v2723, %v2781
      %v2859 = vadd.f32 %v2724, %v2781
      %v2860 = vadd.f32 %v2725, %v2781
      %v2861 = vadd.f32 %v2726, %v2781
      %v2862 = vadd.f32 %v2727, %v2781
      %v2863 = vadd.f32 %v2728, %v2781
      %v2864 = vadd.f32 %v2729, %v2781
      %v2865 = vadd.f32 %v2730, %v2781
      %v2866 = vadd.f32 %v2731, %v2781
      %v2867 = vadd.f32 %v2732, %v2781
      %v2868 = vadd.f32 %v2733, %v2781
      %v2869 = vadd.f32 %v2734, %v2781
      %v2870 = vadd.f32 %v2735, %v2781
      %v2871 = vadd.f32 %v2736, %v2781
      %v2872 = vadd.f32 %v2737, %v2781
      %v2873 = vadd.f32 %v2738, %v2781
      %v2874 = vadd.f32 %v2739, %v2781
      %v2875 = vadd.f32 %v2740, %v2781
      %v2876 = vadd.f32 %v2741, %v2781
      %v2877 = vadd.f32 %v2742, %v2781
      %v2878 = vadd.f32 %v2743, %v2781
      %v2879 = vadd.f32 %v2744, %v2781
      %v2880 = vadd.f32 %v2745, %v2781
      %v2881 = vadd.f32 %v2746, %v2781
      %v2882 = vadd.f32 %v2747, %v2781
      %v2883 = vadd.f32 %v2748, %v2781
      %v2884 = vadd.f32 %v2749, %v2781
      %v2885 = vadd.f32 %v2750, %v2781
      %v2886 = vadd.f32 %v2751, %v2781
      %v2887 = vadd.f32 %v2752, %v2781
      %v2888 = vadd.f32 %v2753, %v2781
      %v2889 = vadd.f32 %v2754, %v2781
      %v2890 = vadd.f32 %v2755, %v2781
      %v2891 = vadd.f32 %v2756, %v2781
      %v2892 = vadd.f32 %v2757, %v2781
      %v2893 = vadd.f32 %v2758, %v2781
      %v2894 = vadd.f32 %v2759, %v2781
      %v2895 = vadd.f32 %v2760, %v2781
      %v2896 = vadd.f32 %v2761, %v2781
      %v2897 = vadd.f32 %v2762, %v2781
      %v2898 = vadd.f32 %v2763, %v2781
      %v2899 = vadd.f32 %v2764, %v2781
      %v2900 = vadd.f32 %v2765, %v2781
      %v2901 = vadd.f32 %v2766, %v2781
      %v2902 = vadd.f32 %v2767, %v2781
      %v2903 = vadd.f32 %v2768, %v2781
      %v2904 = vadd.f32 %v2769, %v2781
      %v2905 = vadd.f32 %v2770, %v2781
      %v2906 = vadd.f32 %v2771, %v2781
      %v2907 = vadd.f32 %v2772, %v2781
      %v2908 = vadd.f32 %v2773, %v2781
      %v2909 = vadd.f32 %v2774, %v2781
      %v2910 = vadd.f32 %v2775, %v2781
      %v2911 = vmax.f32 %v2783, 0.0
      %v2912 = vmax.f32 %v2784, 0.0
      %v2913 = vmax.f32 %v2785, 0.0
      %v2914 = vmax.f32 %v2786, 0.0
      %v2915 = vmax.f32 %v2787, 0.0
      %v2916 = vmax.f32 %v2788, 0.0
      %v2917 = vmax.f32 %v2789, 0.0
      %v2918 = vmax.f32 %v2790, 0.0
      %v2919 = vmax.f32 %v2791, 0.0
      %v2920 = vmax.f32 %v2792, 0.0
      %v2921 = vmax.f32 %v2793, 0.0
      %v2922 = vmax.f32 %v2794, 0.0
      %v2923 = vmax.f32 %v2795, 0.0
      %v2924 = vmax.f32 %v2796, 0.0
      %v2925 = vmax.f32 %v2797, 0.0
      %v2926 = vmax.f32 %v2798, 0.0
      %v2927 = vmax.f32 %v2799, 0.0
      %v2928 = vmax.f32 %v2800, 0.0
      %v2929 = vmax.f32 %v2801, 0.0
      %v2930 = vmax.f32 %v2802, 0.0
      %v2931 = vmax.f32 %v2803, 0.0
      %v2932 = vmax.f32 %v2804, 0.0
      %v2933 = vmax.f32 %v2805, 0.0
      %v2934 = vmax.f32 %v2806, 0.0
      %v2935 = vmax.f32 %v2807, 0.0
      %v2936 = vmax.f32 %v2808, 0.0
      %v2937 = vmax.f32 %v2809, 0.0
      %v2938 = vmax.f32 %v2810, 0.0
      %v2939 = vmax.f32 %v2811, 0.0
      %v2940 = vmax.f32 %v2812, 0.0
      %v2941 = vmax.f32 %v2813, 0.0
      %v2942 = vmax.f32 %v2814, 0.0
      %v2943 = vmax.f32 %v2815, 0.0
      %v2944 = vmax.f32 %v2816, 0.0
      %v2945 = vmax.f32 %v2817, 0.0
      %v2946 = vmax.f32 %v2818, 0.0
      %v2947 = vmax.f32 %v2819, 0.0
      %v2948 = vmax.f32 %v2820, 0.0
      %v2949 = vmax.f32 %v2821, 0.0
      %v2950 = vmax.f32 %v2822, 0.0
      %v2951 = vmax.f32 %v2823, 0.0
      %v2952 = vmax.f32 %v2824, 0.0
      %v2953 = vmax.f32 %v2825, 0.0
      %v2954 = vmax.f32 %v2826, 0.0
      %v2955 = vmax.f32 %v2827, 0.0
      %v2956 = vmax.f32 %v2828, 0.0
      %v2957 = vmax.f32 %v2829, 0.0
      %v2958 = vmax.f32 %v2830, 0.0
      %v2959 = vmax.f32 %v2831, 0.0
      %v2960 = vmax.f32 %v2832, 0.0
      %v2961 = vmax.f32 %v2833, 0.0
      %v2962 = vmax.f32 %v2834, 0.0
      %v2963 = vmax.f32 %v2835, 0.0
      %v2964 = vmax.f32 %v2836, 0.0
      %v2965 = vmax.f32 %v2837, 0.0
      %v2966 = vmax.f32 %v2838, 0.0
      %v2967 = vmax.f32 %v2839, 0.0
      %v2968 = vmax.f32 %v2840, 0.0
      %v2969 = vmax.f32 %v2841, 0.0
      %v2970 = vmax.f32 %v2842, 0.0
      %v2971 = vmax.f32 %v2843, 0.0
      %v2972 = vmax.f32 %v2844, 0.0
      %v2973 = vmax.f32 %v2845, 0.0
      %v2974 = vmax.f32 %v2846, 0.0
      %v2975 = vmax.f32 %v2847, 0.0
      %v2976 = vmax.f32 %v2848, 0.0
      %v2977 = vmax.f32 %v2849, 0.0
      %v2978 = vmax.f32 %v2850, 0.0
      %v2979 = vmax.f32 %v2851, 0.0
      %v2980 = vmax.f32 %v2852, 0.0
      %v2981 = vmax.f32 %v2853, 0.0
      %v2982 = vmax.f32 %v2854, 0.0
      %v2983 = vmax.f32 %v2855, 0.0
      %v2984 = vmax.f32 %v2856, 0.0
      %v2985 = vmax.f32 %v2857, 0.0
      %v2986 = vmax.f32 %v2858, 0.0
      %v2987 = vmax.f32 %v2859, 0.0
      %v2988 = vmax.f32 %v2860, 0.0
      %v2989 = vmax.f32 %v2861, 0.0
      %v2990 = vmax.f32 %v2862, 0.0
      %v2991 = vmax.f32 %v2863, 0.0
      %v2992 = vmax.f32 %v2864, 0.0
      %v2993 = vmax.f32 %v2865, 0.0
      %v2994 = vmax.f32 %v2866, 0.0
      %v2995 = vmax.f32 %v2867, 0.0
      %v2996 = vmax.f32 %v2868, 0.0
      %v2997 = vmax.f32 %v2869, 0.0
      %v2998 = vmax.f32 %v2870, 0.0
      %v2999 = vmax.f32 %v2871, 0.0
      %v3000 = vmax.f32 %v2872, 0.0
      %v3001 = vmax.f32 %v2873, 0.0
      %v3002 = vmax.f32 %v2874, 0.0
      %v3003 = vmax.f32 %v2875, 0.0
      %v3004 = vmax.f32 %v2876, 0.0
      %v3005 = vmax.f32 %v2877, 0.0
      %v3006 = vmax.f32 %v2878, 0.0
      %v3007 = vmax.f32 %v2879, 0.0
      %v3008 = vmax.f32 %v2880, 0.0
      %v3009 = vmax.f32 %v2881, 0.0
      %v3010 = vmax.f32 %v2882, 0.0
      %v3011 = vmax.f32 %v2883, 0.0
      %v3012 = vmax.f32 %v2884, 0.0
      %v3013 = vmax.f32 %v2885, 0.0
      %v3014 = vmax.f32 %v2886, 0.0
      %v3015 = vmax.f32 %v2887, 0.0
      %v3016 = vmax.f32 %v2888, 0.0
      %v3017 = vmax.f32 %v2889, 0.0
      %v3018 = vmax.f32 %v2890, 0.0
      %v3019 = vmax.f32 %v2891, 0.0
      %v3020 = vmax.f32 %v2892, 0.0
      %v3021 = vmax.f32 %v2893, 0.0
      %v3022 = vmax.f32 %v2894, 0.0
      %v3023 = vmax.f32 %v2895, 0.0
      %v3024 = vmax.f32 %v2896, 0.0
      %v3025 = vmax.f32 %v2897, 0.0
      %v3026 = vmax.f32 %v2898, 0.0
      %v3027 = vmax.f32 %v2899, 0.0
      %v3028 = vmax.f32 %v2900, 0.0
      %v3029 = vmax.f32 %v2901, 0.0
      %v3030 = vmax.f32 %v2902, 0.0
      %v3031 = vmax.f32 %v2903, 0.0
      %v3032 = vmax.f32 %v2904, 0.0
      %v3033 = vmax.f32 %v2905, 0.0
      %v3034 = vmax.f32 %v2906, 0.0
      %v3035 = vmax.f32 %v2907, 0.0
      %v3036 = vmax.f32 %v2908, 0.0
      %v3037 = vmax.f32 %v2909, 0.0
      %v3038 = vmax.f32 %v2910, 0.0
      %v3039 = vpack.c.bf16 %v2912, %v2911
      %v3040 = vpack.c.bf16 %v2914, %v2913
      %v3041 = vpack.c.bf16 %v2916, %v2915
      %v3042 = vpack.c.bf16 %v2918, %v2917
      %v3043 = vpack.c.bf16 %v2920, %v2919
      %v3044 = vpack.c.bf16 %v2922, %v2921
      %v3045 = vpack.c.bf16 %v2924, %v2923
      %v3046 = vpack.c.bf16 %v2926, %v2925
      %v3047 = vpack.c.bf16 %v2928, %v2927
      %v3048 = vpack.c.bf16 %v2930, %v2929
      %v3049 = vpack.c.bf16 %v2932, %v2931
      %v3050 = vpack.c.bf16 %v2934, %v2933
      %v3051 = vpack.c.bf16 %v2936, %v2935
      %v3052 = vpack.c.bf16 %v2938, %v2937
      %v3053 = vpack.c.bf16 %v2940, %v2939
      %v3054 = vpack.c.bf16 %v2942, %v2941
      %v3055 = vpack.c.bf16 %v2944, %v2943
      %v3056 = vpack.c.bf16 %v2946, %v2945
      %v3057 = vpack.c.bf16 %v2948, %v2947
      %v3058 = vpack.c.bf16 %v2950, %v2949
      %v3059 = vpack.c.bf16 %v2952, %v2951
      %v3060 = vpack.c.bf16 %v2954, %v2953
      %v3061 = vpack.c.bf16 %v2956, %v2955
      %v3062 = vpack.c.bf16 %v2958, %v2957
      %v3063 = vpack.c.bf16 %v2960, %v2959
      %v3064 = vpack.c.bf16 %v2962, %v2961
      %v3065 = vpack.c.bf16 %v2964, %v2963
      %v3066 = vpack.c.bf16 %v2966, %v2965
      %v3067 = vpack.c.bf16 %v2968, %v2967
      %v3068 = vpack.c.bf16 %v2970, %v2969
      %v3069 = vpack.c.bf16 %v2972, %v2971
      %v3070 = vpack.c.bf16 %v2974, %v2973
      %v3071 = vpack.c.bf16 %v2976, %v2975
      %v3072 = vpack.c.bf16 %v2978, %v2977
      %v3073 = vpack.c.bf16 %v2980, %v2979
      %v3074 = vpack.c.bf16 %v2982, %v2981
      %v3075 = vpack.c.bf16 %v2984, %v2983
      %v3076 = vpack.c.bf16 %v2986, %v2985
      %v3077 = vpack.c.bf16 %v2988, %v2987
      %v3078 = vpack.c.bf16 %v2990, %v2989
      %v3079 = vpack.c.bf16 %v2992, %v2991
      %v3080 = vpack.c.bf16 %v2994, %v2993
      %v3081 = vpack.c.bf16 %v2996, %v2995
      %v3082 = vpack.c.bf16 %v2998, %v2997
      %v3083 = vpack.c.bf16 %v3000, %v2999
      %v3084 = vpack.c.bf16 %v3002, %v3001
      %v3085 = vpack.c.bf16 %v3004, %v3003
      %v3086 = vpack.c.bf16 %v3006, %v3005
      %v3087 = vpack.c.bf16 %v3008, %v3007
      %v3088 = vpack.c.bf16 %v3010, %v3009
      %v3089 = vpack.c.bf16 %v3012, %v3011
      %v3090 = vpack.c.bf16 %v3014, %v3013
      %v3091 = vpack.c.bf16 %v3016, %v3015
      %v3092 = vpack.c.bf16 %v3018, %v3017
      %v3093 = vpack.c.bf16 %v3020, %v3019
      %v3094 = vpack.c.bf16 %v3022, %v3021
      %v3095 = vpack.c.bf16 %v3024, %v3023
      %v3096 = vpack.c.bf16 %v3026, %v3025
      %v3097 = vpack.c.bf16 %v3028, %v3027
      %v3098 = vpack.c.bf16 %v3030, %v3029
      %v3099 = vpack.c.bf16 %v3032, %v3031
      %v3100 = vpack.c.bf16 %v3034, %v3033
      %v3101 = vpack.c.bf16 %v3036, %v3035
      %v3102 = vpack.c.bf16 %v3038, %v3037
      %v3103 = vld [vmem:[%s3] sm:$0xf]
      %v3104 = vld [vmem:[%s3 + $0x4] sm:$0xf]
      %v3105 = vld [vmem:[%s3 + $0x8] sm:$0xf]
      %v3106 = vld [vmem:[%s3 + $0xc] sm:$0xf]
      %v3107 = vld [vmem:[%s3 + $0x10] sm:$0xf]
      %v3108 = vld [vmem:[%s3 + $0x14] sm:$0xf]
      %v3109 = vld [vmem:[%s3 + $0x18] sm:$0xf]
      %v3110 = vld [vmem:[%s3 + $0x1c] sm:$0xf]
      %v3111 = vld [vmem:[%s1 + $0x1] sm:$0x1]
      %v3113 = vlaneseq
      %v3114 = vshrl.u32 %v3113, 7
      %v3115 = vsub.s32 0, %v3114
      %v3116 = vrot.slane %v3111, %v3115
      %v3126 = vunpack.c.l.b16 %v3103
      %v3127 = vunpack.c.l.b16 %v3104
      %v3128 = vunpack.c.l.b16 %v3105
      %v3129 = vunpack.c.l.b16 %v3106
      %v3130 = vunpack.c.l.b16 %v3107
      %v3131 = vunpack.c.l.b16 %v3108
      %v3132 = vunpack.c.l.b16 %v3109
      %v3133 = vunpack.c.l.b16 %v3110
      %v3134 = vpack.c.b16 %v3127, %v3126
      %v3135 = vpack.c.b16 %v3129, %v3128
      %v3136 = vpack.c.b16 %v3131, %v3130
      %v3137 = vpack.c.b16 %v3133, %v3132
      %vm3142 = vcmask 523264
      %v3144 = vsel %vm3142, %v3039, 0
      %v3147 = vsel %vm3142, %v3040, 0
      %v3150 = vsel %vm3142, %v3041, 0
      %v3153 = vsel %vm3142, %v3042, 0
      %v3156 = vsel %vm3142, %v3043, 0
      %v3159 = vsel %vm3142, %v3044, 0
      %v3162 = vsel %vm3142, %v3045, 0
      %v3165 = vsel %vm3142, %v3046, 0
      %v3168 = vsel %vm3142, %v3047, 0
      %v3171 = vsel %vm3142, %v3048, 0
      %v3174 = vsel %vm3142, %v3049, 0
      %v3177 = vsel %vm3142, %v3050, 0
      %v3180 = vsel %vm3142, %v3051, 0
      %v3183 = vsel %vm3142, %v3052, 0
      %v3186 = vsel %vm3142, %v3053, 0
      %v3189 = vsel %vm3142, %v3054, 0
      %v3192 = vsel %vm3142, %v3055, 0
      %v3195 = vsel %vm3142, %v3056, 0
      %v3198 = vsel %vm3142, %v3057, 0
      %v3201 = vsel %vm3142, %v3058, 0
      %v3204 = vsel %vm3142, %v3059, 0
      %v3207 = vsel %vm3142, %v3060, 0
      %v3210 = vsel %vm3142, %v3061, 0
      %v3213 = vsel %vm3142, %v3062, 0
      %v3216 = vsel %vm3142, %v3063, 0
      %v3219 = vsel %vm3142, %v3064, 0
      %v3222 = vsel %vm3142, %v3065, 0
      %v3225 = vsel %vm3142, %v3066, 0
      %v3228 = vsel %vm3142, %v3067, 0
      %v3231 = vsel %vm3142, %v3068, 0
      %v3234 = vsel %vm3142, %v3069, 0
      %v3237 = vsel %vm3142, %v3070, 0
      %v3240 = vsel %vm3142, %v3071, 0
      %v3243 = vsel %vm3142, %v3072, 0
      %v3246 = vsel %vm3142, %v3073, 0
      %v3249 = vsel %vm3142, %v3074, 0
      %v3252 = vsel %vm3142, %v3075, 0
      %v3255 = vsel %vm3142, %v3076, 0
      %v3258 = vsel %vm3142, %v3077, 0
      %v3261 = vsel %vm3142, %v3078, 0
      %v3264 = vsel %vm3142, %v3079, 0
      %v3267 = vsel %vm3142, %v3080, 0
      %v3270 = vsel %vm3142, %v3081, 0
      %v3273 = vsel %vm3142, %v3082, 0
      %v3276 = vsel %vm3142, %v3083, 0
      %v3279 = vsel %vm3142, %v3084, 0
      %v3282 = vsel %vm3142, %v3085, 0
      %v3285 = vsel %vm3142, %v3086, 0
      %v3288 = vsel %vm3142, %v3087, 0
      %v3291 = vsel %vm3142, %v3088, 0
      %v3294 = vsel %vm3142, %v3089, 0
      %v3297 = vsel %vm3142, %v3090, 0
      %v3300 = vsel %vm3142, %v3091, 0
      %v3303 = vsel %vm3142, %v3092, 0
      %v3306 = vsel %vm3142, %v3093, 0
      %v3309 = vsel %vm3142, %v3094, 0
      %v3312 = vsel %vm3142, %v3095, 0
      %v3315 = vsel %vm3142, %v3096, 0
      %v3318 = vsel %vm3142, %v3097, 0
      %v3321 = vsel %vm3142, %v3098, 0
      %v3324 = vsel %vm3142, %v3099, 0
      %v3327 = vsel %vm3142, %v3100, 0
      %v3330 = vsel %vm3142, %v3101, 0
      %v3333 = vsel %vm3142, %v3102, 0
      %3335 = vmatprep.subr.bf16.mxu0 0
      %3336 = vmatpush1.bf16.msra.mxu0 0
      %3337 = vmatprep.subr.bf16.mxu0 0
      %3338 = vmatpush1.bf16.msra.mxu0 0
      %3339 = vmatprep.subr.bf16.mxu0 0
      %3340 = vmatpush1.bf16.msra.mxu0 0
      %3341 = vmatprep.subr.bf16.mxu0 0
      %3342 = vmatpush1.bf16.msra.mxu0 0
      %3343 = vmatprep.subr.bf16.mxu0 0
      %3344 = vmatpush1.bf16.msra.mxu0 %v3137
      %3345 = vmatprep.subr.bf16.mxu0 0
      %3346 = vmatpush1.bf16.msra.mxu0 %v3136
      %3347 = vmatprep.subr.bf16.mxu0 0
      %3348 = vmatpush1.bf16.msra.mxu0 %v3135
      %3349 = vmatprep.subr.bf16.mxu0 0
      %3350 = vmatpush1.bf16.msra.mxu0 %v3134
      %3351 = vmatprep.subr.bf16.mxu0 0
      %3352 = vmatpush2.bf16.msra.mxu0 0
      %3353 = vmatprep.subr.bf16.mxu0 0
      %3354 = vmatpush2.bf16.msra.mxu0 0
      %3355 = vmatprep.subr.bf16.mxu0 0
      %3356 = vmatpush2.bf16.msra.mxu0 0
      %3357 = vmatprep.subr.bf16.mxu0 0
      %3358 = vmatpush2.bf16.msra.mxu0 0
      %3359 = vmatprep.subr.bf16.mxu0 0
      %3360 = vmatpush2.bf16.msra.mxu0 0
      %3361 = vmatprep.subr.bf16.mxu0 0
      %3362 = vmatpush2.bf16.msra.mxu0 0
      %3363 = vmatprep.subr.bf16.mxu0 0
      %3364 = vmatpush2.bf16.msra.mxu0 0
      %3365 = vmatprep.subr.bf16.mxu0 0
      %3366 = vmatpush2.bf16.msra.mxu0 0
      %3367 = vmatprep.mubr.bf16.mxu0 0
      %3368 = vmatmul.mubr.bf16.gmra.mxu0 %v3144
      %v3369 = vpop.f32.mrf.mxu0
      %v3370 = vadd.f32 %v3116, %v3369
      %v3371 = vpop.f32.mrf.mxu0
      %v3372 = vpop.f32.mrf.mxu0
      %v3373 = vadd.f32 %v3116, %v3372
      %v3374 = vpop.f32.mrf.mxu0
      %3375 = vmatprep.mubr.bf16.mxu0 0
      %3376 = vmatmul.mubr.bf16.gmra.mxu0 %v3147
      %v3377 = vpop.f32.mrf.mxu0
      %v3378 = vadd.f32 %v3116, %v3377
      %v3379 = vpop.f32.mrf.mxu0
      %v3380 = vpop.f32.mrf.mxu0
      %v3381 = vadd.f32 %v3116, %v3380
      %v3382 = vpop.f32.mrf.mxu0
      %3383 = vmatprep.mubr.bf16.mxu0 0
      %3384 = vmatmul.mubr.bf16.gmra.mxu0 %v3150
      %v3385 = vpop.f32.mrf.mxu0
      %v3386 = vadd.f32 %v3116, %v3385
      %v3387 = vpop.f32.mrf.mxu0
      %v3388 = vpop.f32.mrf.mxu0
      %v3389 = vadd.f32 %v3116, %v3388
      %v3390 = vpop.f32.mrf.mxu0
      %3391 = vmatprep.mubr.bf16.mxu0 0
      %3392 = vmatmul.mubr.bf16.gmra.mxu0 %v3153
      %v3393 = vpop.f32.mrf.mxu0
      %v3394 = vadd.f32 %v3116, %v3393
      %v3395 = vpop.f32.mrf.mxu0
      %v3396 = vpop.f32.mrf.mxu0
      %v3397 = vadd.f32 %v3116, %v3396
      %v3398 = vpop.f32.mrf.mxu0
      %3399 = vmatprep.mubr.bf16.mxu0 0
      %3400 = vmatmul.mubr.bf16.gmra.mxu0 %v3156
      %v3401 = vpop.f32.mrf.mxu0
      %v3402 = vadd.f32 %v3116, %v3401
      %v3403 = vpop.f32.mrf.mxu0
      %v3404 = vpop.f32.mrf.mxu0
      %v3405 = vadd.f32 %v3116, %v3404
      %v3406 = vpop.f32.mrf.mxu0
      %3407 = vmatprep.mubr.bf16.mxu0 0
      %3408 = vmatmul.mubr.bf16.gmra.mxu0 %v3159
      %v3409 = vpop.f32.mrf.mxu0
      %v3410 = vadd.f32 %v3116, %v3409
      %v3411 = vpop.f32.mrf.mxu0
      %v3412 = vpop.f32.mrf.mxu0
      %v3413 = vadd.f32 %v3116, %v3412
      %v3414 = vpop.f32.mrf.mxu0
      %3415 = vmatprep.mubr.bf16.mxu0 0
      %3416 = vmatmul.mubr.bf16.gmra.mxu0 %v3162
      %v3417 = vpop.f32.mrf.mxu0
      %v3418 = vadd.f32 %v3116, %v3417
      %v3419 = vpop.f32.mrf.mxu0
      %v3420 = vpop.f32.mrf.mxu0
      %v3421 = vadd.f32 %v3116, %v3420
      %v3422 = vpop.f32.mrf.mxu0
      %3423 = vmatprep.mubr.bf16.mxu0 0
      %3424 = vmatmul.mubr.bf16.gmra.mxu0 %v3165
      %v3425 = vpop.f32.mrf.mxu0
      %v3426 = vadd.f32 %v3116, %v3425
      %v3427 = vpop.f32.mrf.mxu0
      %v3428 = vpop.f32.mrf.mxu0
      %v3429 = vadd.f32 %v3116, %v3428
      %v3430 = vpop.f32.mrf.mxu0
      %3431 = vmatprep.mubr.bf16.mxu0 0
      %3432 = vmatmul.mubr.bf16.gmra.mxu0 %v3168
      %v3433 = vpop.f32.mrf.mxu0
      %v3434 = vadd.f32 %v3116, %v3433
      %v3435 = vpop.f32.mrf.mxu0
      %v3436 = vpop.f32.mrf.mxu0
      %v3437 = vadd.f32 %v3116, %v3436
      %v3438 = vpop.f32.mrf.mxu0
      %3439 = vmatprep.mubr.bf16.mxu0 0
      %3440 = vmatmul.mubr.bf16.gmra.mxu0 %v3171
      %v3441 = vpop.f32.mrf.mxu0
      %v3442 = vadd.f32 %v3116, %v3441
      %v3443 = vpop.f32.mrf.mxu0
      %v3444 = vpop.f32.mrf.mxu0
      %v3445 = vadd.f32 %v3116, %v3444
      %v3446 = vpop.f32.mrf.mxu0
      %3447 = vmatprep.mubr.bf16.mxu0 0
      %3448 = vmatmul.mubr.bf16.gmra.mxu0 %v3174
      %v3449 = vpop.f32.mrf.mxu0
      %v3450 = vadd.f32 %v3116, %v3449
      %v3451 = vpop.f32.mrf.mxu0
      %v3452 = vpop.f32.mrf.mxu0
      %v3453 = vadd.f32 %v3116, %v3452
      %v3454 = vpop.f32.mrf.mxu0
      %3455 = vmatprep.mubr.bf16.mxu0 0
      %3456 = vmatmul.mubr.bf16.gmra.mxu0 %v3177
      %v3457 = vpop.f32.mrf.mxu0
      %v3458 = vadd.f32 %v3116, %v3457
      %v3459 = vpop.f32.mrf.mxu0
      %v3460 = vpop.f32.mrf.mxu0
      %v3461 = vadd.f32 %v3116, %v3460
      %v3462 = vpop.f32.mrf.mxu0
      %3463 = vmatprep.mubr.bf16.mxu0 0
      %3464 = vmatmul.mubr.bf16.gmra.mxu0 %v3180
      %v3465 = vpop.f32.mrf.mxu0
      %v3466 = vadd.f32 %v3116, %v3465
      %v3467 = vpop.f32.mrf.mxu0
      %v3468 = vpop.f32.mrf.mxu0
      %v3469 = vadd.f32 %v3116, %v3468
      %v3470 = vpop.f32.mrf.mxu0
      %3471 = vmatprep.mubr.bf16.mxu0 0
      %3472 = vmatmul.mubr.bf16.gmra.mxu0 %v3183
      %v3473 = vpop.f32.mrf.mxu0
      %v3474 = vadd.f32 %v3116, %v3473
      %v3475 = vpop.f32.mrf.mxu0
      %v3476 = vpop.f32.mrf.mxu0
      %v3477 = vadd.f32 %v3116, %v3476
      %v3478 = vpop.f32.mrf.mxu0
      %3479 = vmatprep.mubr.bf16.mxu0 0
      %3480 = vmatmul.mubr.bf16.gmra.mxu0 %v3186
      %v3481 = vpop.f32.mrf.mxu0
      %v3482 = vadd.f32 %v3116, %v3481
      %v3483 = vpop.f32.mrf.mxu0
      %v3484 = vpop.f32.mrf.mxu0
      %v3485 = vadd.f32 %v3116, %v3484
      %v3486 = vpop.f32.mrf.mxu0
      %3487 = vmatprep.mubr.bf16.mxu0 0
      %3488 = vmatmul.mubr.bf16.gmra.mxu0 %v3189
      %v3489 = vpop.f32.mrf.mxu0
      %v3490 = vadd.f32 %v3116, %v3489
      %v3491 = vpop.f32.mrf.mxu0
      %v3492 = vpop.f32.mrf.mxu0
      %v3493 = vadd.f32 %v3116, %v3492
      %v3494 = vpop.f32.mrf.mxu0
      %3495 = vmatprep.mubr.bf16.mxu0 0
      %3496 = vmatmul.mubr.bf16.gmra.mxu0 %v3192
      %v3497 = vpop.f32.mrf.mxu0
      %v3498 = vadd.f32 %v3116, %v3497
      %v3499 = vpop.f32.mrf.mxu0
      %v3500 = vpop.f32.mrf.mxu0
      %v3501 = vadd.f32 %v3116, %v3500
      %v3502 = vpop.f32.mrf.mxu0
      %3503 = vmatprep.mubr.bf16.mxu0 0
      %3504 = vmatmul.mubr.bf16.gmra.mxu0 %v3195
      %v3505 = vpop.f32.mrf.mxu0
      %v3506 = vadd.f32 %v3116, %v3505
      %v3507 = vpop.f32.mrf.mxu0
      %v3508 = vpop.f32.mrf.mxu0
      %v3509 = vadd.f32 %v3116, %v3508
      %v3510 = vpop.f32.mrf.mxu0
      %3511 = vmatprep.mubr.bf16.mxu0 0
      %3512 = vmatmul.mubr.bf16.gmra.mxu0 %v3198
      %v3513 = vpop.f32.mrf.mxu0
      %v3514 = vadd.f32 %v3116, %v3513
      %v3515 = vpop.f32.mrf.mxu0
      %v3516 = vpop.f32.mrf.mxu0
      %v3517 = vadd.f32 %v3116, %v3516
      %v3518 = vpop.f32.mrf.mxu0
      %3519 = vmatprep.mubr.bf16.mxu0 0
      %3520 = vmatmul.mubr.bf16.gmra.mxu0 %v3201
      %v3521 = vpop.f32.mrf.mxu0
      %v3522 = vadd.f32 %v3116, %v3521
      %v3523 = vpop.f32.mrf.mxu0
      %v3524 = vpop.f32.mrf.mxu0
      %v3525 = vadd.f32 %v3116, %v3524
      %v3526 = vpop.f32.mrf.mxu0
      %3527 = vmatprep.mubr.bf16.mxu0 0
      %3528 = vmatmul.mubr.bf16.gmra.mxu0 %v3204
      %v3529 = vpop.f32.mrf.mxu0
      %v3530 = vadd.f32 %v3116, %v3529
      %v3531 = vpop.f32.mrf.mxu0
      %v3532 = vpop.f32.mrf.mxu0
      %v3533 = vadd.f32 %v3116, %v3532
      %v3534 = vpop.f32.mrf.mxu0
      %3535 = vmatprep.mubr.bf16.mxu0 0
      %3536 = vmatmul.mubr.bf16.gmra.mxu0 %v3207
      %v3537 = vpop.f32.mrf.mxu0
      %v3538 = vadd.f32 %v3116, %v3537
      %v3539 = vpop.f32.mrf.mxu0
      %v3540 = vpop.f32.mrf.mxu0
      %v3541 = vadd.f32 %v3116, %v3540
      %v3542 = vpop.f32.mrf.mxu0
      %3543 = vmatprep.mubr.bf16.mxu0 0
      %3544 = vmatmul.mubr.bf16.gmra.mxu0 %v3210
      %v3545 = vpop.f32.mrf.mxu0
      %v3546 = vadd.f32 %v3116, %v3545
      %v3547 = vpop.f32.mrf.mxu0
      %v3548 = vpop.f32.mrf.mxu0
      %v3549 = vadd.f32 %v3116, %v3548
      %v3550 = vpop.f32.mrf.mxu0
      %3551 = vmatprep.mubr.bf16.mxu0 0
      %3552 = vmatmul.mubr.bf16.gmra.mxu0 %v3213
      %v3553 = vpop.f32.mrf.mxu0
      %v3554 = vadd.f32 %v3116, %v3553
      %v3555 = vpop.f32.mrf.mxu0
      %v3556 = vpop.f32.mrf.mxu0
      %v3557 = vadd.f32 %v3116, %v3556
      %v3558 = vpop.f32.mrf.mxu0
      %3559 = vmatprep.mubr.bf16.mxu0 0
      %3560 = vmatmul.mubr.bf16.gmra.mxu0 %v3216
      %v3561 = vpop.f32.mrf.mxu0
      %v3562 = vadd.f32 %v3116, %v3561
      %v3563 = vpop.f32.mrf.mxu0
      %v3564 = vpop.f32.mrf.mxu0
      %v3565 = vadd.f32 %v3116, %v3564
      %v3566 = vpop.f32.mrf.mxu0
      %3567 = vmatprep.mubr.bf16.mxu0 0
      %3568 = vmatmul.mubr.bf16.gmra.mxu0 %v3219
      %v3569 = vpop.f32.mrf.mxu0
      %v3570 = vadd.f32 %v3116, %v3569
      %v3571 = vpop.f32.mrf.mxu0
      %v3572 = vpop.f32.mrf.mxu0
      %v3573 = vadd.f32 %v3116, %v3572
      %v3574 = vpop.f32.mrf.mxu0
      %3575 = vmatprep.mubr.bf16.mxu0 0
      %3576 = vmatmul.mubr.bf16.gmra.mxu0 %v3222
      %v3577 = vpop.f32.mrf.mxu0
      %v3578 = vadd.f32 %v3116, %v3577
      %v3579 = vpop.f32.mrf.mxu0
      %v3580 = vpop.f32.mrf.mxu0
      %v3581 = vadd.f32 %v3116, %v3580
      %v3582 = vpop.f32.mrf.mxu0
      %3583 = vmatprep.mubr.bf16.mxu0 0
      %3584 = vmatmul.mubr.bf16.gmra.mxu0 %v3225
      %v3585 = vpop.f32.mrf.mxu0
      %v3586 = vadd.f32 %v3116, %v3585
      %v3587 = vpop.f32.mrf.mxu0
      %v3588 = vpop.f32.mrf.mxu0
      %v3589 = vadd.f32 %v3116, %v3588
      %v3590 = vpop.f32.mrf.mxu0
      %3591 = vmatprep.mubr.bf16.mxu0 0
      %3592 = vmatmul.mubr.bf16.gmra.mxu0 %v3228
      %v3593 = vpop.f32.mrf.mxu0
      %v3594 = vadd.f32 %v3116, %v3593
      %v3595 = vpop.f32.mrf.mxu0
      %v3596 = vpop.f32.mrf.mxu0
      %v3597 = vadd.f32 %v3116, %v3596
      %v3598 = vpop.f32.mrf.mxu0
      %3599 = vmatprep.mubr.bf16.mxu0 0
      %3600 = vmatmul.mubr.bf16.gmra.mxu0 %v3231
      %v3601 = vpop.f32.mrf.mxu0
      %v3602 = vadd.f32 %v3116, %v3601
      %v3603 = vpop.f32.mrf.mxu0
      %v3604 = vpop.f32.mrf.mxu0
      %v3605 = vadd.f32 %v3116, %v3604
      %v3606 = vpop.f32.mrf.mxu0
      %3607 = vmatprep.mubr.bf16.mxu0 0
      %3608 = vmatmul.mubr.bf16.gmra.mxu0 %v3234
      %v3609 = vpop.f32.mrf.mxu0
      %v3610 = vadd.f32 %v3116, %v3609
      %v3611 = vpop.f32.mrf.mxu0
      %v3612 = vpop.f32.mrf.mxu0
      %v3613 = vadd.f32 %v3116, %v3612
      %v3614 = vpop.f32.mrf.mxu0
      %3615 = vmatprep.mubr.bf16.mxu0 0
      %3616 = vmatmul.mubr.bf16.gmra.mxu0 %v3237
      %v3617 = vpop.f32.mrf.mxu0
      %v3618 = vadd.f32 %v3116, %v3617
      %v3619 = vpop.f32.mrf.mxu0
      %v3620 = vpop.f32.mrf.mxu0
      %v3621 = vadd.f32 %v3116, %v3620
      %v3622 = vpop.f32.mrf.mxu0
      %3623 = vmatprep.mubr.bf16.mxu0 0
      %3624 = vmatmul.mubr.bf16.gmra.mxu0 %v3240
      %v3625 = vpop.f32.mrf.mxu0
      %v3626 = vadd.f32 %v3116, %v3625
      %v3627 = vpop.f32.mrf.mxu0
      %v3628 = vpop.f32.mrf.mxu0
      %v3629 = vadd.f32 %v3116, %v3628
      %v3630 = vpop.f32.mrf.mxu0
      %3631 = vmatprep.mubr.bf16.mxu0 0
      %3632 = vmatmul.mubr.bf16.gmra.mxu0 %v3243
      %v3633 = vpop.f32.mrf.mxu0
      %v3634 = vadd.f32 %v3116, %v3633
      %v3635 = vpop.f32.mrf.mxu0
      %v3636 = vpop.f32.mrf.mxu0
      %v3637 = vadd.f32 %v3116, %v3636
      %v3638 = vpop.f32.mrf.mxu0
      %3639 = vmatprep.mubr.bf16.mxu0 0
      %3640 = vmatmul.mubr.bf16.gmra.mxu0 %v3246
      %v3641 = vpop.f32.mrf.mxu0
      %v3642 = vadd.f32 %v3116, %v3641
      %v3643 = vpop.f32.mrf.mxu0
      %v3644 = vpop.f32.mrf.mxu0
      %v3645 = vadd.f32 %v3116, %v3644
      %v3646 = vpop.f32.mrf.mxu0
      %3647 = vmatprep.mubr.bf16.mxu0 0
      %3648 = vmatmul.mubr.bf16.gmra.mxu0 %v3249
      %v3649 = vpop.f32.mrf.mxu0
      %v3650 = vadd.f32 %v3116, %v3649
      %v3651 = vpop.f32.mrf.mxu0
      %v3652 = vpop.f32.mrf.mxu0
      %v3653 = vadd.f32 %v3116, %v3652
      %v3654 = vpop.f32.mrf.mxu0
      %3655 = vmatprep.mubr.bf16.mxu0 0
      %3656 = vmatmul.mubr.bf16.gmra.mxu0 %v3252
      %v3657 = vpop.f32.mrf.mxu0
      %v3658 = vadd.f32 %v3116, %v3657
      %v3659 = vpop.f32.mrf.mxu0
      %v3660 = vpop.f32.mrf.mxu0
      %v3661 = vadd.f32 %v3116, %v3660
      %v3662 = vpop.f32.mrf.mxu0
      %3663 = vmatprep.mubr.bf16.mxu0 0
      %3664 = vmatmul.mubr.bf16.gmra.mxu0 %v3255
      %v3665 = vpop.f32.mrf.mxu0
      %v3666 = vadd.f32 %v3116, %v3665
      %v3667 = vpop.f32.mrf.mxu0
      %v3668 = vpop.f32.mrf.mxu0
      %v3669 = vadd.f32 %v3116, %v3668
      %v3670 = vpop.f32.mrf.mxu0
      %3671 = vmatprep.mubr.bf16.mxu0 0
      %3672 = vmatmul.mubr.bf16.gmra.mxu0 %v3258
      %v3673 = vpop.f32.mrf.mxu0
      %v3674 = vadd.f32 %v3116, %v3673
      %v3675 = vpop.f32.mrf.mxu0
      %v3676 = vpop.f32.mrf.mxu0
      %v3677 = vadd.f32 %v3116, %v3676
      %v3678 = vpop.f32.mrf.mxu0
      %3679 = vmatprep.mubr.bf16.mxu0 0
      %3680 = vmatmul.mubr.bf16.gmra.mxu0 %v3261
      %v3681 = vpop.f32.mrf.mxu0
      %v3682 = vadd.f32 %v3116, %v3681
      %v3683 = vpop.f32.mrf.mxu0
      %v3684 = vpop.f32.mrf.mxu0
      %v3685 = vadd.f32 %v3116, %v3684
      %v3686 = vpop.f32.mrf.mxu0
      %3687 = vmatprep.mubr.bf16.mxu0 0
      %3688 = vmatmul.mubr.bf16.gmra.mxu0 %v3264
      %v3689 = vpop.f32.mrf.mxu0
      %v3690 = vadd.f32 %v3116, %v3689
      %v3691 = vpop.f32.mrf.mxu0
      %v3692 = vpop.f32.mrf.mxu0
      %v3693 = vadd.f32 %v3116, %v3692
      %v3694 = vpop.f32.mrf.mxu0
      %3695 = vmatprep.mubr.bf16.mxu0 0
      %3696 = vmatmul.mubr.bf16.gmra.mxu0 %v3267
      %v3697 = vpop.f32.mrf.mxu0
      %v3698 = vadd.f32 %v3116, %v3697
      %v3699 = vpop.f32.mrf.mxu0
      %v3700 = vpop.f32.mrf.mxu0
      %v3701 = vadd.f32 %v3116, %v3700
      %v3702 = vpop.f32.mrf.mxu0
      %3703 = vmatprep.mubr.bf16.mxu0 0
      %3704 = vmatmul.mubr.bf16.gmra.mxu0 %v3270
      %v3705 = vpop.f32.mrf.mxu0
      %v3706 = vadd.f32 %v3116, %v3705
      %v3707 = vpop.f32.mrf.mxu0
      %v3708 = vpop.f32.mrf.mxu0
      %v3709 = vadd.f32 %v3116, %v3708
      %v3710 = vpop.f32.mrf.mxu0
      %3711 = vmatprep.mubr.bf16.mxu0 0
      %3712 = vmatmul.mubr.bf16.gmra.mxu0 %v3273
      %v3713 = vpop.f32.mrf.mxu0
      %v3714 = vadd.f32 %v3116, %v3713
      %v3715 = vpop.f32.mrf.mxu0
      %v3716 = vpop.f32.mrf.mxu0
      %v3717 = vadd.f32 %v3116, %v3716
      %v3718 = vpop.f32.mrf.mxu0
      %3719 = vmatprep.mubr.bf16.mxu0 0
      %3720 = vmatmul.mubr.bf16.gmra.mxu0 %v3276
      %v3721 = vpop.f32.mrf.mxu0
      %v3722 = vadd.f32 %v3116, %v3721
      %v3723 = vpop.f32.mrf.mxu0
      %v3724 = vpop.f32.mrf.mxu0
      %v3725 = vadd.f32 %v3116, %v3724
      %v3726 = vpop.f32.mrf.mxu0
      %3727 = vmatprep.mubr.bf16.mxu0 0
      %3728 = vmatmul.mubr.bf16.gmra.mxu0 %v3279
      %v3729 = vpop.f32.mrf.mxu0
      %v3730 = vadd.f32 %v3116, %v3729
      %v3731 = vpop.f32.mrf.mxu0
      %v3732 = vpop.f32.mrf.mxu0
      %v3733 = vadd.f32 %v3116, %v3732
      %v3734 = vpop.f32.mrf.mxu0
      %3735 = vmatprep.mubr.bf16.mxu0 0
      %3736 = vmatmul.mubr.bf16.gmra.mxu0 %v3282
      %v3737 = vpop.f32.mrf.mxu0
      %v3738 = vadd.f32 %v3116, %v3737
      %v3739 = vpop.f32.mrf.mxu0
      %v3740 = vpop.f32.mrf.mxu0
      %v3741 = vadd.f32 %v3116, %v3740
      %v3742 = vpop.f32.mrf.mxu0
      %3743 = vmatprep.mubr.bf16.mxu0 0
      %3744 = vmatmul.mubr.bf16.gmra.mxu0 %v3285
      %v3745 = vpop.f32.mrf.mxu0
      %v3746 = vadd.f32 %v3116, %v3745
      %v3747 = vpop.f32.mrf.mxu0
      %v3748 = vpop.f32.mrf.mxu0
      %v3749 = vadd.f32 %v3116, %v3748
      %v3750 = vpop.f32.mrf.mxu0
      %3751 = vmatprep.mubr.bf16.mxu0 0
      %3752 = vmatmul.mubr.bf16.gmra.mxu0 %v3288
      %v3753 = vpop.f32.mrf.mxu0
      %v3754 = vadd.f32 %v3116, %v3753
      %v3755 = vpop.f32.mrf.mxu0
      %v3756 = vpop.f32.mrf.mxu0
      %v3757 = vadd.f32 %v3116, %v3756
      %v3758 = vpop.f32.mrf.mxu0
      %3759 = vmatprep.mubr.bf16.mxu0 0
      %3760 = vmatmul.mubr.bf16.gmra.mxu0 %v3291
      %v3761 = vpop.f32.mrf.mxu0
      %v3762 = vadd.f32 %v3116, %v3761
      %v3763 = vpop.f32.mrf.mxu0
      %v3764 = vpop.f32.mrf.mxu0
      %v3765 = vadd.f32 %v3116, %v3764
      %v3766 = vpop.f32.mrf.mxu0
      %3767 = vmatprep.mubr.bf16.mxu0 0
      %3768 = vmatmul.mubr.bf16.gmra.mxu0 %v3294
      %v3769 = vpop.f32.mrf.mxu0
      %v3770 = vadd.f32 %v3116, %v3769
      %v3771 = vpop.f32.mrf.mxu0
      %v3772 = vpop.f32.mrf.mxu0
      %v3773 = vadd.f32 %v3116, %v3772
      %v3774 = vpop.f32.mrf.mxu0
      %3775 = vmatprep.mubr.bf16.mxu0 0
      %3776 = vmatmul.mubr.bf16.gmra.mxu0 %v3297
      %v3777 = vpop.f32.mrf.mxu0
      %v3778 = vadd.f32 %v3116, %v3777
      %v3779 = vpop.f32.mrf.mxu0
      %v3780 = vpop.f32.mrf.mxu0
      %v3781 = vadd.f32 %v3116, %v3780
      %v3782 = vpop.f32.mrf.mxu0
      %3783 = vmatprep.mubr.bf16.mxu0 0
      %3784 = vmatmul.mubr.bf16.gmra.mxu0 %v3300
      %v3785 = vpop.f32.mrf.mxu0
      %v3786 = vadd.f32 %v3116, %v3785
      %v3787 = vpop.f32.mrf.mxu0
      %v3788 = vpop.f32.mrf.mxu0
      %v3789 = vadd.f32 %v3116, %v3788
      %v3790 = vpop.f32.mrf.mxu0
      %3791 = vmatprep.mubr.bf16.mxu0 0
      %3792 = vmatmul.mubr.bf16.gmra.mxu0 %v3303
      %v3793 = vpop.f32.mrf.mxu0
      %v3794 = vadd.f32 %v3116, %v3793
      %v3795 = vpop.f32.mrf.mxu0
      %v3796 = vpop.f32.mrf.mxu0
      %v3797 = vadd.f32 %v3116, %v3796
      %v3798 = vpop.f32.mrf.mxu0
      %3799 = vmatprep.mubr.bf16.mxu0 0
      %3800 = vmatmul.mubr.bf16.gmra.mxu0 %v3306
      %v3801 = vpop.f32.mrf.mxu0
      %v3802 = vadd.f32 %v3116, %v3801
      %v3803 = vpop.f32.mrf.mxu0
      %v3804 = vpop.f32.mrf.mxu0
      %v3805 = vadd.f32 %v3116, %v3804
      %v3806 = vpop.f32.mrf.mxu0
      %3807 = vmatprep.mubr.bf16.mxu0 0
      %3808 = vmatmul.mubr.bf16.gmra.mxu0 %v3309
      %v3809 = vpop.f32.mrf.mxu0
      %v3810 = vadd.f32 %v3116, %v3809
      %v3811 = vpop.f32.mrf.mxu0
      %v3812 = vpop.f32.mrf.mxu0
      %v3813 = vadd.f32 %v3116, %v3812
      %v3814 = vpop.f32.mrf.mxu0
      %3815 = vmatprep.mubr.bf16.mxu0 0
      %3816 = vmatmul.mubr.bf16.gmra.mxu0 %v3312
      %v3817 = vpop.f32.mrf.mxu0
      %v3818 = vadd.f32 %v3116, %v3817
      %v3819 = vpop.f32.mrf.mxu0
      %v3820 = vpop.f32.mrf.mxu0
      %v3821 = vadd.f32 %v3116, %v3820
      %v3822 = vpop.f32.mrf.mxu0
      %3823 = vmatprep.mubr.bf16.mxu0 0
      %3824 = vmatmul.mubr.bf16.gmra.mxu0 %v3315
      %v3825 = vpop.f32.mrf.mxu0
      %v3826 = vadd.f32 %v3116, %v3825
      %v3827 = vpop.f32.mrf.mxu0
      %v3828 = vpop.f32.mrf.mxu0
      %v3829 = vadd.f32 %v3116, %v3828
      %v3830 = vpop.f32.mrf.mxu0
      %3831 = vmatprep.mubr.bf16.mxu0 0
      %3832 = vmatmul.mubr.bf16.gmra.mxu0 %v3318
      %v3833 = vpop.f32.mrf.mxu0
      %v3834 = vadd.f32 %v3116, %v3833
      %v3835 = vpop.f32.mrf.mxu0
      %v3836 = vpop.f32.mrf.mxu0
      %v3837 = vadd.f32 %v3116, %v3836
      %v3838 = vpop.f32.mrf.mxu0
      %3839 = vmatprep.mubr.bf16.mxu0 0
      %3840 = vmatmul.mubr.bf16.gmra.mxu0 %v3321
      %v3841 = vpop.f32.mrf.mxu0
      %v3842 = vadd.f32 %v3116, %v3841
      %v3843 = vpop.f32.mrf.mxu0
      %v3844 = vpop.f32.mrf.mxu0
      %v3845 = vadd.f32 %v3116, %v3844
      %v3846 = vpop.f32.mrf.mxu0
      %3847 = vmatprep.mubr.bf16.mxu0 0
      %3848 = vmatmul.mubr.bf16.gmra.mxu0 %v3324
      %v3849 = vpop.f32.mrf.mxu0
      %v3850 = vadd.f32 %v3116, %v3849
      %v3851 = vpop.f32.mrf.mxu0
      %v3852 = vpop.f32.mrf.mxu0
      %v3853 = vadd.f32 %v3116, %v3852
      %v3854 = vpop.f32.mrf.mxu0
      %3855 = vmatprep.mubr.bf16.mxu0 0
      %3856 = vmatmul.mubr.bf16.gmra.mxu0 %v3327
      %v3857 = vpop.f32.mrf.mxu0
      %v3858 = vadd.f32 %v3116, %v3857
      %v3859 = vpop.f32.mrf.mxu0
      %v3860 = vpop.f32.mrf.mxu0
      %v3861 = vadd.f32 %v3116, %v3860
      %v3862 = vpop.f32.mrf.mxu0
      %3863 = vmatprep.mubr.bf16.mxu0 0
      %3864 = vmatmul.mubr.bf16.gmra.mxu0 %v3330
      %v3865 = vpop.f32.mrf.mxu0
      %v3866 = vadd.f32 %v3116, %v3865
      %v3867 = vpop.f32.mrf.mxu0
      %v3868 = vpop.f32.mrf.mxu0
      %v3869 = vadd.f32 %v3116, %v3868
      %v3870 = vpop.f32.mrf.mxu0
      %3871 = vmatprep.mubr.bf16.mxu0 0
      %3872 = vmatmul.mubr.bf16.gmra.mxu0 %v3333
      %v3873 = vpop.f32.mrf.mxu0
      %v3874 = vadd.f32 %v3116, %v3873
      %v3875 = vpop.f32.mrf.mxu0
      %v3876 = vpop.f32.mrf.mxu0
      %v3877 = vadd.f32 %v3116, %v3876
      %v3878 = vpop.f32.mrf.mxu0
      %3879 = vdwg.mxu0
      %v3880 = vmax.f32 %v3370, 0.0
      %v3881 = vmax.f32 %v3373, 0.0
      %v3882 = vmax.f32 %v3378, 0.0
      %v3883 = vmax.f32 %v3381, 0.0
      %v3884 = vmax.f32 %v3386, 0.0
      %v3885 = vmax.f32 %v3389, 0.0
      %v3886 = vmax.f32 %v3394, 0.0
      %v3887 = vmax.f32 %v3397, 0.0
      %v3888 = vmax.f32 %v3402, 0.0
      %v3889 = vmax.f32 %v3405, 0.0
      %v3890 = vmax.f32 %v3410, 0.0
      %v3891 = vmax.f32 %v3413, 0.0
      %v3892 = vmax.f32 %v3418, 0.0
      %v3893 = vmax.f32 %v3421, 0.0
      %v3894 = vmax.f32 %v3426, 0.0
      %v3895 = vmax.f32 %v3429, 0.0
      %v3896 = vmax.f32 %v3434, 0.0
      %v3897 = vmax.f32 %v3437, 0.0
      %v3898 = vmax.f32 %v3442, 0.0
      %v3899 = vmax.f32 %v3445, 0.0
      %v3900 = vmax.f32 %v3450, 0.0
      %v3901 = vmax.f32 %v3453, 0.0
      %v3902 = vmax.f32 %v3458, 0.0
      %v3903 = vmax.f32 %v3461, 0.0
      %v3904 = vmax.f32 %v3466, 0.0
      %v3905 = vmax.f32 %v3469, 0.0
      %v3906 = vmax.f32 %v3474, 0.0
      %v3907 = vmax.f32 %v3477, 0.0
      %v3908 = vmax.f32 %v3482, 0.0
      %v3909 = vmax.f32 %v3485, 0.0
      %v3910 = vmax.f32 %v3490, 0.0
      %v3911 = vmax.f32 %v3493, 0.0
      %v3912 = vmax.f32 %v3498, 0.0
      %v3913 = vmax.f32 %v3501, 0.0
      %v3914 = vmax.f32 %v3506, 0.0
      %v3915 = vmax.f32 %v3509, 0.0
      %v3916 = vmax.f32 %v3514, 0.0
      %v3917 = vmax.f32 %v3517, 0.0
      %v3918 = vmax.f32 %v3522, 0.0
      %v3919 = vmax.f32 %v3525, 0.0
      %v3920 = vmax.f32 %v3530, 0.0
      %v3921 = vmax.f32 %v3533, 0.0
      %v3922 = vmax.f32 %v3538, 0.0
      %v3923 = vmax.f32 %v3541, 0.0
      %v3924 = vmax.f32 %v3546, 0.0
      %v3925 = vmax.f32 %v3549, 0.0
      %v3926 = vmax.f32 %v3554, 0.0
      %v3927 = vmax.f32 %v3557, 0.0
      %v3928 = vmax.f32 %v3562, 0.0
      %v3929 = vmax.f32 %v3565, 0.0
      %v3930 = vmax.f32 %v3570, 0.0
      %v3931 = vmax.f32 %v3573, 0.0
      %v3932 = vmax.f32 %v3578, 0.0
      %v3933 = vmax.f32 %v3581, 0.0
      %v3934 = vmax.f32 %v3586, 0.0
      %v3935 = vmax.f32 %v3589, 0.0
      %v3936 = vmax.f32 %v3594, 0.0
      %v3937 = vmax.f32 %v3597, 0.0
      %v3938 = vmax.f32 %v3602, 0.0
      %v3939 = vmax.f32 %v3605, 0.0
      %v3940 = vmax.f32 %v3610, 0.0
      %v3941 = vmax.f32 %v3613, 0.0
      %v3942 = vmax.f32 %v3618, 0.0
      %v3943 = vmax.f32 %v3621, 0.0
      %v3944 = vmax.f32 %v3626, 0.0
      %v3945 = vmax.f32 %v3629, 0.0
      %v3946 = vmax.f32 %v3634, 0.0
      %v3947 = vmax.f32 %v3637, 0.0
      %v3948 = vmax.f32 %v3642, 0.0
      %v3949 = vmax.f32 %v3645, 0.0
      %v3950 = vmax.f32 %v3650, 0.0
      %v3951 = vmax.f32 %v3653, 0.0
      %v3952 = vmax.f32 %v3658, 0.0
      %v3953 = vmax.f32 %v3661, 0.0
      %v3954 = vmax.f32 %v3666, 0.0
      %v3955 = vmax.f32 %v3669, 0.0
      %v3956 = vmax.f32 %v3674, 0.0
      %v3957 = vmax.f32 %v3677, 0.0
      %v3958 = vmax.f32 %v3682, 0.0
      %v3959 = vmax.f32 %v3685, 0.0
      %v3960 = vmax.f32 %v3690, 0.0
      %v3961 = vmax.f32 %v3693, 0.0
      %v3962 = vmax.f32 %v3698, 0.0
      %v3963 = vmax.f32 %v3701, 0.0
      %v3964 = vmax.f32 %v3706, 0.0
      %v3965 = vmax.f32 %v3709, 0.0
      %v3966 = vmax.f32 %v3714, 0.0
      %v3967 = vmax.f32 %v3717, 0.0
      %v3968 = vmax.f32 %v3722, 0.0
      %v3969 = vmax.f32 %v3725, 0.0
      %v3970 = vmax.f32 %v3730, 0.0
      %v3971 = vmax.f32 %v3733, 0.0
      %v3972 = vmax.f32 %v3738, 0.0
      %v3973 = vmax.f32 %v3741, 0.0
      %v3974 = vmax.f32 %v3746, 0.0
      %v3975 = vmax.f32 %v3749, 0.0
      %v3976 = vmax.f32 %v3754, 0.0
      %v3977 = vmax.f32 %v3757, 0.0
      %v3978 = vmax.f32 %v3762, 0.0
      %v3979 = vmax.f32 %v3765, 0.0
      %v3980 = vmax.f32 %v3770, 0.0
      %v3981 = vmax.f32 %v3773, 0.0
      %v3982 = vmax.f32 %v3778, 0.0
      %v3983 = vmax.f32 %v3781, 0.0
      %v3984 = vmax.f32 %v3786, 0.0
      %v3985 = vmax.f32 %v3789, 0.0
      %v3986 = vmax.f32 %v3794, 0.0
      %v3987 = vmax.f32 %v3797, 0.0
      %v3988 = vmax.f32 %v3802, 0.0
      %v3989 = vmax.f32 %v3805, 0.0
      %v3990 = vmax.f32 %v3810, 0.0
      %v3991 = vmax.f32 %v3813, 0.0
      %v3992 = vmax.f32 %v3818, 0.0
      %v3993 = vmax.f32 %v3821, 0.0
      %v3994 = vmax.f32 %v3826, 0.0
      %v3995 = vmax.f32 %v3829, 0.0
      %v3996 = vmax.f32 %v3834, 0.0
      %v3997 = vmax.f32 %v3837, 0.0
      %v3998 = vmax.f32 %v3842, 0.0
      %v3999 = vmax.f32 %v3845, 0.0
      %v4000 = vmax.f32 %v3850, 0.0
      %v4001 = vmax.f32 %v3853, 0.0
      %v4002 = vmax.f32 %v3858, 0.0
      %v4003 = vmax.f32 %v3861, 0.0
      %v4004 = vmax.f32 %v3866, 0.0
      %v4005 = vmax.f32 %v3869, 0.0
      %v4006 = vmax.f32 %v3874, 0.0
      %v4007 = vmax.f32 %v3877, 0.0
      %v4008 = vpack.c.bf16 %v3881, %v3880
      %v4009 = vpack.c.bf16 %v3883, %v3882
      %v4010 = vpack.c.bf16 %v3885, %v3884
      %v4011 = vpack.c.bf16 %v3887, %v3886
      %v4012 = vpack.c.bf16 %v3889, %v3888
      %v4013 = vpack.c.bf16 %v3891, %v3890
      %v4014 = vpack.c.bf16 %v3893, %v3892
      %v4015 = vpack.c.bf16 %v3895, %v3894
      %v4016 = vpack.c.bf16 %v3897, %v3896
      %v4017 = vpack.c.bf16 %v3899, %v3898
      %v4018 = vpack.c.bf16 %v3901, %v3900
      %v4019 = vpack.c.bf16 %v3903, %v3902
      %v4020 = vpack.c.bf16 %v3905, %v3904
      %v4021 = vpack.c.bf16 %v3907, %v3906
      %v4022 = vpack.c.bf16 %v3909, %v3908
      %v4023 = vpack.c.bf16 %v3911, %v3910
      %v4024 = vpack.c.bf16 %v3913, %v3912
      %v4025 = vpack.c.bf16 %v3915, %v3914
      %v4026 = vpack.c.bf16 %v3917, %v3916
      %v4027 = vpack.c.bf16 %v3919, %v3918
      %v4028 = vpack.c.bf16 %v3921, %v3920
      %v4029 = vpack.c.bf16 %v3923, %v3922
      %v4030 = vpack.c.bf16 %v3925, %v3924
      %v4031 = vpack.c.bf16 %v3927, %v3926
      %v4032 = vpack.c.bf16 %v3929, %v3928
      %v4033 = vpack.c.bf16 %v3931, %v3930
      %v4034 = vpack.c.bf16 %v3933, %v3932
      %v4035 = vpack.c.bf16 %v3935, %v3934
      %v4036 = vpack.c.bf16 %v3937, %v3936
      %v4037 = vpack.c.bf16 %v3939, %v3938
      %v4038 = vpack.c.bf16 %v3941, %v3940
      %v4039 = vpack.c.bf16 %v3943, %v3942
      %v4040 = vpack.c.bf16 %v3945, %v3944
      %v4041 = vpack.c.bf16 %v3947, %v3946
      %v4042 = vpack.c.bf16 %v3949, %v3948
      %v4043 = vpack.c.bf16 %v3951, %v3950
      %v4044 = vpack.c.bf16 %v3953, %v3952
      %v4045 = vpack.c.bf16 %v3955, %v3954
      %v4046 = vpack.c.bf16 %v3957, %v3956
      %v4047 = vpack.c.bf16 %v3959, %v3958
      %v4048 = vpack.c.bf16 %v3961, %v3960
      %v4049 = vpack.c.bf16 %v3963, %v3962
      %v4050 = vpack.c.bf16 %v3965, %v3964
      %v4051 = vpack.c.bf16 %v3967, %v3966
      %v4052 = vpack.c.bf16 %v3969, %v3968
      %v4053 = vpack.c.bf16 %v3971, %v3970
      %v4054 = vpack.c.bf16 %v3973, %v3972
      %v4055 = vpack.c.bf16 %v3975, %v3974
      %v4056 = vpack.c.bf16 %v3977, %v3976
      %v4057 = vpack.c.bf16 %v3979, %v3978
      %v4058 = vpack.c.bf16 %v3981, %v3980
      %v4059 = vpack.c.bf16 %v3983, %v3982
      %v4060 = vpack.c.bf16 %v3985, %v3984
      %v4061 = vpack.c.bf16 %v3987, %v3986
      %v4062 = vpack.c.bf16 %v3989, %v3988
      %v4063 = vpack.c.bf16 %v3991, %v3990
      %v4064 = vpack.c.bf16 %v3993, %v3992
      %v4065 = vpack.c.bf16 %v3995, %v3994
      %v4066 = vpack.c.bf16 %v3997, %v3996
      %v4067 = vpack.c.bf16 %v3999, %v3998
      %v4068 = vpack.c.bf16 %v4001, %v4000
      %v4069 = vpack.c.bf16 %v4003, %v4002
      %v4070 = vpack.c.bf16 %v4005, %v4004
      %v4071 = vpack.c.bf16 %v4007, %v4006
      %v4072 = vld [vmem:[%s4] sm:$0xff]
      %v4073 = vld [vmem:[%s4 + $0x8] sm:$0xff]
      %v4074 = vld [vmem:[%s4 + $0x10] sm:$0xff]
      %v4075 = vld [vmem:[%s4 + $0x18] sm:$0xff]
      %v4076 = vld [vmem:[%s4 + $0x20] sm:$0xff]
      %v4077 = vld [vmem:[%s4 + $0x28] sm:$0xff]
      %v4078 = vld [vmem:[%s4 + $0x30] sm:$0xff]
      %v4079 = vld [vmem:[%s4 + $0x38] sm:$0xff]
      %v4080 = vld [vmem:[%s4 + $0x40] sm:$0xff]
      %v4081 = vld [vmem:[%s4 + $0x48] sm:$0xff]
      %v4082 = vld [vmem:[%s4 + $0x50] sm:$0xff]
      %v4083 = vld [vmem:[%s4 + $0x58] sm:$0xff]
      %v4084 = vld [vmem:[%s4 + $0x60] sm:$0xff]
      %v4085 = vld [vmem:[%s4 + $0x68] sm:$0xff]
      %v4086 = vld [vmem:[%s4 + $0x70] sm:$0xff]
      %v4087 = vld [vmem:[%s4 + $0x78] sm:$0xff]
      %v4088 = vld [vmem:[%s4 + $0x80] sm:$0xff]
      %v4089 = vld [vmem:[%s4 + $0x88] sm:$0xff]
      %v4090 = vld [vmem:[%s4 + $0x90] sm:$0xff]
      %v4091 = vld [vmem:[%s4 + $0x98] sm:$0xff]
      %v4092 = vld [vmem:[%s4 + $0xa0] sm:$0xff]
      %v4093 = vld [vmem:[%s4 + $0xa8] sm:$0xff]
      %v4094 = vld [vmem:[%s4 + $0xb0] sm:$0xff]
      %v4095 = vld [vmem:[%s4 + $0xb8] sm:$0xff]
      %v4096 = vld [vmem:[%s4 + $0xc0] sm:$0xff]
      %v4097 = vld [vmem:[%s4 + $0xc8] sm:$0xff]
      %v4098 = vld [vmem:[%s4 + $0xd0] sm:$0xff]
      %v4099 = vld [vmem:[%s4 + $0xd8] sm:$0xff]
      %v4100 = vld [vmem:[%s4 + $0xe0] sm:$0xff]
      %v4101 = vld [vmem:[%s4 + $0xe8] sm:$0xff]
      %v4102 = vld [vmem:[%s4 + $0xf0] sm:$0xff]
      %v4103 = vld [vmem:[%s4 + $0xf8] sm:$0xff]
      %v4104 = vld [vmem:[%s4 + $0x100] sm:$0xff]
      %v4105 = vld [vmem:[%s4 + $0x108] sm:$0xff]
      %v4106 = vld [vmem:[%s4 + $0x110] sm:$0xff]
      %v4107 = vld [vmem:[%s4 + $0x118] sm:$0xff]
      %v4108 = vld [vmem:[%s4 + $0x120] sm:$0xff]
      %v4109 = vld [vmem:[%s4 + $0x128] sm:$0xff]
      %v4110 = vld [vmem:[%s4 + $0x130] sm:$0xff]
      %v4111 = vld [vmem:[%s4 + $0x138] sm:$0xff]
      %v4112 = vld [vmem:[%s4 + $0x140] sm:$0xff]
      %v4113 = vld [vmem:[%s4 + $0x148] sm:$0xff]
      %v4114 = vld [vmem:[%s4 + $0x150] sm:$0xff]
      %v4115 = vld [vmem:[%s4 + $0x158] sm:$0xff]
      %v4116 = vld [vmem:[%s4 + $0x160] sm:$0xff]
      %v4117 = vld [vmem:[%s4 + $0x168] sm:$0xff]
      %v4118 = vld [vmem:[%s4 + $0x170] sm:$0xff]
      %v4119 = vld [vmem:[%s4 + $0x178] sm:$0xff]
      %v4120 = vld [vmem:[%s4 + $0x180] sm:$0xff]
      %v4121 = vld [vmem:[%s4 + $0x188] sm:$0xff]
      %v4122 = vld [vmem:[%s4 + $0x190] sm:$0xff]
      %v4123 = vld [vmem:[%s4 + $0x198] sm:$0xff]
      %v4124 = vld [vmem:[%s4 + $0x1a0] sm:$0xff]
      %v4125 = vld [vmem:[%s4 + $0x1a8] sm:$0xff]
      %v4126 = vld [vmem:[%s4 + $0x1b0] sm:$0xff]
      %v4127 = vld [vmem:[%s4 + $0x1b8] sm:$0xff]
      %v4128 = vld [vmem:[%s4 + $0x1c0] sm:$0xff]
      %v4129 = vld [vmem:[%s4 + $0x1c8] sm:$0xff]
      %v4130 = vld [vmem:[%s4 + $0x1d0] sm:$0xff]
      %v4131 = vld [vmem:[%s4 + $0x1d8] sm:$0xff]
      %v4132 = vld [vmem:[%s4 + $0x1e0] sm:$0xff]
      %v4133 = vld [vmem:[%s4 + $0x1e8] sm:$0xff]
      %v4134 = vld [vmem:[%s4 + $0x1f0] sm:$0xff]
      %v4135 = vld [vmem:[%s4 + $0x1f8] sm:$0xff]
      %v4200 = vunpack.c.l.b16 %v4072
      %v4201 = vunpack.c.h.b16 %v4072
      %v4202 = vunpack.c.l.b16 %v4073
      %v4203 = vunpack.c.h.b16 %v4073
      %v4204 = vunpack.c.l.b16 %v4074
      %v4205 = vunpack.c.h.b16 %v4074
      %v4206 = vunpack.c.l.b16 %v4075
      %v4207 = vunpack.c.h.b16 %v4075
      %v4208 = vunpack.c.l.b16 %v4076
      %v4209 = vunpack.c.h.b16 %v4076
      %v4210 = vunpack.c.l.b16 %v4077
      %v4211 = vunpack.c.h.b16 %v4077
      %v4212 = vunpack.c.l.b16 %v4078
      %v4213 = vunpack.c.h.b16 %v4078
      %v4214 = vunpack.c.l.b16 %v4079
      %v4215 = vunpack.c.h.b16 %v4079
      %v4216 = vunpack.c.l.b16 %v4080
      %v4217 = vunpack.c.h.b16 %v4080
      %v4218 = vunpack.c.l.b16 %v4081
      %v4219 = vunpack.c.h.b16 %v4081
      %v4220 = vunpack.c.l.b16 %v4082
      %v4221 = vunpack.c.h.b16 %v4082
      %v4222 = vunpack.c.l.b16 %v4083
      %v4223 = vunpack.c.h.b16 %v4083
      %v4224 = vunpack.c.l.b16 %v4084
      %v4225 = vunpack.c.h.b16 %v4084
      %v4226 = vunpack.c.l.b16 %v4085
      %v4227 = vunpack.c.h.b16 %v4085
      %v4228 = vunpack.c.l.b16 %v4086
      %v4229 = vunpack.c.h.b16 %v4086
      %v4230 = vunpack.c.l.b16 %v4087
      %v4231 = vunpack.c.h.b16 %v4087
      %v4232 = vunpack.c.l.b16 %v4088
      %v4233 = vunpack.c.h.b16 %v4088
      %v4234 = vunpack.c.l.b16 %v4089
      %v4235 = vunpack.c.h.b16 %v4089
      %v4236 = vunpack.c.l.b16 %v4090
      %v4237 = vunpack.c.h.b16 %v4090
      %v4238 = vunpack.c.l.b16 %v4091
      %v4239 = vunpack.c.h.b16 %v4091
      %v4240 = vunpack.c.l.b16 %v4092
      %v4241 = vunpack.c.h.b16 %v4092
      %v4242 = vunpack.c.l.b16 %v4093
      %v4243 = vunpack.c.h.b16 %v4093
      %v4244 = vunpack.c.l.b16 %v4094
      %v4245 = vunpack.c.h.b16 %v4094
      %v4246 = vunpack.c.l.b16 %v4095
      %v4247 = vunpack.c.h.b16 %v4095
      %v4248 = vunpack.c.l.b16 %v4096
      %v4249 = vunpack.c.h.b16 %v4096
      %v4250 = vunpack.c.l.b16 %v4097
      %v4251 = vunpack.c.h.b16 %v4097
      %v4252 = vunpack.c.l.b16 %v4098
      %v4253 = vunpack.c.h.b16 %v4098
      %v4254 = vunpack.c.l.b16 %v4099
      %v4255 = vunpack.c.h.b16 %v4099
      %v4256 = vunpack.c.l.b16 %v4100
      %v4257 = vunpack.c.h.b16 %v4100
      %v4258 = vunpack.c.l.b16 %v4101
      %v4259 = vunpack.c.h.b16 %v4101
      %v4260 = vunpack.c.l.b16 %v4102
      %v4261 = vunpack.c.h.b16 %v4102
      %v4262 = vunpack.c.l.b16 %v4103
      %v4263 = vunpack.c.h.b16 %v4103
      %v4264 = vunpack.c.l.b16 %v4104
      %v4265 = vunpack.c.h.b16 %v4104
      %v4266 = vunpack.c.l.b16 %v4105
      %v4267 = vunpack.c.h.b16 %v4105
      %v4268 = vunpack.c.l.b16 %v4106
      %v4269 = vunpack.c.h.b16 %v4106
      %v4270 = vunpack.c.l.b16 %v4107
      %v4271 = vunpack.c.h.b16 %v4107
      %v4272 = vunpack.c.l.b16 %v4108
      %v4273 = vunpack.c.h.b16 %v4108
      %v4274 = vunpack.c.l.b16 %v4109
      %v4275 = vunpack.c.h.b16 %v4109
      %v4276 = vunpack.c.l.b16 %v4110
      %v4277 = vunpack.c.h.b16 %v4110
      %v4278 = vunpack.c.l.b16 %v4111
      %v4279 = vunpack.c.h.b16 %v4111
      %v4280 = vunpack.c.l.b16 %v4112
      %v4281 = vunpack.c.h.b16 %v4112
      %v4282 = vunpack.c.l.b16 %v4113
      %v4283 = vunpack.c.h.b16 %v4113
      %v4284 = vunpack.c.l.b16 %v4114
      %v4285 = vunpack.c.h.b16 %v4114
      %v4286 = vunpack.c.l.b16 %v4115
      %v4287 = vunpack.c.h.b16 %v4115
      %v4288 = vunpack.c.l.b16 %v4116
      %v4289 = vunpack.c.h.b16 %v4116
      %v4290 = vunpack.c.l.b16 %v4117
      %v4291 = vunpack.c.h.b16 %v4117
      %v4292 = vunpack.c.l.b16 %v4118
      %v4293 = vunpack.c.h.b16 %v4118
      %v4294 = vunpack.c.l.b16 %v4119
      %v4295 = vunpack.c.h.b16 %v4119
      %v4296 = vunpack.c.l.b16 %v4120
      %v4297 = vunpack.c.h.b16 %v4120
      %v4298 = vunpack.c.l.b16 %v4121
      %v4299 = vunpack.c.h.b16 %v4121
      %v4300 = vunpack.c.l.b16 %v4122
      %v4301 = vunpack.c.h.b16 %v4122
      %v4302 = vunpack.c.l.b16 %v4123
      %v4303 = vunpack.c.h.b16 %v4123
      %v4304 = vunpack.c.l.b16 %v4124
      %v4305 = vunpack.c.h.b16 %v4124
      %v4306 = vunpack.c.l.b16 %v4125
      %v4307 = vunpack.c.h.b16 %v4125
      %v4308 = vunpack.c.l.b16 %v4126
      %v4309 = vunpack.c.h.b16 %v4126
      %v4310 = vunpack.c.l.b16 %v4127
      %v4311 = vunpack.c.h.b16 %v4127
      %v4312 = vunpack.c.l.b16 %v4128
      %v4313 = vunpack.c.h.b16 %v4128
      %v4314 = vunpack.c.l.b16 %v4129
      %v4315 = vunpack.c.h.b16 %v4129
      %v4316 = vunpack.c.l.b16 %v4130
      %v4317 = vunpack.c.h.b16 %v4130
      %v4318 = vunpack.c.l.b16 %v4131
      %v4319 = vunpack.c.h.b16 %v4131
      %v4320 = vunpack.c.l.b16 %v4132
      %v4321 = vunpack.c.h.b16 %v4132
      %v4322 = vunpack.c.l.b16 %v4133
      %v4323 = vunpack.c.h.b16 %v4133
      %v4324 = vunpack.c.l.b16 %v4134
      %v4325 = vunpack.c.h.b16 %v4134
      %v4326 = vunpack.c.l.b16 %v4135
      %v4327 = vunpack.c.h.b16 %v4135
      %v4328 = vpack.c.b16 %v4208, %v4200
      %v4329 = vpack.c.b16 %v4209, %v4201
      %v4330 = vpack.c.b16 %v4210, %v4202
      %v4331 = vpack.c.b16 %v4211, %v4203
      %v4332 = vpack.c.b16 %v4212, %v4204
      %v4333 = vpack.c.b16 %v4213, %v4205
      %v4334 = vpack.c.b16 %v4214, %v4206
      %v4335 = vpack.c.b16 %v4215, %v4207
      %v4336 = vpack.c.b16 %v4224, %v4216
      %v4337 = vpack.c.b16 %v4225, %v4217
      %v4338 = vpack.c.b16 %v4226, %v4218
      %v4339 = vpack.c.b16 %v4227, %v4219
      %v4340 = vpack.c.b16 %v4228, %v4220
      %v4341 = vpack.c.b16 %v4229, %v4221
      %v4342 = vpack.c.b16 %v4230, %v4222
      %v4343 = vpack.c.b16 %v4231, %v4223
      %v4344 = vpack.c.b16 %v4240, %v4232
      %v4345 = vpack.c.b16 %v4241, %v4233
      %v4346 = vpack.c.b16 %v4242, %v4234
      %v4347 = vpack.c.b16 %v4243, %v4235
      %v4348 = vpack.c.b16 %v4244, %v4236
      %v4349 = vpack.c.b16 %v4245, %v4237
      %v4350 = vpack.c.b16 %v4246, %v4238
      %v4351 = vpack.c.b16 %v4247, %v4239
      %v4352 = vpack.c.b16 %v4256, %v4248
      %v4353 = vpack.c.b16 %v4257, %v4249
      %v4354 = vpack.c.b16 %v4258, %v4250
      %v4355 = vpack.c.b16 %v4259, %v4251
      %v4356 = vpack.c.b16 %v4260, %v4252
      %v4357 = vpack.c.b16 %v4261, %v4253
      %v4358 = vpack.c.b16 %v4262, %v4254
      %v4359 = vpack.c.b16 %v4263, %v4255
      %v4360 = vpack.c.b16 %v4272, %v4264
      %v4361 = vpack.c.b16 %v4273, %v4265
      %v4362 = vpack.c.b16 %v4274, %v4266
      %v4363 = vpack.c.b16 %v4275, %v4267
      %v4364 = vpack.c.b16 %v4276, %v4268
      %v4365 = vpack.c.b16 %v4277, %v4269
      %v4366 = vpack.c.b16 %v4278, %v4270
      %v4367 = vpack.c.b16 %v4279, %v4271
      %v4368 = vpack.c.b16 %v4288, %v4280
      %v4369 = vpack.c.b16 %v4289, %v4281
      %v4370 = vpack.c.b16 %v4290, %v4282
      %v4371 = vpack.c.b16 %v4291, %v4283
      %v4372 = vpack.c.b16 %v4292, %v4284
      %v4373 = vpack.c.b16 %v4293, %v4285
      %v4374 = vpack.c.b16 %v4294, %v4286
      %v4375 = vpack.c.b16 %v4295, %v4287
      %v4376 = vpack.c.b16 %v4304, %v4296
      %v4377 = vpack.c.b16 %v4305, %v4297
      %v4378 = vpack.c.b16 %v4306, %v4298
      %v4379 = vpack.c.b16 %v4307, %v4299
      %v4380 = vpack.c.b16 %v4308, %v4300
      %v4381 = vpack.c.b16 %v4309, %v4301
      %v4382 = vpack.c.b16 %v4310, %v4302
      %v4383 = vpack.c.b16 %v4311, %v4303
      %v4384 = vpack.c.b16 %v4320, %v4312
      %v4385 = vpack.c.b16 %v4321, %v4313
      %v4386 = vpack.c.b16 %v4322, %v4314
      %v4387 = vpack.c.b16 %v4323, %v4315
      %v4388 = vpack.c.b16 %v4324, %v4316
      %v4389 = vpack.c.b16 %v4325, %v4317
      %v4390 = vpack.c.b16 %v4326, %v4318
      %v4391 = vpack.c.b16 %v4327, %v4319
      %4456 = vmatprep.subr.bf16.mxu0 %v4385
      %4457 = vmatpush1.bf16.msra.mxu0 %v4384
      %4458 = vmatprep.subr.bf16.mxu0 %v4377
      %4459 = vmatpush1.bf16.msra.mxu0 %v4376
      %4460 = vmatprep.subr.bf16.mxu0 %v4369
      %4461 = vmatpush1.bf16.msra.mxu0 %v4368
      %4462 = vmatprep.subr.bf16.mxu0 %v4361
      %4463 = vmatpush1.bf16.msra.mxu0 %v4360
      %4464 = vmatprep.subr.bf16.mxu0 %v4353
      %4465 = vmatpush1.bf16.msra.mxu0 %v4352
      %4466 = vmatprep.subr.bf16.mxu0 %v4345
      %4467 = vmatpush1.bf16.msra.mxu0 %v4344
      %4468 = vmatprep.subr.bf16.mxu0 %v4337
      %4469 = vmatpush1.bf16.msra.mxu0 %v4336
      %4470 = vmatprep.subr.bf16.mxu0 %v4329
      %4471 = vmatpush1.bf16.msra.mxu0 %v4328
      %4472 = vmatprep.subr.bf16.mxu0 0
      %4473 = vmatpush2.bf16.msra.mxu0 0
      %4474 = vmatprep.subr.bf16.mxu0 0
      %4475 = vmatpush2.bf16.msra.mxu0 0
      %4476 = vmatprep.subr.bf16.mxu0 0
      %4477 = vmatpush2.bf16.msra.mxu0 0
      %4478 = vmatprep.subr.bf16.mxu0 0
      %4479 = vmatpush2.bf16.msra.mxu0 0
      %4480 = vmatprep.subr.bf16.mxu0 0
      %4481 = vmatpush2.bf16.msra.mxu0 0
      %4482 = vmatprep.subr.bf16.mxu0 0
      %4483 = vmatpush2.bf16.msra.mxu0 0
      %4484 = vmatprep.subr.bf16.mxu0 0
      %4485 = vmatpush2.bf16.msra.mxu0 0
      %4486 = vmatprep.subr.bf16.mxu0 0
      %4487 = vmatpush2.bf16.msra.mxu0 0
      %4488 = vmatprep.mubr.bf16.mxu0 0
      %4489 = vmatmul.mubr.bf16.gmra.mxu0 %v4008
      %v4490 = vpop.f32.mrf.mxu0
      %v4491 = vadd.f32 0.0, %v4490
      %v4492 = vpop.f32.mrf.mxu0
      %v4493 = vadd.f32 0.0, %v4492
      %v4494 = vpop.f32.mrf.mxu0
      %v4495 = vadd.f32 0.0, %v4494
      %v4496 = vpop.f32.mrf.mxu0
      %v4497 = vadd.f32 0.0, %v4496
      %4498 = vmatprep.mubr.bf16.mxu0 0
      %4499 = vmatmul.mubr.bf16.gmra.mxu0 %v4009
      %v4500 = vpop.f32.mrf.mxu0
      %v4501 = vadd.f32 0.0, %v4500
      %v4502 = vpop.f32.mrf.mxu0
      %v4503 = vadd.f32 0.0, %v4502
      %v4504 = vpop.f32.mrf.mxu0
      %v4505 = vadd.f32 0.0, %v4504
      %v4506 = vpop.f32.mrf.mxu0
      %v4507 = vadd.f32 0.0, %v4506
      %4508 = vmatprep.mubr.bf16.mxu0 0
      %4509 = vmatmul.mubr.bf16.gmra.mxu0 %v4010
      %v4510 = vpop.f32.mrf.mxu0
      %v4511 = vadd.f32 0.0, %v4510
      %v4512 = vpop.f32.mrf.mxu0
      %v4513 = vadd.f32 0.0, %v4512
      %v4514 = vpop.f32.mrf.mxu0
      %v4515 = vadd.f32 0.0, %v4514
      %v4516 = vpop.f32.mrf.mxu0
      %v4517 = vadd.f32 0.0, %v4516
      %4518 = vmatprep.mubr.bf16.mxu0 0
      %4519 = vmatmul.mubr.bf16.gmra.mxu0 %v4011
      %v4520 = vpop.f32.mrf.mxu0
      %v4521 = vadd.f32 0.0, %v4520
      %v4522 = vpop.f32.mrf.mxu0
      %v4523 = vadd.f32 0.0, %v4522
      %v4524 = vpop.f32.mrf.mxu0
      %v4525 = vadd.f32 0.0, %v4524
      %v4526 = vpop.f32.mrf.mxu0
      %v4527 = vadd.f32 0.0, %v4526
      %4528 = vmatprep.mubr.bf16.mxu0 0
      %4529 = vmatmul.mubr.bf16.gmra.mxu0 %v4012
      %v4530 = vpop.f32.mrf.mxu0
      %v4531 = vadd.f32 0.0, %v4530
      %v4532 = vpop.f32.mrf.mxu0
      %v4533 = vadd.f32 0.0, %v4532
      %v4534 = vpop.f32.mrf.mxu0
      %v4535 = vadd.f32 0.0, %v4534
      %v4536 = vpop.f32.mrf.mxu0
      %v4537 = vadd.f32 0.0, %v4536
      %4538 = vmatprep.mubr.bf16.mxu0 0
      %4539 = vmatmul.mubr.bf16.gmra.mxu0 %v4013
      %v4540 = vpop.f32.mrf.mxu0
      %v4541 = vadd.f32 0.0, %v4540
      %v4542 = vpop.f32.mrf.mxu0
      %v4543 = vadd.f32 0.0, %v4542
      %v4544 = vpop.f32.mrf.mxu0
      %v4545 = vadd.f32 0.0, %v4544
      %v4546 = vpop.f32.mrf.mxu0
      %v4547 = vadd.f32 0.0, %v4546
      %4548 = vmatprep.mubr.bf16.mxu0 0
      %4549 = vmatmul.mubr.bf16.gmra.mxu0 %v4014
      %v4550 = vpop.f32.mrf.mxu0
      %v4551 = vadd.f32 0.0, %v4550
      %v4552 = vpop.f32.mrf.mxu0
      %v4553 = vadd.f32 0.0, %v4552
      %v4554 = vpop.f32.mrf.mxu0
      %v4555 = vadd.f32 0.0, %v4554
      %v4556 = vpop.f32.mrf.mxu0
      %v4557 = vadd.f32 0.0, %v4556
      %4558 = vmatprep.mubr.bf16.mxu0 0
      %4559 = vmatmul.mubr.bf16.gmra.mxu0 %v4015
      %v4560 = vpop.f32.mrf.mxu0
      %v4561 = vadd.f32 0.0, %v4560
      %v4562 = vpop.f32.mrf.mxu0
      %v4563 = vadd.f32 0.0, %v4562
      %v4564 = vpop.f32.mrf.mxu0
      %v4565 = vadd.f32 0.0, %v4564
      %v4566 = vpop.f32.mrf.mxu0
      %v4567 = vadd.f32 0.0, %v4566
      %4568 = vmatprep.mubr.bf16.mxu0 0
      %4569 = vmatmul.mubr.bf16.gmra.mxu0 %v4016
      %v4570 = vpop.f32.mrf.mxu0
      %v4571 = vadd.f32 0.0, %v4570
      %v4572 = vpop.f32.mrf.mxu0
      %v4573 = vadd.f32 0.0, %v4572
      %v4574 = vpop.f32.mrf.mxu0
      %v4575 = vadd.f32 0.0, %v4574
      %v4576 = vpop.f32.mrf.mxu0
      %v4577 = vadd.f32 0.0, %v4576
      %4578 = vmatprep.mubr.bf16.mxu0 0
      %4579 = vmatmul.mubr.bf16.gmra.mxu0 %v4017
      %v4580 = vpop.f32.mrf.mxu0
      %v4581 = vadd.f32 0.0, %v4580
      %v4582 = vpop.f32.mrf.mxu0
      %v4583 = vadd.f32 0.0, %v4582
      %v4584 = vpop.f32.mrf.mxu0
      %v4585 = vadd.f32 0.0, %v4584
      %v4586 = vpop.f32.mrf.mxu0
      %v4587 = vadd.f32 0.0, %v4586
      %4588 = vmatprep.mubr.bf16.mxu0 0
      %4589 = vmatmul.mubr.bf16.gmra.mxu0 %v4018
      %v4590 = vpop.f32.mrf.mxu0
      %v4591 = vadd.f32 0.0, %v4590
      %v4592 = vpop.f32.mrf.mxu0
      %v4593 = vadd.f32 0.0, %v4592
      %v4594 = vpop.f32.mrf.mxu0
      %v4595 = vadd.f32 0.0, %v4594
      %v4596 = vpop.f32.mrf.mxu0
      %v4597 = vadd.f32 0.0, %v4596
      %4598 = vmatprep.mubr.bf16.mxu0 0
      %4599 = vmatmul.mubr.bf16.gmra.mxu0 %v4019
      %v4600 = vpop.f32.mrf.mxu0
      %v4601 = vadd.f32 0.0, %v4600
      %v4602 = vpop.f32.mrf.mxu0
      %v4603 = vadd.f32 0.0, %v4602
      %v4604 = vpop.f32.mrf.mxu0
      %v4605 = vadd.f32 0.0, %v4604
      %v4606 = vpop.f32.mrf.mxu0
      %v4607 = vadd.f32 0.0, %v4606
      %4608 = vmatprep.mubr.bf16.mxu0 0
      %4609 = vmatmul.mubr.bf16.gmra.mxu0 %v4020
      %v4610 = vpop.f32.mrf.mxu0
      %v4611 = vadd.f32 0.0, %v4610
      %v4612 = vpop.f32.mrf.mxu0
      %v4613 = vadd.f32 0.0, %v4612
      %v4614 = vpop.f32.mrf.mxu0
      %v4615 = vadd.f32 0.0, %v4614
      %v4616 = vpop.f32.mrf.mxu0
      %v4617 = vadd.f32 0.0, %v4616
      %4618 = vmatprep.mubr.bf16.mxu0 0
      %4619 = vmatmul.mubr.bf16.gmra.mxu0 %v4021
      %v4620 = vpop.f32.mrf.mxu0
      %v4621 = vadd.f32 0.0, %v4620
      %v4622 = vpop.f32.mrf.mxu0
      %v4623 = vadd.f32 0.0, %v4622
      %v4624 = vpop.f32.mrf.mxu0
      %v4625 = vadd.f32 0.0, %v4624
      %v4626 = vpop.f32.mrf.mxu0
      %v4627 = vadd.f32 0.0, %v4626
      %4628 = vmatprep.mubr.bf16.mxu0 0
      %4629 = vmatmul.mubr.bf16.gmra.mxu0 %v4022
      %v4630 = vpop.f32.mrf.mxu0
      %v4631 = vadd.f32 0.0, %v4630
      %v4632 = vpop.f32.mrf.mxu0
      %v4633 = vadd.f32 0.0, %v4632
      %v4634 = vpop.f32.mrf.mxu0
      %v4635 = vadd.f32 0.0, %v4634
      %v4636 = vpop.f32.mrf.mxu0
      %v4637 = vadd.f32 0.0, %v4636
      %4638 = vmatprep.mubr.bf16.mxu0 0
      %4639 = vmatmul.mubr.bf16.gmra.mxu0 %v4023
      %v4640 = vpop.f32.mrf.mxu0
      %v4641 = vadd.f32 0.0, %v4640
      %v4642 = vpop.f32.mrf.mxu0
      %v4643 = vadd.f32 0.0, %v4642
      %v4644 = vpop.f32.mrf.mxu0
      %v4645 = vadd.f32 0.0, %v4644
      %v4646 = vpop.f32.mrf.mxu0
      %v4647 = vadd.f32 0.0, %v4646
      %4648 = vmatprep.mubr.bf16.mxu0 0
      %4649 = vmatmul.mubr.bf16.gmra.mxu0 %v4024
      %v4650 = vpop.f32.mrf.mxu0
      %v4651 = vadd.f32 0.0, %v4650
      %v4652 = vpop.f32.mrf.mxu0
      %v4653 = vadd.f32 0.0, %v4652
      %v4654 = vpop.f32.mrf.mxu0
      %v4655 = vadd.f32 0.0, %v4654
      %v4656 = vpop.f32.mrf.mxu0
      %v4657 = vadd.f32 0.0, %v4656
      %4658 = vmatprep.mubr.bf16.mxu0 0
      %4659 = vmatmul.mubr.bf16.gmra.mxu0 %v4025
      %v4660 = vpop.f32.mrf.mxu0
      %v4661 = vadd.f32 0.0, %v4660
      %v4662 = vpop.f32.mrf.mxu0
      %v4663 = vadd.f32 0.0, %v4662
      %v4664 = vpop.f32.mrf.mxu0
      %v4665 = vadd.f32 0.0, %v4664
      %v4666 = vpop.f32.mrf.mxu0
      %v4667 = vadd.f32 0.0, %v4666
      %4668 = vmatprep.mubr.bf16.mxu0 0
      %4669 = vmatmul.mubr.bf16.gmra.mxu0 %v4026
      %v4670 = vpop.f32.mrf.mxu0
      %v4671 = vadd.f32 0.0, %v4670
      %v4672 = vpop.f32.mrf.mxu0
      %v4673 = vadd.f32 0.0, %v4672
      %v4674 = vpop.f32.mrf.mxu0
      %v4675 = vadd.f32 0.0, %v4674
      %v4676 = vpop.f32.mrf.mxu0
      %v4677 = vadd.f32 0.0, %v4676
      %4678 = vmatprep.mubr.bf16.mxu0 0
      %4679 = vmatmul.mubr.bf16.gmra.mxu0 %v4027
      %v4680 = vpop.f32.mrf.mxu0
      %v4681 = vadd.f32 0.0, %v4680
      %v4682 = vpop.f32.mrf.mxu0
      %v4683 = vadd.f32 0.0, %v4682
      %v4684 = vpop.f32.mrf.mxu0
      %v4685 = vadd.f32 0.0, %v4684
      %v4686 = vpop.f32.mrf.mxu0
      %v4687 = vadd.f32 0.0, %v4686
      %4688 = vmatprep.mubr.bf16.mxu0 0
      %4689 = vmatmul.mubr.bf16.gmra.mxu0 %v4028
      %v4690 = vpop.f32.mrf.mxu0
      %v4691 = vadd.f32 0.0, %v4690
      %v4692 = vpop.f32.mrf.mxu0
      %v4693 = vadd.f32 0.0, %v4692
      %v4694 = vpop.f32.mrf.mxu0
      %v4695 = vadd.f32 0.0, %v4694
      %v4696 = vpop.f32.mrf.mxu0
      %v4697 = vadd.f32 0.0, %v4696
      %4698 = vmatprep.mubr.bf16.mxu0 0
      %4699 = vmatmul.mubr.bf16.gmra.mxu0 %v4029
      %v4700 = vpop.f32.mrf.mxu0
      %v4701 = vadd.f32 0.0, %v4700
      %v4702 = vpop.f32.mrf.mxu0
      %v4703 = vadd.f32 0.0, %v4702
      %v4704 = vpop.f32.mrf.mxu0
      %v4705 = vadd.f32 0.0, %v4704
      %v4706 = vpop.f32.mrf.mxu0
      %v4707 = vadd.f32 0.0, %v4706
      %4708 = vmatprep.mubr.bf16.mxu0 0
      %4709 = vmatmul.mubr.bf16.gmra.mxu0 %v4030
      %v4710 = vpop.f32.mrf.mxu0
      %v4711 = vadd.f32 0.0, %v4710
      %v4712 = vpop.f32.mrf.mxu0
      %v4713 = vadd.f32 0.0, %v4712
      %v4714 = vpop.f32.mrf.mxu0
      %v4715 = vadd.f32 0.0, %v4714
      %v4716 = vpop.f32.mrf.mxu0
      %v4717 = vadd.f32 0.0, %v4716
      %4718 = vmatprep.mubr.bf16.mxu0 0
      %4719 = vmatmul.mubr.bf16.gmra.mxu0 %v4031
      %v4720 = vpop.f32.mrf.mxu0
      %v4721 = vadd.f32 0.0, %v4720
      %v4722 = vpop.f32.mrf.mxu0
      %v4723 = vadd.f32 0.0, %v4722
      %v4724 = vpop.f32.mrf.mxu0
      %v4725 = vadd.f32 0.0, %v4724
      %v4726 = vpop.f32.mrf.mxu0
      %v4727 = vadd.f32 0.0, %v4726
      %4728 = vmatprep.mubr.bf16.mxu0 0
      %4729 = vmatmul.mubr.bf16.gmra.mxu0 %v4032
      %v4730 = vpop.f32.mrf.mxu0
      %v4731 = vadd.f32 0.0, %v4730
      %v4732 = vpop.f32.mrf.mxu0
      %v4733 = vadd.f32 0.0, %v4732
      %v4734 = vpop.f32.mrf.mxu0
      %v4735 = vadd.f32 0.0, %v4734
      %v4736 = vpop.f32.mrf.mxu0
      %v4737 = vadd.f32 0.0, %v4736
      %4738 = vmatprep.mubr.bf16.mxu0 0
      %4739 = vmatmul.mubr.bf16.gmra.mxu0 %v4033
      %v4740 = vpop.f32.mrf.mxu0
      %v4741 = vadd.f32 0.0, %v4740
      %v4742 = vpop.f32.mrf.mxu0
      %v4743 = vadd.f32 0.0, %v4742
      %v4744 = vpop.f32.mrf.mxu0
      %v4745 = vadd.f32 0.0, %v4744
      %v4746 = vpop.f32.mrf.mxu0
      %v4747 = vadd.f32 0.0, %v4746
      %4748 = vmatprep.mubr.bf16.mxu0 0
      %4749 = vmatmul.mubr.bf16.gmra.mxu0 %v4034
      %v4750 = vpop.f32.mrf.mxu0
      %v4751 = vadd.f32 0.0, %v4750
      %v4752 = vpop.f32.mrf.mxu0
      %v4753 = vadd.f32 0.0, %v4752
      %v4754 = vpop.f32.mrf.mxu0
      %v4755 = vadd.f32 0.0, %v4754
      %v4756 = vpop.f32.mrf.mxu0
      %v4757 = vadd.f32 0.0, %v4756
      %4758 = vmatprep.mubr.bf16.mxu0 0
      %4759 = vmatmul.mubr.bf16.gmra.mxu0 %v4035
      %v4760 = vpop.f32.mrf.mxu0
      %v4761 = vadd.f32 0.0, %v4760
      %v4762 = vpop.f32.mrf.mxu0
      %v4763 = vadd.f32 0.0, %v4762
      %v4764 = vpop.f32.mrf.mxu0
      %v4765 = vadd.f32 0.0, %v4764
      %v4766 = vpop.f32.mrf.mxu0
      %v4767 = vadd.f32 0.0, %v4766
      %4768 = vmatprep.mubr.bf16.mxu0 0
      %4769 = vmatmul.mubr.bf16.gmra.mxu0 %v4036
      %v4770 = vpop.f32.mrf.mxu0
      %v4771 = vadd.f32 0.0, %v4770
      %v4772 = vpop.f32.mrf.mxu0
      %v4773 = vadd.f32 0.0, %v4772
      %v4774 = vpop.f32.mrf.mxu0
      %v4775 = vadd.f32 0.0, %v4774
      %v4776 = vpop.f32.mrf.mxu0
      %v4777 = vadd.f32 0.0, %v4776
      %4778 = vmatprep.mubr.bf16.mxu0 0
      %4779 = vmatmul.mubr.bf16.gmra.mxu0 %v4037
      %v4780 = vpop.f32.mrf.mxu0
      %v4781 = vadd.f32 0.0, %v4780
      %v4782 = vpop.f32.mrf.mxu0
      %v4783 = vadd.f32 0.0, %v4782
      %v4784 = vpop.f32.mrf.mxu0
      %v4785 = vadd.f32 0.0, %v4784
      %v4786 = vpop.f32.mrf.mxu0
      %v4787 = vadd.f32 0.0, %v4786
      %4788 = vmatprep.mubr.bf16.mxu0 0
      %4789 = vmatmul.mubr.bf16.gmra.mxu0 %v4038
      %v4790 = vpop.f32.mrf.mxu0
      %v4791 = vadd.f32 0.0, %v4790
      %v4792 = vpop.f32.mrf.mxu0
      %v4793 = vadd.f32 0.0, %v4792
      %v4794 = vpop.f32.mrf.mxu0
      %v4795 = vadd.f32 0.0, %v4794
      %v4796 = vpop.f32.mrf.mxu0
      %v4797 = vadd.f32 0.0, %v4796
      %4798 = vmatprep.mubr.bf16.mxu0 0
      %4799 = vmatmul.mubr.bf16.gmra.mxu0 %v4039
      %v4800 = vpop.f32.mrf.mxu0
      %v4801 = vadd.f32 0.0, %v4800
      %v4802 = vpop.f32.mrf.mxu0
      %v4803 = vadd.f32 0.0, %v4802
      %v4804 = vpop.f32.mrf.mxu0
      %v4805 = vadd.f32 0.0, %v4804
      %v4806 = vpop.f32.mrf.mxu0
      %v4807 = vadd.f32 0.0, %v4806
      %4808 = vmatprep.mubr.bf16.mxu0 0
      %4809 = vmatmul.mubr.bf16.gmra.mxu0 %v4040
      %v4810 = vpop.f32.mrf.mxu0
      %v4811 = vadd.f32 0.0, %v4810
      %v4812 = vpop.f32.mrf.mxu0
      %v4813 = vadd.f32 0.0, %v4812
      %v4814 = vpop.f32.mrf.mxu0
      %v4815 = vadd.f32 0.0, %v4814
      %v4816 = vpop.f32.mrf.mxu0
      %v4817 = vadd.f32 0.0, %v4816
      %4818 = vmatprep.mubr.bf16.mxu0 0
      %4819 = vmatmul.mubr.bf16.gmra.mxu0 %v4041
      %v4820 = vpop.f32.mrf.mxu0
      %v4821 = vadd.f32 0.0, %v4820
      %v4822 = vpop.f32.mrf.mxu0
      %v4823 = vadd.f32 0.0, %v4822
      %v4824 = vpop.f32.mrf.mxu0
      %v4825 = vadd.f32 0.0, %v4824
      %v4826 = vpop.f32.mrf.mxu0
      %v4827 = vadd.f32 0.0, %v4826
      %4828 = vmatprep.mubr.bf16.mxu0 0
      %4829 = vmatmul.mubr.bf16.gmra.mxu0 %v4042
      %v4830 = vpop.f32.mrf.mxu0
      %v4831 = vadd.f32 0.0, %v4830
      %v4832 = vpop.f32.mrf.mxu0
      %v4833 = vadd.f32 0.0, %v4832
      %v4834 = vpop.f32.mrf.mxu0
      %v4835 = vadd.f32 0.0, %v4834
      %v4836 = vpop.f32.mrf.mxu0
      %v4837 = vadd.f32 0.0, %v4836
      %4838 = vmatprep.mubr.bf16.mxu0 0
      %4839 = vmatmul.mubr.bf16.gmra.mxu0 %v4043
      %v4840 = vpop.f32.mrf.mxu0
      %v4841 = vadd.f32 0.0, %v4840
      %v4842 = vpop.f32.mrf.mxu0
      %v4843 = vadd.f32 0.0, %v4842
      %v4844 = vpop.f32.mrf.mxu0
      %v4845 = vadd.f32 0.0, %v4844
      %v4846 = vpop.f32.mrf.mxu0
      %v4847 = vadd.f32 0.0, %v4846
      %4848 = vmatprep.mubr.bf16.mxu0 0
      %4849 = vmatmul.mubr.bf16.gmra.mxu0 %v4044
      %v4850 = vpop.f32.mrf.mxu0
      %v4851 = vadd.f32 0.0, %v4850
      %v4852 = vpop.f32.mrf.mxu0
      %v4853 = vadd.f32 0.0, %v4852
      %v4854 = vpop.f32.mrf.mxu0
      %v4855 = vadd.f32 0.0, %v4854
      %v4856 = vpop.f32.mrf.mxu0
      %v4857 = vadd.f32 0.0, %v4856
      %4858 = vmatprep.mubr.bf16.mxu0 0
      %4859 = vmatmul.mubr.bf16.gmra.mxu0 %v4045
      %v4860 = vpop.f32.mrf.mxu0
      %v4861 = vadd.f32 0.0, %v4860
      %v4862 = vpop.f32.mrf.mxu0
      %v4863 = vadd.f32 0.0, %v4862
      %v4864 = vpop.f32.mrf.mxu0
      %v4865 = vadd.f32 0.0, %v4864
      %v4866 = vpop.f32.mrf.mxu0
      %v4867 = vadd.f32 0.0, %v4866
      %4868 = vmatprep.mubr.bf16.mxu0 0
      %4869 = vmatmul.mubr.bf16.gmra.mxu0 %v4046
      %v4870 = vpop.f32.mrf.mxu0
      %v4871 = vadd.f32 0.0, %v4870
      %v4872 = vpop.f32.mrf.mxu0
      %v4873 = vadd.f32 0.0, %v4872
      %v4874 = vpop.f32.mrf.mxu0
      %v4875 = vadd.f32 0.0, %v4874
      %v4876 = vpop.f32.mrf.mxu0
      %v4877 = vadd.f32 0.0, %v4876
      %4878 = vmatprep.mubr.bf16.mxu0 0
      %4879 = vmatmul.mubr.bf16.gmra.mxu0 %v4047
      %v4880 = vpop.f32.mrf.mxu0
      %v4881 = vadd.f32 0.0, %v4880
      %v4882 = vpop.f32.mrf.mxu0
      %v4883 = vadd.f32 0.0, %v4882
      %v4884 = vpop.f32.mrf.mxu0
      %v4885 = vadd.f32 0.0, %v4884
      %v4886 = vpop.f32.mrf.mxu0
      %v4887 = vadd.f32 0.0, %v4886
      %4888 = vmatprep.mubr.bf16.mxu0 0
      %4889 = vmatmul.mubr.bf16.gmra.mxu0 %v4048
      %v4890 = vpop.f32.mrf.mxu0
      %v4891 = vadd.f32 0.0, %v4890
      %v4892 = vpop.f32.mrf.mxu0
      %v4893 = vadd.f32 0.0, %v4892
      %v4894 = vpop.f32.mrf.mxu0
      %v4895 = vadd.f32 0.0, %v4894
      %v4896 = vpop.f32.mrf.mxu0
      %v4897 = vadd.f32 0.0, %v4896
      %4898 = vmatprep.mubr.bf16.mxu0 0
      %4899 = vmatmul.mubr.bf16.gmra.mxu0 %v4049
      %v4900 = vpop.f32.mrf.mxu0
      %v4901 = vadd.f32 0.0, %v4900
      %v4902 = vpop.f32.mrf.mxu0
      %v4903 = vadd.f32 0.0, %v4902
      %v4904 = vpop.f32.mrf.mxu0
      %v4905 = vadd.f32 0.0, %v4904
      %v4906 = vpop.f32.mrf.mxu0
      %v4907 = vadd.f32 0.0, %v4906
      %4908 = vmatprep.mubr.bf16.mxu0 0
      %4909 = vmatmul.mubr.bf16.gmra.mxu0 %v4050
      %v4910 = vpop.f32.mrf.mxu0
      %v4911 = vadd.f32 0.0, %v4910
      %v4912 = vpop.f32.mrf.mxu0
      %v4913 = vadd.f32 0.0, %v4912
      %v4914 = vpop.f32.mrf.mxu0
      %v4915 = vadd.f32 0.0, %v4914
      %v4916 = vpop.f32.mrf.mxu0
      %v4917 = vadd.f32 0.0, %v4916
      %4918 = vmatprep.mubr.bf16.mxu0 0
      %4919 = vmatmul.mubr.bf16.gmra.mxu0 %v4051
      %v4920 = vpop.f32.mrf.mxu0
      %v4921 = vadd.f32 0.0, %v4920
      %v4922 = vpop.f32.mrf.mxu0
      %v4923 = vadd.f32 0.0, %v4922
      %v4924 = vpop.f32.mrf.mxu0
      %v4925 = vadd.f32 0.0, %v4924
      %v4926 = vpop.f32.mrf.mxu0
      %v4927 = vadd.f32 0.0, %v4926
      %4928 = vmatprep.mubr.bf16.mxu0 0
      %4929 = vmatmul.mubr.bf16.gmra.mxu0 %v4052
      %v4930 = vpop.f32.mrf.mxu0
      %v4931 = vadd.f32 0.0, %v4930
      %v4932 = vpop.f32.mrf.mxu0
      %v4933 = vadd.f32 0.0, %v4932
      %v4934 = vpop.f32.mrf.mxu0
      %v4935 = vadd.f32 0.0, %v4934
      %v4936 = vpop.f32.mrf.mxu0
      %v4937 = vadd.f32 0.0, %v4936
      %4938 = vmatprep.mubr.bf16.mxu0 0
      %4939 = vmatmul.mubr.bf16.gmra.mxu0 %v4053
      %v4940 = vpop.f32.mrf.mxu0
      %v4941 = vadd.f32 0.0, %v4940
      %v4942 = vpop.f32.mrf.mxu0
      %v4943 = vadd.f32 0.0, %v4942
      %v4944 = vpop.f32.mrf.mxu0
      %v4945 = vadd.f32 0.0, %v4944
      %v4946 = vpop.f32.mrf.mxu0
      %v4947 = vadd.f32 0.0, %v4946
      %4948 = vmatprep.mubr.bf16.mxu0 0
      %4949 = vmatmul.mubr.bf16.gmra.mxu0 %v4054
      %v4950 = vpop.f32.mrf.mxu0
      %v4951 = vadd.f32 0.0, %v4950
      %v4952 = vpop.f32.mrf.mxu0
      %v4953 = vadd.f32 0.0, %v4952
      %v4954 = vpop.f32.mrf.mxu0
      %v4955 = vadd.f32 0.0, %v4954
      %v4956 = vpop.f32.mrf.mxu0
      %v4957 = vadd.f32 0.0, %v4956
      %4958 = vmatprep.mubr.bf16.mxu0 0
      %4959 = vmatmul.mubr.bf16.gmra.mxu0 %v4055
      %v4960 = vpop.f32.mrf.mxu0
      %v4961 = vadd.f32 0.0, %v4960
      %v4962 = vpop.f32.mrf.mxu0
      %v4963 = vadd.f32 0.0, %v4962
      %v4964 = vpop.f32.mrf.mxu0
      %v4965 = vadd.f32 0.0, %v4964
      %v4966 = vpop.f32.mrf.mxu0
      %v4967 = vadd.f32 0.0, %v4966
      %4968 = vmatprep.mubr.bf16.mxu0 0
      %4969 = vmatmul.mubr.bf16.gmra.mxu0 %v4056
      %v4970 = vpop.f32.mrf.mxu0
      %v4971 = vadd.f32 0.0, %v4970
      %v4972 = vpop.f32.mrf.mxu0
      %v4973 = vadd.f32 0.0, %v4972
      %v4974 = vpop.f32.mrf.mxu0
      %v4975 = vadd.f32 0.0, %v4974
      %v4976 = vpop.f32.mrf.mxu0
      %v4977 = vadd.f32 0.0, %v4976
      %4978 = vmatprep.mubr.bf16.mxu0 0
      %4979 = vmatmul.mubr.bf16.gmra.mxu0 %v4057
      %v4980 = vpop.f32.mrf.mxu0
      %v4981 = vadd.f32 0.0, %v4980
      %v4982 = vpop.f32.mrf.mxu0
      %v4983 = vadd.f32 0.0, %v4982
      %v4984 = vpop.f32.mrf.mxu0
      %v4985 = vadd.f32 0.0, %v4984
      %v4986 = vpop.f32.mrf.mxu0
      %v4987 = vadd.f32 0.0, %v4986
      %4988 = vmatprep.mubr.bf16.mxu0 0
      %4989 = vmatmul.mubr.bf16.gmra.mxu0 %v4058
      %v4990 = vpop.f32.mrf.mxu0
      %v4991 = vadd.f32 0.0, %v4990
      %v4992 = vpop.f32.mrf.mxu0
      %v4993 = vadd.f32 0.0, %v4992
      %v4994 = vpop.f32.mrf.mxu0
      %v4995 = vadd.f32 0.0, %v4994
      %v4996 = vpop.f32.mrf.mxu0
      %v4997 = vadd.f32 0.0, %v4996
      %4998 = vmatprep.mubr.bf16.mxu0 0
      %4999 = vmatmul.mubr.bf16.gmra.mxu0 %v4059
      %v5000 = vpop.f32.mrf.mxu0
      %v5001 = vadd.f32 0.0, %v5000
      %v5002 = vpop.f32.mrf.mxu0
      %v5003 = vadd.f32 0.0, %v5002
      %v5004 = vpop.f32.mrf.mxu0
      %v5005 = vadd.f32 0.0, %v5004
      %v5006 = vpop.f32.mrf.mxu0
      %v5007 = vadd.f32 0.0, %v5006
      %5008 = vmatprep.mubr.bf16.mxu0 0
      %5009 = vmatmul.mubr.bf16.gmra.mxu0 %v4060
      %v5010 = vpop.f32.mrf.mxu0
      %v5011 = vadd.f32 0.0, %v5010
      %v5012 = vpop.f32.mrf.mxu0
      %v5013 = vadd.f32 0.0, %v5012
      %v5014 = vpop.f32.mrf.mxu0
      %v5015 = vadd.f32 0.0, %v5014
      %v5016 = vpop.f32.mrf.mxu0
      %v5017 = vadd.f32 0.0, %v5016
      %5018 = vmatprep.mubr.bf16.mxu0 0
      %5019 = vmatmul.mubr.bf16.gmra.mxu0 %v4061
      %v5020 = vpop.f32.mrf.mxu0
      %v5021 = vadd.f32 0.0, %v5020
      %v5022 = vpop.f32.mrf.mxu0
      %v5023 = vadd.f32 0.0, %v5022
      %v5024 = vpop.f32.mrf.mxu0
      %v5025 = vadd.f32 0.0, %v5024
      %v5026 = vpop.f32.mrf.mxu0
      %v5027 = vadd.f32 0.0, %v5026
      %5028 = vmatprep.mubr.bf16.mxu0 0
      %5029 = vmatmul.mubr.bf16.gmra.mxu0 %v4062
      %v5030 = vpop.f32.mrf.mxu0
      %v5031 = vadd.f32 0.0, %v5030
      %v5032 = vpop.f32.mrf.mxu0
      %v5033 = vadd.f32 0.0, %v5032
      %v5034 = vpop.f32.mrf.mxu0
      %v5035 = vadd.f32 0.0, %v5034
      %v5036 = vpop.f32.mrf.mxu0
      %v5037 = vadd.f32 0.0, %v5036
      %5038 = vmatprep.mubr.bf16.mxu0 0
      %5039 = vmatmul.mubr.bf16.gmra.mxu0 %v4063
      %v5040 = vpop.f32.mrf.mxu0
      %v5041 = vadd.f32 0.0, %v5040
      %v5042 = vpop.f32.mrf.mxu0
      %v5043 = vadd.f32 0.0, %v5042
      %v5044 = vpop.f32.mrf.mxu0
      %v5045 = vadd.f32 0.0, %v5044
      %v5046 = vpop.f32.mrf.mxu0
      %v5047 = vadd.f32 0.0, %v5046
      %5048 = vmatprep.mubr.bf16.mxu0 0
      %5049 = vmatmul.mubr.bf16.gmra.mxu0 %v4064
      %v5050 = vpop.f32.mrf.mxu0
      %v5051 = vadd.f32 0.0, %v5050
      %v5052 = vpop.f32.mrf.mxu0
      %v5053 = vadd.f32 0.0, %v5052
      %v5054 = vpop.f32.mrf.mxu0
      %v5055 = vadd.f32 0.0, %v5054
      %v5056 = vpop.f32.mrf.mxu0
      %v5057 = vadd.f32 0.0, %v5056
      %5058 = vmatprep.mubr.bf16.mxu0 0
      %5059 = vmatmul.mubr.bf16.gmra.mxu0 %v4065
      %v5060 = vpop.f32.mrf.mxu0
      %v5061 = vadd.f32 0.0, %v5060
      %v5062 = vpop.f32.mrf.mxu0
      %v5063 = vadd.f32 0.0, %v5062
      %v5064 = vpop.f32.mrf.mxu0
      %v5065 = vadd.f32 0.0, %v5064
      %v5066 = vpop.f32.mrf.mxu0
      %v5067 = vadd.f32 0.0, %v5066
      %5068 = vmatprep.mubr.bf16.mxu0 0
      %5069 = vmatmul.mubr.bf16.gmra.mxu0 %v4066
      %v5070 = vpop.f32.mrf.mxu0
      %v5071 = vadd.f32 0.0, %v5070
      %v5072 = vpop.f32.mrf.mxu0
      %v5073 = vadd.f32 0.0, %v5072
      %v5074 = vpop.f32.mrf.mxu0
      %v5075 = vadd.f32 0.0, %v5074
      %v5076 = vpop.f32.mrf.mxu0
      %v5077 = vadd.f32 0.0, %v5076
      %5078 = vmatprep.mubr.bf16.mxu0 0
      %5079 = vmatmul.mubr.bf16.gmra.mxu0 %v4067
      %v5080 = vpop.f32.mrf.mxu0
      %v5081 = vadd.f32 0.0, %v5080
      %v5082 = vpop.f32.mrf.mxu0
      %v5083 = vadd.f32 0.0, %v5082
      %v5084 = vpop.f32.mrf.mxu0
      %v5085 = vadd.f32 0.0, %v5084
      %v5086 = vpop.f32.mrf.mxu0
      %v5087 = vadd.f32 0.0, %v5086
      %5088 = vmatprep.mubr.bf16.mxu0 0
      %5089 = vmatmul.mubr.bf16.gmra.mxu0 %v4068
      %v5090 = vpop.f32.mrf.mxu0
      %v5091 = vadd.f32 0.0, %v5090
      %v5092 = vpop.f32.mrf.mxu0
      %v5093 = vadd.f32 0.0, %v5092
      %v5094 = vpop.f32.mrf.mxu0
      %v5095 = vadd.f32 0.0, %v5094
      %v5096 = vpop.f32.mrf.mxu0
      %v5097 = vadd.f32 0.0, %v5096
      %5098 = vmatprep.mubr.bf16.mxu0 0
      %5099 = vmatmul.mubr.bf16.gmra.mxu0 %v4069
      %v5100 = vpop.f32.mrf.mxu0
      %v5101 = vadd.f32 0.0, %v5100
      %v5102 = vpop.f32.mrf.mxu0
      %v5103 = vadd.f32 0.0, %v5102
      %v5104 = vpop.f32.mrf.mxu0
      %v5105 = vadd.f32 0.0, %v5104
      %v5106 = vpop.f32.mrf.mxu0
      %v5107 = vadd.f32 0.0, %v5106
      %5108 = vmatprep.mubr.bf16.mxu0 0
      %5109 = vmatmul.mubr.bf16.gmra.mxu0 %v4070
      %v5110 = vpop.f32.mrf.mxu0
      %v5111 = vadd.f32 0.0, %v5110
      %v5112 = vpop.f32.mrf.mxu0
      %v5113 = vadd.f32 0.0, %v5112
      %v5114 = vpop.f32.mrf.mxu0
      %v5115 = vadd.f32 0.0, %v5114
      %v5116 = vpop.f32.mrf.mxu0
      %v5117 = vadd.f32 0.0, %v5116
      %5118 = vmatprep.mubr.bf16.mxu0 0
      %5119 = vmatmul.mubr.bf16.gmra.mxu0 %v4071
      %v5120 = vpop.f32.mrf.mxu0
      %v5121 = vadd.f32 0.0, %v5120
      %v5122 = vpop.f32.mrf.mxu0
      %v5123 = vadd.f32 0.0, %v5122
      %v5124 = vpop.f32.mrf.mxu0
      %v5125 = vadd.f32 0.0, %v5124
      %v5126 = vpop.f32.mrf.mxu0
      %v5127 = vadd.f32 0.0, %v5126
      %5128 = vdwg.mxu0
      %5129 = vmatprep.subr.bf16.mxu0 %v4387
      %5130 = vmatpush1.bf16.msra.mxu0 %v4386
      %5131 = vmatprep.subr.bf16.mxu0 %v4379
      %5132 = vmatpush1.bf16.msra.mxu0 %v4378
      %5133 = vmatprep.subr.bf16.mxu0 %v4371
      %5134 = vmatpush1.bf16.msra.mxu0 %v4370
      %5135 = vmatprep.subr.bf16.mxu0 %v4363
      %5136 = vmatpush1.bf16.msra.mxu0 %v4362
      %5137 = vmatprep.subr.bf16.mxu0 %v4355
      %5138 = vmatpush1.bf16.msra.mxu0 %v4354
      %5139 = vmatprep.subr.bf16.mxu0 %v4347
      %5140 = vmatpush1.bf16.msra.mxu0 %v4346
      %5141 = vmatprep.subr.bf16.mxu0 %v4339
      %5142 = vmatpush1.bf16.msra.mxu0 %v4338
      %5143 = vmatprep.subr.bf16.mxu0 %v4331
      %5144 = vmatpush1.bf16.msra.mxu0 %v4330
      %5145 = vmatprep.subr.bf16.mxu0 0
      %5146 = vmatpush2.bf16.msra.mxu0 0
      %5147 = vmatprep.subr.bf16.mxu0 0
      %5148 = vmatpush2.bf16.msra.mxu0 0
      %5149 = vmatprep.subr.bf16.mxu0 0
      %5150 = vmatpush2.bf16.msra.mxu0 0
      %5151 = vmatprep.subr.bf16.mxu0 0
      %5152 = vmatpush2.bf16.msra.mxu0 0
      %5153 = vmatprep.subr.bf16.mxu0 0
      %5154 = vmatpush2.bf16.msra.mxu0 0
      %5155 = vmatprep.subr.bf16.mxu0 0
      %5156 = vmatpush2.bf16.msra.mxu0 0
      %5157 = vmatprep.subr.bf16.mxu0 0
      %5158 = vmatpush2.bf16.msra.mxu0 0
      %5159 = vmatprep.subr.bf16.mxu0 0
      %5160 = vmatpush2.bf16.msra.mxu0 0
      %5161 = vmatprep.mubr.bf16.mxu0 0
      %5162 = vmatmul.mubr.bf16.gmra.mxu0 %v4008
      %v5163 = vpop.f32.mrf.mxu0
      %v5164 = vadd.f32 0.0, %v5163
      %v5165 = vpop.f32.mrf.mxu0
      %v5166 = vadd.f32 0.0, %v5165
      %v5167 = vpop.f32.mrf.mxu0
      %v5168 = vadd.f32 0.0, %v5167
      %v5169 = vpop.f32.mrf.mxu0
      %v5170 = vadd.f32 0.0, %v5169
      %5171 = vmatprep.mubr.bf16.mxu0 0
      %5172 = vmatmul.mubr.bf16.gmra.mxu0 %v4009
      %v5173 = vpop.f32.mrf.mxu0
      %v5174 = vadd.f32 0.0, %v5173
      %v5175 = vpop.f32.mrf.mxu0
      %v5176 = vadd.f32 0.0, %v5175
      %v5177 = vpop.f32.mrf.mxu0
      %v5178 = vadd.f32 0.0, %v5177
      %v5179 = vpop.f32.mrf.mxu0
      %v5180 = vadd.f32 0.0, %v5179
      %5181 = vmatprep.mubr.bf16.mxu0 0
      %5182 = vmatmul.mubr.bf16.gmra.mxu0 %v4010
      %v5183 = vpop.f32.mrf.mxu0
      %v5184 = vadd.f32 0.0, %v5183
      %v5185 = vpop.f32.mrf.mxu0
      %v5186 = vadd.f32 0.0, %v5185
      %v5187 = vpop.f32.mrf.mxu0
      %v5188 = vadd.f32 0.0, %v5187
      %v5189 = vpop.f32.mrf.mxu0
      %v5190 = vadd.f32 0.0, %v5189
      %5191 = vmatprep.mubr.bf16.mxu0 0
      %5192 = vmatmul.mubr.bf16.gmra.mxu0 %v4011
      %v5193 = vpop.f32.mrf.mxu0
      %v5194 = vadd.f32 0.0, %v5193
      %v5195 = vpop.f32.mrf.mxu0
      %v5196 = vadd.f32 0.0, %v5195
      %v5197 = vpop.f32.mrf.mxu0
      %v5198 = vadd.f32 0.0, %v5197
      %v5199 = vpop.f32.mrf.mxu0
      %v5200 = vadd.f32 0.0, %v5199
      %5201 = vmatprep.mubr.bf16.mxu0 0
      %5202 = vmatmul.mubr.bf16.gmra.mxu0 %v4012
      %v5203 = vpop.f32.mrf.mxu0
      %v5204 = vadd.f32 0.0, %v5203
      %v5205 = vpop.f32.mrf.mxu0
      %v5206 = vadd.f32 0.0, %v5205
      %v5207 = vpop.f32.mrf.mxu0
      %v5208 = vadd.f32 0.0, %v5207
      %v5209 = vpop.f32.mrf.mxu0
      %v5210 = vadd.f32 0.0, %v5209
      %5211 = vmatprep.mubr.bf16.mxu0 0
      %5212 = vmatmul.mubr.bf16.gmra.mxu0 %v4013
      %v5213 = vpop.f32.mrf.mxu0
      %v5214 = vadd.f32 0.0, %v5213
      %v5215 = vpop.f32.mrf.mxu0
      %v5216 = vadd.f32 0.0, %v5215
      %v5217 = vpop.f32.mrf.mxu0
      %v5218 = vadd.f32 0.0, %v5217
      %v5219 = vpop.f32.mrf.mxu0
      %v5220 = vadd.f32 0.0, %v5219
      %5221 = vmatprep.mubr.bf16.mxu0 0
      %5222 = vmatmul.mubr.bf16.gmra.mxu0 %v4014
      %v5223 = vpop.f32.mrf.mxu0
      %v5224 = vadd.f32 0.0, %v5223
      %v5225 = vpop.f32.mrf.mxu0
      %v5226 = vadd.f32 0.0, %v5225
      %v5227 = vpop.f32.mrf.mxu0
      %v5228 = vadd.f32 0.0, %v5227
      %v5229 = vpop.f32.mrf.mxu0
      %v5230 = vadd.f32 0.0, %v5229
      %5231 = vmatprep.mubr.bf16.mxu0 0
      %5232 = vmatmul.mubr.bf16.gmra.mxu0 %v4015
      %v5233 = vpop.f32.mrf.mxu0
      %v5234 = vadd.f32 0.0, %v5233
      %v5235 = vpop.f32.mrf.mxu0
      %v5236 = vadd.f32 0.0, %v5235
      %v5237 = vpop.f32.mrf.mxu0
      %v5238 = vadd.f32 0.0, %v5237
      %v5239 = vpop.f32.mrf.mxu0
      %v5240 = vadd.f32 0.0, %v5239
      %5241 = vmatprep.mubr.bf16.mxu0 0
      %5242 = vmatmul.mubr.bf16.gmra.mxu0 %v4016
      %v5243 = vpop.f32.mrf.mxu0
      %v5244 = vadd.f32 0.0, %v5243
      %v5245 = vpop.f32.mrf.mxu0
      %v5246 = vadd.f32 0.0, %v5245
      %v5247 = vpop.f32.mrf.mxu0
      %v5248 = vadd.f32 0.0, %v5247
      %v5249 = vpop.f32.mrf.mxu0
      %v5250 = vadd.f32 0.0, %v5249
      %5251 = vmatprep.mubr.bf16.mxu0 0
      %5252 = vmatmul.mubr.bf16.gmra.mxu0 %v4017
      %v5253 = vpop.f32.mrf.mxu0
      %v5254 = vadd.f32 0.0, %v5253
      %v5255 = vpop.f32.mrf.mxu0
      %v5256 = vadd.f32 0.0, %v5255
      %v5257 = vpop.f32.mrf.mxu0
      %v5258 = vadd.f32 0.0, %v5257
      %v5259 = vpop.f32.mrf.mxu0
      %v5260 = vadd.f32 0.0, %v5259
      %5261 = vmatprep.mubr.bf16.mxu0 0
      %5262 = vmatmul.mubr.bf16.gmra.mxu0 %v4018
      %v5263 = vpop.f32.mrf.mxu0
      %v5264 = vadd.f32 0.0, %v5263
      %v5265 = vpop.f32.mrf.mxu0
      %v5266 = vadd.f32 0.0, %v5265
      %v5267 = vpop.f32.mrf.mxu0
      %v5268 = vadd.f32 0.0, %v5267
      %v5269 = vpop.f32.mrf.mxu0
      %v5270 = vadd.f32 0.0, %v5269
      %5271 = vmatprep.mubr.bf16.mxu0 0
      %5272 = vmatmul.mubr.bf16.gmra.mxu0 %v4019
      %v5273 = vpop.f32.mrf.mxu0
      %v5274 = vadd.f32 0.0, %v5273
      %v5275 = vpop.f32.mrf.mxu0
      %v5276 = vadd.f32 0.0, %v5275
      %v5277 = vpop.f32.mrf.mxu0
      %v5278 = vadd.f32 0.0, %v5277
      %v5279 = vpop.f32.mrf.mxu0
      %v5280 = vadd.f32 0.0, %v5279
      %5281 = vmatprep.mubr.bf16.mxu0 0
      %5282 = vmatmul.mubr.bf16.gmra.mxu0 %v4020
      %v5283 = vpop.f32.mrf.mxu0
      %v5284 = vadd.f32 0.0, %v5283
      %v5285 = vpop.f32.mrf.mxu0
      %v5286 = vadd.f32 0.0, %v5285
      %v5287 = vpop.f32.mrf.mxu0
      %v5288 = vadd.f32 0.0, %v5287
      %v5289 = vpop.f32.mrf.mxu0
      %v5290 = vadd.f32 0.0, %v5289
      %5291 = vmatprep.mubr.bf16.mxu0 0
      %5292 = vmatmul.mubr.bf16.gmra.mxu0 %v4021
      %v5293 = vpop.f32.mrf.mxu0
      %v5294 = vadd.f32 0.0, %v5293
      %v5295 = vpop.f32.mrf.mxu0
      %v5296 = vadd.f32 0.0, %v5295
      %v5297 = vpop.f32.mrf.mxu0
      %v5298 = vadd.f32 0.0, %v5297
      %v5299 = vpop.f32.mrf.mxu0
      %v5300 = vadd.f32 0.0, %v5299
      %5301 = vmatprep.mubr.bf16.mxu0 0
      %5302 = vmatmul.mubr.bf16.gmra.mxu0 %v4022
      %v5303 = vpop.f32.mrf.mxu0
      %v5304 = vadd.f32 0.0, %v5303
      %v5305 = vpop.f32.mrf.mxu0
      %v5306 = vadd.f32 0.0, %v5305
      %v5307 = vpop.f32.mrf.mxu0
      %v5308 = vadd.f32 0.0, %v5307
      %v5309 = vpop.f32.mrf.mxu0
      %v5310 = vadd.f32 0.0, %v5309
      %5311 = vmatprep.mubr.bf16.mxu0 0
      %5312 = vmatmul.mubr.bf16.gmra.mxu0 %v4023
      %v5313 = vpop.f32.mrf.mxu0
      %v5314 = vadd.f32 0.0, %v5313
      %v5315 = vpop.f32.mrf.mxu0
      %v5316 = vadd.f32 0.0, %v5315
      %v5317 = vpop.f32.mrf.mxu0
      %v5318 = vadd.f32 0.0, %v5317
      %v5319 = vpop.f32.mrf.mxu0
      %v5320 = vadd.f32 0.0, %v5319
      %5321 = vmatprep.mubr.bf16.mxu0 0
      %5322 = vmatmul.mubr.bf16.gmra.mxu0 %v4024
      %v5323 = vpop.f32.mrf.mxu0
      %v5324 = vadd.f32 0.0, %v5323
      %v5325 = vpop.f32.mrf.mxu0
      %v5326 = vadd.f32 0.0, %v5325
      %v5327 = vpop.f32.mrf.mxu0
      %v5328 = vadd.f32 0.0, %v5327
      %v5329 = vpop.f32.mrf.mxu0
      %v5330 = vadd.f32 0.0, %v5329
      %5331 = vmatprep.mubr.bf16.mxu0 0
      %5332 = vmatmul.mubr.bf16.gmra.mxu0 %v4025
      %v5333 = vpop.f32.mrf.mxu0
      %v5334 = vadd.f32 0.0, %v5333
      %v5335 = vpop.f32.mrf.mxu0
      %v5336 = vadd.f32 0.0, %v5335
      %v5337 = vpop.f32.mrf.mxu0
      %v5338 = vadd.f32 0.0, %v5337
      %v5339 = vpop.f32.mrf.mxu0
      %v5340 = vadd.f32 0.0, %v5339
      %5341 = vmatprep.mubr.bf16.mxu0 0
      %5342 = vmatmul.mubr.bf16.gmra.mxu0 %v4026
      %v5343 = vpop.f32.mrf.mxu0
      %v5344 = vadd.f32 0.0, %v5343
      %v5345 = vpop.f32.mrf.mxu0
      %v5346 = vadd.f32 0.0, %v5345
      %v5347 = vpop.f32.mrf.mxu0
      %v5348 = vadd.f32 0.0, %v5347
      %v5349 = vpop.f32.mrf.mxu0
      %v5350 = vadd.f32 0.0, %v5349
      %5351 = vmatprep.mubr.bf16.mxu0 0
      %5352 = vmatmul.mubr.bf16.gmra.mxu0 %v4027
      %v5353 = vpop.f32.mrf.mxu0
      %v5354 = vadd.f32 0.0, %v5353
      %v5355 = vpop.f32.mrf.mxu0
      %v5356 = vadd.f32 0.0, %v5355
      %v5357 = vpop.f32.mrf.mxu0
      %v5358 = vadd.f32 0.0, %v5357
      %v5359 = vpop.f32.mrf.mxu0
      %v5360 = vadd.f32 0.0, %v5359
      %5361 = vmatprep.mubr.bf16.mxu0 0
      %5362 = vmatmul.mubr.bf16.gmra.mxu0 %v4028
      %v5363 = vpop.f32.mrf.mxu0
      %v5364 = vadd.f32 0.0, %v5363
      %v5365 = vpop.f32.mrf.mxu0
      %v5366 = vadd.f32 0.0, %v5365
      %v5367 = vpop.f32.mrf.mxu0
      %v5368 = vadd.f32 0.0, %v5367
      %v5369 = vpop.f32.mrf.mxu0
      %v5370 = vadd.f32 0.0, %v5369
      %5371 = vmatprep.mubr.bf16.mxu0 0
      %5372 = vmatmul.mubr.bf16.gmra.mxu0 %v4029
      %v5373 = vpop.f32.mrf.mxu0
      %v5374 = vadd.f32 0.0, %v5373
      %v5375 = vpop.f32.mrf.mxu0
      %v5376 = vadd.f32 0.0, %v5375
      %v5377 = vpop.f32.mrf.mxu0
      %v5378 = vadd.f32 0.0, %v5377
      %v5379 = vpop.f32.mrf.mxu0
      %v5380 = vadd.f32 0.0, %v5379
      %5381 = vmatprep.mubr.bf16.mxu0 0
      %5382 = vmatmul.mubr.bf16.gmra.mxu0 %v4030
      %v5383 = vpop.f32.mrf.mxu0
      %v5384 = vadd.f32 0.0, %v5383
      %v5385 = vpop.f32.mrf.mxu0
      %v5386 = vadd.f32 0.0, %v5385
      %v5387 = vpop.f32.mrf.mxu0
      %v5388 = vadd.f32 0.0, %v5387
      %v5389 = vpop.f32.mrf.mxu0
      %v5390 = vadd.f32 0.0, %v5389
      %5391 = vmatprep.mubr.bf16.mxu0 0
      %5392 = vmatmul.mubr.bf16.gmra.mxu0 %v4031
      %v5393 = vpop.f32.mrf.mxu0
      %v5394 = vadd.f32 0.0, %v5393
      %v5395 = vpop.f32.mrf.mxu0
      %v5396 = vadd.f32 0.0, %v5395
      %v5397 = vpop.f32.mrf.mxu0
      %v5398 = vadd.f32 0.0, %v5397
      %v5399 = vpop.f32.mrf.mxu0
      %v5400 = vadd.f32 0.0, %v5399
      %5401 = vmatprep.mubr.bf16.mxu0 0
      %5402 = vmatmul.mubr.bf16.gmra.mxu0 %v4032
      %v5403 = vpop.f32.mrf.mxu0
      %v5404 = vadd.f32 0.0, %v5403
      %v5405 = vpop.f32.mrf.mxu0
      %v5406 = vadd.f32 0.0, %v5405
      %v5407 = vpop.f32.mrf.mxu0
      %v5408 = vadd.f32 0.0, %v5407
      %v5409 = vpop.f32.mrf.mxu0
      %v5410 = vadd.f32 0.0, %v5409
      %5411 = vmatprep.mubr.bf16.mxu0 0
      %5412 = vmatmul.mubr.bf16.gmra.mxu0 %v4033
      %v5413 = vpop.f32.mrf.mxu0
      %v5414 = vadd.f32 0.0, %v5413
      %v5415 = vpop.f32.mrf.mxu0
      %v5416 = vadd.f32 0.0, %v5415
      %v5417 = vpop.f32.mrf.mxu0
      %v5418 = vadd.f32 0.0, %v5417
      %v5419 = vpop.f32.mrf.mxu0
      %v5420 = vadd.f32 0.0, %v5419
      %5421 = vmatprep.mubr.bf16.mxu0 0
      %5422 = vmatmul.mubr.bf16.gmra.mxu0 %v4034
      %v5423 = vpop.f32.mrf.mxu0
      %v5424 = vadd.f32 0.0, %v5423
      %v5425 = vpop.f32.mrf.mxu0
      %v5426 = vadd.f32 0.0, %v5425
      %v5427 = vpop.f32.mrf.mxu0
      %v5428 = vadd.f32 0.0, %v5427
      %v5429 = vpop.f32.mrf.mxu0
      %v5430 = vadd.f32 0.0, %v5429
      %5431 = vmatprep.mubr.bf16.mxu0 0
      %5432 = vmatmul.mubr.bf16.gmra.mxu0 %v4035
      %v5433 = vpop.f32.mrf.mxu0
      %v5434 = vadd.f32 0.0, %v5433
      %v5435 = vpop.f32.mrf.mxu0
      %v5436 = vadd.f32 0.0, %v5435
      %v5437 = vpop.f32.mrf.mxu0
      %v5438 = vadd.f32 0.0, %v5437
      %v5439 = vpop.f32.mrf.mxu0
      %v5440 = vadd.f32 0.0, %v5439
      %5441 = vmatprep.mubr.bf16.mxu0 0
      %5442 = vmatmul.mubr.bf16.gmra.mxu0 %v4036
      %v5443 = vpop.f32.mrf.mxu0
      %v5444 = vadd.f32 0.0, %v5443
      %v5445 = vpop.f32.mrf.mxu0
      %v5446 = vadd.f32 0.0, %v5445
      %v5447 = vpop.f32.mrf.mxu0
      %v5448 = vadd.f32 0.0, %v5447
      %v5449 = vpop.f32.mrf.mxu0
      %v5450 = vadd.f32 0.0, %v5449
      %5451 = vmatprep.mubr.bf16.mxu0 0
      %5452 = vmatmul.mubr.bf16.gmra.mxu0 %v4037
      %v5453 = vpop.f32.mrf.mxu0
      %v5454 = vadd.f32 0.0, %v5453
      %v5455 = vpop.f32.mrf.mxu0
      %v5456 = vadd.f32 0.0, %v5455
      %v5457 = vpop.f32.mrf.mxu0
      %v5458 = vadd.f32 0.0, %v5457
      %v5459 = vpop.f32.mrf.mxu0
      %v5460 = vadd.f32 0.0, %v5459
      %5461 = vmatprep.mubr.bf16.mxu0 0
      %5462 = vmatmul.mubr.bf16.gmra.mxu0 %v4038
      %v5463 = vpop.f32.mrf.mxu0
      %v5464 = vadd.f32 0.0, %v5463
      %v5465 = vpop.f32.mrf.mxu0
      %v5466 = vadd.f32 0.0, %v5465
      %v5467 = vpop.f32.mrf.mxu0
      %v5468 = vadd.f32 0.0, %v5467
      %v5469 = vpop.f32.mrf.mxu0
      %v5470 = vadd.f32 0.0, %v5469
      %5471 = vmatprep.mubr.bf16.mxu0 0
      %5472 = vmatmul.mubr.bf16.gmra.mxu0 %v4039
      %v5473 = vpop.f32.mrf.mxu0
      %v5474 = vadd.f32 0.0, %v5473
      %v5475 = vpop.f32.mrf.mxu0
      %v5476 = vadd.f32 0.0, %v5475
      %v5477 = vpop.f32.mrf.mxu0
      %v5478 = vadd.f32 0.0, %v5477
      %v5479 = vpop.f32.mrf.mxu0
      %v5480 = vadd.f32 0.0, %v5479
      %5481 = vmatprep.mubr.bf16.mxu0 0
      %5482 = vmatmul.mubr.bf16.gmra.mxu0 %v4040
      %v5483 = vpop.f32.mrf.mxu0
      %v5484 = vadd.f32 0.0, %v5483
      %v5485 = vpop.f32.mrf.mxu0
      %v5486 = vadd.f32 0.0, %v5485
      %v5487 = vpop.f32.mrf.mxu0
      %v5488 = vadd.f32 0.0, %v5487
      %v5489 = vpop.f32.mrf.mxu0
      %v5490 = vadd.f32 0.0, %v5489
      %5491 = vmatprep.mubr.bf16.mxu0 0
      %5492 = vmatmul.mubr.bf16.gmra.mxu0 %v4041
      %v5493 = vpop.f32.mrf.mxu0
      %v5494 = vadd.f32 0.0, %v5493
      %v5495 = vpop.f32.mrf.mxu0
      %v5496 = vadd.f32 0.0, %v5495
      %v5497 = vpop.f32.mrf.mxu0
      %v5498 = vadd.f32 0.0, %v5497
      %v5499 = vpop.f32.mrf.mxu0
      %v5500 = vadd.f32 0.0, %v5499
      %5501 = vmatprep.mubr.bf16.mxu0 0
      %5502 = vmatmul.mubr.bf16.gmra.mxu0 %v4042
      %v5503 = vpop.f32.mrf.mxu0
      %v5504 = vadd.f32 0.0, %v5503
      %v5505 = vpop.f32.mrf.mxu0
      %v5506 = vadd.f32 0.0, %v5505
      %v5507 = vpop.f32.mrf.mxu0
      %v5508 = vadd.f32 0.0, %v5507
      %v5509 = vpop.f32.mrf.mxu0
      %v5510 = vadd.f32 0.0, %v5509
      %5511 = vmatprep.mubr.bf16.mxu0 0
      %5512 = vmatmul.mubr.bf16.gmra.mxu0 %v4043
      %v5513 = vpop.f32.mrf.mxu0
      %v5514 = vadd.f32 0.0, %v5513
      %v5515 = vpop.f32.mrf.mxu0
      %v5516 = vadd.f32 0.0, %v5515
      %v5517 = vpop.f32.mrf.mxu0
      %v5518 = vadd.f32 0.0, %v5517
      %v5519 = vpop.f32.mrf.mxu0
      %v5520 = vadd.f32 0.0, %v5519
      %5521 = vmatprep.mubr.bf16.mxu0 0
      %5522 = vmatmul.mubr.bf16.gmra.mxu0 %v4044
      %v5523 = vpop.f32.mrf.mxu0
      %v5524 = vadd.f32 0.0, %v5523
      %v5525 = vpop.f32.mrf.mxu0
      %v5526 = vadd.f32 0.0, %v5525
      %v5527 = vpop.f32.mrf.mxu0
      %v5528 = vadd.f32 0.0, %v5527
      %v5529 = vpop.f32.mrf.mxu0
      %v5530 = vadd.f32 0.0, %v5529
      %5531 = vmatprep.mubr.bf16.mxu0 0
      %5532 = vmatmul.mubr.bf16.gmra.mxu0 %v4045
      %v5533 = vpop.f32.mrf.mxu0
      %v5534 = vadd.f32 0.0, %v5533
      %v5535 = vpop.f32.mrf.mxu0
      %v5536 = vadd.f32 0.0, %v5535
      %v5537 = vpop.f32.mrf.mxu0
      %v5538 = vadd.f32 0.0, %v5537
      %v5539 = vpop.f32.mrf.mxu0
      %v5540 = vadd.f32 0.0, %v5539
      %5541 = vmatprep.mubr.bf16.mxu0 0
      %5542 = vmatmul.mubr.bf16.gmra.mxu0 %v4046
      %v5543 = vpop.f32.mrf.mxu0
      %v5544 = vadd.f32 0.0, %v5543
      %v5545 = vpop.f32.mrf.mxu0
      %v5546 = vadd.f32 0.0, %v5545
      %v5547 = vpop.f32.mrf.mxu0
      %v5548 = vadd.f32 0.0, %v5547
      %v5549 = vpop.f32.mrf.mxu0
      %v5550 = vadd.f32 0.0, %v5549
      %5551 = vmatprep.mubr.bf16.mxu0 0
      %5552 = vmatmul.mubr.bf16.gmra.mxu0 %v4047
      %v5553 = vpop.f32.mrf.mxu0
      %v5554 = vadd.f32 0.0, %v5553
      %v5555 = vpop.f32.mrf.mxu0
      %v5556 = vadd.f32 0.0, %v5555
      %v5557 = vpop.f32.mrf.mxu0
      %v5558 = vadd.f32 0.0, %v5557
      %v5559 = vpop.f32.mrf.mxu0
      %v5560 = vadd.f32 0.0, %v5559
      %5561 = vmatprep.mubr.bf16.mxu0 0
      %5562 = vmatmul.mubr.bf16.gmra.mxu0 %v4048
      %v5563 = vpop.f32.mrf.mxu0
      %v5564 = vadd.f32 0.0, %v5563
      %v5565 = vpop.f32.mrf.mxu0
      %v5566 = vadd.f32 0.0, %v5565
      %v5567 = vpop.f32.mrf.mxu0
      %v5568 = vadd.f32 0.0, %v5567
      %v5569 = vpop.f32.mrf.mxu0
      %v5570 = vadd.f32 0.0, %v5569
      %5571 = vmatprep.mubr.bf16.mxu0 0
      %5572 = vmatmul.mubr.bf16.gmra.mxu0 %v4049
      %v5573 = vpop.f32.mrf.mxu0
      %v5574 = vadd.f32 0.0, %v5573
      %v5575 = vpop.f32.mrf.mxu0
      %v5576 = vadd.f32 0.0, %v5575
      %v5577 = vpop.f32.mrf.mxu0
      %v5578 = vadd.f32 0.0, %v5577
      %v5579 = vpop.f32.mrf.mxu0
      %v5580 = vadd.f32 0.0, %v5579
      %5581 = vmatprep.mubr.bf16.mxu0 0
      %5582 = vmatmul.mubr.bf16.gmra.mxu0 %v4050
      %v5583 = vpop.f32.mrf.mxu0
      %v5584 = vadd.f32 0.0, %v5583
      %v5585 = vpop.f32.mrf.mxu0
      %v5586 = vadd.f32 0.0, %v5585
      %v5587 = vpop.f32.mrf.mxu0
      %v5588 = vadd.f32 0.0, %v5587
      %v5589 = vpop.f32.mrf.mxu0
      %v5590 = vadd.f32 0.0, %v5589
      %5591 = vmatprep.mubr.bf16.mxu0 0
      %5592 = vmatmul.mubr.bf16.gmra.mxu0 %v4051
      %v5593 = vpop.f32.mrf.mxu0
      %v5594 = vadd.f32 0.0, %v5593
      %v5595 = vpop.f32.mrf.mxu0
      %v5596 = vadd.f32 0.0, %v5595
      %v5597 = vpop.f32.mrf.mxu0
      %v5598 = vadd.f32 0.0, %v5597
      %v5599 = vpop.f32.mrf.mxu0
      %v5600 = vadd.f32 0.0, %v5599
      %5601 = vmatprep.mubr.bf16.mxu0 0
      %5602 = vmatmul.mubr.bf16.gmra.mxu0 %v4052
      %v5603 = vpop.f32.mrf.mxu0
      %v5604 = vadd.f32 0.0, %v5603
      %v5605 = vpop.f32.mrf.mxu0
      %v5606 = vadd.f32 0.0, %v5605
      %v5607 = vpop.f32.mrf.mxu0
      %v5608 = vadd.f32 0.0, %v5607
      %v5609 = vpop.f32.mrf.mxu0
      %v5610 = vadd.f32 0.0, %v5609
      %5611 = vmatprep.mubr.bf16.mxu0 0
      %5612 = vmatmul.mubr.bf16.gmra.mxu0 %v4053
      %v5613 = vpop.f32.mrf.mxu0
      %v5614 = vadd.f32 0.0, %v5613
      %v5615 = vpop.f32.mrf.mxu0
      %v5616 = vadd.f32 0.0, %v5615
      %v5617 = vpop.f32.mrf.mxu0
      %v5618 = vadd.f32 0.0, %v5617
      %v5619 = vpop.f32.mrf.mxu0
      %v5620 = vadd.f32 0.0, %v5619
      %5621 = vmatprep.mubr.bf16.mxu0 0
      %5622 = vmatmul.mubr.bf16.gmra.mxu0 %v4054
      %v5623 = vpop.f32.mrf.mxu0
      %v5624 = vadd.f32 0.0, %v5623
      %v5625 = vpop.f32.mrf.mxu0
      %v5626 = vadd.f32 0.0, %v5625
      %v5627 = vpop.f32.mrf.mxu0
      %v5628 = vadd.f32 0.0, %v5627
      %v5629 = vpop.f32.mrf.mxu0
      %v5630 = vadd.f32 0.0, %v5629
      %5631 = vmatprep.mubr.bf16.mxu0 0
      %5632 = vmatmul.mubr.bf16.gmra.mxu0 %v4055
      %v5633 = vpop.f32.mrf.mxu0
      %v5634 = vadd.f32 0.0, %v5633
      %v5635 = vpop.f32.mrf.mxu0
      %v5636 = vadd.f32 0.0, %v5635
      %v5637 = vpop.f32.mrf.mxu0
      %v5638 = vadd.f32 0.0, %v5637
      %v5639 = vpop.f32.mrf.mxu0
      %v5640 = vadd.f32 0.0, %v5639
      %5641 = vmatprep.mubr.bf16.mxu0 0
      %5642 = vmatmul.mubr.bf16.gmra.mxu0 %v4056
      %v5643 = vpop.f32.mrf.mxu0
      %v5644 = vadd.f32 0.0, %v5643
      %v5645 = vpop.f32.mrf.mxu0
      %v5646 = vadd.f32 0.0, %v5645
      %v5647 = vpop.f32.mrf.mxu0
      %v5648 = vadd.f32 0.0, %v5647
      %v5649 = vpop.f32.mrf.mxu0
      %v5650 = vadd.f32 0.0, %v5649
      %5651 = vmatprep.mubr.bf16.mxu0 0
      %5652 = vmatmul.mubr.bf16.gmra.mxu0 %v4057
      %v5653 = vpop.f32.mrf.mxu0
      %v5654 = vadd.f32 0.0, %v5653
      %v5655 = vpop.f32.mrf.mxu0
      %v5656 = vadd.f32 0.0, %v5655
      %v5657 = vpop.f32.mrf.mxu0
      %v5658 = vadd.f32 0.0, %v5657
      %v5659 = vpop.f32.mrf.mxu0
      %v5660 = vadd.f32 0.0, %v5659
      %5661 = vmatprep.mubr.bf16.mxu0 0
      %5662 = vmatmul.mubr.bf16.gmra.mxu0 %v4058
      %v5663 = vpop.f32.mrf.mxu0
      %v5664 = vadd.f32 0.0, %v5663
      %v5665 = vpop.f32.mrf.mxu0
      %v5666 = vadd.f32 0.0, %v5665
      %v5667 = vpop.f32.mrf.mxu0
      %v5668 = vadd.f32 0.0, %v5667
      %v5669 = vpop.f32.mrf.mxu0
      %v5670 = vadd.f32 0.0, %v5669
      %5671 = vmatprep.mubr.bf16.mxu0 0
      %5672 = vmatmul.mubr.bf16.gmra.mxu0 %v4059
      %v5673 = vpop.f32.mrf.mxu0
      %v5674 = vadd.f32 0.0, %v5673
      %v5675 = vpop.f32.mrf.mxu0
      %v5676 = vadd.f32 0.0, %v5675
      %v5677 = vpop.f32.mrf.mxu0
      %v5678 = vadd.f32 0.0, %v5677
      %v5679 = vpop.f32.mrf.mxu0
      %v5680 = vadd.f32 0.0, %v5679
      %5681 = vmatprep.mubr.bf16.mxu0 0
      %5682 = vmatmul.mubr.bf16.gmra.mxu0 %v4060
      %v5683 = vpop.f32.mrf.mxu0
      %v5684 = vadd.f32 0.0, %v5683
      %v5685 = vpop.f32.mrf.mxu0
      %v5686 = vadd.f32 0.0, %v5685
      %v5687 = vpop.f32.mrf.mxu0
      %v5688 = vadd.f32 0.0, %v5687
      %v5689 = vpop.f32.mrf.mxu0
      %v5690 = vadd.f32 0.0, %v5689
      %5691 = vmatprep.mubr.bf16.mxu0 0
      %5692 = vmatmul.mubr.bf16.gmra.mxu0 %v4061
      %v5693 = vpop.f32.mrf.mxu0
      %v5694 = vadd.f32 0.0, %v5693
      %v5695 = vpop.f32.mrf.mxu0
      %v5696 = vadd.f32 0.0, %v5695
      %v5697 = vpop.f32.mrf.mxu0
      %v5698 = vadd.f32 0.0, %v5697
      %v5699 = vpop.f32.mrf.mxu0
      %v5700 = vadd.f32 0.0, %v5699
      %5701 = vmatprep.mubr.bf16.mxu0 0
      %5702 = vmatmul.mubr.bf16.gmra.mxu0 %v4062
      %v5703 = vpop.f32.mrf.mxu0
      %v5704 = vadd.f32 0.0, %v5703
      %v5705 = vpop.f32.mrf.mxu0
      %v5706 = vadd.f32 0.0, %v5705
      %v5707 = vpop.f32.mrf.mxu0
      %v5708 = vadd.f32 0.0, %v5707
      %v5709 = vpop.f32.mrf.mxu0
      %v5710 = vadd.f32 0.0, %v5709
      %5711 = vmatprep.mubr.bf16.mxu0 0
      %5712 = vmatmul.mubr.bf16.gmra.mxu0 %v4063
      %v5713 = vpop.f32.mrf.mxu0
      %v5714 = vadd.f32 0.0, %v5713
      %v5715 = vpop.f32.mrf.mxu0
      %v5716 = vadd.f32 0.0, %v5715
      %v5717 = vpop.f32.mrf.mxu0
      %v5718 = vadd.f32 0.0, %v5717
      %v5719 = vpop.f32.mrf.mxu0
      %v5720 = vadd.f32 0.0, %v5719
      %5721 = vmatprep.mubr.bf16.mxu0 0
      %5722 = vmatmul.mubr.bf16.gmra.mxu0 %v4064
      %v5723 = vpop.f32.mrf.mxu0
      %v5724 = vadd.f32 0.0, %v5723
      %v5725 = vpop.f32.mrf.mxu0
      %v5726 = vadd.f32 0.0, %v5725
      %v5727 = vpop.f32.mrf.mxu0
      %v5728 = vadd.f32 0.0, %v5727
      %v5729 = vpop.f32.mrf.mxu0
      %v5730 = vadd.f32 0.0, %v5729
      %5731 = vmatprep.mubr.bf16.mxu0 0
      %5732 = vmatmul.mubr.bf16.gmra.mxu0 %v4065
      %v5733 = vpop.f32.mrf.mxu0
      %v5734 = vadd.f32 0.0, %v5733
      %v5735 = vpop.f32.mrf.mxu0
      %v5736 = vadd.f32 0.0, %v5735
      %v5737 = vpop.f32.mrf.mxu0
      %v5738 = vadd.f32 0.0, %v5737
      %v5739 = vpop.f32.mrf.mxu0
      %v5740 = vadd.f32 0.0, %v5739
      %5741 = vmatprep.mubr.bf16.mxu0 0
      %5742 = vmatmul.mubr.bf16.gmra.mxu0 %v4066
      %v5743 = vpop.f32.mrf.mxu0
      %v5744 = vadd.f32 0.0, %v5743
      %v5745 = vpop.f32.mrf.mxu0
      %v5746 = vadd.f32 0.0, %v5745
      %v5747 = vpop.f32.mrf.mxu0
      %v5748 = vadd.f32 0.0, %v5747
      %v5749 = vpop.f32.mrf.mxu0
      %v5750 = vadd.f32 0.0, %v5749
      %5751 = vmatprep.mubr.bf16.mxu0 0
      %5752 = vmatmul.mubr.bf16.gmra.mxu0 %v4067
      %v5753 = vpop.f32.mrf.mxu0
      %v5754 = vadd.f32 0.0, %v5753
      %v5755 = vpop.f32.mrf.mxu0
      %v5756 = vadd.f32 0.0, %v5755
      %v5757 = vpop.f32.mrf.mxu0
      %v5758 = vadd.f32 0.0, %v5757
      %v5759 = vpop.f32.mrf.mxu0
      %v5760 = vadd.f32 0.0, %v5759
      %5761 = vmatprep.mubr.bf16.mxu0 0
      %5762 = vmatmul.mubr.bf16.gmra.mxu0 %v4068
      %v5763 = vpop.f32.mrf.mxu0
      %v5764 = vadd.f32 0.0, %v5763
      %v5765 = vpop.f32.mrf.mxu0
      %v5766 = vadd.f32 0.0, %v5765
      %v5767 = vpop.f32.mrf.mxu0
      %v5768 = vadd.f32 0.0, %v5767
      %v5769 = vpop.f32.mrf.mxu0
      %v5770 = vadd.f32 0.0, %v5769
      %5771 = vmatprep.mubr.bf16.mxu0 0
      %5772 = vmatmul.mubr.bf16.gmra.mxu0 %v4069
      %v5773 = vpop.f32.mrf.mxu0
      %v5774 = vadd.f32 0.0, %v5773
      %v5775 = vpop.f32.mrf.mxu0
      %v5776 = vadd.f32 0.0, %v5775
      %v5777 = vpop.f32.mrf.mxu0
      %v5778 = vadd.f32 0.0, %v5777
      %v5779 = vpop.f32.mrf.mxu0
      %v5780 = vadd.f32 0.0, %v5779
      %5781 = vmatprep.mubr.bf16.mxu0 0
      %5782 = vmatmul.mubr.bf16.gmra.mxu0 %v4070
      %v5783 = vpop.f32.mrf.mxu0
      %v5784 = vadd.f32 0.0, %v5783
      %v5785 = vpop.f32.mrf.mxu0
      %v5786 = vadd.f32 0.0, %v5785
      %v5787 = vpop.f32.mrf.mxu0
      %v5788 = vadd.f32 0.0, %v5787
      %v5789 = vpop.f32.mrf.mxu0
      %v5790 = vadd.f32 0.0, %v5789
      %5791 = vmatprep.mubr.bf16.mxu0 0
      %5792 = vmatmul.mubr.bf16.gmra.mxu0 %v4071
      %v5793 = vpop.f32.mrf.mxu0
      %v5794 = vadd.f32 0.0, %v5793
      %v5795 = vpop.f32.mrf.mxu0
      %v5796 = vadd.f32 0.0, %v5795
      %v5797 = vpop.f32.mrf.mxu0
      %v5798 = vadd.f32 0.0, %v5797
      %v5799 = vpop.f32.mrf.mxu0
      %v5800 = vadd.f32 0.0, %v5799
      %5801 = vdwg.mxu0
      %5802 = vmatprep.subr.bf16.mxu0 %v4389
      %5803 = vmatpush1.bf16.msra.mxu0 %v4388
      %5804 = vmatprep.subr.bf16.mxu0 %v4381
      %5805 = vmatpush1.bf16.msra.mxu0 %v4380
      %5806 = vmatprep.subr.bf16.mxu0 %v4373
      %5807 = vmatpush1.bf16.msra.mxu0 %v4372
      %5808 = vmatprep.subr.bf16.mxu0 %v4365
      %5809 = vmatpush1.bf16.msra.mxu0 %v4364
      %5810 = vmatprep.subr.bf16.mxu0 %v4357
      %5811 = vmatpush1.bf16.msra.mxu0 %v4356
      %5812 = vmatprep.subr.bf16.mxu0 %v4349
      %5813 = vmatpush1.bf16.msra.mxu0 %v4348
      %5814 = vmatprep.subr.bf16.mxu0 %v4341
      %5815 = vmatpush1.bf16.msra.mxu0 %v4340
      %5816 = vmatprep.subr.bf16.mxu0 %v4333
      %5817 = vmatpush1.bf16.msra.mxu0 %v4332
      %5818 = vmatprep.subr.bf16.mxu0 0
      %5819 = vmatpush2.bf16.msra.mxu0 0
      %5820 = vmatprep.subr.bf16.mxu0 0
      %5821 = vmatpush2.bf16.msra.mxu0 0
      %5822 = vmatprep.subr.bf16.mxu0 0
      %5823 = vmatpush2.bf16.msra.mxu0 0
      %5824 = vmatprep.subr.bf16.mxu0 0
      %5825 = vmatpush2.bf16.msra.mxu0 0
      %5826 = vmatprep.subr.bf16.mxu0 0
      %5827 = vmatpush2.bf16.msra.mxu0 0
      %5828 = vmatprep.subr.bf16.mxu0 0
      %5829 = vmatpush2.bf16.msra.mxu0 0
      %5830 = vmatprep.subr.bf16.mxu0 0
      %5831 = vmatpush2.bf16.msra.mxu0 0
      %5832 = vmatprep.subr.bf16.mxu0 0
      %5833 = vmatpush2.bf16.msra.mxu0 0
      %5834 = vmatprep.mubr.bf16.mxu0 0
      %5835 = vmatmul.mubr.bf16.gmra.mxu0 %v4008
      %v5836 = vpop.f32.mrf.mxu0
      %v5837 = vadd.f32 0.0, %v5836
      %v5838 = vpop.f32.mrf.mxu0
      %v5839 = vadd.f32 0.0, %v5838
      %v5840 = vpop.f32.mrf.mxu0
      %v5841 = vadd.f32 0.0, %v5840
      %v5842 = vpop.f32.mrf.mxu0
      %v5843 = vadd.f32 0.0, %v5842
      %5844 = vmatprep.mubr.bf16.mxu0 0
      %5845 = vmatmul.mubr.bf16.gmra.mxu0 %v4009
      %v5846 = vpop.f32.mrf.mxu0
      %v5847 = vadd.f32 0.0, %v5846
      %v5848 = vpop.f32.mrf.mxu0
      %v5849 = vadd.f32 0.0, %v5848
      %v5850 = vpop.f32.mrf.mxu0
      %v5851 = vadd.f32 0.0, %v5850
      %v5852 = vpop.f32.mrf.mxu0
      %v5853 = vadd.f32 0.0, %v5852
      %5854 = vmatprep.mubr.bf16.mxu0 0
      %5855 = vmatmul.mubr.bf16.gmra.mxu0 %v4010
      %v5856 = vpop.f32.mrf.mxu0
      %v5857 = vadd.f32 0.0, %v5856
      %v5858 = vpop.f32.mrf.mxu0
      %v5859 = vadd.f32 0.0, %v5858
      %v5860 = vpop.f32.mrf.mxu0
      %v5861 = vadd.f32 0.0, %v5860
      %v5862 = vpop.f32.mrf.mxu0
      %v5863 = vadd.f32 0.0, %v5862
      %5864 = vmatprep.mubr.bf16.mxu0 0
      %5865 = vmatmul.mubr.bf16.gmra.mxu0 %v4011
      %v5866 = vpop.f32.mrf.mxu0
      %v5867 = vadd.f32 0.0, %v5866
      %v5868 = vpop.f32.mrf.mxu0
      %v5869 = vadd.f32 0.0, %v5868
      %v5870 = vpop.f32.mrf.mxu0
      %v5871 = vadd.f32 0.0, %v5870
      %v5872 = vpop.f32.mrf.mxu0
      %v5873 = vadd.f32 0.0, %v5872
      %5874 = vmatprep.mubr.bf16.mxu0 0
      %5875 = vmatmul.mubr.bf16.gmra.mxu0 %v4012
      %v5876 = vpop.f32.mrf.mxu0
      %v5877 = vadd.f32 0.0, %v5876
      %v5878 = vpop.f32.mrf.mxu0
      %v5879 = vadd.f32 0.0, %v5878
      %v5880 = vpop.f32.mrf.mxu0
      %v5881 = vadd.f32 0.0, %v5880
      %v5882 = vpop.f32.mrf.mxu0
      %v5883 = vadd.f32 0.0, %v5882
      %5884 = vmatprep.mubr.bf16.mxu0 0
      %5885 = vmatmul.mubr.bf16.gmra.mxu0 %v4013
      %v5886 = vpop.f32.mrf.mxu0
      %v5887 = vadd.f32 0.0, %v5886
      %v5888 = vpop.f32.mrf.mxu0
      %v5889 = vadd.f32 0.0, %v5888
      %v5890 = vpop.f32.mrf.mxu0
      %v5891 = vadd.f32 0.0, %v5890
      %v5892 = vpop.f32.mrf.mxu0
      %v5893 = vadd.f32 0.0, %v5892
      %5894 = vmatprep.mubr.bf16.mxu0 0
      %5895 = vmatmul.mubr.bf16.gmra.mxu0 %v4014
      %v5896 = vpop.f32.mrf.mxu0
      %v5897 = vadd.f32 0.0, %v5896
      %v5898 = vpop.f32.mrf.mxu0
      %v5899 = vadd.f32 0.0, %v5898
      %v5900 = vpop.f32.mrf.mxu0
      %v5901 = vadd.f32 0.0, %v5900
      %v5902 = vpop.f32.mrf.mxu0
      %v5903 = vadd.f32 0.0, %v5902
      %5904 = vmatprep.mubr.bf16.mxu0 0
      %5905 = vmatmul.mubr.bf16.gmra.mxu0 %v4015
      %v5906 = vpop.f32.mrf.mxu0
      %v5907 = vadd.f32 0.0, %v5906
      %v5908 = vpop.f32.mrf.mxu0
      %v5909 = vadd.f32 0.0, %v5908
      %v5910 = vpop.f32.mrf.mxu0
      %v5911 = vadd.f32 0.0, %v5910
      %v5912 = vpop.f32.mrf.mxu0
      %v5913 = vadd.f32 0.0, %v5912
      %5914 = vmatprep.mubr.bf16.mxu0 0
      %5915 = vmatmul.mubr.bf16.gmra.mxu0 %v4016
      %v5916 = vpop.f32.mrf.mxu0
      %v5917 = vadd.f32 0.0, %v5916
      %v5918 = vpop.f32.mrf.mxu0
      %v5919 = vadd.f32 0.0, %v5918
      %v5920 = vpop.f32.mrf.mxu0
      %v5921 = vadd.f32 0.0, %v5920
      %v5922 = vpop.f32.mrf.mxu0
      %v5923 = vadd.f32 0.0, %v5922
      %5924 = vmatprep.mubr.bf16.mxu0 0
      %5925 = vmatmul.mubr.bf16.gmra.mxu0 %v4017
      %v5926 = vpop.f32.mrf.mxu0
      %v5927 = vadd.f32 0.0, %v5926
      %v5928 = vpop.f32.mrf.mxu0
      %v5929 = vadd.f32 0.0, %v5928
      %v5930 = vpop.f32.mrf.mxu0
      %v5931 = vadd.f32 0.0, %v5930
      %v5932 = vpop.f32.mrf.mxu0
      %v5933 = vadd.f32 0.0, %v5932
      %5934 = vmatprep.mubr.bf16.mxu0 0
      %5935 = vmatmul.mubr.bf16.gmra.mxu0 %v4018
      %v5936 = vpop.f32.mrf.mxu0
      %v5937 = vadd.f32 0.0, %v5936
      %v5938 = vpop.f32.mrf.mxu0
      %v5939 = vadd.f32 0.0, %v5938
      %v5940 = vpop.f32.mrf.mxu0
      %v5941 = vadd.f32 0.0, %v5940
      %v5942 = vpop.f32.mrf.mxu0
      %v5943 = vadd.f32 0.0, %v5942
      %5944 = vmatprep.mubr.bf16.mxu0 0
      %5945 = vmatmul.mubr.bf16.gmra.mxu0 %v4019
      %v5946 = vpop.f32.mrf.mxu0
      %v5947 = vadd.f32 0.0, %v5946
      %v5948 = vpop.f32.mrf.mxu0
      %v5949 = vadd.f32 0.0, %v5948
      %v5950 = vpop.f32.mrf.mxu0
      %v5951 = vadd.f32 0.0, %v5950
      %v5952 = vpop.f32.mrf.mxu0
      %v5953 = vadd.f32 0.0, %v5952
      %5954 = vmatprep.mubr.bf16.mxu0 0
      %5955 = vmatmul.mubr.bf16.gmra.mxu0 %v4020
      %v5956 = vpop.f32.mrf.mxu0
      %v5957 = vadd.f32 0.0, %v5956
      %v5958 = vpop.f32.mrf.mxu0
      %v5959 = vadd.f32 0.0, %v5958
      %v5960 = vpop.f32.mrf.mxu0
      %v5961 = vadd.f32 0.0, %v5960
      %v5962 = vpop.f32.mrf.mxu0
      %v5963 = vadd.f32 0.0, %v5962
      %5964 = vmatprep.mubr.bf16.mxu0 0
      %5965 = vmatmul.mubr.bf16.gmra.mxu0 %v4021
      %v5966 = vpop.f32.mrf.mxu0
      %v5967 = vadd.f32 0.0, %v5966
      %v5968 = vpop.f32.mrf.mxu0
      %v5969 = vadd.f32 0.0, %v5968
      %v5970 = vpop.f32.mrf.mxu0
      %v5971 = vadd.f32 0.0, %v5970
      %v5972 = vpop.f32.mrf.mxu0
      %v5973 = vadd.f32 0.0, %v5972
      %5974 = vmatprep.mubr.bf16.mxu0 0
      %5975 = vmatmul.mubr.bf16.gmra.mxu0 %v4022
      %v5976 = vpop.f32.mrf.mxu0
      %v5977 = vadd.f32 0.0, %v5976
      %v5978 = vpop.f32.mrf.mxu0
      %v5979 = vadd.f32 0.0, %v5978
      %v5980 = vpop.f32.mrf.mxu0
      %v5981 = vadd.f32 0.0, %v5980
      %v5982 = vpop.f32.mrf.mxu0
      %v5983 = vadd.f32 0.0, %v5982
      %5984 = vmatprep.mubr.bf16.mxu0 0
      %5985 = vmatmul.mubr.bf16.gmra.mxu0 %v4023
      %v5986 = vpop.f32.mrf.mxu0
      %v5987 = vadd.f32 0.0, %v5986
      %v5988 = vpop.f32.mrf.mxu0
      %v5989 = vadd.f32 0.0, %v5988
      %v5990 = vpop.f32.mrf.mxu0
      %v5991 = vadd.f32 0.0, %v5990
      %v5992 = vpop.f32.mrf.mxu0
      %v5993 = vadd.f32 0.0, %v5992
      %5994 = vmatprep.mubr.bf16.mxu0 0
      %5995 = vmatmul.mubr.bf16.gmra.mxu0 %v4024
      %v5996 = vpop.f32.mrf.mxu0
      %v5997 = vadd.f32 0.0, %v5996
      %v5998 = vpop.f32.mrf.mxu0
      %v5999 = vadd.f32 0.0, %v5998
      %v6000 = vpop.f32.mrf.mxu0
      %v6001 = vadd.f32 0.0, %v6000
      %v6002 = vpop.f32.mrf.mxu0
      %v6003 = vadd.f32 0.0, %v6002
      %6004 = vmatprep.mubr.bf16.mxu0 0
      %6005 = vmatmul.mubr.bf16.gmra.mxu0 %v4025
      %v6006 = vpop.f32.mrf.mxu0
      %v6007 = vadd.f32 0.0, %v6006
      %v6008 = vpop.f32.mrf.mxu0
      %v6009 = vadd.f32 0.0, %v6008
      %v6010 = vpop.f32.mrf.mxu0
      %v6011 = vadd.f32 0.0, %v6010
      %v6012 = vpop.f32.mrf.mxu0
      %v6013 = vadd.f32 0.0, %v6012
      %6014 = vmatprep.mubr.bf16.mxu0 0
      %6015 = vmatmul.mubr.bf16.gmra.mxu0 %v4026
      %v6016 = vpop.f32.mrf.mxu0
      %v6017 = vadd.f32 0.0, %v6016
      %v6018 = vpop.f32.mrf.mxu0
      %v6019 = vadd.f32 0.0, %v6018
      %v6020 = vpop.f32.mrf.mxu0
      %v6021 = vadd.f32 0.0, %v6020
      %v6022 = vpop.f32.mrf.mxu0
      %v6023 = vadd.f32 0.0, %v6022
      %6024 = vmatprep.mubr.bf16.mxu0 0
      %6025 = vmatmul.mubr.bf16.gmra.mxu0 %v4027
      %v6026 = vpop.f32.mrf.mxu0
      %v6027 = vadd.f32 0.0, %v6026
      %v6028 = vpop.f32.mrf.mxu0
      %v6029 = vadd.f32 0.0, %v6028
      %v6030 = vpop.f32.mrf.mxu0
      %v6031 = vadd.f32 0.0, %v6030
      %v6032 = vpop.f32.mrf.mxu0
      %v6033 = vadd.f32 0.0, %v6032
      %6034 = vmatprep.mubr.bf16.mxu0 0
      %6035 = vmatmul.mubr.bf16.gmra.mxu0 %v4028
      %v6036 = vpop.f32.mrf.mxu0
      %v6037 = vadd.f32 0.0, %v6036
      %v6038 = vpop.f32.mrf.mxu0
      %v6039 = vadd.f32 0.0, %v6038
      %v6040 = vpop.f32.mrf.mxu0
      %v6041 = vadd.f32 0.0, %v6040
      %v6042 = vpop.f32.mrf.mxu0
      %v6043 = vadd.f32 0.0, %v6042
      %6044 = vmatprep.mubr.bf16.mxu0 0
      %6045 = vmatmul.mubr.bf16.gmra.mxu0 %v4029
      %v6046 = vpop.f32.mrf.mxu0
      %v6047 = vadd.f32 0.0, %v6046
      %v6048 = vpop.f32.mrf.mxu0
      %v6049 = vadd.f32 0.0, %v6048
      %v6050 = vpop.f32.mrf.mxu0
      %v6051 = vadd.f32 0.0, %v6050
      %v6052 = vpop.f32.mrf.mxu0
      %v6053 = vadd.f32 0.0, %v6052
      %6054 = vmatprep.mubr.bf16.mxu0 0
      %6055 = vmatmul.mubr.bf16.gmra.mxu0 %v4030
      %v6056 = vpop.f32.mrf.mxu0
      %v6057 = vadd.f32 0.0, %v6056
      %v6058 = vpop.f32.mrf.mxu0
      %v6059 = vadd.f32 0.0, %v6058
      %v6060 = vpop.f32.mrf.mxu0
      %v6061 = vadd.f32 0.0, %v6060
      %v6062 = vpop.f32.mrf.mxu0
      %v6063 = vadd.f32 0.0, %v6062
      %6064 = vmatprep.mubr.bf16.mxu0 0
      %6065 = vmatmul.mubr.bf16.gmra.mxu0 %v4031
      %v6066 = vpop.f32.mrf.mxu0
      %v6067 = vadd.f32 0.0, %v6066
      %v6068 = vpop.f32.mrf.mxu0
      %v6069 = vadd.f32 0.0, %v6068
      %v6070 = vpop.f32.mrf.mxu0
      %v6071 = vadd.f32 0.0, %v6070
      %v6072 = vpop.f32.mrf.mxu0
      %v6073 = vadd.f32 0.0, %v6072
      %6074 = vmatprep.mubr.bf16.mxu0 0
      %6075 = vmatmul.mubr.bf16.gmra.mxu0 %v4032
      %v6076 = vpop.f32.mrf.mxu0
      %v6077 = vadd.f32 0.0, %v6076
      %v6078 = vpop.f32.mrf.mxu0
      %v6079 = vadd.f32 0.0, %v6078
      %v6080 = vpop.f32.mrf.mxu0
      %v6081 = vadd.f32 0.0, %v6080
      %v6082 = vpop.f32.mrf.mxu0
      %v6083 = vadd.f32 0.0, %v6082
      %6084 = vmatprep.mubr.bf16.mxu0 0
      %6085 = vmatmul.mubr.bf16.gmra.mxu0 %v4033
      %v6086 = vpop.f32.mrf.mxu0
      %v6087 = vadd.f32 0.0, %v6086
      %v6088 = vpop.f32.mrf.mxu0
      %v6089 = vadd.f32 0.0, %v6088
      %v6090 = vpop.f32.mrf.mxu0
      %v6091 = vadd.f32 0.0, %v6090
      %v6092 = vpop.f32.mrf.mxu0
      %v6093 = vadd.f32 0.0, %v6092
      %6094 = vmatprep.mubr.bf16.mxu0 0
      %6095 = vmatmul.mubr.bf16.gmra.mxu0 %v4034
      %v6096 = vpop.f32.mrf.mxu0
      %v6097 = vadd.f32 0.0, %v6096
      %v6098 = vpop.f32.mrf.mxu0
      %v6099 = vadd.f32 0.0, %v6098
      %v6100 = vpop.f32.mrf.mxu0
      %v6101 = vadd.f32 0.0, %v6100
      %v6102 = vpop.f32.mrf.mxu0
      %v6103 = vadd.f32 0.0, %v6102
      %6104 = vmatprep.mubr.bf16.mxu0 0
      %6105 = vmatmul.mubr.bf16.gmra.mxu0 %v4035
      %v6106 = vpop.f32.mrf.mxu0
      %v6107 = vadd.f32 0.0, %v6106
      %v6108 = vpop.f32.mrf.mxu0
      %v6109 = vadd.f32 0.0, %v6108
      %v6110 = vpop.f32.mrf.mxu0
      %v6111 = vadd.f32 0.0, %v6110
      %v6112 = vpop.f32.mrf.mxu0
      %v6113 = vadd.f32 0.0, %v6112
      %6114 = vmatprep.mubr.bf16.mxu0 0
      %6115 = vmatmul.mubr.bf16.gmra.mxu0 %v4036
      %v6116 = vpop.f32.mrf.mxu0
      %v6117 = vadd.f32 0.0, %v6116
      %v6118 = vpop.f32.mrf.mxu0
      %v6119 = vadd.f32 0.0, %v6118
      %v6120 = vpop.f32.mrf.mxu0
      %v6121 = vadd.f32 0.0, %v6120
      %v6122 = vpop.f32.mrf.mxu0
      %v6123 = vadd.f32 0.0, %v6122
      %6124 = vmatprep.mubr.bf16.mxu0 0
      %6125 = vmatmul.mubr.bf16.gmra.mxu0 %v4037
      %v6126 = vpop.f32.mrf.mxu0
      %v6127 = vadd.f32 0.0, %v6126
      %v6128 = vpop.f32.mrf.mxu0
      %v6129 = vadd.f32 0.0, %v6128
      %v6130 = vpop.f32.mrf.mxu0
      %v6131 = vadd.f32 0.0, %v6130
      %v6132 = vpop.f32.mrf.mxu0
      %v6133 = vadd.f32 0.0, %v6132
      %6134 = vmatprep.mubr.bf16.mxu0 0
      %6135 = vmatmul.mubr.bf16.gmra.mxu0 %v4038
      %v6136 = vpop.f32.mrf.mxu0
      %v6137 = vadd.f32 0.0, %v6136
      %v6138 = vpop.f32.mrf.mxu0
      %v6139 = vadd.f32 0.0, %v6138
      %v6140 = vpop.f32.mrf.mxu0
      %v6141 = vadd.f32 0.0, %v6140
      %v6142 = vpop.f32.mrf.mxu0
      %v6143 = vadd.f32 0.0, %v6142
      %6144 = vmatprep.mubr.bf16.mxu0 0
      %6145 = vmatmul.mubr.bf16.gmra.mxu0 %v4039
      %v6146 = vpop.f32.mrf.mxu0
      %v6147 = vadd.f32 0.0, %v6146
      %v6148 = vpop.f32.mrf.mxu0
      %v6149 = vadd.f32 0.0, %v6148
      %v6150 = vpop.f32.mrf.mxu0
      %v6151 = vadd.f32 0.0, %v6150
      %v6152 = vpop.f32.mrf.mxu0
      %v6153 = vadd.f32 0.0, %v6152
      %6154 = vmatprep.mubr.bf16.mxu0 0
      %6155 = vmatmul.mubr.bf16.gmra.mxu0 %v4040
      %v6156 = vpop.f32.mrf.mxu0
      %v6157 = vadd.f32 0.0, %v6156
      %v6158 = vpop.f32.mrf.mxu0
      %v6159 = vadd.f32 0.0, %v6158
      %v6160 = vpop.f32.mrf.mxu0
      %v6161 = vadd.f32 0.0, %v6160
      %v6162 = vpop.f32.mrf.mxu0
      %v6163 = vadd.f32 0.0, %v6162
      %6164 = vmatprep.mubr.bf16.mxu0 0
      %6165 = vmatmul.mubr.bf16.gmra.mxu0 %v4041
      %v6166 = vpop.f32.mrf.mxu0
      %v6167 = vadd.f32 0.0, %v6166
      %v6168 = vpop.f32.mrf.mxu0
      %v6169 = vadd.f32 0.0, %v6168
      %v6170 = vpop.f32.mrf.mxu0
      %v6171 = vadd.f32 0.0, %v6170
      %v6172 = vpop.f32.mrf.mxu0
      %v6173 = vadd.f32 0.0, %v6172
      %6174 = vmatprep.mubr.bf16.mxu0 0
      %6175 = vmatmul.mubr.bf16.gmra.mxu0 %v4042
      %v6176 = vpop.f32.mrf.mxu0
      %v6177 = vadd.f32 0.0, %v6176
      %v6178 = vpop.f32.mrf.mxu0
      %v6179 = vadd.f32 0.0, %v6178
      %v6180 = vpop.f32.mrf.mxu0
      %v6181 = vadd.f32 0.0, %v6180
      %v6182 = vpop.f32.mrf.mxu0
      %v6183 = vadd.f32 0.0, %v6182
      %6184 = vmatprep.mubr.bf16.mxu0 0
      %6185 = vmatmul.mubr.bf16.gmra.mxu0 %v4043
      %v6186 = vpop.f32.mrf.mxu0
      %v6187 = vadd.f32 0.0, %v6186
      %v6188 = vpop.f32.mrf.mxu0
      %v6189 = vadd.f32 0.0, %v6188
      %v6190 = vpop.f32.mrf.mxu0
      %v6191 = vadd.f32 0.0, %v6190
      %v6192 = vpop.f32.mrf.mxu0
      %v6193 = vadd.f32 0.0, %v6192
      %6194 = vmatprep.mubr.bf16.mxu0 0
      %6195 = vmatmul.mubr.bf16.gmra.mxu0 %v4044
      %v6196 = vpop.f32.mrf.mxu0
      %v6197 = vadd.f32 0.0, %v6196
      %v6198 = vpop.f32.mrf.mxu0
      %v6199 = vadd.f32 0.0, %v6198
      %v6200 = vpop.f32.mrf.mxu0
      %v6201 = vadd.f32 0.0, %v6200
      %v6202 = vpop.f32.mrf.mxu0
      %v6203 = vadd.f32 0.0, %v6202
      %6204 = vmatprep.mubr.bf16.mxu0 0
      %6205 = vmatmul.mubr.bf16.gmra.mxu0 %v4045
      %v6206 = vpop.f32.mrf.mxu0
      %v6207 = vadd.f32 0.0, %v6206
      %v6208 = vpop.f32.mrf.mxu0
      %v6209 = vadd.f32 0.0, %v6208
      %v6210 = vpop.f32.mrf.mxu0
      %v6211 = vadd.f32 0.0, %v6210
      %v6212 = vpop.f32.mrf.mxu0
      %v6213 = vadd.f32 0.0, %v6212
      %6214 = vmatprep.mubr.bf16.mxu0 0
      %6215 = vmatmul.mubr.bf16.gmra.mxu0 %v4046
      %v6216 = vpop.f32.mrf.mxu0
      %v6217 = vadd.f32 0.0, %v6216
      %v6218 = vpop.f32.mrf.mxu0
      %v6219 = vadd.f32 0.0, %v6218
      %v6220 = vpop.f32.mrf.mxu0
      %v6221 = vadd.f32 0.0, %v6220
      %v6222 = vpop.f32.mrf.mxu0
      %v6223 = vadd.f32 0.0, %v6222
      %6224 = vmatprep.mubr.bf16.mxu0 0
      %6225 = vmatmul.mubr.bf16.gmra.mxu0 %v4047
      %v6226 = vpop.f32.mrf.mxu0
      %v6227 = vadd.f32 0.0, %v6226
      %v6228 = vpop.f32.mrf.mxu0
      %v6229 = vadd.f32 0.0, %v6228
      %v6230 = vpop.f32.mrf.mxu0
      %v6231 = vadd.f32 0.0, %v6230
      %v6232 = vpop.f32.mrf.mxu0
      %v6233 = vadd.f32 0.0, %v6232
      %6234 = vmatprep.mubr.bf16.mxu0 0
      %6235 = vmatmul.mubr.bf16.gmra.mxu0 %v4048
      %v6236 = vpop.f32.mrf.mxu0
      %v6237 = vadd.f32 0.0, %v6236
      %v6238 = vpop.f32.mrf.mxu0
      %v6239 = vadd.f32 0.0, %v6238
      %v6240 = vpop.f32.mrf.mxu0
      %v6241 = vadd.f32 0.0, %v6240
      %v6242 = vpop.f32.mrf.mxu0
      %v6243 = vadd.f32 0.0, %v6242
      %6244 = vmatprep.mubr.bf16.mxu0 0
      %6245 = vmatmul.mubr.bf16.gmra.mxu0 %v4049
      %v6246 = vpop.f32.mrf.mxu0
      %v6247 = vadd.f32 0.0, %v6246
      %v6248 = vpop.f32.mrf.mxu0
      %v6249 = vadd.f32 0.0, %v6248
      %v6250 = vpop.f32.mrf.mxu0
      %v6251 = vadd.f32 0.0, %v6250
      %v6252 = vpop.f32.mrf.mxu0
      %v6253 = vadd.f32 0.0, %v6252
      %6254 = vmatprep.mubr.bf16.mxu0 0
      %6255 = vmatmul.mubr.bf16.gmra.mxu0 %v4050
      %v6256 = vpop.f32.mrf.mxu0
      %v6257 = vadd.f32 0.0, %v6256
      %v6258 = vpop.f32.mrf.mxu0
      %v6259 = vadd.f32 0.0, %v6258
      %v6260 = vpop.f32.mrf.mxu0
      %v6261 = vadd.f32 0.0, %v6260
      %v6262 = vpop.f32.mrf.mxu0
      %v6263 = vadd.f32 0.0, %v6262
      %6264 = vmatprep.mubr.bf16.mxu0 0
      %6265 = vmatmul.mubr.bf16.gmra.mxu0 %v4051
      %v6266 = vpop.f32.mrf.mxu0
      %v6267 = vadd.f32 0.0, %v6266
      %v6268 = vpop.f32.mrf.mxu0
      %v6269 = vadd.f32 0.0, %v6268
      %v6270 = vpop.f32.mrf.mxu0
      %v6271 = vadd.f32 0.0, %v6270
      %v6272 = vpop.f32.mrf.mxu0
      %v6273 = vadd.f32 0.0, %v6272
      %6274 = vmatprep.mubr.bf16.mxu0 0
      %6275 = vmatmul.mubr.bf16.gmra.mxu0 %v4052
      %v6276 = vpop.f32.mrf.mxu0
      %v6277 = vadd.f32 0.0, %v6276
      %v6278 = vpop.f32.mrf.mxu0
      %v6279 = vadd.f32 0.0, %v6278
      %v6280 = vpop.f32.mrf.mxu0
      %v6281 = vadd.f32 0.0, %v6280
      %v6282 = vpop.f32.mrf.mxu0
      %v6283 = vadd.f32 0.0, %v6282
      %6284 = vmatprep.mubr.bf16.mxu0 0
      %6285 = vmatmul.mubr.bf16.gmra.mxu0 %v4053
      %v6286 = vpop.f32.mrf.mxu0
      %v6287 = vadd.f32 0.0, %v6286
      %v6288 = vpop.f32.mrf.mxu0
      %v6289 = vadd.f32 0.0, %v6288
      %v6290 = vpop.f32.mrf.mxu0
      %v6291 = vadd.f32 0.0, %v6290
      %v6292 = vpop.f32.mrf.mxu0
      %v6293 = vadd.f32 0.0, %v6292
      %6294 = vmatprep.mubr.bf16.mxu0 0
      %6295 = vmatmul.mubr.bf16.gmra.mxu0 %v4054
      %v6296 = vpop.f32.mrf.mxu0
      %v6297 = vadd.f32 0.0, %v6296
      %v6298 = vpop.f32.mrf.mxu0
      %v6299 = vadd.f32 0.0, %v6298
      %v6300 = vpop.f32.mrf.mxu0
      %v6301 = vadd.f32 0.0, %v6300
      %v6302 = vpop.f32.mrf.mxu0
      %v6303 = vadd.f32 0.0, %v6302
      %6304 = vmatprep.mubr.bf16.mxu0 0
      %6305 = vmatmul.mubr.bf16.gmra.mxu0 %v4055
      %v6306 = vpop.f32.mrf.mxu0
      %v6307 = vadd.f32 0.0, %v6306
      %v6308 = vpop.f32.mrf.mxu0
      %v6309 = vadd.f32 0.0, %v6308
      %v6310 = vpop.f32.mrf.mxu0
      %v6311 = vadd.f32 0.0, %v6310
      %v6312 = vpop.f32.mrf.mxu0
      %v6313 = vadd.f32 0.0, %v6312
      %6314 = vmatprep.mubr.bf16.mxu0 0
      %6315 = vmatmul.mubr.bf16.gmra.mxu0 %v4056
      %v6316 = vpop.f32.mrf.mxu0
      %v6317 = vadd.f32 0.0, %v6316
      %v6318 = vpop.f32.mrf.mxu0
      %v6319 = vadd.f32 0.0, %v6318
      %v6320 = vpop.f32.mrf.mxu0
      %v6321 = vadd.f32 0.0, %v6320
      %v6322 = vpop.f32.mrf.mxu0
      %v6323 = vadd.f32 0.0, %v6322
      %6324 = vmatprep.mubr.bf16.mxu0 0
      %6325 = vmatmul.mubr.bf16.gmra.mxu0 %v4057
      %v6326 = vpop.f32.mrf.mxu0
      %v6327 = vadd.f32 0.0, %v6326
      %v6328 = vpop.f32.mrf.mxu0
      %v6329 = vadd.f32 0.0, %v6328
      %v6330 = vpop.f32.mrf.mxu0
      %v6331 = vadd.f32 0.0, %v6330
      %v6332 = vpop.f32.mrf.mxu0
      %v6333 = vadd.f32 0.0, %v6332
      %6334 = vmatprep.mubr.bf16.mxu0 0
      %6335 = vmatmul.mubr.bf16.gmra.mxu0 %v4058
      %v6336 = vpop.f32.mrf.mxu0
      %v6337 = vadd.f32 0.0, %v6336
      %v6338 = vpop.f32.mrf.mxu0
      %v6339 = vadd.f32 0.0, %v6338
      %v6340 = vpop.f32.mrf.mxu0
      %v6341 = vadd.f32 0.0, %v6340
      %v6342 = vpop.f32.mrf.mxu0
      %v6343 = vadd.f32 0.0, %v6342
      %6344 = vmatprep.mubr.bf16.mxu0 0
      %6345 = vmatmul.mubr.bf16.gmra.mxu0 %v4059
      %v6346 = vpop.f32.mrf.mxu0
      %v6347 = vadd.f32 0.0, %v6346
      %v6348 = vpop.f32.mrf.mxu0
      %v6349 = vadd.f32 0.0, %v6348
      %v6350 = vpop.f32.mrf.mxu0
      %v6351 = vadd.f32 0.0, %v6350
      %v6352 = vpop.f32.mrf.mxu0
      %v6353 = vadd.f32 0.0, %v6352
      %6354 = vmatprep.mubr.bf16.mxu0 0
      %6355 = vmatmul.mubr.bf16.gmra.mxu0 %v4060
      %v6356 = vpop.f32.mrf.mxu0
      %v6357 = vadd.f32 0.0, %v6356
      %v6358 = vpop.f32.mrf.mxu0
      %v6359 = vadd.f32 0.0, %v6358
      %v6360 = vpop.f32.mrf.mxu0
      %v6361 = vadd.f32 0.0, %v6360
      %v6362 = vpop.f32.mrf.mxu0
      %v6363 = vadd.f32 0.0, %v6362
      %6364 = vmatprep.mubr.bf16.mxu0 0
      %6365 = vmatmul.mubr.bf16.gmra.mxu0 %v4061
      %v6366 = vpop.f32.mrf.mxu0
      %v6367 = vadd.f32 0.0, %v6366
      %v6368 = vpop.f32.mrf.mxu0
      %v6369 = vadd.f32 0.0, %v6368
      %v6370 = vpop.f32.mrf.mxu0
      %v6371 = vadd.f32 0.0, %v6370
      %v6372 = vpop.f32.mrf.mxu0
      %v6373 = vadd.f32 0.0, %v6372
      %6374 = vmatprep.mubr.bf16.mxu0 0
      %6375 = vmatmul.mubr.bf16.gmra.mxu0 %v4062
      %v6376 = vpop.f32.mrf.mxu0
      %v6377 = vadd.f32 0.0, %v6376
      %v6378 = vpop.f32.mrf.mxu0
      %v6379 = vadd.f32 0.0, %v6378
      %v6380 = vpop.f32.mrf.mxu0
      %v6381 = vadd.f32 0.0, %v6380
      %v6382 = vpop.f32.mrf.mxu0
      %v6383 = vadd.f32 0.0, %v6382
      %6384 = vmatprep.mubr.bf16.mxu0 0
      %6385 = vmatmul.mubr.bf16.gmra.mxu0 %v4063
      %v6386 = vpop.f32.mrf.mxu0
      %v6387 = vadd.f32 0.0, %v6386
      %v6388 = vpop.f32.mrf.mxu0
      %v6389 = vadd.f32 0.0, %v6388
      %v6390 = vpop.f32.mrf.mxu0
      %v6391 = vadd.f32 0.0, %v6390
      %v6392 = vpop.f32.mrf.mxu0
      %v6393 = vadd.f32 0.0, %v6392
      %6394 = vmatprep.mubr.bf16.mxu0 0
      %6395 = vmatmul.mubr.bf16.gmra.mxu0 %v4064
      %v6396 = vpop.f32.mrf.mxu0
      %v6397 = vadd.f32 0.0, %v6396
      %v6398 = vpop.f32.mrf.mxu0
      %v6399 = vadd.f32 0.0, %v6398
      %v6400 = vpop.f32.mrf.mxu0
      %v6401 = vadd.f32 0.0, %v6400
      %v6402 = vpop.f32.mrf.mxu0
      %v6403 = vadd.f32 0.0, %v6402
      %6404 = vmatprep.mubr.bf16.mxu0 0
      %6405 = vmatmul.mubr.bf16.gmra.mxu0 %v4065
      %v6406 = vpop.f32.mrf.mxu0
      %v6407 = vadd.f32 0.0, %v6406
      %v6408 = vpop.f32.mrf.mxu0
      %v6409 = vadd.f32 0.0, %v6408
      %v6410 = vpop.f32.mrf.mxu0
      %v6411 = vadd.f32 0.0, %v6410
      %v6412 = vpop.f32.mrf.mxu0
      %v6413 = vadd.f32 0.0, %v6412
      %6414 = vmatprep.mubr.bf16.mxu0 0
      %6415 = vmatmul.mubr.bf16.gmra.mxu0 %v4066
      %v6416 = vpop.f32.mrf.mxu0
      %v6417 = vadd.f32 0.0, %v6416
      %v6418 = vpop.f32.mrf.mxu0
      %v6419 = vadd.f32 0.0, %v6418
      %v6420 = vpop.f32.mrf.mxu0
      %v6421 = vadd.f32 0.0, %v6420
      %v6422 = vpop.f32.mrf.mxu0
      %v6423 = vadd.f32 0.0, %v6422
      %6424 = vmatprep.mubr.bf16.mxu0 0
      %6425 = vmatmul.mubr.bf16.gmra.mxu0 %v4067
      %v6426 = vpop.f32.mrf.mxu0
      %v6427 = vadd.f32 0.0, %v6426
      %v6428 = vpop.f32.mrf.mxu0
      %v6429 = vadd.f32 0.0, %v6428
      %v6430 = vpop.f32.mrf.mxu0
      %v6431 = vadd.f32 0.0, %v6430
      %v6432 = vpop.f32.mrf.mxu0
      %v6433 = vadd.f32 0.0, %v6432
      %6434 = vmatprep.mubr.bf16.mxu0 0
      %6435 = vmatmul.mubr.bf16.gmra.mxu0 %v4068
      %v6436 = vpop.f32.mrf.mxu0
      %v6437 = vadd.f32 0.0, %v6436
      %v6438 = vpop.f32.mrf.mxu0
      %v6439 = vadd.f32 0.0, %v6438
      %v6440 = vpop.f32.mrf.mxu0
      %v6441 = vadd.f32 0.0, %v6440
      %v6442 = vpop.f32.mrf.mxu0
      %v6443 = vadd.f32 0.0, %v6442
      %6444 = vmatprep.mubr.bf16.mxu0 0
      %6445 = vmatmul.mubr.bf16.gmra.mxu0 %v4069
      %v6446 = vpop.f32.mrf.mxu0
      %v6447 = vadd.f32 0.0, %v6446
      %v6448 = vpop.f32.mrf.mxu0
      %v6449 = vadd.f32 0.0, %v6448
      %v6450 = vpop.f32.mrf.mxu0
      %v6451 = vadd.f32 0.0, %v6450
      %v6452 = vpop.f32.mrf.mxu0
      %v6453 = vadd.f32 0.0, %v6452
      %6454 = vmatprep.mubr.bf16.mxu0 0
      %6455 = vmatmul.mubr.bf16.gmra.mxu0 %v4070
      %v6456 = vpop.f32.mrf.mxu0
      %v6457 = vadd.f32 0.0, %v6456
      %v6458 = vpop.f32.mrf.mxu0
      %v6459 = vadd.f32 0.0, %v6458
      %v6460 = vpop.f32.mrf.mxu0
      %v6461 = vadd.f32 0.0, %v6460
      %v6462 = vpop.f32.mrf.mxu0
      %v6463 = vadd.f32 0.0, %v6462
      %6464 = vmatprep.mubr.bf16.mxu0 0
      %6465 = vmatmul.mubr.bf16.gmra.mxu0 %v4071
      %v6466 = vpop.f32.mrf.mxu0
      %v6467 = vadd.f32 0.0, %v6466
      %v6468 = vpop.f32.mrf.mxu0
      %v6469 = vadd.f32 0.0, %v6468
      %v6470 = vpop.f32.mrf.mxu0
      %v6471 = vadd.f32 0.0, %v6470
      %v6472 = vpop.f32.mrf.mxu0
      %v6473 = vadd.f32 0.0, %v6472
      %6474 = vdwg.mxu0
      %6475 = vmatprep.subr.bf16.mxu0 %v4391
      %6476 = vmatpush1.bf16.msra.mxu0 %v4390
      %6477 = vmatprep.subr.bf16.mxu0 %v4383
      %6478 = vmatpush1.bf16.msra.mxu0 %v4382
      %6479 = vmatprep.subr.bf16.mxu0 %v4375
      %6480 = vmatpush1.bf16.msra.mxu0 %v4374
      %6481 = vmatprep.subr.bf16.mxu0 %v4367
      %6482 = vmatpush1.bf16.msra.mxu0 %v4366
      %6483 = vmatprep.subr.bf16.mxu0 %v4359
      %6484 = vmatpush1.bf16.msra.mxu0 %v4358
      %6485 = vmatprep.subr.bf16.mxu0 %v4351
      %6486 = vmatpush1.bf16.msra.mxu0 %v4350
      %6487 = vmatprep.subr.bf16.mxu0 %v4343
      %6488 = vmatpush1.bf16.msra.mxu0 %v4342
      %6489 = vmatprep.subr.bf16.mxu0 %v4335
      %6490 = vmatpush1.bf16.msra.mxu0 %v4334
      %6491 = vmatprep.subr.bf16.mxu0 0
      %6492 = vmatpush2.bf16.msra.mxu0 0
      %6493 = vmatprep.subr.bf16.mxu0 0
      %6494 = vmatpush2.bf16.msra.mxu0 0
      %6495 = vmatprep.subr.bf16.mxu0 0
      %6496 = vmatpush2.bf16.msra.mxu0 0
      %6497 = vmatprep.subr.bf16.mxu0 0
      %6498 = vmatpush2.bf16.msra.mxu0 0
      %6499 = vmatprep.subr.bf16.mxu0 0
      %6500 = vmatpush2.bf16.msra.mxu0 0
      %6501 = vmatprep.subr.bf16.mxu0 0
      %6502 = vmatpush2.bf16.msra.mxu0 0
      %6503 = vmatprep.subr.bf16.mxu0 0
      %6504 = vmatpush2.bf16.msra.mxu0 0
      %6505 = vmatprep.subr.bf16.mxu0 0
      %6506 = vmatpush2.bf16.msra.mxu0 0
      %6507 = vmatprep.mubr.bf16.mxu0 0
      %6508 = vmatmul.mubr.bf16.gmra.mxu0 %v4008
      %v6509 = vpop.f32.mrf.mxu0
      %v6510 = vadd.f32 0.0, %v6509
      %v6511 = vpop.f32.mrf.mxu0
      %v6512 = vadd.f32 0.0, %v6511
      %v6513 = vpop.f32.mrf.mxu0
      %v6514 = vadd.f32 0.0, %v6513
      %v6515 = vpop.f32.mrf.mxu0
      %v6516 = vadd.f32 0.0, %v6515
      %6517 = vmatprep.mubr.bf16.mxu0 0
      %6518 = vmatmul.mubr.bf16.gmra.mxu0 %v4009
      %v6519 = vpop.f32.mrf.mxu0
      %v6520 = vadd.f32 0.0, %v6519
      %v6521 = vpop.f32.mrf.mxu0
      %v6522 = vadd.f32 0.0, %v6521
      %v6523 = vpop.f32.mrf.mxu0
      %v6524 = vadd.f32 0.0, %v6523
      %v6525 = vpop.f32.mrf.mxu0
      %v6526 = vadd.f32 0.0, %v6525
      %6527 = vmatprep.mubr.bf16.mxu0 0
      %6528 = vmatmul.mubr.bf16.gmra.mxu0 %v4010
      %v6529 = vpop.f32.mrf.mxu0
      %v6530 = vadd.f32 0.0, %v6529
      %v6531 = vpop.f32.mrf.mxu0
      %v6532 = vadd.f32 0.0, %v6531
      %v6533 = vpop.f32.mrf.mxu0
      %v6534 = vadd.f32 0.0, %v6533
      %v6535 = vpop.f32.mrf.mxu0
      %v6536 = vadd.f32 0.0, %v6535
      %6537 = vmatprep.mubr.bf16.mxu0 0
      %6538 = vmatmul.mubr.bf16.gmra.mxu0 %v4011
      %v6539 = vpop.f32.mrf.mxu0
      %v6540 = vadd.f32 0.0, %v6539
      %v6541 = vpop.f32.mrf.mxu0
      %v6542 = vadd.f32 0.0, %v6541
      %v6543 = vpop.f32.mrf.mxu0
      %v6544 = vadd.f32 0.0, %v6543
      %v6545 = vpop.f32.mrf.mxu0
      %v6546 = vadd.f32 0.0, %v6545
      %6547 = vmatprep.mubr.bf16.mxu0 0
      %6548 = vmatmul.mubr.bf16.gmra.mxu0 %v4012
      %v6549 = vpop.f32.mrf.mxu0
      %v6550 = vadd.f32 0.0, %v6549
      %v6551 = vpop.f32.mrf.mxu0
      %v6552 = vadd.f32 0.0, %v6551
      %v6553 = vpop.f32.mrf.mxu0
      %v6554 = vadd.f32 0.0, %v6553
      %v6555 = vpop.f32.mrf.mxu0
      %v6556 = vadd.f32 0.0, %v6555
      %6557 = vmatprep.mubr.bf16.mxu0 0
      %6558 = vmatmul.mubr.bf16.gmra.mxu0 %v4013
      %v6559 = vpop.f32.mrf.mxu0
      %v6560 = vadd.f32 0.0, %v6559
      %v6561 = vpop.f32.mrf.mxu0
      %v6562 = vadd.f32 0.0, %v6561
      %v6563 = vpop.f32.mrf.mxu0
      %v6564 = vadd.f32 0.0, %v6563
      %v6565 = vpop.f32.mrf.mxu0
      %v6566 = vadd.f32 0.0, %v6565
      %6567 = vmatprep.mubr.bf16.mxu0 0
      %6568 = vmatmul.mubr.bf16.gmra.mxu0 %v4014
      %v6569 = vpop.f32.mrf.mxu0
      %v6570 = vadd.f32 0.0, %v6569
      %v6571 = vpop.f32.mrf.mxu0
      %v6572 = vadd.f32 0.0, %v6571
      %v6573 = vpop.f32.mrf.mxu0
      %v6574 = vadd.f32 0.0, %v6573
      %v6575 = vpop.f32.mrf.mxu0
      %v6576 = vadd.f32 0.0, %v6575
      %6577 = vmatprep.mubr.bf16.mxu0 0
      %6578 = vmatmul.mubr.bf16.gmra.mxu0 %v4015
      %v6579 = vpop.f32.mrf.mxu0
      %v6580 = vadd.f32 0.0, %v6579
      %v6581 = vpop.f32.mrf.mxu0
      %v6582 = vadd.f32 0.0, %v6581
      %v6583 = vpop.f32.mrf.mxu0
      %v6584 = vadd.f32 0.0, %v6583
      %v6585 = vpop.f32.mrf.mxu0
      %v6586 = vadd.f32 0.0, %v6585
      %6587 = vmatprep.mubr.bf16.mxu0 0
      %6588 = vmatmul.mubr.bf16.gmra.mxu0 %v4016
      %v6589 = vpop.f32.mrf.mxu0
      %v6590 = vadd.f32 0.0, %v6589
      %v6591 = vpop.f32.mrf.mxu0
      %v6592 = vadd.f32 0.0, %v6591
      %v6593 = vpop.f32.mrf.mxu0
      %v6594 = vadd.f32 0.0, %v6593
      %v6595 = vpop.f32.mrf.mxu0
      %v6596 = vadd.f32 0.0, %v6595
      %6597 = vmatprep.mubr.bf16.mxu0 0
      %6598 = vmatmul.mubr.bf16.gmra.mxu0 %v4017
      %v6599 = vpop.f32.mrf.mxu0
      %v6600 = vadd.f32 0.0, %v6599
      %v6601 = vpop.f32.mrf.mxu0
      %v6602 = vadd.f32 0.0, %v6601
      %v6603 = vpop.f32.mrf.mxu0
      %v6604 = vadd.f32 0.0, %v6603
      %v6605 = vpop.f32.mrf.mxu0
      %v6606 = vadd.f32 0.0, %v6605
      %6607 = vmatprep.mubr.bf16.mxu0 0
      %6608 = vmatmul.mubr.bf16.gmra.mxu0 %v4018
      %v6609 = vpop.f32.mrf.mxu0
      %v6610 = vadd.f32 0.0, %v6609
      %v6611 = vpop.f32.mrf.mxu0
      %v6612 = vadd.f32 0.0, %v6611
      %v6613 = vpop.f32.mrf.mxu0
      %v6614 = vadd.f32 0.0, %v6613
      %v6615 = vpop.f32.mrf.mxu0
      %v6616 = vadd.f32 0.0, %v6615
      %6617 = vmatprep.mubr.bf16.mxu0 0
      %6618 = vmatmul.mubr.bf16.gmra.mxu0 %v4019
      %v6619 = vpop.f32.mrf.mxu0
      %v6620 = vadd.f32 0.0, %v6619
      %v6621 = vpop.f32.mrf.mxu0
      %v6622 = vadd.f32 0.0, %v6621
      %v6623 = vpop.f32.mrf.mxu0
      %v6624 = vadd.f32 0.0, %v6623
      %v6625 = vpop.f32.mrf.mxu0
      %v6626 = vadd.f32 0.0, %v6625
      %6627 = vmatprep.mubr.bf16.mxu0 0
      %6628 = vmatmul.mubr.bf16.gmra.mxu0 %v4020
      %v6629 = vpop.f32.mrf.mxu0
      %v6630 = vadd.f32 0.0, %v6629
      %v6631 = vpop.f32.mrf.mxu0
      %v6632 = vadd.f32 0.0, %v6631
      %v6633 = vpop.f32.mrf.mxu0
      %v6634 = vadd.f32 0.0, %v6633
      %v6635 = vpop.f32.mrf.mxu0
      %v6636 = vadd.f32 0.0, %v6635
      %6637 = vmatprep.mubr.bf16.mxu0 0
      %6638 = vmatmul.mubr.bf16.gmra.mxu0 %v4021
      %v6639 = vpop.f32.mrf.mxu0
      %v6640 = vadd.f32 0.0, %v6639
      %v6641 = vpop.f32.mrf.mxu0
      %v6642 = vadd.f32 0.0, %v6641
      %v6643 = vpop.f32.mrf.mxu0
      %v6644 = vadd.f32 0.0, %v6643
      %v6645 = vpop.f32.mrf.mxu0
      %v6646 = vadd.f32 0.0, %v6645
      %6647 = vmatprep.mubr.bf16.mxu0 0
      %6648 = vmatmul.mubr.bf16.gmra.mxu0 %v4022
      %v6649 = vpop.f32.mrf.mxu0
      %v6650 = vadd.f32 0.0, %v6649
      %v6651 = vpop.f32.mrf.mxu0
      %v6652 = vadd.f32 0.0, %v6651
      %v6653 = vpop.f32.mrf.mxu0
      %v6654 = vadd.f32 0.0, %v6653
      %v6655 = vpop.f32.mrf.mxu0
      %v6656 = vadd.f32 0.0, %v6655
      %6657 = vmatprep.mubr.bf16.mxu0 0
      %6658 = vmatmul.mubr.bf16.gmra.mxu0 %v4023
      %v6659 = vpop.f32.mrf.mxu0
      %v6660 = vadd.f32 0.0, %v6659
      %v6661 = vpop.f32.mrf.mxu0
      %v6662 = vadd.f32 0.0, %v6661
      %v6663 = vpop.f32.mrf.mxu0
      %v6664 = vadd.f32 0.0, %v6663
      %v6665 = vpop.f32.mrf.mxu0
      %v6666 = vadd.f32 0.0, %v6665
      %6667 = vmatprep.mubr.bf16.mxu0 0
      %6668 = vmatmul.mubr.bf16.gmra.mxu0 %v4024
      %v6669 = vpop.f32.mrf.mxu0
      %v6670 = vadd.f32 0.0, %v6669
      %v6671 = vpop.f32.mrf.mxu0
      %v6672 = vadd.f32 0.0, %v6671
      %v6673 = vpop.f32.mrf.mxu0
      %v6674 = vadd.f32 0.0, %v6673
      %v6675 = vpop.f32.mrf.mxu0
      %v6676 = vadd.f32 0.0, %v6675
      %6677 = vmatprep.mubr.bf16.mxu0 0
      %6678 = vmatmul.mubr.bf16.gmra.mxu0 %v4025
      %v6679 = vpop.f32.mrf.mxu0
      %v6680 = vadd.f32 0.0, %v6679
      %v6681 = vpop.f32.mrf.mxu0
      %v6682 = vadd.f32 0.0, %v6681
      %v6683 = vpop.f32.mrf.mxu0
      %v6684 = vadd.f32 0.0, %v6683
      %v6685 = vpop.f32.mrf.mxu0
      %v6686 = vadd.f32 0.0, %v6685
      %6687 = vmatprep.mubr.bf16.mxu0 0
      %6688 = vmatmul.mubr.bf16.gmra.mxu0 %v4026
      %v6689 = vpop.f32.mrf.mxu0
      %v6690 = vadd.f32 0.0, %v6689
      %v6691 = vpop.f32.mrf.mxu0
      %v6692 = vadd.f32 0.0, %v6691
      %v6693 = vpop.f32.mrf.mxu0
      %v6694 = vadd.f32 0.0, %v6693
      %v6695 = vpop.f32.mrf.mxu0
      %v6696 = vadd.f32 0.0, %v6695
      %6697 = vmatprep.mubr.bf16.mxu0 0
      %6698 = vmatmul.mubr.bf16.gmra.mxu0 %v4027
      %v6699 = vpop.f32.mrf.mxu0
      %v6700 = vadd.f32 0.0, %v6699
      %v6701 = vpop.f32.mrf.mxu0
      %v6702 = vadd.f32 0.0, %v6701
      %v6703 = vpop.f32.mrf.mxu0
      %v6704 = vadd.f32 0.0, %v6703
      %v6705 = vpop.f32.mrf.mxu0
      %v6706 = vadd.f32 0.0, %v6705
      %6707 = vmatprep.mubr.bf16.mxu0 0
      %6708 = vmatmul.mubr.bf16.gmra.mxu0 %v4028
      %v6709 = vpop.f32.mrf.mxu0
      %v6710 = vadd.f32 0.0, %v6709
      %v6711 = vpop.f32.mrf.mxu0
      %v6712 = vadd.f32 0.0, %v6711
      %v6713 = vpop.f32.mrf.mxu0
      %v6714 = vadd.f32 0.0, %v6713
      %v6715 = vpop.f32.mrf.mxu0
      %v6716 = vadd.f32 0.0, %v6715
      %6717 = vmatprep.mubr.bf16.mxu0 0
      %6718 = vmatmul.mubr.bf16.gmra.mxu0 %v4029
      %v6719 = vpop.f32.mrf.mxu0
      %v6720 = vadd.f32 0.0, %v6719
      %v6721 = vpop.f32.mrf.mxu0
      %v6722 = vadd.f32 0.0, %v6721
      %v6723 = vpop.f32.mrf.mxu0
      %v6724 = vadd.f32 0.0, %v6723
      %v6725 = vpop.f32.mrf.mxu0
      %v6726 = vadd.f32 0.0, %v6725
      %6727 = vmatprep.mubr.bf16.mxu0 0
      %6728 = vmatmul.mubr.bf16.gmra.mxu0 %v4030
      %v6729 = vpop.f32.mrf.mxu0
      %v6730 = vadd.f32 0.0, %v6729
      %v6731 = vpop.f32.mrf.mxu0
      %v6732 = vadd.f32 0.0, %v6731
      %v6733 = vpop.f32.mrf.mxu0
      %v6734 = vadd.f32 0.0, %v6733
      %v6735 = vpop.f32.mrf.mxu0
      %v6736 = vadd.f32 0.0, %v6735
      %6737 = vmatprep.mubr.bf16.mxu0 0
      %6738 = vmatmul.mubr.bf16.gmra.mxu0 %v4031
      %v6739 = vpop.f32.mrf.mxu0
      %v6740 = vadd.f32 0.0, %v6739
      %v6741 = vpop.f32.mrf.mxu0
      %v6742 = vadd.f32 0.0, %v6741
      %v6743 = vpop.f32.mrf.mxu0
      %v6744 = vadd.f32 0.0, %v6743
      %v6745 = vpop.f32.mrf.mxu0
      %v6746 = vadd.f32 0.0, %v6745
      %6747 = vmatprep.mubr.bf16.mxu0 0
      %6748 = vmatmul.mubr.bf16.gmra.mxu0 %v4032
      %v6749 = vpop.f32.mrf.mxu0
      %v6750 = vadd.f32 0.0, %v6749
      %v6751 = vpop.f32.mrf.mxu0
      %v6752 = vadd.f32 0.0, %v6751
      %v6753 = vpop.f32.mrf.mxu0
      %v6754 = vadd.f32 0.0, %v6753
      %v6755 = vpop.f32.mrf.mxu0
      %v6756 = vadd.f32 0.0, %v6755
      %6757 = vmatprep.mubr.bf16.mxu0 0
      %6758 = vmatmul.mubr.bf16.gmra.mxu0 %v4033
      %v6759 = vpop.f32.mrf.mxu0
      %v6760 = vadd.f32 0.0, %v6759
      %v6761 = vpop.f32.mrf.mxu0
      %v6762 = vadd.f32 0.0, %v6761
      %v6763 = vpop.f32.mrf.mxu0
      %v6764 = vadd.f32 0.0, %v6763
      %v6765 = vpop.f32.mrf.mxu0
      %v6766 = vadd.f32 0.0, %v6765
      %6767 = vmatprep.mubr.bf16.mxu0 0
      %6768 = vmatmul.mubr.bf16.gmra.mxu0 %v4034
      %v6769 = vpop.f32.mrf.mxu0
      %v6770 = vadd.f32 0.0, %v6769
      %v6771 = vpop.f32.mrf.mxu0
      %v6772 = vadd.f32 0.0, %v6771
      %v6773 = vpop.f32.mrf.mxu0
      %v6774 = vadd.f32 0.0, %v6773
      %v6775 = vpop.f32.mrf.mxu0
      %v6776 = vadd.f32 0.0, %v6775
      %6777 = vmatprep.mubr.bf16.mxu0 0
      %6778 = vmatmul.mubr.bf16.gmra.mxu0 %v4035
      %v6779 = vpop.f32.mrf.mxu0
      %v6780 = vadd.f32 0.0, %v6779
      %v6781 = vpop.f32.mrf.mxu0
      %v6782 = vadd.f32 0.0, %v6781
      %v6783 = vpop.f32.mrf.mxu0
      %v6784 = vadd.f32 0.0, %v6783
      %v6785 = vpop.f32.mrf.mxu0
      %v6786 = vadd.f32 0.0, %v6785
      %6787 = vmatprep.mubr.bf16.mxu0 0
      %6788 = vmatmul.mubr.bf16.gmra.mxu0 %v4036
      %v6789 = vpop.f32.mrf.mxu0
      %v6790 = vadd.f32 0.0, %v6789
      %v6791 = vpop.f32.mrf.mxu0
      %v6792 = vadd.f32 0.0, %v6791
      %v6793 = vpop.f32.mrf.mxu0
      %v6794 = vadd.f32 0.0, %v6793
      %v6795 = vpop.f32.mrf.mxu0
      %v6796 = vadd.f32 0.0, %v6795
      %6797 = vmatprep.mubr.bf16.mxu0 0
      %6798 = vmatmul.mubr.bf16.gmra.mxu0 %v4037
      %v6799 = vpop.f32.mrf.mxu0
      %v6800 = vadd.f32 0.0, %v6799
      %v6801 = vpop.f32.mrf.mxu0
      %v6802 = vadd.f32 0.0, %v6801
      %v6803 = vpop.f32.mrf.mxu0
      %v6804 = vadd.f32 0.0, %v6803
      %v6805 = vpop.f32.mrf.mxu0
      %v6806 = vadd.f32 0.0, %v6805
      %6807 = vmatprep.mubr.bf16.mxu0 0
      %6808 = vmatmul.mubr.bf16.gmra.mxu0 %v4038
      %v6809 = vpop.f32.mrf.mxu0
      %v6810 = vadd.f32 0.0, %v6809
      %v6811 = vpop.f32.mrf.mxu0
      %v6812 = vadd.f32 0.0, %v6811
      %v6813 = vpop.f32.mrf.mxu0
      %v6814 = vadd.f32 0.0, %v6813
      %v6815 = vpop.f32.mrf.mxu0
      %v6816 = vadd.f32 0.0, %v6815
      %6817 = vmatprep.mubr.bf16.mxu0 0
      %6818 = vmatmul.mubr.bf16.gmra.mxu0 %v4039
      %v6819 = vpop.f32.mrf.mxu0
      %v6820 = vadd.f32 0.0, %v6819
      %v6821 = vpop.f32.mrf.mxu0
      %v6822 = vadd.f32 0.0, %v6821
      %v6823 = vpop.f32.mrf.mxu0
      %v6824 = vadd.f32 0.0, %v6823
      %v6825 = vpop.f32.mrf.mxu0
      %v6826 = vadd.f32 0.0, %v6825
      %6827 = vmatprep.mubr.bf16.mxu0 0
      %6828 = vmatmul.mubr.bf16.gmra.mxu0 %v4040
      %v6829 = vpop.f32.mrf.mxu0
      %v6830 = vadd.f32 0.0, %v6829
      %v6831 = vpop.f32.mrf.mxu0
      %v6832 = vadd.f32 0.0, %v6831
      %v6833 = vpop.f32.mrf.mxu0
      %v6834 = vadd.f32 0.0, %v6833
      %v6835 = vpop.f32.mrf.mxu0
      %v6836 = vadd.f32 0.0, %v6835
      %6837 = vmatprep.mubr.bf16.mxu0 0
      %6838 = vmatmul.mubr.bf16.gmra.mxu0 %v4041
      %v6839 = vpop.f32.mrf.mxu0
      %v6840 = vadd.f32 0.0, %v6839
      %v6841 = vpop.f32.mrf.mxu0
      %v6842 = vadd.f32 0.0, %v6841
      %v6843 = vpop.f32.mrf.mxu0
      %v6844 = vadd.f32 0.0, %v6843
      %v6845 = vpop.f32.mrf.mxu0
      %v6846 = vadd.f32 0.0, %v6845
      %6847 = vmatprep.mubr.bf16.mxu0 0
      %6848 = vmatmul.mubr.bf16.gmra.mxu0 %v4042
      %v6849 = vpop.f32.mrf.mxu0
      %v6850 = vadd.f32 0.0, %v6849
      %v6851 = vpop.f32.mrf.mxu0
      %v6852 = vadd.f32 0.0, %v6851
      %v6853 = vpop.f32.mrf.mxu0
      %v6854 = vadd.f32 0.0, %v6853
      %v6855 = vpop.f32.mrf.mxu0
      %v6856 = vadd.f32 0.0, %v6855
      %6857 = vmatprep.mubr.bf16.mxu0 0
      %6858 = vmatmul.mubr.bf16.gmra.mxu0 %v4043
      %v6859 = vpop.f32.mrf.mxu0
      %v6860 = vadd.f32 0.0, %v6859
      %v6861 = vpop.f32.mrf.mxu0
      %v6862 = vadd.f32 0.0, %v6861
      %v6863 = vpop.f32.mrf.mxu0
      %v6864 = vadd.f32 0.0, %v6863
      %v6865 = vpop.f32.mrf.mxu0
      %v6866 = vadd.f32 0.0, %v6865
      %6867 = vmatprep.mubr.bf16.mxu0 0
      %6868 = vmatmul.mubr.bf16.gmra.mxu0 %v4044
      %v6869 = vpop.f32.mrf.mxu0
      %v6870 = vadd.f32 0.0, %v6869
      %v6871 = vpop.f32.mrf.mxu0
      %v6872 = vadd.f32 0.0, %v6871
      %v6873 = vpop.f32.mrf.mxu0
      %v6874 = vadd.f32 0.0, %v6873
      %v6875 = vpop.f32.mrf.mxu0
      %v6876 = vadd.f32 0.0, %v6875
      %6877 = vmatprep.mubr.bf16.mxu0 0
      %6878 = vmatmul.mubr.bf16.gmra.mxu0 %v4045
      %v6879 = vpop.f32.mrf.mxu0
      %v6880 = vadd.f32 0.0, %v6879
      %v6881 = vpop.f32.mrf.mxu0
      %v6882 = vadd.f32 0.0, %v6881
      %v6883 = vpop.f32.mrf.mxu0
      %v6884 = vadd.f32 0.0, %v6883
      %v6885 = vpop.f32.mrf.mxu0
      %v6886 = vadd.f32 0.0, %v6885
      %6887 = vmatprep.mubr.bf16.mxu0 0
      %6888 = vmatmul.mubr.bf16.gmra.mxu0 %v4046
      %v6889 = vpop.f32.mrf.mxu0
      %v6890 = vadd.f32 0.0, %v6889
      %v6891 = vpop.f32.mrf.mxu0
      %v6892 = vadd.f32 0.0, %v6891
      %v6893 = vpop.f32.mrf.mxu0
      %v6894 = vadd.f32 0.0, %v6893
      %v6895 = vpop.f32.mrf.mxu0
      %v6896 = vadd.f32 0.0, %v6895
      %6897 = vmatprep.mubr.bf16.mxu0 0
      %6898 = vmatmul.mubr.bf16.gmra.mxu0 %v4047
      %v6899 = vpop.f32.mrf.mxu0
      %v6900 = vadd.f32 0.0, %v6899
      %v6901 = vpop.f32.mrf.mxu0
      %v6902 = vadd.f32 0.0, %v6901
      %v6903 = vpop.f32.mrf.mxu0
      %v6904 = vadd.f32 0.0, %v6903
      %v6905 = vpop.f32.mrf.mxu0
      %v6906 = vadd.f32 0.0, %v6905
      %6907 = vmatprep.mubr.bf16.mxu0 0
      %6908 = vmatmul.mubr.bf16.gmra.mxu0 %v4048
      %v6909 = vpop.f32.mrf.mxu0
      %v6910 = vadd.f32 0.0, %v6909
      %v6911 = vpop.f32.mrf.mxu0
      %v6912 = vadd.f32 0.0, %v6911
      %v6913 = vpop.f32.mrf.mxu0
      %v6914 = vadd.f32 0.0, %v6913
      %v6915 = vpop.f32.mrf.mxu0
      %v6916 = vadd.f32 0.0, %v6915
      %6917 = vmatprep.mubr.bf16.mxu0 0
      %6918 = vmatmul.mubr.bf16.gmra.mxu0 %v4049
      %v6919 = vpop.f32.mrf.mxu0
      %v6920 = vadd.f32 0.0, %v6919
      %v6921 = vpop.f32.mrf.mxu0
      %v6922 = vadd.f32 0.0, %v6921
      %v6923 = vpop.f32.mrf.mxu0
      %v6924 = vadd.f32 0.0, %v6923
      %v6925 = vpop.f32.mrf.mxu0
      %v6926 = vadd.f32 0.0, %v6925
      %6927 = vmatprep.mubr.bf16.mxu0 0
      %6928 = vmatmul.mubr.bf16.gmra.mxu0 %v4050
      %v6929 = vpop.f32.mrf.mxu0
      %v6930 = vadd.f32 0.0, %v6929
      %v6931 = vpop.f32.mrf.mxu0
      %v6932 = vadd.f32 0.0, %v6931
      %v6933 = vpop.f32.mrf.mxu0
      %v6934 = vadd.f32 0.0, %v6933
      %v6935 = vpop.f32.mrf.mxu0
      %v6936 = vadd.f32 0.0, %v6935
      %6937 = vmatprep.mubr.bf16.mxu0 0
      %6938 = vmatmul.mubr.bf16.gmra.mxu0 %v4051
      %v6939 = vpop.f32.mrf.mxu0
      %v6940 = vadd.f32 0.0, %v6939
      %v6941 = vpop.f32.mrf.mxu0
      %v6942 = vadd.f32 0.0, %v6941
      %v6943 = vpop.f32.mrf.mxu0
      %v6944 = vadd.f32 0.0, %v6943
      %v6945 = vpop.f32.mrf.mxu0
      %v6946 = vadd.f32 0.0, %v6945
      %6947 = vmatprep.mubr.bf16.mxu0 0
      %6948 = vmatmul.mubr.bf16.gmra.mxu0 %v4052
      %v6949 = vpop.f32.mrf.mxu0
      %v6950 = vadd.f32 0.0, %v6949
      %v6951 = vpop.f32.mrf.mxu0
      %v6952 = vadd.f32 0.0, %v6951
      %v6953 = vpop.f32.mrf.mxu0
      %v6954 = vadd.f32 0.0, %v6953
      %v6955 = vpop.f32.mrf.mxu0
      %v6956 = vadd.f32 0.0, %v6955
      %6957 = vmatprep.mubr.bf16.mxu0 0
      %6958 = vmatmul.mubr.bf16.gmra.mxu0 %v4053
      %v6959 = vpop.f32.mrf.mxu0
      %v6960 = vadd.f32 0.0, %v6959
      %v6961 = vpop.f32.mrf.mxu0
      %v6962 = vadd.f32 0.0, %v6961
      %v6963 = vpop.f32.mrf.mxu0
      %v6964 = vadd.f32 0.0, %v6963
      %v6965 = vpop.f32.mrf.mxu0
      %v6966 = vadd.f32 0.0, %v6965
      %6967 = vmatprep.mubr.bf16.mxu0 0
      %6968 = vmatmul.mubr.bf16.gmra.mxu0 %v4054
      %v6969 = vpop.f32.mrf.mxu0
      %v6970 = vadd.f32 0.0, %v6969
      %v6971 = vpop.f32.mrf.mxu0
      %v6972 = vadd.f32 0.0, %v6971
      %v6973 = vpop.f32.mrf.mxu0
      %v6974 = vadd.f32 0.0, %v6973
      %v6975 = vpop.f32.mrf.mxu0
      %v6976 = vadd.f32 0.0, %v6975
      %6977 = vmatprep.mubr.bf16.mxu0 0
      %6978 = vmatmul.mubr.bf16.gmra.mxu0 %v4055
      %v6979 = vpop.f32.mrf.mxu0
      %v6980 = vadd.f32 0.0, %v6979
      %v6981 = vpop.f32.mrf.mxu0
      %v6982 = vadd.f32 0.0, %v6981
      %v6983 = vpop.f32.mrf.mxu0
      %v6984 = vadd.f32 0.0, %v6983
      %v6985 = vpop.f32.mrf.mxu0
      %v6986 = vadd.f32 0.0, %v6985
      %6987 = vmatprep.mubr.bf16.mxu0 0
      %6988 = vmatmul.mubr.bf16.gmra.mxu0 %v4056
      %v6989 = vpop.f32.mrf.mxu0
      %v6990 = vadd.f32 0.0, %v6989
      %v6991 = vpop.f32.mrf.mxu0
      %v6992 = vadd.f32 0.0, %v6991
      %v6993 = vpop.f32.mrf.mxu0
      %v6994 = vadd.f32 0.0, %v6993
      %v6995 = vpop.f32.mrf.mxu0
      %v6996 = vadd.f32 0.0, %v6995
      %6997 = vmatprep.mubr.bf16.mxu0 0
      %6998 = vmatmul.mubr.bf16.gmra.mxu0 %v4057
      %v6999 = vpop.f32.mrf.mxu0
      %v7000 = vadd.f32 0.0, %v6999
      %v7001 = vpop.f32.mrf.mxu0
      %v7002 = vadd.f32 0.0, %v7001
      %v7003 = vpop.f32.mrf.mxu0
      %v7004 = vadd.f32 0.0, %v7003
      %v7005 = vpop.f32.mrf.mxu0
      %v7006 = vadd.f32 0.0, %v7005
      %7007 = vmatprep.mubr.bf16.mxu0 0
      %7008 = vmatmul.mubr.bf16.gmra.mxu0 %v4058
      %v7009 = vpop.f32.mrf.mxu0
      %v7010 = vadd.f32 0.0, %v7009
      %v7011 = vpop.f32.mrf.mxu0
      %v7012 = vadd.f32 0.0, %v7011
      %v7013 = vpop.f32.mrf.mxu0
      %v7014 = vadd.f32 0.0, %v7013
      %v7015 = vpop.f32.mrf.mxu0
      %v7016 = vadd.f32 0.0, %v7015
      %7017 = vmatprep.mubr.bf16.mxu0 0
      %7018 = vmatmul.mubr.bf16.gmra.mxu0 %v4059
      %v7019 = vpop.f32.mrf.mxu0
      %v7020 = vadd.f32 0.0, %v7019
      %v7021 = vpop.f32.mrf.mxu0
      %v7022 = vadd.f32 0.0, %v7021
      %v7023 = vpop.f32.mrf.mxu0
      %v7024 = vadd.f32 0.0, %v7023
      %v7025 = vpop.f32.mrf.mxu0
      %v7026 = vadd.f32 0.0, %v7025
      %7027 = vmatprep.mubr.bf16.mxu0 0
      %7028 = vmatmul.mubr.bf16.gmra.mxu0 %v4060
      %v7029 = vpop.f32.mrf.mxu0
      %v7030 = vadd.f32 0.0, %v7029
      %v7031 = vpop.f32.mrf.mxu0
      %v7032 = vadd.f32 0.0, %v7031
      %v7033 = vpop.f32.mrf.mxu0
      %v7034 = vadd.f32 0.0, %v7033
      %v7035 = vpop.f32.mrf.mxu0
      %v7036 = vadd.f32 0.0, %v7035
      %7037 = vmatprep.mubr.bf16.mxu0 0
      %7038 = vmatmul.mubr.bf16.gmra.mxu0 %v4061
      %v7039 = vpop.f32.mrf.mxu0
      %v7040 = vadd.f32 0.0, %v7039
      %v7041 = vpop.f32.mrf.mxu0
      %v7042 = vadd.f32 0.0, %v7041
      %v7043 = vpop.f32.mrf.mxu0
      %v7044 = vadd.f32 0.0, %v7043
      %v7045 = vpop.f32.mrf.mxu0
      %v7046 = vadd.f32 0.0, %v7045
      %7047 = vmatprep.mubr.bf16.mxu0 0
      %7048 = vmatmul.mubr.bf16.gmra.mxu0 %v4062
      %v7049 = vpop.f32.mrf.mxu0
      %v7050 = vadd.f32 0.0, %v7049
      %v7051 = vpop.f32.mrf.mxu0
      %v7052 = vadd.f32 0.0, %v7051
      %v7053 = vpop.f32.mrf.mxu0
      %v7054 = vadd.f32 0.0, %v7053
      %v7055 = vpop.f32.mrf.mxu0
      %v7056 = vadd.f32 0.0, %v7055
      %7057 = vmatprep.mubr.bf16.mxu0 0
      %7058 = vmatmul.mubr.bf16.gmra.mxu0 %v4063
      %v7059 = vpop.f32.mrf.mxu0
      %v7060 = vadd.f32 0.0, %v7059
      %v7061 = vpop.f32.mrf.mxu0
      %v7062 = vadd.f32 0.0, %v7061
      %v7063 = vpop.f32.mrf.mxu0
      %v7064 = vadd.f32 0.0, %v7063
      %v7065 = vpop.f32.mrf.mxu0
      %v7066 = vadd.f32 0.0, %v7065
      %7067 = vmatprep.mubr.bf16.mxu0 0
      %7068 = vmatmul.mubr.bf16.gmra.mxu0 %v4064
      %v7069 = vpop.f32.mrf.mxu0
      %v7070 = vadd.f32 0.0, %v7069
      %v7071 = vpop.f32.mrf.mxu0
      %v7072 = vadd.f32 0.0, %v7071
      %v7073 = vpop.f32.mrf.mxu0
      %v7074 = vadd.f32 0.0, %v7073
      %v7075 = vpop.f32.mrf.mxu0
      %v7076 = vadd.f32 0.0, %v7075
      %7077 = vmatprep.mubr.bf16.mxu0 0
      %7078 = vmatmul.mubr.bf16.gmra.mxu0 %v4065
      %v7079 = vpop.f32.mrf.mxu0
      %v7080 = vadd.f32 0.0, %v7079
      %v7081 = vpop.f32.mrf.mxu0
      %v7082 = vadd.f32 0.0, %v7081
      %v7083 = vpop.f32.mrf.mxu0
      %v7084 = vadd.f32 0.0, %v7083
      %v7085 = vpop.f32.mrf.mxu0
      %v7086 = vadd.f32 0.0, %v7085
      %7087 = vmatprep.mubr.bf16.mxu0 0
      %7088 = vmatmul.mubr.bf16.gmra.mxu0 %v4066
      %v7089 = vpop.f32.mrf.mxu0
      %v7090 = vadd.f32 0.0, %v7089
      %v7091 = vpop.f32.mrf.mxu0
      %v7092 = vadd.f32 0.0, %v7091
      %v7093 = vpop.f32.mrf.mxu0
      %v7094 = vadd.f32 0.0, %v7093
      %v7095 = vpop.f32.mrf.mxu0
      %v7096 = vadd.f32 0.0, %v7095
      %7097 = vmatprep.mubr.bf16.mxu0 0
      %7098 = vmatmul.mubr.bf16.gmra.mxu0 %v4067
      %v7099 = vpop.f32.mrf.mxu0
      %v7100 = vadd.f32 0.0, %v7099
      %v7101 = vpop.f32.mrf.mxu0
      %v7102 = vadd.f32 0.0, %v7101
      %v7103 = vpop.f32.mrf.mxu0
      %v7104 = vadd.f32 0.0, %v7103
      %v7105 = vpop.f32.mrf.mxu0
      %v7106 = vadd.f32 0.0, %v7105
      %7107 = vmatprep.mubr.bf16.mxu0 0
      %7108 = vmatmul.mubr.bf16.gmra.mxu0 %v4068
      %v7109 = vpop.f32.mrf.mxu0
      %v7110 = vadd.f32 0.0, %v7109
      %v7111 = vpop.f32.mrf.mxu0
      %v7112 = vadd.f32 0.0, %v7111
      %v7113 = vpop.f32.mrf.mxu0
      %v7114 = vadd.f32 0.0, %v7113
      %v7115 = vpop.f32.mrf.mxu0
      %v7116 = vadd.f32 0.0, %v7115
      %7117 = vmatprep.mubr.bf16.mxu0 0
      %7118 = vmatmul.mubr.bf16.gmra.mxu0 %v4069
      %v7119 = vpop.f32.mrf.mxu0
      %v7120 = vadd.f32 0.0, %v7119
      %v7121 = vpop.f32.mrf.mxu0
      %v7122 = vadd.f32 0.0, %v7121
      %v7123 = vpop.f32.mrf.mxu0
      %v7124 = vadd.f32 0.0, %v7123
      %v7125 = vpop.f32.mrf.mxu0
      %v7126 = vadd.f32 0.0, %v7125
      %7127 = vmatprep.mubr.bf16.mxu0 0
      %7128 = vmatmul.mubr.bf16.gmra.mxu0 %v4070
      %v7129 = vpop.f32.mrf.mxu0
      %v7130 = vadd.f32 0.0, %v7129
      %v7131 = vpop.f32.mrf.mxu0
      %v7132 = vadd.f32 0.0, %v7131
      %v7133 = vpop.f32.mrf.mxu0
      %v7134 = vadd.f32 0.0, %v7133
      %v7135 = vpop.f32.mrf.mxu0
      %v7136 = vadd.f32 0.0, %v7135
      %7137 = vmatprep.mubr.bf16.mxu0 0
      %7138 = vmatmul.mubr.bf16.gmra.mxu0 %v4071
      %v7139 = vpop.f32.mrf.mxu0
      %v7140 = vadd.f32 0.0, %v7139
      %v7141 = vpop.f32.mrf.mxu0
      %v7142 = vadd.f32 0.0, %v7141
      %v7143 = vpop.f32.mrf.mxu0
      %v7144 = vadd.f32 0.0, %v7143
      %v7145 = vpop.f32.mrf.mxu0
      %v7146 = vadd.f32 0.0, %v7145
      %7147 = vdwg.mxu0
      %v7148 = vmax.f32 %v4491, %v4495
      %v7149 = vmax.f32 %v7148, %v4501
      %v7150 = vmax.f32 %v7149, %v4505
      %v7151 = vmax.f32 %v7150, %v4511
      %v7152 = vmax.f32 %v7151, %v4515
      %v7153 = vmax.f32 %v7152, %v4521
      %v7154 = vmax.f32 %v7153, %v4525
      %v7155 = vmax.f32 %v7154, %v4531
      %v7156 = vmax.f32 %v7155, %v4535
      %v7157 = vmax.f32 %v7156, %v4541
      %v7158 = vmax.f32 %v7157, %v4545
      %v7159 = vmax.f32 %v7158, %v4551
      %v7160 = vmax.f32 %v7159, %v4555
      %v7161 = vmax.f32 %v7160, %v4561
      %v7162 = vmax.f32 %v7161, %v4565
      %v7163 = vmax.f32 %v7162, %v4571
      %v7164 = vmax.f32 %v7163, %v4575
      %v7165 = vmax.f32 %v7164, %v4581
      %v7166 = vmax.f32 %v7165, %v4585
      %v7167 = vmax.f32 %v7166, %v4591
      %v7168 = vmax.f32 %v7167, %v4595
      %v7169 = vmax.f32 %v7168, %v4601
      %v7170 = vmax.f32 %v7169, %v4605
      %v7171 = vmax.f32 %v7170, %v4611
      %v7172 = vmax.f32 %v7171, %v4615
      %v7173 = vmax.f32 %v7172, %v4621
      %v7174 = vmax.f32 %v7173, %v4625
      %v7175 = vmax.f32 %v7174, %v4631
      %v7176 = vmax.f32 %v7175, %v4635
      %v7177 = vmax.f32 %v7176, %v4641
      %v7178 = vmax.f32 %v7177, %v4645
      %v7179 = vmax.f32 %v7178, %v4651
      %v7180 = vmax.f32 %v7179, %v4655
      %v7181 = vmax.f32 %v7180, %v4661
      %v7182 = vmax.f32 %v7181, %v4665
      %v7183 = vmax.f32 %v7182, %v4671
      %v7184 = vmax.f32 %v7183, %v4675
      %v7185 = vmax.f32 %v7184, %v4681
      %v7186 = vmax.f32 %v7185, %v4685
      %v7187 = vmax.f32 %v7186, %v4691
      %v7188 = vmax.f32 %v7187, %v4695
      %v7189 = vmax.f32 %v7188, %v4701
      %v7190 = vmax.f32 %v7189, %v4705
      %v7191 = vmax.f32 %v7190, %v4711
      %v7192 = vmax.f32 %v7191, %v4715
      %v7193 = vmax.f32 %v7192, %v4721
      %v7194 = vmax.f32 %v7193, %v4725
      %v7195 = vmax.f32 %v7194, %v4731
      %v7196 = vmax.f32 %v7195, %v4735
      %v7197 = vmax.f32 %v7196, %v4741
      %v7198 = vmax.f32 %v7197, %v4745
      %v7199 = vmax.f32 %v7198, %v4751
      %v7200 = vmax.f32 %v7199, %v4755
      %v7201 = vmax.f32 %v7200, %v4761
      %v7202 = vmax.f32 %v7201, %v4765
      %v7203 = vmax.f32 %v7202, %v4771
      %v7204 = vmax.f32 %v7203, %v4775
      %v7205 = vmax.f32 %v7204, %v4781
      %v7206 = vmax.f32 %v7205, %v4785
      %v7207 = vmax.f32 %v7206, %v4791
      %v7208 = vmax.f32 %v7207, %v4795
      %v7209 = vmax.f32 %v7208, %v4801
      %v7210 = vmax.f32 %v7209, %v4805
      %v7211 = vmax.f32 %v7210, %v4811
      %v7212 = vmax.f32 %v7211, %v4815
      %v7213 = vmax.f32 %v7212, %v4821
      %v7214 = vmax.f32 %v7213, %v4825
      %v7215 = vmax.f32 %v7214, %v4831
      %v7216 = vmax.f32 %v7215, %v4835
      %v7217 = vmax.f32 %v7216, %v4841
      %v7218 = vmax.f32 %v7217, %v4845
      %v7219 = vmax.f32 %v7218, %v4851
      %v7220 = vmax.f32 %v7219, %v4855
      %v7221 = vmax.f32 %v7220, %v4861
      %v7222 = vmax.f32 %v7221, %v4865
      %v7223 = vmax.f32 %v7222, %v4871
      %v7224 = vmax.f32 %v7223, %v4875
      %v7225 = vmax.f32 %v7224, %v4881
      %v7226 = vmax.f32 %v7225, %v4885
      %v7227 = vmax.f32 %v7226, %v4891
      %v7228 = vmax.f32 %v7227, %v4895
      %v7229 = vmax.f32 %v7228, %v4901
      %v7230 = vmax.f32 %v7229, %v4905
      %v7231 = vmax.f32 %v7230, %v4911
      %v7232 = vmax.f32 %v7231, %v4915
      %v7233 = vmax.f32 %v7232, %v4921
      %v7234 = vmax.f32 %v7233, %v4925
      %v7235 = vmax.f32 %v7234, %v4931
      %v7236 = vmax.f32 %v7235, %v4935
      %v7237 = vmax.f32 %v7236, %v4941
      %v7238 = vmax.f32 %v7237, %v4945
      %v7239 = vmax.f32 %v7238, %v4951
      %v7240 = vmax.f32 %v7239, %v4955
      %v7241 = vmax.f32 %v7240, %v4961
      %v7242 = vmax.f32 %v7241, %v4965
      %v7243 = vmax.f32 %v7242, %v4971
      %v7244 = vmax.f32 %v7243, %v4975
      %v7245 = vmax.f32 %v7244, %v4981
      %v7246 = vmax.f32 %v7245, %v4985
      %v7247 = vmax.f32 %v7246, %v4991
      %v7248 = vmax.f32 %v7247, %v4995
      %v7249 = vmax.f32 %v7248, %v5001
      %v7250 = vmax.f32 %v7249, %v5005
      %v7251 = vmax.f32 %v7250, %v5011
      %v7252 = vmax.f32 %v7251, %v5015
      %v7253 = vmax.f32 %v7252, %v5021
      %v7254 = vmax.f32 %v7253, %v5025
      %v7255 = vmax.f32 %v7254, %v5031
      %v7256 = vmax.f32 %v7255, %v5035
      %v7257 = vmax.f32 %v7256, %v5041
      %v7258 = vmax.f32 %v7257, %v5045
      %v7259 = vmax.f32 %v7258, %v5051
      %v7260 = vmax.f32 %v7259, %v5055
      %v7261 = vmax.f32 %v7260, %v5061
      %v7262 = vmax.f32 %v7261, %v5065
      %v7263 = vmax.f32 %v7262, %v5071
      %v7264 = vmax.f32 %v7263, %v5075
      %v7265 = vmax.f32 %v7264, %v5081
      %v7266 = vmax.f32 %v7265, %v5085
      %v7267 = vmax.f32 %v7266, %v5091
      %v7268 = vmax.f32 %v7267, %v5095
      %v7269 = vmax.f32 %v7268, %v5101
      %v7270 = vmax.f32 %v7269, %v5105
      %v7271 = vmax.f32 %v7270, %v5111
      %v7272 = vmax.f32 %v7271, %v5115
      %v7273 = vmax.f32 %v7272, %v5121
      %v7274 = vmax.f32 %v7273, %v5125
      %v7275 = vrot.slane %v7274, 4
      %v7276 = vmax.f32 %v7274, %v7275
      %v7277 = vrot.slane %v7276, 2
      %v7278 = vmax.f32 %v7276, %v7277
      %v7279 = vrot.slane %v7278, 1
      %v7280 = vmax.f32 %v7278, %v7279
      %v7281 = vmax.f32 %v4493, %v4497
      %v7282 = vmax.f32 %v7281, %v4503
      %v7283 = vmax.f32 %v7282, %v4507
      %v7284 = vmax.f32 %v7283, %v4513
      %v7285 = vmax.f32 %v7284, %v4517
      %v7286 = vmax.f32 %v7285, %v4523
      %v7287 = vmax.f32 %v7286, %v4527
      %v7288 = vmax.f32 %v7287, %v4533
      %v7289 = vmax.f32 %v7288, %v4537
      %v7290 = vmax.f32 %v7289, %v4543
      %v7291 = vmax.f32 %v7290, %v4547
      %v7292 = vmax.f32 %v7291, %v4553
      %v7293 = vmax.f32 %v7292, %v4557
      %v7294 = vmax.f32 %v7293, %v4563
      %v7295 = vmax.f32 %v7294, %v4567
      %v7296 = vmax.f32 %v7295, %v4573
      %v7297 = vmax.f32 %v7296, %v4577
      %v7298 = vmax.f32 %v7297, %v4583
      %v7299 = vmax.f32 %v7298, %v4587
      %v7300 = vmax.f32 %v7299, %v4593
      %v7301 = vmax.f32 %v7300, %v4597
      %v7302 = vmax.f32 %v7301, %v4603
      %v7303 = vmax.f32 %v7302, %v4607
      %v7304 = vmax.f32 %v7303, %v4613
      %v7305 = vmax.f32 %v7304, %v4617
      %v7306 = vmax.f32 %v7305, %v4623
      %v7307 = vmax.f32 %v7306, %v4627
      %v7308 = vmax.f32 %v7307, %v4633
      %v7309 = vmax.f32 %v7308, %v4637
      %v7310 = vmax.f32 %v7309, %v4643
      %v7311 = vmax.f32 %v7310, %v4647
      %v7312 = vmax.f32 %v7311, %v4653
      %v7313 = vmax.f32 %v7312, %v4657
      %v7314 = vmax.f32 %v7313, %v4663
      %v7315 = vmax.f32 %v7314, %v4667
      %v7316 = vmax.f32 %v7315, %v4673
      %v7317 = vmax.f32 %v7316, %v4677
      %v7318 = vmax.f32 %v7317, %v4683
      %v7319 = vmax.f32 %v7318, %v4687
      %v7320 = vmax.f32 %v7319, %v4693
      %v7321 = vmax.f32 %v7320, %v4697
      %v7322 = vmax.f32 %v7321, %v4703
      %v7323 = vmax.f32 %v7322, %v4707
      %v7324 = vmax.f32 %v7323, %v4713
      %v7325 = vmax.f32 %v7324, %v4717
      %v7326 = vmax.f32 %v7325, %v4723
      %v7327 = vmax.f32 %v7326, %v4727
      %v7328 = vmax.f32 %v7327, %v4733
      %v7329 = vmax.f32 %v7328, %v4737
      %v7330 = vmax.f32 %v7329, %v4743
      %v7331 = vmax.f32 %v7330, %v4747
      %v7332 = vmax.f32 %v7331, %v4753
      %v7333 = vmax.f32 %v7332, %v4757
      %v7334 = vmax.f32 %v7333, %v4763
      %v7335 = vmax.f32 %v7334, %v4767
      %v7336 = vmax.f32 %v7335, %v4773
      %v7337 = vmax.f32 %v7336, %v4777
      %v7338 = vmax.f32 %v7337, %v4783
      %v7339 = vmax.f32 %v7338, %v4787
      %v7340 = vmax.f32 %v7339, %v4793
      %v7341 = vmax.f32 %v7340, %v4797
      %v7342 = vmax.f32 %v7341, %v4803
      %v7343 = vmax.f32 %v7342, %v4807
      %v7344 = vmax.f32 %v7343, %v4813
      %v7345 = vmax.f32 %v7344, %v4817
      %v7346 = vmax.f32 %v7345, %v4823
      %v7347 = vmax.f32 %v7346, %v4827
      %v7348 = vmax.f32 %v7347, %v4833
      %v7349 = vmax.f32 %v7348, %v4837
      %v7350 = vmax.f32 %v7349, %v4843
      %v7351 = vmax.f32 %v7350, %v4847
      %v7352 = vmax.f32 %v7351, %v4853
      %v7353 = vmax.f32 %v7352, %v4857
      %v7354 = vmax.f32 %v7353, %v4863
      %v7355 = vmax.f32 %v7354, %v4867
      %v7356 = vmax.f32 %v7355, %v4873
      %v7357 = vmax.f32 %v7356, %v4877
      %v7358 = vmax.f32 %v7357, %v4883
      %v7359 = vmax.f32 %v7358, %v4887
      %v7360 = vmax.f32 %v7359, %v4893
      %v7361 = vmax.f32 %v7360, %v4897
      %v7362 = vmax.f32 %v7361, %v4903
      %v7363 = vmax.f32 %v7362, %v4907
      %v7364 = vmax.f32 %v7363, %v4913
      %v7365 = vmax.f32 %v7364, %v4917
      %v7366 = vmax.f32 %v7365, %v4923
      %v7367 = vmax.f32 %v7366, %v4927
      %v7368 = vmax.f32 %v7367, %v4933
      %v7369 = vmax.f32 %v7368, %v4937
      %v7370 = vmax.f32 %v7369, %v4943
      %v7371 = vmax.f32 %v7370, %v4947
      %v7372 = vmax.f32 %v7371, %v4953
      %v7373 = vmax.f32 %v7372, %v4957
      %v7374 = vmax.f32 %v7373, %v4963
      %v7375 = vmax.f32 %v7374, %v4967
      %v7376 = vmax.f32 %v7375, %v4973
      %v7377 = vmax.f32 %v7376, %v4977
      %v7378 = vmax.f32 %v7377, %v4983
      %v7379 = vmax.f32 %v7378, %v4987
      %v7380 = vmax.f32 %v7379, %v4993
      %v7381 = vmax.f32 %v7380, %v4997
      %v7382 = vmax.f32 %v7381, %v5003
      %v7383 = vmax.f32 %v7382, %v5007
      %v7384 = vmax.f32 %v7383, %v5013
      %v7385 = vmax.f32 %v7384, %v5017
      %v7386 = vmax.f32 %v7385, %v5023
      %v7387 = vmax.f32 %v7386, %v5027
      %v7388 = vmax.f32 %v7387, %v5033
      %v7389 = vmax.f32 %v7388, %v5037
      %v7390 = vmax.f32 %v7389, %v5043
      %v7391 = vmax.f32 %v7390, %v5047
      %v7392 = vmax.f32 %v7391, %v5053
      %v7393 = vmax.f32 %v7392, %v5057
      %v7394 = vmax.f32 %v7393, %v5063
      %v7395 = vmax.f32 %v7394, %v5067
      %v7396 = vmax.f32 %v7395, %v5073
      %v7397 = vmax.f32 %v7396, %v5077
      %v7398 = vmax.f32 %v7397, %v5083
      %v7399 = vmax.f32 %v7398, %v5087
      %v7400 = vmax.f32 %v7399, %v5093
      %v7401 = vmax.f32 %v7400, %v5097
      %v7402 = vmax.f32 %v7401, %v5103
      %v7403 = vmax.f32 %v7402, %v5107
      %v7404 = vmax.f32 %v7403, %v5113
      %v7405 = vmax.f32 %v7404, %v5117
      %v7406 = vmax.f32 %v7405, %v5123
      %v7407 = vmax.f32 %v7406, %v5127
      %v7408 = vrot.slane %v7407, 4
      %v7409 = vmax.f32 %v7407, %v7408
      %v7410 = vrot.slane %v7409, 2
      %v7411 = vmax.f32 %v7409, %v7410
      %v7412 = vrot.slane %v7411, 1
      %v7413 = vmax.f32 %v7411, %v7412
      %v7414 = vmax.f32 %v5164, %v5168
      %v7415 = vmax.f32 %v7414, %v5174
      %v7416 = vmax.f32 %v7415, %v5178
      %v7417 = vmax.f32 %v7416, %v5184
      %v7418 = vmax.f32 %v7417, %v5188
      %v7419 = vmax.f32 %v7418, %v5194
      %v7420 = vmax.f32 %v7419, %v5198
      %v7421 = vmax.f32 %v7420, %v5204
      %v7422 = vmax.f32 %v7421, %v5208
      %v7423 = vmax.f32 %v7422, %v5214
      %v7424 = vmax.f32 %v7423, %v5218
      %v7425 = vmax.f32 %v7424, %v5224
      %v7426 = vmax.f32 %v7425, %v5228
      %v7427 = vmax.f32 %v7426, %v5234
      %v7428 = vmax.f32 %v7427, %v5238
      %v7429 = vmax.f32 %v7428, %v5244
      %v7430 = vmax.f32 %v7429, %v5248
      %v7431 = vmax.f32 %v7430, %v5254
      %v7432 = vmax.f32 %v7431, %v5258
      %v7433 = vmax.f32 %v7432, %v5264
      %v7434 = vmax.f32 %v7433, %v5268
      %v7435 = vmax.f32 %v7434, %v5274
      %v7436 = vmax.f32 %v7435, %v5278
      %v7437 = vmax.f32 %v7436, %v5284
      %v7438 = vmax.f32 %v7437, %v5288
      %v7439 = vmax.f32 %v7438, %v5294
      %v7440 = vmax.f32 %v7439, %v5298
      %v7441 = vmax.f32 %v7440, %v5304
      %v7442 = vmax.f32 %v7441, %v5308
      %v7443 = vmax.f32 %v7442, %v5314
      %v7444 = vmax.f32 %v7443, %v5318
      %v7445 = vmax.f32 %v7444, %v5324
      %v7446 = vmax.f32 %v7445, %v5328
      %v7447 = vmax.f32 %v7446, %v5334
      %v7448 = vmax.f32 %v7447, %v5338
      %v7449 = vmax.f32 %v7448, %v5344
      %v7450 = vmax.f32 %v7449, %v5348
      %v7451 = vmax.f32 %v7450, %v5354
      %v7452 = vmax.f32 %v7451, %v5358
      %v7453 = vmax.f32 %v7452, %v5364
      %v7454 = vmax.f32 %v7453, %v5368
      %v7455 = vmax.f32 %v7454, %v5374
      %v7456 = vmax.f32 %v7455, %v5378
      %v7457 = vmax.f32 %v7456, %v5384
      %v7458 = vmax.f32 %v7457, %v5388
      %v7459 = vmax.f32 %v7458, %v5394
      %v7460 = vmax.f32 %v7459, %v5398
      %v7461 = vmax.f32 %v7460, %v5404
      %v7462 = vmax.f32 %v7461, %v5408
      %v7463 = vmax.f32 %v7462, %v5414
      %v7464 = vmax.f32 %v7463, %v5418
      %v7465 = vmax.f32 %v7464, %v5424
      %v7466 = vmax.f32 %v7465, %v5428
      %v7467 = vmax.f32 %v7466, %v5434
      %v7468 = vmax.f32 %v7467, %v5438
      %v7469 = vmax.f32 %v7468, %v5444
      %v7470 = vmax.f32 %v7469, %v5448
      %v7471 = vmax.f32 %v7470, %v5454
      %v7472 = vmax.f32 %v7471, %v5458
      %v7473 = vmax.f32 %v7472, %v5464
      %v7474 = vmax.f32 %v7473, %v5468
      %v7475 = vmax.f32 %v7474, %v5474
      %v7476 = vmax.f32 %v7475, %v5478
      %v7477 = vmax.f32 %v7476, %v5484
      %v7478 = vmax.f32 %v7477, %v5488
      %v7479 = vmax.f32 %v7478, %v5494
      %v7480 = vmax.f32 %v7479, %v5498
      %v7481 = vmax.f32 %v7480, %v5504
      %v7482 = vmax.f32 %v7481, %v5508
      %v7483 = vmax.f32 %v7482, %v5514
      %v7484 = vmax.f32 %v7483, %v5518
      %v7485 = vmax.f32 %v7484, %v5524
      %v7486 = vmax.f32 %v7485, %v5528
      %v7487 = vmax.f32 %v7486, %v5534
      %v7488 = vmax.f32 %v7487, %v5538
      %v7489 = vmax.f32 %v7488, %v5544
      %v7490 = vmax.f32 %v7489, %v5548
      %v7491 = vmax.f32 %v7490, %v5554
      %v7492 = vmax.f32 %v7491, %v5558
      %v7493 = vmax.f32 %v7492, %v5564
      %v7494 = vmax.f32 %v7493, %v5568
      %v7495 = vmax.f32 %v7494, %v5574
      %v7496 = vmax.f32 %v7495, %v5578
      %v7497 = vmax.f32 %v7496, %v5584
      %v7498 = vmax.f32 %v7497, %v5588
      %v7499 = vmax.f32 %v7498, %v5594
      %v7500 = vmax.f32 %v7499, %v5598
      %v7501 = vmax.f32 %v7500, %v5604
      %v7502 = vmax.f32 %v7501, %v5608
      %v7503 = vmax.f32 %v7502, %v5614
      %v7504 = vmax.f32 %v7503, %v5618
      %v7505 = vmax.f32 %v7504, %v5624
      %v7506 = vmax.f32 %v7505, %v5628
      %v7507 = vmax.f32 %v7506, %v5634
      %v7508 = vmax.f32 %v7507, %v5638
      %v7509 = vmax.f32 %v7508, %v5644
      %v7510 = vmax.f32 %v7509, %v5648
      %v7511 = vmax.f32 %v7510, %v5654
      %v7512 = vmax.f32 %v7511, %v5658
      %v7513 = vmax.f32 %v7512, %v5664
      %v7514 = vmax.f32 %v7513, %v5668
      %v7515 = vmax.f32 %v7514, %v5674
      %v7516 = vmax.f32 %v7515, %v5678
      %v7517 = vmax.f32 %v7516, %v5684
      %v7518 = vmax.f32 %v7517, %v5688
      %v7519 = vmax.f32 %v7518, %v5694
      %v7520 = vmax.f32 %v7519, %v5698
      %v7521 = vmax.f32 %v7520, %v5704
      %v7522 = vmax.f32 %v7521, %v5708
      %v7523 = vmax.f32 %v7522, %v5714
      %v7524 = vmax.f32 %v7523, %v5718
      %v7525 = vmax.f32 %v7524, %v5724
      %v7526 = vmax.f32 %v7525, %v5728
      %v7527 = vmax.f32 %v7526, %v5734
      %v7528 = vmax.f32 %v7527, %v5738
      %v7529 = vmax.f32 %v7528, %v5744
      %v7530 = vmax.f32 %v7529, %v5748
      %v7531 = vmax.f32 %v7530, %v5754
      %v7532 = vmax.f32 %v7531, %v5758
      %v7533 = vmax.f32 %v7532, %v5764
      %v7534 = vmax.f32 %v7533, %v5768
      %v7535 = vmax.f32 %v7534, %v5774
      %v7536 = vmax.f32 %v7535, %v5778
      %v7537 = vmax.f32 %v7536, %v5784
      %v7538 = vmax.f32 %v7537, %v5788
      %v7539 = vmax.f32 %v7538, %v5794
      %v7540 = vmax.f32 %v7539, %v5798
      %v7541 = vrot.slane %v7540, 4
      %v7542 = vmax.f32 %v7540, %v7541
      %v7543 = vrot.slane %v7542, 2
      %v7544 = vmax.f32 %v7542, %v7543
      %v7545 = vrot.slane %v7544, 1
      %v7546 = vmax.f32 %v7544, %v7545
      %v7547 = vmax.f32 %v5166, %v5170
      %v7548 = vmax.f32 %v7547, %v5176
      %v7549 = vmax.f32 %v7548, %v5180
      %v7550 = vmax.f32 %v7549, %v5186
      %v7551 = vmax.f32 %v7550, %v5190
      %v7552 = vmax.f32 %v7551, %v5196
      %v7553 = vmax.f32 %v7552, %v5200
      %v7554 = vmax.f32 %v7553, %v5206
      %v7555 = vmax.f32 %v7554, %v5210
      %v7556 = vmax.f32 %v7555, %v5216
      %v7557 = vmax.f32 %v7556, %v5220
      %v7558 = vmax.f32 %v7557, %v5226
      %v7559 = vmax.f32 %v7558, %v5230
      %v7560 = vmax.f32 %v7559, %v5236
      %v7561 = vmax.f32 %v7560, %v5240
      %v7562 = vmax.f32 %v7561, %v5246
      %v7563 = vmax.f32 %v7562, %v5250
      %v7564 = vmax.f32 %v7563, %v5256
      %v7565 = vmax.f32 %v7564, %v5260
      %v7566 = vmax.f32 %v7565, %v5266
      %v7567 = vmax.f32 %v7566, %v5270
      %v7568 = vmax.f32 %v7567, %v5276
      %v7569 = vmax.f32 %v7568, %v5280
      %v7570 = vmax.f32 %v7569, %v5286
      %v7571 = vmax.f32 %v7570, %v5290
      %v7572 = vmax.f32 %v7571, %v5296
      %v7573 = vmax.f32 %v7572, %v5300
      %v7574 = vmax.f32 %v7573, %v5306
      %v7575 = vmax.f32 %v7574, %v5310
      %v7576 = vmax.f32 %v7575, %v5316
      %v7577 = vmax.f32 %v7576, %v5320
      %v7578 = vmax.f32 %v7577, %v5326
      %v7579 = vmax.f32 %v7578, %v5330
      %v7580 = vmax.f32 %v7579, %v5336
      %v7581 = vmax.f32 %v7580, %v5340
      %v7582 = vmax.f32 %v7581, %v5346
      %v7583 = vmax.f32 %v7582, %v5350
      %v7584 = vmax.f32 %v7583, %v5356
      %v7585 = vmax.f32 %v7584, %v5360
      %v7586 = vmax.f32 %v7585, %v5366
      %v7587 = vmax.f32 %v7586, %v5370
      %v7588 = vmax.f32 %v7587, %v5376
      %v7589 = vmax.f32 %v7588, %v5380
      %v7590 = vmax.f32 %v7589, %v5386
      %v7591 = vmax.f32 %v7590, %v5390
      %v7592 = vmax.f32 %v7591, %v5396
      %v7593 = vmax.f32 %v7592, %v5400
      %v7594 = vmax.f32 %v7593, %v5406
      %v7595 = vmax.f32 %v7594, %v5410
      %v7596 = vmax.f32 %v7595, %v5416
      %v7597 = vmax.f32 %v7596, %v5420
      %v7598 = vmax.f32 %v7597, %v5426
      %v7599 = vmax.f32 %v7598, %v5430
      %v7600 = vmax.f32 %v7599, %v5436
      %v7601 = vmax.f32 %v7600, %v5440
      %v7602 = vmax.f32 %v7601, %v5446
      %v7603 = vmax.f32 %v7602, %v5450
      %v7604 = vmax.f32 %v7603, %v5456
      %v7605 = vmax.f32 %v7604, %v5460
      %v7606 = vmax.f32 %v7605, %v5466
      %v7607 = vmax.f32 %v7606, %v5470
      %v7608 = vmax.f32 %v7607, %v5476
      %v7609 = vmax.f32 %v7608, %v5480
      %v7610 = vmax.f32 %v7609, %v5486
      %v7611 = vmax.f32 %v7610, %v5490
      %v7612 = vmax.f32 %v7611, %v5496
      %v7613 = vmax.f32 %v7612, %v5500
      %v7614 = vmax.f32 %v7613, %v5506
      %v7615 = vmax.f32 %v7614, %v5510
      %v7616 = vmax.f32 %v7615, %v5516
      %v7617 = vmax.f32 %v7616, %v5520
      %v7618 = vmax.f32 %v7617, %v5526
      %v7619 = vmax.f32 %v7618, %v5530
      %v7620 = vmax.f32 %v7619, %v5536
      %v7621 = vmax.f32 %v7620, %v5540
      %v7622 = vmax.f32 %v7621, %v5546
      %v7623 = vmax.f32 %v7622, %v5550
      %v7624 = vmax.f32 %v7623, %v5556
      %v7625 = vmax.f32 %v7624, %v5560
      %v7626 = vmax.f32 %v7625, %v5566
      %v7627 = vmax.f32 %v7626, %v5570
      %v7628 = vmax.f32 %v7627, %v5576
      %v7629 = vmax.f32 %v7628, %v5580
      %v7630 = vmax.f32 %v7629, %v5586
      %v7631 = vmax.f32 %v7630, %v5590
      %v7632 = vmax.f32 %v7631, %v5596
      %v7633 = vmax.f32 %v7632, %v5600
      %v7634 = vmax.f32 %v7633, %v5606
      %v7635 = vmax.f32 %v7634, %v5610
      %v7636 = vmax.f32 %v7635, %v5616
      %v7637 = vmax.f32 %v7636, %v5620
      %v7638 = vmax.f32 %v7637, %v5626
      %v7639 = vmax.f32 %v7638, %v5630
      %v7640 = vmax.f32 %v7639, %v5636
      %v7641 = vmax.f32 %v7640, %v5640
      %v7642 = vmax.f32 %v7641, %v5646
      %v7643 = vmax.f32 %v7642, %v5650
      %v7644 = vmax.f32 %v7643, %v5656
      %v7645 = vmax.f32 %v7644, %v5660
      %v7646 = vmax.f32 %v7645, %v5666
      %v7647 = vmax.f32 %v7646, %v5670
      %v7648 = vmax.f32 %v7647, %v5676
      %v7649 = vmax.f32 %v7648, %v5680
      %v7650 = vmax.f32 %v7649, %v5686
      %v7651 = vmax.f32 %v7650, %v5690
      %v7652 = vmax.f32 %v7651, %v5696
      %v7653 = vmax.f32 %v7652, %v5700
      %v7654 = vmax.f32 %v7653, %v5706
      %v7655 = vmax.f32 %v7654, %v5710
      %v7656 = vmax.f32 %v7655, %v5716
      %v7657 = vmax.f32 %v7656, %v5720
      %v7658 = vmax.f32 %v7657, %v5726
      %v7659 = vmax.f32 %v7658, %v5730
      %v7660 = vmax.f32 %v7659, %v5736
      %v7661 = vmax.f32 %v7660, %v5740
      %v7662 = vmax.f32 %v7661, %v5746
      %v7663 = vmax.f32 %v7662, %v5750
      %v7664 = vmax.f32 %v7663, %v5756
      %v7665 = vmax.f32 %v7664, %v5760
      %v7666 = vmax.f32 %v7665, %v5766
      %v7667 = vmax.f32 %v7666, %v5770
      %v7668 = vmax.f32 %v7667, %v5776
      %v7669 = vmax.f32 %v7668, %v5780
      %v7670 = vmax.f32 %v7669, %v5786
      %v7671 = vmax.f32 %v7670, %v5790
      %v7672 = vmax.f32 %v7671, %v5796
      %v7673 = vmax.f32 %v7672, %v5800
      %v7674 = vrot.slane %v7673, 4
      %v7675 = vmax.f32 %v7673, %v7674
      %v7676 = vrot.slane %v7675, 2
      %v7677 = vmax.f32 %v7675, %v7676
      %v7678 = vrot.slane %v7677, 1
      %v7679 = vmax.f32 %v7677, %v7678
      %v7680 = vmax.f32 %v5837, %v5841
      %v7681 = vmax.f32 %v7680, %v5847
      %v7682 = vmax.f32 %v7681, %v5851
      %v7683 = vmax.f32 %v7682, %v5857
      %v7684 = vmax.f32 %v7683, %v5861
      %v7685 = vmax.f32 %v7684, %v5867
      %v7686 = vmax.f32 %v7685, %v5871
      %v7687 = vmax.f32 %v7686, %v5877
      %v7688 = vmax.f32 %v7687, %v5881
      %v7689 = vmax.f32 %v7688, %v5887
      %v7690 = vmax.f32 %v7689, %v5891
      %v7691 = vmax.f32 %v7690, %v5897
      %v7692 = vmax.f32 %v7691, %v5901
      %v7693 = vmax.f32 %v7692, %v5907
      %v7694 = vmax.f32 %v7693, %v5911
      %v7695 = vmax.f32 %v7694, %v5917
      %v7696 = vmax.f32 %v7695, %v5921
      %v7697 = vmax.f32 %v7696, %v5927
      %v7698 = vmax.f32 %v7697, %v5931
      %v7699 = vmax.f32 %v7698, %v5937
      %v7700 = vmax.f32 %v7699, %v5941
      %v7701 = vmax.f32 %v7700, %v5947
      %v7702 = vmax.f32 %v7701, %v5951
      %v7703 = vmax.f32 %v7702, %v5957
      %v7704 = vmax.f32 %v7703, %v5961
      %v7705 = vmax.f32 %v7704, %v5967
      %v7706 = vmax.f32 %v7705, %v5971
      %v7707 = vmax.f32 %v7706, %v5977
      %v7708 = vmax.f32 %v7707, %v5981
      %v7709 = vmax.f32 %v7708, %v5987
      %v7710 = vmax.f32 %v7709, %v5991
      %v7711 = vmax.f32 %v7710, %v5997
      %v7712 = vmax.f32 %v7711, %v6001
      %v7713 = vmax.f32 %v7712, %v6007
      %v7714 = vmax.f32 %v7713, %v6011
      %v7715 = vmax.f32 %v7714, %v6017
      %v7716 = vmax.f32 %v7715, %v6021
      %v7717 = vmax.f32 %v7716, %v6027
      %v7718 = vmax.f32 %v7717, %v6031
      %v7719 = vmax.f32 %v7718, %v6037
      %v7720 = vmax.f32 %v7719, %v6041
      %v7721 = vmax.f32 %v7720, %v6047
      %v7722 = vmax.f32 %v7721, %v6051
      %v7723 = vmax.f32 %v7722, %v6057
      %v7724 = vmax.f32 %v7723, %v6061
      %v7725 = vmax.f32 %v7724, %v6067
      %v7726 = vmax.f32 %v7725, %v6071
      %v7727 = vmax.f32 %v7726, %v6077
      %v7728 = vmax.f32 %v7727, %v6081
      %v7729 = vmax.f32 %v7728, %v6087
      %v7730 = vmax.f32 %v7729, %v6091
      %v7731 = vmax.f32 %v7730, %v6097
      %v7732 = vmax.f32 %v7731, %v6101
      %v7733 = vmax.f32 %v7732, %v6107
      %v7734 = vmax.f32 %v7733, %v6111
      %v7735 = vmax.f32 %v7734, %v6117
      %v7736 = vmax.f32 %v7735, %v6121
      %v7737 = vmax.f32 %v7736, %v6127
      %v7738 = vmax.f32 %v7737, %v6131
      %v7739 = vmax.f32 %v7738, %v6137
      %v7740 = vmax.f32 %v7739, %v6141
      %v7741 = vmax.f32 %v7740, %v6147
      %v7742 = vmax.f32 %v7741, %v6151
      %v7743 = vmax.f32 %v7742, %v6157
      %v7744 = vmax.f32 %v7743, %v6161
      %v7745 = vmax.f32 %v7744, %v6167
      %v7746 = vmax.f32 %v7745, %v6171
      %v7747 = vmax.f32 %v7746, %v6177
      %v7748 = vmax.f32 %v7747, %v6181
      %v7749 = vmax.f32 %v7748, %v6187
      %v7750 = vmax.f32 %v7749, %v6191
      %v7751 = vmax.f32 %v7750, %v6197
      %v7752 = vmax.f32 %v7751, %v6201
      %v7753 = vmax.f32 %v7752, %v6207
      %v7754 = vmax.f32 %v7753, %v6211
      %v7755 = vmax.f32 %v7754, %v6217
      %v7756 = vmax.f32 %v7755, %v6221
      %v7757 = vmax.f32 %v7756, %v6227
      %v7758 = vmax.f32 %v7757, %v6231
      %v7759 = vmax.f32 %v7758, %v6237
      %v7760 = vmax.f32 %v7759, %v6241
      %v7761 = vmax.f32 %v7760, %v6247
      %v7762 = vmax.f32 %v7761, %v6251
      %v7763 = vmax.f32 %v7762, %v6257
      %v7764 = vmax.f32 %v7763, %v6261
      %v7765 = vmax.f32 %v7764, %v6267
      %v7766 = vmax.f32 %v7765, %v6271
      %v7767 = vmax.f32 %v7766, %v6277
      %v7768 = vmax.f32 %v7767, %v6281
      %v7769 = vmax.f32 %v7768, %v6287
      %v7770 = vmax.f32 %v7769, %v6291
      %v7771 = vmax.f32 %v7770, %v6297
      %v7772 = vmax.f32 %v7771, %v6301
      %v7773 = vmax.f32 %v7772, %v6307
      %v7774 = vmax.f32 %v7773, %v6311
      %v7775 = vmax.f32 %v7774, %v6317
      %v7776 = vmax.f32 %v7775, %v6321
      %v7777 = vmax.f32 %v7776, %v6327
      %v7778 = vmax.f32 %v7777, %v6331
      %v7779 = vmax.f32 %v7778, %v6337
      %v7780 = vmax.f32 %v7779, %v6341
      %v7781 = vmax.f32 %v7780, %v6347
      %v7782 = vmax.f32 %v7781, %v6351
      %v7783 = vmax.f32 %v7782, %v6357
      %v7784 = vmax.f32 %v7783, %v6361
      %v7785 = vmax.f32 %v7784, %v6367
      %v7786 = vmax.f32 %v7785, %v6371
      %v7787 = vmax.f32 %v7786, %v6377
      %v7788 = vmax.f32 %v7787, %v6381
      %v7789 = vmax.f32 %v7788, %v6387
      %v7790 = vmax.f32 %v7789, %v6391
      %v7791 = vmax.f32 %v7790, %v6397
      %v7792 = vmax.f32 %v7791, %v6401
      %v7793 = vmax.f32 %v7792, %v6407
      %v7794 = vmax.f32 %v7793, %v6411
      %v7795 = vmax.f32 %v7794, %v6417
      %v7796 = vmax.f32 %v7795, %v6421
      %v7797 = vmax.f32 %v7796, %v6427
      %v7798 = vmax.f32 %v7797, %v6431
      %v7799 = vmax.f32 %v7798, %v6437
      %v7800 = vmax.f32 %v7799, %v6441
      %v7801 = vmax.f32 %v7800, %v6447
      %v7802 = vmax.f32 %v7801, %v6451
      %v7803 = vmax.f32 %v7802, %v6457
      %v7804 = vmax.f32 %v7803, %v6461
      %v7805 = vmax.f32 %v7804, %v6467
      %v7806 = vmax.f32 %v7805, %v6471
      %v7807 = vrot.slane %v7806, 4
      %v7808 = vmax.f32 %v7806, %v7807
      %v7809 = vrot.slane %v7808, 2
      %v7810 = vmax.f32 %v7808, %v7809
      %v7811 = vrot.slane %v7810, 1
      %v7812 = vmax.f32 %v7810, %v7811
      %v7813 = vmax.f32 %v5839, %v5843
      %v7814 = vmax.f32 %v7813, %v5849
      %v7815 = vmax.f32 %v7814, %v5853
      %v7816 = vmax.f32 %v7815, %v5859
      %v7817 = vmax.f32 %v7816, %v5863
      %v7818 = vmax.f32 %v7817, %v5869
      %v7819 = vmax.f32 %v7818, %v5873
      %v7820 = vmax.f32 %v7819, %v5879
      %v7821 = vmax.f32 %v7820, %v5883
      %v7822 = vmax.f32 %v7821, %v5889
      %v7823 = vmax.f32 %v7822, %v5893
      %v7824 = vmax.f32 %v7823, %v5899
      %v7825 = vmax.f32 %v7824, %v5903
      %v7826 = vmax.f32 %v7825, %v5909
      %v7827 = vmax.f32 %v7826, %v5913
      %v7828 = vmax.f32 %v7827, %v5919
      %v7829 = vmax.f32 %v7828, %v5923
      %v7830 = vmax.f32 %v7829, %v5929
      %v7831 = vmax.f32 %v7830, %v5933
      %v7832 = vmax.f32 %v7831, %v5939
      %v7833 = vmax.f32 %v7832, %v5943
      %v7834 = vmax.f32 %v7833, %v5949
      %v7835 = vmax.f32 %v7834, %v5953
      %v7836 = vmax.f32 %v7835, %v5959
      %v7837 = vmax.f32 %v7836, %v5963
      %v7838 = vmax.f32 %v7837, %v5969
      %v7839 = vmax.f32 %v7838, %v5973
      %v7840 = vmax.f32 %v7839, %v5979
      %v7841 = vmax.f32 %v7840, %v5983
      %v7842 = vmax.f32 %v7841, %v5989
      %v7843 = vmax.f32 %v7842, %v5993
      %v7844 = vmax.f32 %v7843, %v5999
      %v7845 = vmax.f32 %v7844, %v6003
      %v7846 = vmax.f32 %v7845, %v6009
      %v7847 = vmax.f32 %v7846, %v6013
      %v7848 = vmax.f32 %v7847, %v6019
      %v7849 = vmax.f32 %v7848, %v6023
      %v7850 = vmax.f32 %v7849, %v6029
      %v7851 = vmax.f32 %v7850, %v6033
      %v7852 = vmax.f32 %v7851, %v6039
      %v7853 = vmax.f32 %v7852, %v6043
      %v7854 = vmax.f32 %v7853, %v6049
      %v7855 = vmax.f32 %v7854, %v6053
      %v7856 = vmax.f32 %v7855, %v6059
      %v7857 = vmax.f32 %v7856, %v6063
      %v7858 = vmax.f32 %v7857, %v6069
      %v7859 = vmax.f32 %v7858, %v6073
      %v7860 = vmax.f32 %v7859, %v6079
      %v7861 = vmax.f32 %v7860, %v6083
      %v7862 = vmax.f32 %v7861, %v6089
      %v7863 = vmax.f32 %v7862, %v6093
      %v7864 = vmax.f32 %v7863, %v6099
      %v7865 = vmax.f32 %v7864, %v6103
      %v7866 = vmax.f32 %v7865, %v6109
      %v7867 = vmax.f32 %v7866, %v6113
      %v7868 = vmax.f32 %v7867, %v6119
      %v7869 = vmax.f32 %v7868, %v6123
      %v7870 = vmax.f32 %v7869, %v6129
      %v7871 = vmax.f32 %v7870, %v6133
      %v7872 = vmax.f32 %v7871, %v6139
      %v7873 = vmax.f32 %v7872, %v6143
      %v7874 = vmax.f32 %v7873, %v6149
      %v7875 = vmax.f32 %v7874, %v6153
      %v7876 = vmax.f32 %v7875, %v6159
      %v7877 = vmax.f32 %v7876, %v6163
      %v7878 = vmax.f32 %v7877, %v6169
      %v7879 = vmax.f32 %v7878, %v6173
      %v7880 = vmax.f32 %v7879, %v6179
      %v7881 = vmax.f32 %v7880, %v6183
      %v7882 = vmax.f32 %v7881, %v6189
      %v7883 = vmax.f32 %v7882, %v6193
      %v7884 = vmax.f32 %v7883, %v6199
      %v7885 = vmax.f32 %v7884, %v6203
      %v7886 = vmax.f32 %v7885, %v6209
      %v7887 = vmax.f32 %v7886, %v6213
      %v7888 = vmax.f32 %v7887, %v6219
      %v7889 = vmax.f32 %v7888, %v6223
      %v7890 = vmax.f32 %v7889, %v6229
      %v7891 = vmax.f32 %v7890, %v6233
      %v7892 = vmax.f32 %v7891, %v6239
      %v7893 = vmax.f32 %v7892, %v6243
      %v7894 = vmax.f32 %v7893, %v6249
      %v7895 = vmax.f32 %v7894, %v6253
      %v7896 = vmax.f32 %v7895, %v6259
      %v7897 = vmax.f32 %v7896, %v6263
      %v7898 = vmax.f32 %v7897, %v6269
      %v7899 = vmax.f32 %v7898, %v6273
      %v7900 = vmax.f32 %v7899, %v6279
      %v7901 = vmax.f32 %v7900, %v6283
      %v7902 = vmax.f32 %v7901, %v6289
      %v7903 = vmax.f32 %v7902, %v6293
      %v7904 = vmax.f32 %v7903, %v6299
      %v7905 = vmax.f32 %v7904, %v6303
      %v7906 = vmax.f32 %v7905, %v6309
      %v7907 = vmax.f32 %v7906, %v6313
      %v7908 = vmax.f32 %v7907, %v6319
      %v7909 = vmax.f32 %v7908, %v6323
      %v7910 = vmax.f32 %v7909, %v6329
      %v7911 = vmax.f32 %v7910, %v6333
      %v7912 = vmax.f32 %v7911, %v6339
      %v7913 = vmax.f32 %v7912, %v6343
      %v7914 = vmax.f32 %v7913, %v6349
      %v7915 = vmax.f32 %v7914, %v6353
      %v7916 = vmax.f32 %v7915, %v6359
      %v7917 = vmax.f32 %v7916, %v6363
      %v7918 = vmax.f32 %v7917, %v6369
      %v7919 = vmax.f32 %v7918, %v6373
      %v7920 = vmax.f32 %v7919, %v6379
      %v7921 = vmax.f32 %v7920, %v6383
      %v7922 = vmax.f32 %v7921, %v6389
      %v7923 = vmax.f32 %v7922, %v6393
      %v7924 = vmax.f32 %v7923, %v6399
      %v7925 = vmax.f32 %v7924, %v6403
      %v7926 = vmax.f32 %v7925, %v6409
      %v7927 = vmax.f32 %v7926, %v6413
      %v7928 = vmax.f32 %v7927, %v6419
      %v7929 = vmax.f32 %v7928, %v6423
      %v7930 = vmax.f32 %v7929, %v6429
      %v7931 = vmax.f32 %v7930, %v6433
      %v7932 = vmax.f32 %v7931, %v6439
      %v7933 = vmax.f32 %v7932, %v6443
      %v7934 = vmax.f32 %v7933, %v6449
      %v7935 = vmax.f32 %v7934, %v6453
      %v7936 = vmax.f32 %v7935, %v6459
      %v7937 = vmax.f32 %v7936, %v6463
      %v7938 = vmax.f32 %v7937, %v6469
      %v7939 = vmax.f32 %v7938, %v6473
      %v7940 = vrot.slane %v7939, 4
      %v7941 = vmax.f32 %v7939, %v7940
      %v7942 = vrot.slane %v7941, 2
      %v7943 = vmax.f32 %v7941, %v7942
      %v7944 = vrot.slane %v7943, 1
      %v7945 = vmax.f32 %v7943, %v7944
      %v7946 = vmax.f32 %v6510, %v6514
      %v7947 = vmax.f32 %v7946, %v6520
      %v7948 = vmax.f32 %v7947, %v6524
      %v7949 = vmax.f32 %v7948, %v6530
      %v7950 = vmax.f32 %v7949, %v6534
      %v7951 = vmax.f32 %v7950, %v6540
      %v7952 = vmax.f32 %v7951, %v6544
      %v7953 = vmax.f32 %v7952, %v6550
      %v7954 = vmax.f32 %v7953, %v6554
      %v7955 = vmax.f32 %v7954, %v6560
      %v7956 = vmax.f32 %v7955, %v6564
      %v7957 = vmax.f32 %v7956, %v6570
      %v7958 = vmax.f32 %v7957, %v6574
      %v7959 = vmax.f32 %v7958, %v6580
      %v7960 = vmax.f32 %v7959, %v6584
      %v7961 = vmax.f32 %v7960, %v6590
      %v7962 = vmax.f32 %v7961, %v6594
      %v7963 = vmax.f32 %v7962, %v6600
      %v7964 = vmax.f32 %v7963, %v6604
      %v7965 = vmax.f32 %v7964, %v6610
      %v7966 = vmax.f32 %v7965, %v6614
      %v7967 = vmax.f32 %v7966, %v6620
      %v7968 = vmax.f32 %v7967, %v6624
      %v7969 = vmax.f32 %v7968, %v6630
      %v7970 = vmax.f32 %v7969, %v6634
      %v7971 = vmax.f32 %v7970, %v6640
      %v7972 = vmax.f32 %v7971, %v6644
      %v7973 = vmax.f32 %v7972, %v6650
      %v7974 = vmax.f32 %v7973, %v6654
      %v7975 = vmax.f32 %v7974, %v6660
      %v7976 = vmax.f32 %v7975, %v6664
      %v7977 = vmax.f32 %v7976, %v6670
      %v7978 = vmax.f32 %v7977, %v6674
      %v7979 = vmax.f32 %v7978, %v6680
      %v7980 = vmax.f32 %v7979, %v6684
      %v7981 = vmax.f32 %v7980, %v6690
      %v7982 = vmax.f32 %v7981, %v6694
      %v7983 = vmax.f32 %v7982, %v6700
      %v7984 = vmax.f32 %v7983, %v6704
      %v7985 = vmax.f32 %v7984, %v6710
      %v7986 = vmax.f32 %v7985, %v6714
      %v7987 = vmax.f32 %v7986, %v6720
      %v7988 = vmax.f32 %v7987, %v6724
      %v7989 = vmax.f32 %v7988, %v6730
      %v7990 = vmax.f32 %v7989, %v6734
      %v7991 = vmax.f32 %v7990, %v6740
      %v7992 = vmax.f32 %v7991, %v6744
      %v7993 = vmax.f32 %v7992, %v6750
      %v7994 = vmax.f32 %v7993, %v6754
      %v7995 = vmax.f32 %v7994, %v6760
      %v7996 = vmax.f32 %v7995, %v6764
      %v7997 = vmax.f32 %v7996, %v6770
      %v7998 = vmax.f32 %v7997, %v6774
      %v7999 = vmax.f32 %v7998, %v6780
      %v8000 = vmax.f32 %v7999, %v6784
      %v8001 = vmax.f32 %v8000, %v6790
      %v8002 = vmax.f32 %v8001, %v6794
      %v8003 = vmax.f32 %v8002, %v6800
      %v8004 = vmax.f32 %v8003, %v6804
      %v8005 = vmax.f32 %v8004, %v6810
      %v8006 = vmax.f32 %v8005, %v6814
      %v8007 = vmax.f32 %v8006, %v6820
      %v8008 = vmax.f32 %v8007, %v6824
      %v8009 = vmax.f32 %v8008, %v6830
      %v8010 = vmax.f32 %v8009, %v6834
      %v8011 = vmax.f32 %v8010, %v6840
      %v8012 = vmax.f32 %v8011, %v6844
      %v8013 = vmax.f32 %v8012, %v6850
      %v8014 = vmax.f32 %v8013, %v6854
      %v8015 = vmax.f32 %v8014, %v6860
      %v8016 = vmax.f32 %v8015, %v6864
      %v8017 = vmax.f32 %v8016, %v6870
      %v8018 = vmax.f32 %v8017, %v6874
      %v8019 = vmax.f32 %v8018, %v6880
      %v8020 = vmax.f32 %v8019, %v6884
      %v8021 = vmax.f32 %v8020, %v6890
      %v8022 = vmax.f32 %v8021, %v6894
      %v8023 = vmax.f32 %v8022, %v6900
      %v8024 = vmax.f32 %v8023, %v6904
      %v8025 = vmax.f32 %v8024, %v6910
      %v8026 = vmax.f32 %v8025, %v6914
      %v8027 = vmax.f32 %v8026, %v6920
      %v8028 = vmax.f32 %v8027, %v6924
      %v8029 = vmax.f32 %v8028, %v6930
      %v8030 = vmax.f32 %v8029, %v6934
      %v8031 = vmax.f32 %v8030, %v6940
      %v8032 = vmax.f32 %v8031, %v6944
      %v8033 = vmax.f32 %v8032, %v6950
      %v8034 = vmax.f32 %v8033, %v6954
      %v8035 = vmax.f32 %v8034, %v6960
      %v8036 = vmax.f32 %v8035, %v6964
      %v8037 = vmax.f32 %v8036, %v6970
      %v8038 = vmax.f32 %v8037, %v6974
      %v8039 = vmax.f32 %v8038, %v6980
      %v8040 = vmax.f32 %v8039, %v6984
      %v8041 = vmax.f32 %v8040, %v6990
      %v8042 = vmax.f32 %v8041, %v6994
      %v8043 = vmax.f32 %v8042, %v7000
      %v8044 = vmax.f32 %v8043, %v7004
      %v8045 = vmax.f32 %v8044, %v7010
      %v8046 = vmax.f32 %v8045, %v7014
      %v8047 = vmax.f32 %v8046, %v7020
      %v8048 = vmax.f32 %v8047, %v7024
      %v8049 = vmax.f32 %v8048, %v7030
      %v8050 = vmax.f32 %v8049, %v7034
      %v8051 = vmax.f32 %v8050, %v7040
      %v8052 = vmax.f32 %v8051, %v7044
      %v8053 = vmax.f32 %v8052, %v7050
      %v8054 = vmax.f32 %v8053, %v7054
      %v8055 = vmax.f32 %v8054, %v7060
      %v8056 = vmax.f32 %v8055, %v7064
      %v8057 = vmax.f32 %v8056, %v7070
      %v8058 = vmax.f32 %v8057, %v7074
      %v8059 = vmax.f32 %v8058, %v7080
      %v8060 = vmax.f32 %v8059, %v7084
      %v8061 = vmax.f32 %v8060, %v7090
      %v8062 = vmax.f32 %v8061, %v7094
      %v8063 = vmax.f32 %v8062, %v7100
      %v8064 = vmax.f32 %v8063, %v7104
      %v8065 = vmax.f32 %v8064, %v7110
      %v8066 = vmax.f32 %v8065, %v7114
      %v8067 = vmax.f32 %v8066, %v7120
      %v8068 = vmax.f32 %v8067, %v7124
      %v8069 = vmax.f32 %v8068, %v7130
      %v8070 = vmax.f32 %v8069, %v7134
      %v8071 = vmax.f32 %v8070, %v7140
      %v8072 = vmax.f32 %v8071, %v7144
      %v8073 = vrot.slane %v8072, 4
      %v8074 = vmax.f32 %v8072, %v8073
      %v8075 = vrot.slane %v8074, 2
      %v8076 = vmax.f32 %v8074, %v8075
      %v8077 = vrot.slane %v8076, 1
      %v8078 = vmax.f32 %v8076, %v8077
      %v8079 = vmax.f32 %v6512, %v6516
      %v8080 = vmax.f32 %v8079, %v6522
      %v8081 = vmax.f32 %v8080, %v6526
      %v8082 = vmax.f32 %v8081, %v6532
      %v8083 = vmax.f32 %v8082, %v6536
      %v8084 = vmax.f32 %v8083, %v6542
      %v8085 = vmax.f32 %v8084, %v6546
      %v8086 = vmax.f32 %v8085, %v6552
      %v8087 = vmax.f32 %v8086, %v6556
      %v8088 = vmax.f32 %v8087, %v6562
      %v8089 = vmax.f32 %v8088, %v6566
      %v8090 = vmax.f32 %v8089, %v6572
      %v8091 = vmax.f32 %v8090, %v6576
      %v8092 = vmax.f32 %v8091, %v6582
      %v8093 = vmax.f32 %v8092, %v6586
      %v8094 = vmax.f32 %v8093, %v6592
      %v8095 = vmax.f32 %v8094, %v6596
      %v8096 = vmax.f32 %v8095, %v6602
      %v8097 = vmax.f32 %v8096, %v6606
      %v8098 = vmax.f32 %v8097, %v6612
      %v8099 = vmax.f32 %v8098, %v6616
      %v8100 = vmax.f32 %v8099, %v6622
      %v8101 = vmax.f32 %v8100, %v6626
      %v8102 = vmax.f32 %v8101, %v6632
      %v8103 = vmax.f32 %v8102, %v6636
      %v8104 = vmax.f32 %v8103, %v6642
      %v8105 = vmax.f32 %v8104, %v6646
      %v8106 = vmax.f32 %v8105, %v6652
      %v8107 = vmax.f32 %v8106, %v6656
      %v8108 = vmax.f32 %v8107, %v6662
      %v8109 = vmax.f32 %v8108, %v6666
      %v8110 = vmax.f32 %v8109, %v6672
      %v8111 = vmax.f32 %v8110, %v6676
      %v8112 = vmax.f32 %v8111, %v6682
      %v8113 = vmax.f32 %v8112, %v6686
      %v8114 = vmax.f32 %v8113, %v6692
      %v8115 = vmax.f32 %v8114, %v6696
      %v8116 = vmax.f32 %v8115, %v6702
      %v8117 = vmax.f32 %v8116, %v6706
      %v8118 = vmax.f32 %v8117, %v6712
      %v8119 = vmax.f32 %v8118, %v6716
      %v8120 = vmax.f32 %v8119, %v6722
      %v8121 = vmax.f32 %v8120, %v6726
      %v8122 = vmax.f32 %v8121, %v6732
      %v8123 = vmax.f32 %v8122, %v6736
      %v8124 = vmax.f32 %v8123, %v6742
      %v8125 = vmax.f32 %v8124, %v6746
      %v8126 = vmax.f32 %v8125, %v6752
      %v8127 = vmax.f32 %v8126, %v6756
      %v8128 = vmax.f32 %v8127, %v6762
      %v8129 = vmax.f32 %v8128, %v6766
      %v8130 = vmax.f32 %v8129, %v6772
      %v8131 = vmax.f32 %v8130, %v6776
      %v8132 = vmax.f32 %v8131, %v6782
      %v8133 = vmax.f32 %v8132, %v6786
      %v8134 = vmax.f32 %v8133, %v6792
      %v8135 = vmax.f32 %v8134, %v6796
      %v8136 = vmax.f32 %v8135, %v6802
      %v8137 = vmax.f32 %v8136, %v6806
      %v8138 = vmax.f32 %v8137, %v6812
      %v8139 = vmax.f32 %v8138, %v6816
      %v8140 = vmax.f32 %v8139, %v6822
      %v8141 = vmax.f32 %v8140, %v6826
      %v8142 = vmax.f32 %v8141, %v6832
      %v8143 = vmax.f32 %v8142, %v6836
      %v8144 = vmax.f32 %v8143, %v6842
      %v8145 = vmax.f32 %v8144, %v6846
      %v8146 = vmax.f32 %v8145, %v6852
      %v8147 = vmax.f32 %v8146, %v6856
      %v8148 = vmax.f32 %v8147, %v6862
      %v8149 = vmax.f32 %v8148, %v6866
      %v8150 = vmax.f32 %v8149, %v6872
      %v8151 = vmax.f32 %v8150, %v6876
      %v8152 = vmax.f32 %v8151, %v6882
      %v8153 = vmax.f32 %v8152, %v6886
      %v8154 = vmax.f32 %v8153, %v6892
      %v8155 = vmax.f32 %v8154, %v6896
      %v8156 = vmax.f32 %v8155, %v6902
      %v8157 = vmax.f32 %v8156, %v6906
      %v8158 = vmax.f32 %v8157, %v6912
      %v8159 = vmax.f32 %v8158, %v6916
      %v8160 = vmax.f32 %v8159, %v6922
      %v8161 = vmax.f32 %v8160, %v6926
      %v8162 = vmax.f32 %v8161, %v6932
      %v8163 = vmax.f32 %v8162, %v6936
      %v8164 = vmax.f32 %v8163, %v6942
      %v8165 = vmax.f32 %v8164, %v6946
      %v8166 = vmax.f32 %v8165, %v6952
      %v8167 = vmax.f32 %v8166, %v6956
      %v8168 = vmax.f32 %v8167, %v6962
      %v8169 = vmax.f32 %v8168, %v6966
      %v8170 = vmax.f32 %v8169, %v6972
      %v8171 = vmax.f32 %v8170, %v6976
      %v8172 = vmax.f32 %v8171, %v6982
      %v8173 = vmax.f32 %v8172, %v6986
      %v8174 = vmax.f32 %v8173, %v6992
      %v8175 = vmax.f32 %v8174, %v6996
      %v8176 = vmax.f32 %v8175, %v7002
      %v8177 = vmax.f32 %v8176, %v7006
      %v8178 = vmax.f32 %v8177, %v7012
      %v8179 = vmax.f32 %v8178, %v7016
      %v8180 = vmax.f32 %v8179, %v7022
      %v8181 = vmax.f32 %v8180, %v7026
      %v8182 = vmax.f32 %v8181, %v7032
      %v8183 = vmax.f32 %v8182, %v7036
      %v8184 = vmax.f32 %v8183, %v7042
      %v8185 = vmax.f32 %v8184, %v7046
      %v8186 = vmax.f32 %v8185, %v7052
      %v8187 = vmax.f32 %v8186, %v7056
      %v8188 = vmax.f32 %v8187, %v7062
      %v8189 = vmax.f32 %v8188, %v7066
      %v8190 = vmax.f32 %v8189, %v7072
      %v8191 = vmax.f32 %v8190, %v7076
      %v8192 = vmax.f32 %v8191, %v7082
      %v8193 = vmax.f32 %v8192, %v7086
      %v8194 = vmax.f32 %v8193, %v7092
      %v8195 = vmax.f32 %v8194, %v7096
      %v8196 = vmax.f32 %v8195, %v7102
      %v8197 = vmax.f32 %v8196, %v7106
      %v8198 = vmax.f32 %v8197, %v7112
      %v8199 = vmax.f32 %v8198, %v7116
      %v8200 = vmax.f32 %v8199, %v7122
      %v8201 = vmax.f32 %v8200, %v7126
      %v8202 = vmax.f32 %v8201, %v7132
      %v8203 = vmax.f32 %v8202, %v7136
      %v8204 = vmax.f32 %v8203, %v7142
      %v8205 = vmax.f32 %v8204, %v7146
      %v8206 = vrot.slane %v8205, 4
      %v8207 = vmax.f32 %v8205, %v8206
      %v8208 = vrot.slane %v8207, 2
      %v8209 = vmax.f32 %v8207, %v8208
      %v8210 = vrot.slane %v8209, 1
      %v8211 = vmax.f32 %v8209, %v8210
      %p8212 = scmp.eq.s32.totalorder %s24, 0
      // Predicated region
      $region53: #{transformer_forward.1} parent=51 // pred_check
        %p8213 = pneg %p8212
      $region54: #{transformer_forward.1} parent=51 // pred_check_branch
        %8215 = sbr.rel (%p8213) target = $region56
      $region55: #{transformer_forward.1} parent=51 // pred_region
        %8216 = vst [vmem:[#allocation2] sm:$0xff] -inf
      $region56: #{transformer_forward.1} parent=51 // pred_fallthru
        _
      %v8217 = vld [vmem:[#allocation2] sm:$0xff]
      %v8226 = vcombine.low %v7280, %v7413
      %v8227 = vcombine.low %v7546, %v7679
      %v8228 = vcombine.low %v7812, %v7945
      %v8229 = vcombine.low %v8078, %v8211
      %v8231 = vunpack.c.l.s4 1966171168
      %v8232 = vunpack.c.0.s8 %v8231
      %v8233 = vlaneseq
      %v8234 = vshrl.u32 %v8233, 7
      %v8235 = vsub.s32 %v8232, %v8234
      %v8236 = vrot.slane %v8226, %v8235
      %v8238 = vunpack.c.l.s4 1966171168
      %v8239 = vunpack.c.0.s8 %v8238
      %v8240 = vlaneseq
      %v8241 = vshrl.u32 %v8240, 7
      %v8242 = vsub.s32 %v8239, %v8241
      %v8243 = vrot.slane %v8227, %v8242
      %v8245 = vunpack.c.l.s4 1966171168
      %v8246 = vunpack.c.0.s8 %v8245
      %v8247 = vlaneseq
      %v8248 = vshrl.u32 %v8247, 7
      %v8249 = vsub.s32 %v8246, %v8248
      %v8250 = vrot.slane %v8228, %v8249
      %v8252 = vunpack.c.l.s4 1966171168
      %v8253 = vunpack.c.0.s8 %v8252
      %v8254 = vlaneseq
      %v8255 = vshrl.u32 %v8254, 7
      %v8256 = vsub.s32 %v8253, %v8255
      %v8257 = vrot.slane %v8229, %v8256
      %v8258 = vcombine.low %v8236, %v8243
      %v8259 = vcombine.low %v8250, %v8257
      %v8261 = vunpack.c.l.s4 1966171168
      %v8262 = vunpack.c.0.s8 %v8261
      %v8263 = vlaneseq
      %v8264 = vshrl.u32 %v8263, 7
      %v8265 = vsub.s32 %v8262, %v8264
      %v8266 = vrot.slane %v8258, %v8265
      %v8268 = vunpack.c.l.s4 1966171168
      %v8269 = vunpack.c.0.s8 %v8268
      %v8270 = vlaneseq
      %v8271 = vshrl.u32 %v8270, 7
      %v8272 = vsub.s32 %v8269, %v8271
      %v8273 = vrot.slane %v8259, %v8272
      %v8274 = vcombine.low %v8266, %v8273
      %v8276 = vmax.f32 %v8217, %v8274
      %8277 = vst [vmem:[#allocation2] sm:$0xff] %v8276
      // Predicated region
      $region57: #{transformer_forward.1} parent=51 // pred_check
        %p8278 = pneg %p8212
      $region58: #{transformer_forward.1} parent=51 // pred_check_branch
        %8280 = sbr.rel (%p8278) target = $region60
      $region59: #{transformer_forward.1} parent=51 // pred_region
        %v8281 = vld [vmem:[#allocation2] sm:$0xff]
        %v8282 = vld [vmem:[%s1 + $0x2] sm:$0xff]
        %v8283 = vadd.f32 %v8281, %v8282
        %v8284 = vmax.f32 %v8283, 0.0
        %v8286 = vlaneseq
        %v8287 = vshrl.u32 %v8286, 7
        %v8288 = vsub.s32 0, %v8287
        %v8289 = vrot.slane %v8284, %v8288
        %v8290 = vlaneseq
        %v8291 = vshrl.u32 %v8290, 7
        %v8292 = vsub.s32 1, %v8291
        %v8293 = vrot.slane %v8284, %v8292
        %v8294 = vlaneseq
        %v8295 = vshrl.u32 %v8294, 7
        %v8296 = vsub.s32 2, %v8295
        %v8297 = vrot.slane %v8284, %v8296
        %v8298 = vlaneseq
        %v8299 = vshrl.u32 %v8298, 7
        %v8300 = vsub.s32 3, %v8299
        %v8301 = vrot.slane %v8284, %v8300
        %v8302 = vlaneseq
        %v8303 = vshrl.u32 %v8302, 7
        %v8304 = vsub.s32 4, %v8303
        %v8305 = vrot.slane %v8284, %v8304
        %v8306 = vlaneseq
        %v8307 = vshrl.u32 %v8306, 7
        %v8308 = vsub.s32 5, %v8307
        %v8309 = vrot.slane %v8284, %v8308
        %v8310 = vlaneseq
        %v8311 = vshrl.u32 %v8310, 7
        %v8312 = vsub.s32 6, %v8311
        %v8313 = vrot.slane %v8284, %v8312
        %v8314 = vlaneseq
        %v8315 = vshrl.u32 %v8314, 7
        %v8316 = vsub.s32 7, %v8315
        %v8317 = vrot.slane %v8284, %v8316
        %v8326 = vpack.c.bf16 %v8289, %v8289
        %v8327 = vpack.c.bf16 %v8293, %v8293
        %v8328 = vpack.c.bf16 %v8297, %v8297
        %v8329 = vpack.c.bf16 %v8301, %v8301
        %v8330 = vpack.c.bf16 %v8305, %v8305
        %v8331 = vpack.c.bf16 %v8309, %v8309
        %v8332 = vpack.c.bf16 %v8313, %v8313
        %v8333 = vpack.c.bf16 %v8317, %v8317
        %v8334 = vld [vmem:[%s5] sm:$0xff]
        %v8335 = vld [vmem:[%s5 + $0x8] sm:$0xff]
        %v8336 = vld [vmem:[%s5 + $0x10] sm:$0xff]
        %v8337 = vld [vmem:[%s5 + $0x18] sm:$0xff]
        %v8338 = vld [vmem:[%s5 + $0x20] sm:$0xff]
        %v8339 = vld [vmem:[%s5 + $0x28] sm:$0xff]
        %v8340 = vld [vmem:[%s5 + $0x30] sm:$0xff]
        %v8341 = vld [vmem:[%s5 + $0x38] sm:$0xff]
        %v8342 = vld [vmem:[%s5 + $0x40] sm:$0xff]
        %v8343 = vld [vmem:[%s5 + $0x48] sm:$0xff]
        %v8344 = vld [vmem:[%s5 + $0x50] sm:$0xff]
        %v8345 = vld [vmem:[%s5 + $0x58] sm:$0xff]
        %v8346 = vld [vmem:[%s5 + $0x60] sm:$0xff]
        %v8347 = vld [vmem:[%s5 + $0x68] sm:$0xff]
        %v8348 = vld [vmem:[%s5 + $0x70] sm:$0xff]
        %v8349 = vld [vmem:[%s5 + $0x78] sm:$0xff]
        %v8350 = vld [vmem:[%s5 + $0x80] sm:$0xff]
        %v8351 = vld [vmem:[%s5 + $0x88] sm:$0xff]
        %v8352 = vld [vmem:[%s5 + $0x90] sm:$0xff]
        %v8353 = vld [vmem:[%s5 + $0x98] sm:$0xff]
        %v8354 = vld [vmem:[%s5 + $0xa0] sm:$0xff]
        %v8355 = vld [vmem:[%s5 + $0xa8] sm:$0xff]
        %v8356 = vld [vmem:[%s5 + $0xb0] sm:$0xff]
        %v8357 = vld [vmem:[%s5 + $0xb8] sm:$0xff]
        %v8358 = vld [vmem:[%s5 + $0xc0] sm:$0xff]
        %v8359 = vld [vmem:[%s5 + $0xc8] sm:$0xff]
        %v8360 = vld [vmem:[%s5 + $0xd0] sm:$0xff]
        %v8361 = vld [vmem:[%s5 + $0xd8] sm:$0xff]
        %v8362 = vld [vmem:[%s5 + $0xe0] sm:$0xff]
        %v8363 = vld [vmem:[%s5 + $0xe8] sm:$0xff]
        %v8364 = vld [vmem:[%s5 + $0xf0] sm:$0xff]
        %v8365 = vld [vmem:[%s5 + $0xf8] sm:$0xff]
        %v8366 = vld [vmem:[%s5 + $0x100] sm:$0xff]
        %v8367 = vld [vmem:[%s5 + $0x108] sm:$0xff]
        %v8368 = vld [vmem:[%s5 + $0x110] sm:$0xff]
        %v8369 = vld [vmem:[%s5 + $0x118] sm:$0xff]
        %v8370 = vld [vmem:[%s5 + $0x120] sm:$0xff]
        %v8371 = vld [vmem:[%s5 + $0x128] sm:$0xff]
        %v8372 = vld [vmem:[%s5 + $0x130] sm:$0xff]
        %v8373 = vld [vmem:[%s5 + $0x138] sm:$0xff]
        %v8374 = vld [vmem:[%s5 + $0x140] sm:$0xff]
        %v8375 = vld [vmem:[%s5 + $0x148] sm:$0xff]
        %v8376 = vld [vmem:[%s5 + $0x150] sm:$0xff]
        %v8377 = vld [vmem:[%s5 + $0x158] sm:$0xff]
        %v8378 = vld [vmem:[%s5 + $0x160] sm:$0xff]
        %v8379 = vld [vmem:[%s5 + $0x168] sm:$0xff]
        %v8380 = vld [vmem:[%s5 + $0x170] sm:$0xff]
        %v8381 = vld [vmem:[%s5 + $0x178] sm:$0xff]
        %v8382 = vld [vmem:[%s5 + $0x180] sm:$0xff]
        %v8383 = vld [vmem:[%s5 + $0x188] sm:$0xff]
        %v8384 = vld [vmem:[%s5 + $0x190] sm:$0xff]
        %v8385 = vld [vmem:[%s5 + $0x198] sm:$0xff]
        %v8386 = vld [vmem:[%s5 + $0x1a0] sm:$0xff]
        %v8387 = vld [vmem:[%s5 + $0x1a8] sm:$0xff]
        %v8388 = vld [vmem:[%s5 + $0x1b0] sm:$0xff]
        %v8389 = vld [vmem:[%s5 + $0x1b8] sm:$0xff]
        %v8390 = vld [vmem:[%s5 + $0x1c0] sm:$0xff]
        %v8391 = vld [vmem:[%s5 + $0x1c8] sm:$0xff]
        %v8392 = vld [vmem:[%s5 + $0x1d0] sm:$0xff]
        %v8393 = vld [vmem:[%s5 + $0x1d8] sm:$0xff]
        %v8394 = vld [vmem:[%s5 + $0x1e0] sm:$0xff]
        %v8395 = vld [vmem:[%s5 + $0x1e8] sm:$0xff]
        %v8396 = vld [vmem:[%s5 + $0x1f0] sm:$0xff]
        %v8397 = vld [vmem:[%s5 + $0x1f8] sm:$0xff]
        %v8398 = vld [vmem:[%s5 + $0x200] sm:$0xff]
        %v8399 = vld [vmem:[%s5 + $0x208] sm:$0xff]
        %v8400 = vld [vmem:[%s5 + $0x210] sm:$0xff]
        %v8401 = vld [vmem:[%s5 + $0x218] sm:$0xff]
        %v8402 = vld [vmem:[%s5 + $0x220] sm:$0xff]
        %v8403 = vld [vmem:[%s5 + $0x228] sm:$0xff]
        %v8404 = vld [vmem:[%s5 + $0x230] sm:$0xff]
        %v8405 = vld [vmem:[%s5 + $0x238] sm:$0xff]
        %v8406 = vld [vmem:[%s5 + $0x240] sm:$0xff]
        %v8407 = vld [vmem:[%s5 + $0x248] sm:$0xff]
        %v8408 = vld [vmem:[%s5 + $0x250] sm:$0xff]
        %v8409 = vld [vmem:[%s5 + $0x258] sm:$0xff]
        %v8410 = vld [vmem:[%s5 + $0x260] sm:$0xff]
        %v8411 = vld [vmem:[%s5 + $0x268] sm:$0xff]
        %v8412 = vld [vmem:[%s5 + $0x270] sm:$0xff]
        %v8413 = vld [vmem:[%s5 + $0x278] sm:$0xff]
        %v8414 = vld [vmem:[%s5 + $0x280] sm:$0xff]
        %v8415 = vld [vmem:[%s5 + $0x288] sm:$0xff]
        %v8416 = vld [vmem:[%s5 + $0x290] sm:$0xff]
        %v8417 = vld [vmem:[%s5 + $0x298] sm:$0xff]
        %v8418 = vld [vmem:[%s5 + $0x2a0] sm:$0xff]
        %v8419 = vld [vmem:[%s5 + $0x2a8] sm:$0xff]
        %v8420 = vld [vmem:[%s5 + $0x2b0] sm:$0xff]
        %v8421 = vld [vmem:[%s5 + $0x2b8] sm:$0xff]
        %v8422 = vld [vmem:[%s5 + $0x2c0] sm:$0xff]
        %v8423 = vld [vmem:[%s5 + $0x2c8] sm:$0xff]
        %v8424 = vld [vmem:[%s5 + $0x2d0] sm:$0xff]
        %v8425 = vld [vmem:[%s5 + $0x2d8] sm:$0xff]
        %v8426 = vld [vmem:[%s5 + $0x2e0] sm:$0xff]
        %v8427 = vld [vmem:[%s5 + $0x2e8] sm:$0xff]
        %v8428 = vld [vmem:[%s5 + $0x2f0] sm:$0xff]
        %v8429 = vld [vmem:[%s5 + $0x2f8] sm:$0xff]
        %v8430 = vld [vmem:[%s5 + $0x300] sm:$0xff]
        %v8431 = vld [vmem:[%s5 + $0x308] sm:$0xff]
        %v8432 = vld [vmem:[%s5 + $0x310] sm:$0xff]
        %v8433 = vld [vmem:[%s5 + $0x318] sm:$0xff]
        %v8434 = vld [vmem:[%s5 + $0x320] sm:$0xff]
        %v8435 = vld [vmem:[%s5 + $0x328] sm:$0xff]
        %v8436 = vld [vmem:[%s5 + $0x330] sm:$0xff]
        %v8437 = vld [vmem:[%s5 + $0x338] sm:$0xff]
        %v8438 = vld [vmem:[%s5 + $0x340] sm:$0xff]
        %v8439 = vld [vmem:[%s5 + $0x348] sm:$0xff]
        %v8440 = vld [vmem:[%s5 + $0x350] sm:$0xff]
        %v8441 = vld [vmem:[%s5 + $0x358] sm:$0xff]
        %v8442 = vld [vmem:[%s5 + $0x360] sm:$0xff]
        %v8443 = vld [vmem:[%s5 + $0x368] sm:$0xff]
        %v8444 = vld [vmem:[%s5 + $0x370] sm:$0xff]
        %v8445 = vld [vmem:[%s5 + $0x378] sm:$0xff]
        %v8446 = vld [vmem:[%s5 + $0x380] sm:$0xff]
        %v8447 = vld [vmem:[%s5 + $0x388] sm:$0xff]
        %v8448 = vld [vmem:[%s5 + $0x390] sm:$0xff]
        %v8449 = vld [vmem:[%s5 + $0x398] sm:$0xff]
        %v8450 = vld [vmem:[%s5 + $0x3a0] sm:$0xff]
        %v8451 = vld [vmem:[%s5 + $0x3a8] sm:$0xff]
        %v8452 = vld [vmem:[%s5 + $0x3b0] sm:$0xff]
        %v8453 = vld [vmem:[%s5 + $0x3b8] sm:$0xff]
        %v8454 = vld [vmem:[%s5 + $0x3c0] sm:$0xff]
        %v8455 = vld [vmem:[%s5 + $0x3c8] sm:$0xff]
        %v8456 = vld [vmem:[%s5 + $0x3d0] sm:$0xff]
        %v8457 = vld [vmem:[%s5 + $0x3d8] sm:$0xff]
        %v8458 = vld [vmem:[%s5 + $0x3e0] sm:$0xff]
        %v8459 = vld [vmem:[%s5 + $0x3e8] sm:$0xff]
        %v8460 = vld [vmem:[%s5 + $0x3f0] sm:$0xff]
        %v8461 = vld [vmem:[%s5 + $0x3f8] sm:$0xff]
        %v8462 = vld [vmem:[%s5 + $0x400] sm:$0xff]
        %v8463 = vld [vmem:[%s5 + $0x408] sm:$0xff]
        %v8464 = vld [vmem:[%s5 + $0x410] sm:$0xff]
        %v8465 = vld [vmem:[%s5 + $0x418] sm:$0xff]
        %v8466 = vld [vmem:[%s5 + $0x420] sm:$0xff]
        %v8467 = vld [vmem:[%s5 + $0x428] sm:$0xff]
        %v8468 = vld [vmem:[%s5 + $0x430] sm:$0xff]
        %v8469 = vld [vmem:[%s5 + $0x438] sm:$0xff]
        %v8470 = vld [vmem:[%s5 + $0x440] sm:$0xff]
        %v8471 = vld [vmem:[%s5 + $0x448] sm:$0xff]
        %v8472 = vld [vmem:[%s5 + $0x450] sm:$0xff]
        %v8473 = vld [vmem:[%s5 + $0x458] sm:$0xff]
        %v8474 = vld [vmem:[%s5 + $0x460] sm:$0xff]
        %v8475 = vld [vmem:[%s5 + $0x468] sm:$0xff]
        %v8476 = vld [vmem:[%s5 + $0x470] sm:$0xff]
        %v8477 = vld [vmem:[%s5 + $0x478] sm:$0xff]
        %v8478 = vld [vmem:[%s5 + $0x480] sm:$0xff]
        %v8479 = vld [vmem:[%s5 + $0x488] sm:$0xff]
        %v8480 = vld [vmem:[%s5 + $0x490] sm:$0xff]
        %v8481 = vld [vmem:[%s5 + $0x498] sm:$0xff]
        %v8482 = vld [vmem:[%s5 + $0x4a0] sm:$0xff]
        %v8483 = vld [vmem:[%s5 + $0x4a8] sm:$0xff]
        %v8484 = vld [vmem:[%s5 + $0x4b0] sm:$0xff]
        %v8485 = vld [vmem:[%s5 + $0x4b8] sm:$0xff]
        %v8486 = vld [vmem:[%s5 + $0x4c0] sm:$0xff]
        %v8487 = vld [vmem:[%s5 + $0x4c8] sm:$0xff]
        %v8488 = vld [vmem:[%s5 + $0x4d0] sm:$0xff]
        %v8489 = vld [vmem:[%s5 + $0x4d8] sm:$0xff]
        %v8490 = vld [vmem:[%s5 + $0x4e0] sm:$0xff]
        %v8491 = vld [vmem:[%s5 + $0x4e8] sm:$0xff]
        %v8492 = vld [vmem:[%s5 + $0x4f0] sm:$0xff]
        %v8493 = vld [vmem:[%s5 + $0x4f8] sm:$0xff]
        %v8494 = vld [vmem:[%s5 + $0x500] sm:$0xff]
        %v8495 = vld [vmem:[%s5 + $0x508] sm:$0xff]
        %v8496 = vld [vmem:[%s5 + $0x510] sm:$0xff]
        %v8497 = vld [vmem:[%s5 + $0x518] sm:$0xff]
        %v8498 = vld [vmem:[%s5 + $0x520] sm:$0xff]
        %v8499 = vld [vmem:[%s5 + $0x528] sm:$0xff]
        %v8500 = vld [vmem:[%s5 + $0x530] sm:$0xff]
        %v8501 = vld [vmem:[%s5 + $0x538] sm:$0xff]
        %v8502 = vld [vmem:[%s5 + $0x540] sm:$0xff]
        %v8503 = vld [vmem:[%s5 + $0x548] sm:$0xff]
        %v8504 = vld [vmem:[%s5 + $0x550] sm:$0xff]
        %v8505 = vld [vmem:[%s5 + $0x558] sm:$0xff]
        %v8506 = vld [vmem:[%s5 + $0x560] sm:$0xff]
        %v8507 = vld [vmem:[%s5 + $0x568] sm:$0xff]
        %v8508 = vld [vmem:[%s5 + $0x570] sm:$0xff]
        %v8509 = vld [vmem:[%s5 + $0x578] sm:$0xff]
        %v8510 = vld [vmem:[%s5 + $0x580] sm:$0xff]
        %v8511 = vld [vmem:[%s5 + $0x588] sm:$0xff]
        %v8512 = vld [vmem:[%s5 + $0x590] sm:$0xff]
        %v8513 = vld [vmem:[%s5 + $0x598] sm:$0xff]
        %v8514 = vld [vmem:[%s5 + $0x5a0] sm:$0xff]
        %v8515 = vld [vmem:[%s5 + $0x5a8] sm:$0xff]
        %v8516 = vld [vmem:[%s5 + $0x5b0] sm:$0xff]
        %v8517 = vld [vmem:[%s5 + $0x5b8] sm:$0xff]
        %v8518 = vld [vmem:[%s5 + $0x5c0] sm:$0xff]
        %v8519 = vld [vmem:[%s5 + $0x5c8] sm:$0xff]
        %v8520 = vld [vmem:[%s5 + $0x5d0] sm:$0xff]
        %v8521 = vld [vmem:[%s5 + $0x5d8] sm:$0xff]
        %v8522 = vld [vmem:[%s5 + $0x5e0] sm:$0xff]
        %v8523 = vld [vmem:[%s5 + $0x5e8] sm:$0xff]
        %v8524 = vld [vmem:[%s5 + $0x5f0] sm:$0xff]
        %v8525 = vld [vmem:[%s5 + $0x5f8] sm:$0xff]
        %v8526 = vld [vmem:[%s5 + $0x600] sm:$0xff]
        %v8527 = vld [vmem:[%s5 + $0x608] sm:$0xff]
        %v8528 = vld [vmem:[%s5 + $0x610] sm:$0xff]
        %v8529 = vld [vmem:[%s5 + $0x618] sm:$0xff]
        %v8530 = vld [vmem:[%s5 + $0x620] sm:$0xff]
        %v8531 = vld [vmem:[%s5 + $0x628] sm:$0xff]
        %v8532 = vld [vmem:[%s5 + $0x630] sm:$0xff]
        %v8533 = vld [vmem:[%s5 + $0x638] sm:$0xff]
        %v8534 = vld [vmem:[%s5 + $0x640] sm:$0xff]
        %v8535 = vld [vmem:[%s5 + $0x648] sm:$0xff]
        %v8536 = vld [vmem:[%s5 + $0x650] sm:$0xff]
        %v8537 = vld [vmem:[%s5 + $0x658] sm:$0xff]
        %v8538 = vld [vmem:[%s5 + $0x660] sm:$0xff]
        %v8539 = vld [vmem:[%s5 + $0x668] sm:$0xff]
        %v8540 = vld [vmem:[%s5 + $0x670] sm:$0xff]
        %v8541 = vld [vmem:[%s5 + $0x678] sm:$0xff]
        %v8542 = vld [vmem:[%s5 + $0x680] sm:$0xff]
        %v8543 = vld [vmem:[%s5 + $0x688] sm:$0xff]
        %v8544 = vld [vmem:[%s5 + $0x690] sm:$0xff]
        %v8545 = vld [vmem:[%s5 + $0x698] sm:$0xff]
        %v8546 = vld [vmem:[%s5 + $0x6a0] sm:$0xff]
        %v8547 = vld [vmem:[%s5 + $0x6a8] sm:$0xff]
        %v8548 = vld [vmem:[%s5 + $0x6b0] sm:$0xff]
        %v8549 = vld [vmem:[%s5 + $0x6b8] sm:$0xff]
        %v8550 = vld [vmem:[%s5 + $0x6c0] sm:$0xff]
        %v8551 = vld [vmem:[%s5 + $0x6c8] sm:$0xff]
        %v8552 = vld [vmem:[%s5 + $0x6d0] sm:$0xff]
        %v8553 = vld [vmem:[%s5 + $0x6d8] sm:$0xff]
        %v8554 = vld [vmem:[%s5 + $0x6e0] sm:$0xff]
        %v8555 = vld [vmem:[%s5 + $0x6e8] sm:$0xff]
        %v8556 = vld [vmem:[%s5 + $0x6f0] sm:$0xff]
        %v8557 = vld [vmem:[%s5 + $0x6f8] sm:$0xff]
        %v8558 = vld [vmem:[%s5 + $0x700] sm:$0xff]
        %v8559 = vld [vmem:[%s5 + $0x708] sm:$0xff]
        %v8560 = vld [vmem:[%s5 + $0x710] sm:$0xff]
        %v8561 = vld [vmem:[%s5 + $0x718] sm:$0xff]
        %v8562 = vld [vmem:[%s5 + $0x720] sm:$0xff]
        %v8563 = vld [vmem:[%s5 + $0x728] sm:$0xff]
        %v8564 = vld [vmem:[%s5 + $0x730] sm:$0xff]
        %v8565 = vld [vmem:[%s5 + $0x738] sm:$0xff]
        %v8566 = vld [vmem:[%s5 + $0x740] sm:$0xff]
        %v8567 = vld [vmem:[%s5 + $0x748] sm:$0xff]
        %v8568 = vld [vmem:[%s5 + $0x750] sm:$0xff]
        %v8569 = vld [vmem:[%s5 + $0x758] sm:$0xff]
        %v8570 = vld [vmem:[%s5 + $0x760] sm:$0xff]
        %v8571 = vld [vmem:[%s5 + $0x768] sm:$0xff]
        %v8572 = vld [vmem:[%s5 + $0x770] sm:$0xff]
        %v8573 = vld [vmem:[%s5 + $0x778] sm:$0xff]
        %v8574 = vld [vmem:[%s5 + $0x780] sm:$0xff]
        %v8575 = vld [vmem:[%s5 + $0x788] sm:$0xff]
        %v8576 = vld [vmem:[%s5 + $0x790] sm:$0xff]
        %v8577 = vld [vmem:[%s5 + $0x798] sm:$0xff]
        %v8578 = vld [vmem:[%s5 + $0x7a0] sm:$0xff]
        %v8579 = vld [vmem:[%s5 + $0x7a8] sm:$0xff]
        %v8580 = vld [vmem:[%s5 + $0x7b0] sm:$0xff]
        %v8581 = vld [vmem:[%s5 + $0x7b8] sm:$0xff]
        %v8582 = vld [vmem:[%s5 + $0x7c0] sm:$0xff]
        %v8583 = vld [vmem:[%s5 + $0x7c8] sm:$0xff]
        %v8584 = vld [vmem:[%s5 + $0x7d0] sm:$0xff]
        %v8585 = vld [vmem:[%s5 + $0x7d8] sm:$0xff]
        %v8586 = vld [vmem:[%s5 + $0x7e0] sm:$0xff]
        %v8587 = vld [vmem:[%s5 + $0x7e8] sm:$0xff]
        %v8588 = vld [vmem:[%s5 + $0x7f0] sm:$0xff]
        %v8589 = vld [vmem:[%s5 + $0x7f8] sm:$0xff]
        %v8590 = vld [vmem:[%s1 + $0xa] sm:$0xf]
        %v8847 = vunpack.c.l.b16 %v8334
        %v8848 = vunpack.c.h.b16 %v8334
        %v8849 = vunpack.c.l.b16 %v8335
        %v8850 = vunpack.c.h.b16 %v8335
        %v8851 = vunpack.c.l.b16 %v8336
        %v8852 = vunpack.c.h.b16 %v8336
        %v8853 = vunpack.c.l.b16 %v8337
        %v8854 = vunpack.c.h.b16 %v8337
        %v8855 = vunpack.c.l.b16 %v8338
        %v8856 = vunpack.c.h.b16 %v8338
        %v8857 = vunpack.c.l.b16 %v8339
        %v8858 = vunpack.c.h.b16 %v8339
        %v8859 = vunpack.c.l.b16 %v8340
        %v8860 = vunpack.c.h.b16 %v8340
        %v8861 = vunpack.c.l.b16 %v8341
        %v8862 = vunpack.c.h.b16 %v8341
        %v8863 = vunpack.c.l.b16 %v8342
        %v8864 = vunpack.c.h.b16 %v8342
        %v8865 = vunpack.c.l.b16 %v8343
        %v8866 = vunpack.c.h.b16 %v8343
        %v8867 = vunpack.c.l.b16 %v8344
        %v8868 = vunpack.c.h.b16 %v8344
        %v8869 = vunpack.c.l.b16 %v8345
        %v8870 = vunpack.c.h.b16 %v8345
        %v8871 = vunpack.c.l.b16 %v8346
        %v8872 = vunpack.c.h.b16 %v8346
        %v8873 = vunpack.c.l.b16 %v8347
        %v8874 = vunpack.c.h.b16 %v8347
        %v8875 = vunpack.c.l.b16 %v8348
        %v8876 = vunpack.c.h.b16 %v8348
        %v8877 = vunpack.c.l.b16 %v8349
        %v8878 = vunpack.c.h.b16 %v8349
        %v8879 = vunpack.c.l.b16 %v8350
        %v8880 = vunpack.c.h.b16 %v8350
        %v8881 = vunpack.c.l.b16 %v8351
        %v8882 = vunpack.c.h.b16 %v8351
        %v8883 = vunpack.c.l.b16 %v8352
        %v8884 = vunpack.c.h.b16 %v8352
        %v8885 = vunpack.c.l.b16 %v8353
        %v8886 = vunpack.c.h.b16 %v8353
        %v8887 = vunpack.c.l.b16 %v8354
        %v8888 = vunpack.c.h.b16 %v8354
        %v8889 = vunpack.c.l.b16 %v8355
        %v8890 = vunpack.c.h.b16 %v8355
        %v8891 = vunpack.c.l.b16 %v8356
        %v8892 = vunpack.c.h.b16 %v8356
        %v8893 = vunpack.c.l.b16 %v8357
        %v8894 = vunpack.c.h.b16 %v8357
        %v8895 = vunpack.c.l.b16 %v8358
        %v8896 = vunpack.c.h.b16 %v8358
        %v8897 = vunpack.c.l.b16 %v8359
        %v8898 = vunpack.c.h.b16 %v8359
        %v8899 = vunpack.c.l.b16 %v8360
        %v8900 = vunpack.c.h.b16 %v8360
        %v8901 = vunpack.c.l.b16 %v8361
        %v8902 = vunpack.c.h.b16 %v8361
        %v8903 = vunpack.c.l.b16 %v8362
        %v8904 = vunpack.c.h.b16 %v8362
        %v8905 = vunpack.c.l.b16 %v8363
        %v8906 = vunpack.c.h.b16 %v8363
        %v8907 = vunpack.c.l.b16 %v8364
        %v8908 = vunpack.c.h.b16 %v8364
        %v8909 = vunpack.c.l.b16 %v8365
        %v8910 = vunpack.c.h.b16 %v8365
        %v8911 = vunpack.c.l.b16 %v8366
        %v8912 = vunpack.c.h.b16 %v8366
        %v8913 = vunpack.c.l.b16 %v8367
        %v8914 = vunpack.c.h.b16 %v8367
        %v8915 = vunpack.c.l.b16 %v8368
        %v8916 = vunpack.c.h.b16 %v8368
        %v8917 = vunpack.c.l.b16 %v8369
        %v8918 = vunpack.c.h.b16 %v8369
        %v8919 = vunpack.c.l.b16 %v8370
        %v8920 = vunpack.c.h.b16 %v8370
        %v8921 = vunpack.c.l.b16 %v8371
        %v8922 = vunpack.c.h.b16 %v8371
        %v8923 = vunpack.c.l.b16 %v8372
        %v8924 = vunpack.c.h.b16 %v8372
        %v8925 = vunpack.c.l.b16 %v8373
        %v8926 = vunpack.c.h.b16 %v8373
        %v8927 = vunpack.c.l.b16 %v8374
        %v8928 = vunpack.c.h.b16 %v8374
        %v8929 = vunpack.c.l.b16 %v8375
        %v8930 = vunpack.c.h.b16 %v8375
        %v8931 = vunpack.c.l.b16 %v8376
        %v8932 = vunpack.c.h.b16 %v8376
        %v8933 = vunpack.c.l.b16 %v8377
        %v8934 = vunpack.c.h.b16 %v8377
        %v8935 = vunpack.c.l.b16 %v8378
        %v8936 = vunpack.c.h.b16 %v8378
        %v8937 = vunpack.c.l.b16 %v8379
        %v8938 = vunpack.c.h.b16 %v8379
        %v8939 = vunpack.c.l.b16 %v8380
        %v8940 = vunpack.c.h.b16 %v8380
        %v8941 = vunpack.c.l.b16 %v8381
        %v8942 = vunpack.c.h.b16 %v8381
        %v8943 = vunpack.c.l.b16 %v8382
        %v8944 = vunpack.c.h.b16 %v8382
        %v8945 = vunpack.c.l.b16 %v8383
        %v8946 = vunpack.c.h.b16 %v8383
        %v8947 = vunpack.c.l.b16 %v8384
        %v8948 = vunpack.c.h.b16 %v8384
        %v8949 = vunpack.c.l.b16 %v8385
        %v8950 = vunpack.c.h.b16 %v8385
        %v8951 = vunpack.c.l.b16 %v8386
        %v8952 = vunpack.c.h.b16 %v8386
        %v8953 = vunpack.c.l.b16 %v8387
        %v8954 = vunpack.c.h.b16 %v8387
        %v8955 = vunpack.c.l.b16 %v8388
        %v8956 = vunpack.c.h.b16 %v8388
        %v8957 = vunpack.c.l.b16 %v8389
        %v8958 = vunpack.c.h.b16 %v8389
        %v8959 = vunpack.c.l.b16 %v8390
        %v8960 = vunpack.c.h.b16 %v8390
        %v8961 = vunpack.c.l.b16 %v8391
        %v8962 = vunpack.c.h.b16 %v8391
        %v8963 = vunpack.c.l.b16 %v8392
        %v8964 = vunpack.c.h.b16 %v8392
        %v8965 = vunpack.c.l.b16 %v8393
        %v8966 = vunpack.c.h.b16 %v8393
        %v8967 = vunpack.c.l.b16 %v8394
        %v8968 = vunpack.c.h.b16 %v8394
        %v8969 = vunpack.c.l.b16 %v8395
        %v8970 = vunpack.c.h.b16 %v8395
        %v8971 = vunpack.c.l.b16 %v8396
        %v8972 = vunpack.c.h.b16 %v8396
        %v8973 = vunpack.c.l.b16 %v8397
        %v8974 = vunpack.c.h.b16 %v8397
        %v8975 = vunpack.c.l.b16 %v8398
        %v8976 = vunpack.c.h.b16 %v8398
        %v8977 = vunpack.c.l.b16 %v8399
        %v8978 = vunpack.c.h.b16 %v8399
        %v8979 = vunpack.c.l.b16 %v8400
        %v8980 = vunpack.c.h.b16 %v8400
        %v8981 = vunpack.c.l.b16 %v8401
        %v8982 = vunpack.c.h.b16 %v8401
        %v8983 = vunpack.c.l.b16 %v8402
        %v8984 = vunpack.c.h.b16 %v8402
        %v8985 = vunpack.c.l.b16 %v8403
        %v8986 = vunpack.c.h.b16 %v8403
        %v8987 = vunpack.c.l.b16 %v8404
        %v8988 = vunpack.c.h.b16 %v8404
        %v8989 = vunpack.c.l.b16 %v8405
        %v8990 = vunpack.c.h.b16 %v8405
        %v8991 = vunpack.c.l.b16 %v8406
        %v8992 = vunpack.c.h.b16 %v8406
        %v8993 = vunpack.c.l.b16 %v8407
        %v8994 = vunpack.c.h.b16 %v8407
        %v8995 = vunpack.c.l.b16 %v8408
        %v8996 = vunpack.c.h.b16 %v8408
        %v8997 = vunpack.c.l.b16 %v8409
        %v8998 = vunpack.c.h.b16 %v8409
        %v8999 = vunpack.c.l.b16 %v8410
        %v9000 = vunpack.c.h.b16 %v8410
        %v9001 = vunpack.c.l.b16 %v8411
        %v9002 = vunpack.c.h.b16 %v8411
        %v9003 = vunpack.c.l.b16 %v8412
        %v9004 = vunpack.c.h.b16 %v8412
        %v9005 = vunpack.c.l.b16 %v8413
        %v9006 = vunpack.c.h.b16 %v8413
        %v9007 = vunpack.c.l.b16 %v8414
        %v9008 = vunpack.c.h.b16 %v8414
        %v9009 = vunpack.c.l.b16 %v8415
        %v9010 = vunpack.c.h.b16 %v8415
        %v9011 = vunpack.c.l.b16 %v8416
        %v9012 = vunpack.c.h.b16 %v8416
        %v9013 = vunpack.c.l.b16 %v8417
        %v9014 = vunpack.c.h.b16 %v8417
        %v9015 = vunpack.c.l.b16 %v8418
        %v9016 = vunpack.c.h.b16 %v8418
        %v9017 = vunpack.c.l.b16 %v8419
        %v9018 = vunpack.c.h.b16 %v8419
        %v9019 = vunpack.c.l.b16 %v8420
        %v9020 = vunpack.c.h.b16 %v8420
        %v9021 = vunpack.c.l.b16 %v8421
        %v9022 = vunpack.c.h.b16 %v8421
        %v9023 = vunpack.c.l.b16 %v8422
        %v9024 = vunpack.c.h.b16 %v8422
        %v9025 = vunpack.c.l.b16 %v8423
        %v9026 = vunpack.c.h.b16 %v8423
        %v9027 = vunpack.c.l.b16 %v8424
        %v9028 = vunpack.c.h.b16 %v8424
        %v9029 = vunpack.c.l.b16 %v8425
        %v9030 = vunpack.c.h.b16 %v8425
        %v9031 = vunpack.c.l.b16 %v8426
        %v9032 = vunpack.c.h.b16 %v8426
        %v9033 = vunpack.c.l.b16 %v8427
        %v9034 = vunpack.c.h.b16 %v8427
        %v9035 = vunpack.c.l.b16 %v8428
        %v9036 = vunpack.c.h.b16 %v8428
        %v9037 = vunpack.c.l.b16 %v8429
        %v9038 = vunpack.c.h.b16 %v8429
        %v9039 = vunpack.c.l.b16 %v8430
        %v9040 = vunpack.c.h.b16 %v8430
        %v9041 = vunpack.c.l.b16 %v8431
        %v9042 = vunpack.c.h.b16 %v8431
        %v9043 = vunpack.c.l.b16 %v8432
        %v9044 = vunpack.c.h.b16 %v8432
        %v9045 = vunpack.c.l.b16 %v8433
        %v9046 = vunpack.c.h.b16 %v8433
        %v9047 = vunpack.c.l.b16 %v8434
        %v9048 = vunpack.c.h.b16 %v8434
        %v9049 = vunpack.c.l.b16 %v8435
        %v9050 = vunpack.c.h.b16 %v8435
        %v9051 = vunpack.c.l.b16 %v8436
        %v9052 = vunpack.c.h.b16 %v8436
        %v9053 = vunpack.c.l.b16 %v8437
        %v9054 = vunpack.c.h.b16 %v8437
        %v9055 = vunpack.c.l.b16 %v8438
        %v9056 = vunpack.c.h.b16 %v8438
        %v9057 = vunpack.c.l.b16 %v8439
        %v9058 = vunpack.c.h.b16 %v8439
        %v9059 = vunpack.c.l.b16 %v8440
        %v9060 = vunpack.c.h.b16 %v8440
        %v9061 = vunpack.c.l.b16 %v8441
        %v9062 = vunpack.c.h.b16 %v8441
        %v9063 = vunpack.c.l.b16 %v8442
        %v9064 = vunpack.c.h.b16 %v8442
        %v9065 = vunpack.c.l.b16 %v8443
        %v9066 = vunpack.c.h.b16 %v8443
        %v9067 = vunpack.c.l.b16 %v8444
        %v9068 = vunpack.c.h.b16 %v8444
        %v9069 = vunpack.c.l.b16 %v8445
        %v9070 = vunpack.c.h.b16 %v8445
        %v9071 = vunpack.c.l.b16 %v8446
        %v9072 = vunpack.c.h.b16 %v8446
        %v9073 = vunpack.c.l.b16 %v8447
        %v9074 = vunpack.c.h.b16 %v8447
        %v9075 = vunpack.c.l.b16 %v8448
        %v9076 = vunpack.c.h.b16 %v8448
        %v9077 = vunpack.c.l.b16 %v8449
        %v9078 = vunpack.c.h.b16 %v8449
        %v9079 = vunpack.c.l.b16 %v8450
        %v9080 = vunpack.c.h.b16 %v8450
        %v9081 = vunpack.c.l.b16 %v8451
        %v9082 = vunpack.c.h.b16 %v8451
        %v9083 = vunpack.c.l.b16 %v8452
        %v9084 = vunpack.c.h.b16 %v8452
        %v9085 = vunpack.c.l.b16 %v8453
        %v9086 = vunpack.c.h.b16 %v8453
        %v9087 = vunpack.c.l.b16 %v8454
        %v9088 = vunpack.c.h.b16 %v8454
        %v9089 = vunpack.c.l.b16 %v8455
        %v9090 = vunpack.c.h.b16 %v8455
        %v9091 = vunpack.c.l.b16 %v8456
        %v9092 = vunpack.c.h.b16 %v8456
        %v9093 = vunpack.c.l.b16 %v8457
        %v9094 = vunpack.c.h.b16 %v8457
        %v9095 = vunpack.c.l.b16 %v8458
        %v9096 = vunpack.c.h.b16 %v8458
        %v9097 = vunpack.c.l.b16 %v8459
        %v9098 = vunpack.c.h.b16 %v8459
        %v9099 = vunpack.c.l.b16 %v8460
        %v9100 = vunpack.c.h.b16 %v8460
        %v9101 = vunpack.c.l.b16 %v8461
        %v9102 = vunpack.c.h.b16 %v8461
        %v9103 = vunpack.c.l.b16 %v8462
        %v9104 = vunpack.c.h.b16 %v8462
        %v9105 = vunpack.c.l.b16 %v8463
        %v9106 = vunpack.c.h.b16 %v8463
        %v9107 = vunpack.c.l.b16 %v8464
        %v9108 = vunpack.c.h.b16 %v8464
        %v9109 = vunpack.c.l.b16 %v8465
        %v9110 = vunpack.c.h.b16 %v8465
        %v9111 = vunpack.c.l.b16 %v8466
        %v9112 = vunpack.c.h.b16 %v8466
        %v9113 = vunpack.c.l.b16 %v8467
        %v9114 = vunpack.c.h.b16 %v8467
        %v9115 = vunpack.c.l.b16 %v8468
        %v9116 = vunpack.c.h.b16 %v8468
        %v9117 = vunpack.c.l.b16 %v8469
        %v9118 = vunpack.c.h.b16 %v8469
        %v9119 = vunpack.c.l.b16 %v8470
        %v9120 = vunpack.c.h.b16 %v8470
        %v9121 = vunpack.c.l.b16 %v8471
        %v9122 = vunpack.c.h.b16 %v8471
        %v9123 = vunpack.c.l.b16 %v8472
        %v9124 = vunpack.c.h.b16 %v8472
        %v9125 = vunpack.c.l.b16 %v8473
        %v9126 = vunpack.c.h.b16 %v8473
        %v9127 = vunpack.c.l.b16 %v8474
        %v9128 = vunpack.c.h.b16 %v8474
        %v9129 = vunpack.c.l.b16 %v8475
        %v9130 = vunpack.c.h.b16 %v8475
        %v9131 = vunpack.c.l.b16 %v8476
        %v9132 = vunpack.c.h.b16 %v8476
        %v9133 = vunpack.c.l.b16 %v8477
        %v9134 = vunpack.c.h.b16 %v8477
        %v9135 = vunpack.c.l.b16 %v8478
        %v9136 = vunpack.c.h.b16 %v8478
        %v9137 = vunpack.c.l.b16 %v8479
        %v9138 = vunpack.c.h.b16 %v8479
        %v9139 = vunpack.c.l.b16 %v8480
        %v9140 = vunpack.c.h.b16 %v8480
        %v9141 = vunpack.c.l.b16 %v8481
        %v9142 = vunpack.c.h.b16 %v8481
        %v9143 = vunpack.c.l.b16 %v8482
        %v9144 = vunpack.c.h.b16 %v8482
        %v9145 = vunpack.c.l.b16 %v8483
        %v9146 = vunpack.c.h.b16 %v8483
        %v9147 = vunpack.c.l.b16 %v8484
        %v9148 = vunpack.c.h.b16 %v8484
        %v9149 = vunpack.c.l.b16 %v8485
        %v9150 = vunpack.c.h.b16 %v8485
        %v9151 = vunpack.c.l.b16 %v8486
        %v9152 = vunpack.c.h.b16 %v8486
        %v9153 = vunpack.c.l.b16 %v8487
        %v9154 = vunpack.c.h.b16 %v8487
        %v9155 = vunpack.c.l.b16 %v8488
        %v9156 = vunpack.c.h.b16 %v8488
        %v9157 = vunpack.c.l.b16 %v8489
        %v9158 = vunpack.c.h.b16 %v8489
        %v9159 = vunpack.c.l.b16 %v8490
        %v9160 = vunpack.c.h.b16 %v8490
        %v9161 = vunpack.c.l.b16 %v8491
        %v9162 = vunpack.c.h.b16 %v8491
        %v9163 = vunpack.c.l.b16 %v8492
        %v9164 = vunpack.c.h.b16 %v8492
        %v9165 = vunpack.c.l.b16 %v8493
        %v9166 = vunpack.c.h.b16 %v8493
        %v9167 = vunpack.c.l.b16 %v8494
        %v9168 = vunpack.c.h.b16 %v8494
        %v9169 = vunpack.c.l.b16 %v8495
        %v9170 = vunpack.c.h.b16 %v8495
        %v9171 = vunpack.c.l.b16 %v8496
        %v9172 = vunpack.c.h.b16 %v8496
        %v9173 = vunpack.c.l.b16 %v8497
        %v9174 = vunpack.c.h.b16 %v8497
        %v9175 = vunpack.c.l.b16 %v8498
        %v9176 = vunpack.c.h.b16 %v8498
        %v9177 = vunpack.c.l.b16 %v8499
        %v9178 = vunpack.c.h.b16 %v8499
        %v9179 = vunpack.c.l.b16 %v8500
        %v9180 = vunpack.c.h.b16 %v8500
        %v9181 = vunpack.c.l.b16 %v8501
        %v9182 = vunpack.c.h.b16 %v8501
        %v9183 = vunpack.c.l.b16 %v8502
        %v9184 = vunpack.c.h.b16 %v8502
        %v9185 = vunpack.c.l.b16 %v8503
        %v9186 = vunpack.c.h.b16 %v8503
        %v9187 = vunpack.c.l.b16 %v8504
        %v9188 = vunpack.c.h.b16 %v8504
        %v9189 = vunpack.c.l.b16 %v8505
        %v9190 = vunpack.c.h.b16 %v8505
        %v9191 = vunpack.c.l.b16 %v8506
        %v9192 = vunpack.c.h.b16 %v8506
        %v9193 = vunpack.c.l.b16 %v8507
        %v9194 = vunpack.c.h.b16 %v8507
        %v9195 = vunpack.c.l.b16 %v8508
        %v9196 = vunpack.c.h.b16 %v8508
        %v9197 = vunpack.c.l.b16 %v8509
        %v9198 = vunpack.c.h.b16 %v8509
        %v9199 = vunpack.c.l.b16 %v8510
        %v9200 = vunpack.c.h.b16 %v8510
        %v9201 = vunpack.c.l.b16 %v8511
        %v9202 = vunpack.c.h.b16 %v8511
        %v9203 = vunpack.c.l.b16 %v8512
        %v9204 = vunpack.c.h.b16 %v8512
        %v9205 = vunpack.c.l.b16 %v8513
        %v9206 = vunpack.c.h.b16 %v8513
        %v9207 = vunpack.c.l.b16 %v8514
        %v9208 = vunpack.c.h.b16 %v8514
        %v9209 = vunpack.c.l.b16 %v8515
        %v9210 = vunpack.c.h.b16 %v8515
        %v9211 = vunpack.c.l.b16 %v8516
        %v9212 = vunpack.c.h.b16 %v8516
        %v9213 = vunpack.c.l.b16 %v8517
        %v9214 = vunpack.c.h.b16 %v8517
        %v9215 = vunpack.c.l.b16 %v8518
        %v9216 = vunpack.c.h.b16 %v8518
        %v9217 = vunpack.c.l.b16 %v8519
        %v9218 = vunpack.c.h.b16 %v8519
        %v9219 = vunpack.c.l.b16 %v8520
        %v9220 = vunpack.c.h.b16 %v8520
        %v9221 = vunpack.c.l.b16 %v8521
        %v9222 = vunpack.c.h.b16 %v8521
        %v9223 = vunpack.c.l.b16 %v8522
        %v9224 = vunpack.c.h.b16 %v8522
        %v9225 = vunpack.c.l.b16 %v8523
        %v9226 = vunpack.c.h.b16 %v8523
        %v9227 = vunpack.c.l.b16 %v8524
        %v9228 = vunpack.c.h.b16 %v8524
        %v9229 = vunpack.c.l.b16 %v8525
        %v9230 = vunpack.c.h.b16 %v8525
        %v9231 = vunpack.c.l.b16 %v8526
        %v9232 = vunpack.c.h.b16 %v8526
        %v9233 = vunpack.c.l.b16 %v8527
        %v9234 = vunpack.c.h.b16 %v8527
        %v9235 = vunpack.c.l.b16 %v8528
        %v9236 = vunpack.c.h.b16 %v8528
        %v9237 = vunpack.c.l.b16 %v8529
        %v9238 = vunpack.c.h.b16 %v8529
        %v9239 = vunpack.c.l.b16 %v8530
        %v9240 = vunpack.c.h.b16 %v8530
        %v9241 = vunpack.c.l.b16 %v8531
        %v9242 = vunpack.c.h.b16 %v8531
        %v9243 = vunpack.c.l.b16 %v8532
        %v9244 = vunpack.c.h.b16 %v8532
        %v9245 = vunpack.c.l.b16 %v8533
        %v9246 = vunpack.c.h.b16 %v8533
        %v9247 = vunpack.c.l.b16 %v8534
        %v9248 = vunpack.c.h.b16 %v8534
        %v9249 = vunpack.c.l.b16 %v8535
        %v9250 = vunpack.c.h.b16 %v8535
        %v9251 = vunpack.c.l.b16 %v8536
        %v9252 = vunpack.c.h.b16 %v8536
        %v9253 = vunpack.c.l.b16 %v8537
        %v9254 = vunpack.c.h.b16 %v8537
        %v9255 = vunpack.c.l.b16 %v8538
        %v9256 = vunpack.c.h.b16 %v8538
        %v9257 = vunpack.c.l.b16 %v8539
        %v9258 = vunpack.c.h.b16 %v8539
        %v9259 = vunpack.c.l.b16 %v8540
        %v9260 = vunpack.c.h.b16 %v8540
        %v9261 = vunpack.c.l.b16 %v8541
        %v9262 = vunpack.c.h.b16 %v8541
        %v9263 = vunpack.c.l.b16 %v8542
        %v9264 = vunpack.c.h.b16 %v8542
        %v9265 = vunpack.c.l.b16 %v8543
        %v9266 = vunpack.c.h.b16 %v8543
        %v9267 = vunpack.c.l.b16 %v8544
        %v9268 = vunpack.c.h.b16 %v8544
        %v9269 = vunpack.c.l.b16 %v8545
        %v9270 = vunpack.c.h.b16 %v8545
        %v9271 = vunpack.c.l.b16 %v8546
        %v9272 = vunpack.c.h.b16 %v8546
        %v9273 = vunpack.c.l.b16 %v8547
        %v9274 = vunpack.c.h.b16 %v8547
        %v9275 = vunpack.c.l.b16 %v8548
        %v9276 = vunpack.c.h.b16 %v8548
        %v9277 = vunpack.c.l.b16 %v8549
        %v9278 = vunpack.c.h.b16 %v8549
        %v9279 = vunpack.c.l.b16 %v8550
        %v9280 = vunpack.c.h.b16 %v8550
        %v9281 = vunpack.c.l.b16 %v8551
        %v9282 = vunpack.c.h.b16 %v8551
        %v9283 = vunpack.c.l.b16 %v8552
        %v9284 = vunpack.c.h.b16 %v8552
        %v9285 = vunpack.c.l.b16 %v8553
        %v9286 = vunpack.c.h.b16 %v8553
        %v9287 = vunpack.c.l.b16 %v8554
        %v9288 = vunpack.c.h.b16 %v8554
        %v9289 = vunpack.c.l.b16 %v8555
        %v9290 = vunpack.c.h.b16 %v8555
        %v9291 = vunpack.c.l.b16 %v8556
        %v9292 = vunpack.c.h.b16 %v8556
        %v9293 = vunpack.c.l.b16 %v8557
        %v9294 = vunpack.c.h.b16 %v8557
        %v9295 = vunpack.c.l.b16 %v8558
        %v9296 = vunpack.c.h.b16 %v8558
        %v9297 = vunpack.c.l.b16 %v8559
        %v9298 = vunpack.c.h.b16 %v8559
        %v9299 = vunpack.c.l.b16 %v8560
        %v9300 = vunpack.c.h.b16 %v8560
        %v9301 = vunpack.c.l.b16 %v8561
        %v9302 = vunpack.c.h.b16 %v8561
        %v9303 = vunpack.c.l.b16 %v8562
        %v9304 = vunpack.c.h.b16 %v8562
        %v9305 = vunpack.c.l.b16 %v8563
        %v9306 = vunpack.c.h.b16 %v8563
        %v9307 = vunpack.c.l.b16 %v8564
        %v9308 = vunpack.c.h.b16 %v8564
        %v9309 = vunpack.c.l.b16 %v8565
        %v9310 = vunpack.c.h.b16 %v8565
        %v9311 = vunpack.c.l.b16 %v8566
        %v9312 = vunpack.c.h.b16 %v8566
        %v9313 = vunpack.c.l.b16 %v8567
        %v9314 = vunpack.c.h.b16 %v8567
        %v9315 = vunpack.c.l.b16 %v8568
        %v9316 = vunpack.c.h.b16 %v8568
        %v9317 = vunpack.c.l.b16 %v8569
        %v9318 = vunpack.c.h.b16 %v8569
        %v9319 = vunpack.c.l.b16 %v8570
        %v9320 = vunpack.c.h.b16 %v8570
        %v9321 = vunpack.c.l.b16 %v8571
        %v9322 = vunpack.c.h.b16 %v8571
        %v9323 = vunpack.c.l.b16 %v8572
        %v9324 = vunpack.c.h.b16 %v8572
        %v9325 = vunpack.c.l.b16 %v8573
        %v9326 = vunpack.c.h.b16 %v8573
        %v9327 = vunpack.c.l.b16 %v8574
        %v9328 = vunpack.c.h.b16 %v8574
        %v9329 = vunpack.c.l.b16 %v8575
        %v9330 = vunpack.c.h.b16 %v8575
        %v9331 = vunpack.c.l.b16 %v8576
        %v9332 = vunpack.c.h.b16 %v8576
        %v9333 = vunpack.c.l.b16 %v8577
        %v9334 = vunpack.c.h.b16 %v8577
        %v9335 = vunpack.c.l.b16 %v8578
        %v9336 = vunpack.c.h.b16 %v8578
        %v9337 = vunpack.c.l.b16 %v8579
        %v9338 = vunpack.c.h.b16 %v8579
        %v9339 = vunpack.c.l.b16 %v8580
        %v9340 = vunpack.c.h.b16 %v8580
        %v9341 = vunpack.c.l.b16 %v8581
        %v9342 = vunpack.c.h.b16 %v8581
        %v9343 = vunpack.c.l.b16 %v8582
        %v9344 = vunpack.c.h.b16 %v8582
        %v9345 = vunpack.c.l.b16 %v8583
        %v9346 = vunpack.c.h.b16 %v8583
        %v9347 = vunpack.c.l.b16 %v8584
        %v9348 = vunpack.c.h.b16 %v8584
        %v9349 = vunpack.c.l.b16 %v8585
        %v9350 = vunpack.c.h.b16 %v8585
        %v9351 = vunpack.c.l.b16 %v8586
        %v9352 = vunpack.c.h.b16 %v8586
        %v9353 = vunpack.c.l.b16 %v8587
        %v9354 = vunpack.c.h.b16 %v8587
        %v9355 = vunpack.c.l.b16 %v8588
        %v9356 = vunpack.c.h.b16 %v8588
        %v9357 = vunpack.c.l.b16 %v8589
        %v9358 = vunpack.c.h.b16 %v8589
        %v9359 = vpack.c.b16 %v8851, %v8847
        %v9360 = vpack.c.b16 %v8852, %v8848
        %v9361 = vpack.c.b16 %v8853, %v8849
        %v9362 = vpack.c.b16 %v8854, %v8850
        %v9363 = vpack.c.b16 %v8859, %v8855
        %v9364 = vpack.c.b16 %v8860, %v8856
        %v9365 = vpack.c.b16 %v8861, %v8857
        %v9366 = vpack.c.b16 %v8862, %v8858
        %v9367 = vpack.c.b16 %v8867, %v8863
        %v9368 = vpack.c.b16 %v8868, %v8864
        %v9369 = vpack.c.b16 %v8869, %v8865
        %v9370 = vpack.c.b16 %v8870, %v8866
        %v9371 = vpack.c.b16 %v8875, %v8871
        %v9372 = vpack.c.b16 %v8876, %v8872
        %v9373 = vpack.c.b16 %v8877, %v8873
        %v9374 = vpack.c.b16 %v8878, %v8874
        %v9375 = vpack.c.b16 %v8883, %v8879
        %v9376 = vpack.c.b16 %v8884, %v8880
        %v9377 = vpack.c.b16 %v8885, %v8881
        %v9378 = vpack.c.b16 %v8886, %v8882
        %v9379 = vpack.c.b16 %v8891, %v8887
        %v9380 = vpack.c.b16 %v8892, %v8888
        %v9381 = vpack.c.b16 %v8893, %v8889
        %v9382 = vpack.c.b16 %v8894, %v8890
        %v9383 = vpack.c.b16 %v8899, %v8895
        %v9384 = vpack.c.b16 %v8900, %v8896
        %v9385 = vpack.c.b16 %v8901, %v8897
        %v9386 = vpack.c.b16 %v8902, %v8898
        %v9387 = vpack.c.b16 %v8907, %v8903
        %v9388 = vpack.c.b16 %v8908, %v8904
        %v9389 = vpack.c.b16 %v8909, %v8905
        %v9390 = vpack.c.b16 %v8910, %v8906
        %v9391 = vpack.c.b16 %v8915, %v8911
        %v9392 = vpack.c.b16 %v8916, %v8912
        %v9393 = vpack.c.b16 %v8917, %v8913
        %v9394 = vpack.c.b16 %v8918, %v8914
        %v9395 = vpack.c.b16 %v8923, %v8919
        %v9396 = vpack.c.b16 %v8924, %v8920
        %v9397 = vpack.c.b16 %v8925, %v8921
        %v9398 = vpack.c.b16 %v8926, %v8922
        %v9399 = vpack.c.b16 %v8931, %v8927
        %v9400 = vpack.c.b16 %v8932, %v8928
        %v9401 = vpack.c.b16 %v8933, %v8929
        %v9402 = vpack.c.b16 %v8934, %v8930
        %v9403 = vpack.c.b16 %v8939, %v8935
        %v9404 = vpack.c.b16 %v8940, %v8936
        %v9405 = vpack.c.b16 %v8941, %v8937
        %v9406 = vpack.c.b16 %v8942, %v8938
        %v9407 = vpack.c.b16 %v8947, %v8943
        %v9408 = vpack.c.b16 %v8948, %v8944
        %v9409 = vpack.c.b16 %v8949, %v8945
        %v9410 = vpack.c.b16 %v8950, %v8946
        %v9411 = vpack.c.b16 %v8955, %v8951
        %v9412 = vpack.c.b16 %v8956, %v8952
        %v9413 = vpack.c.b16 %v8957, %v8953
        %v9414 = vpack.c.b16 %v8958, %v8954
        %v9415 = vpack.c.b16 %v8963, %v8959
        %v9416 = vpack.c.b16 %v8964, %v8960
        %v9417 = vpack.c.b16 %v8965, %v8961
        %v9418 = vpack.c.b16 %v8966, %v8962
        %v9419 = vpack.c.b16 %v8971, %v8967
        %v9420 = vpack.c.b16 %v8972, %v8968
        %v9421 = vpack.c.b16 %v8973, %v8969
        %v9422 = vpack.c.b16 %v8974, %v8970
        %v9423 = vpack.c.b16 %v8979, %v8975
        %v9424 = vpack.c.b16 %v8980, %v8976
        %v9425 = vpack.c.b16 %v8981, %v8977
        %v9426 = vpack.c.b16 %v8982, %v8978
        %v9427 = vpack.c.b16 %v8987, %v8983
        %v9428 = vpack.c.b16 %v8988, %v8984
        %v9429 = vpack.c.b16 %v8989, %v8985
        %v9430 = vpack.c.b16 %v8990, %v8986
        %v9431 = vpack.c.b16 %v8995, %v8991
        %v9432 = vpack.c.b16 %v8996, %v8992
        %v9433 = vpack.c.b16 %v8997, %v8993
        %v9434 = vpack.c.b16 %v8998, %v8994
        %v9435 = vpack.c.b16 %v9003, %v8999
        %v9436 = vpack.c.b16 %v9004, %v9000
        %v9437 = vpack.c.b16 %v9005, %v9001
        %v9438 = vpack.c.b16 %v9006, %v9002
        %v9439 = vpack.c.b16 %v9011, %v9007
        %v9440 = vpack.c.b16 %v9012, %v9008
        %v9441 = vpack.c.b16 %v9013, %v9009
        %v9442 = vpack.c.b16 %v9014, %v9010
        %v9443 = vpack.c.b16 %v9019, %v9015
        %v9444 = vpack.c.b16 %v9020, %v9016
        %v9445 = vpack.c.b16 %v9021, %v9017
        %v9446 = vpack.c.b16 %v9022, %v9018
        %v9447 = vpack.c.b16 %v9027, %v9023
        %v9448 = vpack.c.b16 %v9028, %v9024
        %v9449 = vpack.c.b16 %v9029, %v9025
        %v9450 = vpack.c.b16 %v9030, %v9026
        %v9451 = vpack.c.b16 %v9035, %v9031
        %v9452 = vpack.c.b16 %v9036, %v9032
        %v9453 = vpack.c.b16 %v9037, %v9033
        %v9454 = vpack.c.b16 %v9038, %v9034
        %v9455 = vpack.c.b16 %v9043, %v9039
        %v9456 = vpack.c.b16 %v9044, %v9040
        %v9457 = vpack.c.b16 %v9045, %v9041
        %v9458 = vpack.c.b16 %v9046, %v9042
        %v9459 = vpack.c.b16 %v9051, %v9047
        %v9460 = vpack.c.b16 %v9052, %v9048
        %v9461 = vpack.c.b16 %v9053, %v9049
        %v9462 = vpack.c.b16 %v9054, %v9050
        %v9463 = vpack.c.b16 %v9059, %v9055
        %v9464 = vpack.c.b16 %v9060, %v9056
        %v9465 = vpack.c.b16 %v9061, %v9057
        %v9466 = vpack.c.b16 %v9062, %v9058
        %v9467 = vpack.c.b16 %v9067, %v9063
        %v9468 = vpack.c.b16 %v9068, %v9064
        %v9469 = vpack.c.b16 %v9069, %v9065
        %v9470 = vpack.c.b16 %v9070, %v9066
        %v9471 = vpack.c.b16 %v9075, %v9071
        %v9472 = vpack.c.b16 %v9076, %v9072
        %v9473 = vpack.c.b16 %v9077, %v9073
        %v9474 = vpack.c.b16 %v9078, %v9074
        %v9475 = vpack.c.b16 %v9083, %v9079
        %v9476 = vpack.c.b16 %v9084, %v9080
        %v9477 = vpack.c.b16 %v9085, %v9081
        %v9478 = vpack.c.b16 %v9086, %v9082
        %v9479 = vpack.c.b16 %v9091, %v9087
        %v9480 = vpack.c.b16 %v9092, %v9088
        %v9481 = vpack.c.b16 %v9093, %v9089
        %v9482 = vpack.c.b16 %v9094, %v9090
        %v9483 = vpack.c.b16 %v9099, %v9095
        %v9484 = vpack.c.b16 %v9100, %v9096
        %v9485 = vpack.c.b16 %v9101, %v9097
        %v9486 = vpack.c.b16 %v9102, %v9098
        %v9487 = vpack.c.b16 %v9107, %v9103
        %v9488 = vpack.c.b16 %v9108, %v9104
        %v9489 = vpack.c.b16 %v9109, %v9105
        %v9490 = vpack.c.b16 %v9110, %v9106
        %v9491 = vpack.c.b16 %v9115, %v9111
        %v9492 = vpack.c.b16 %v9116, %v9112
        %v9493 = vpack.c.b16 %v9117, %v9113
        %v9494 = vpack.c.b16 %v9118, %v9114
        %v9495 = vpack.c.b16 %v9123, %v9119
        %v9496 = vpack.c.b16 %v9124, %v9120
        %v9497 = vpack.c.b16 %v9125, %v9121
        %v9498 = vpack.c.b16 %v9126, %v9122
        %v9499 = vpack.c.b16 %v9131, %v9127
        %v9500 = vpack.c.b16 %v9132, %v9128
        %v9501 = vpack.c.b16 %v9133, %v9129
        %v9502 = vpack.c.b16 %v9134, %v9130
        %v9503 = vpack.c.b16 %v9139, %v9135
        %v9504 = vpack.c.b16 %v9140, %v9136
        %v9505 = vpack.c.b16 %v9141, %v9137
        %v9506 = vpack.c.b16 %v9142, %v9138
        %v9507 = vpack.c.b16 %v9147, %v9143
        %v9508 = vpack.c.b16 %v9148, %v9144
        %v9509 = vpack.c.b16 %v9149, %v9145
        %v9510 = vpack.c.b16 %v9150, %v9146
        %v9511 = vpack.c.b16 %v9155, %v9151
        %v9512 = vpack.c.b16 %v9156, %v9152
        %v9513 = vpack.c.b16 %v9157, %v9153
        %v9514 = vpack.c.b16 %v9158, %v9154
        %v9515 = vpack.c.b16 %v9163, %v9159
        %v9516 = vpack.c.b16 %v9164, %v9160
        %v9517 = vpack.c.b16 %v9165, %v9161
        %v9518 = vpack.c.b16 %v9166, %v9162
        %v9519 = vpack.c.b16 %v9171, %v9167
        %v9520 = vpack.c.b16 %v9172, %v9168
        %v9521 = vpack.c.b16 %v9173, %v9169
        %v9522 = vpack.c.b16 %v9174, %v9170
        %v9523 = vpack.c.b16 %v9179, %v9175
        %v9524 = vpack.c.b16 %v9180, %v9176
        %v9525 = vpack.c.b16 %v9181, %v9177
        %v9526 = vpack.c.b16 %v9182, %v9178
        %v9527 = vpack.c.b16 %v9187, %v9183
        %v9528 = vpack.c.b16 %v9188, %v9184
        %v9529 = vpack.c.b16 %v9189, %v9185
        %v9530 = vpack.c.b16 %v9190, %v9186
        %v9531 = vpack.c.b16 %v9195, %v9191
        %v9532 = vpack.c.b16 %v9196, %v9192
        %v9533 = vpack.c.b16 %v9197, %v9193
        %v9534 = vpack.c.b16 %v9198, %v9194
        %v9535 = vpack.c.b16 %v9203, %v9199
        %v9536 = vpack.c.b16 %v9204, %v9200
        %v9537 = vpack.c.b16 %v9205, %v9201
        %v9538 = vpack.c.b16 %v9206, %v9202
        %v9539 = vpack.c.b16 %v9211, %v9207
        %v9540 = vpack.c.b16 %v9212, %v9208
        %v9541 = vpack.c.b16 %v9213, %v9209
        %v9542 = vpack.c.b16 %v9214, %v9210
        %v9543 = vpack.c.b16 %v9219, %v9215
        %v9544 = vpack.c.b16 %v9220, %v9216
        %v9545 = vpack.c.b16 %v9221, %v9217
        %v9546 = vpack.c.b16 %v9222, %v9218
        %v9547 = vpack.c.b16 %v9227, %v9223
        %v9548 = vpack.c.b16 %v9228, %v9224
        %v9549 = vpack.c.b16 %v9229, %v9225
        %v9550 = vpack.c.b16 %v9230, %v9226
        %v9551 = vpack.c.b16 %v9235, %v9231
        %v9552 = vpack.c.b16 %v9236, %v9232
        %v9553 = vpack.c.b16 %v9237, %v9233
        %v9554 = vpack.c.b16 %v9238, %v9234
        %v9555 = vpack.c.b16 %v9243, %v9239
        %v9556 = vpack.c.b16 %v9244, %v9240
        %v9557 = vpack.c.b16 %v9245, %v9241
        %v9558 = vpack.c.b16 %v9246, %v9242
        %v9559 = vpack.c.b16 %v9251, %v9247
        %v9560 = vpack.c.b16 %v9252, %v9248
        %v9561 = vpack.c.b16 %v9253, %v9249
        %v9562 = vpack.c.b16 %v9254, %v9250
        %v9563 = vpack.c.b16 %v9259, %v9255
        %v9564 = vpack.c.b16 %v9260, %v9256
        %v9565 = vpack.c.b16 %v9261, %v9257
        %v9566 = vpack.c.b16 %v9262, %v9258
        %v9567 = vpack.c.b16 %v9267, %v9263
        %v9568 = vpack.c.b16 %v9268, %v9264
        %v9569 = vpack.c.b16 %v9269, %v9265
        %v9570 = vpack.c.b16 %v9270, %v9266
        %v9571 = vpack.c.b16 %v9275, %v9271
        %v9572 = vpack.c.b16 %v9276, %v9272
        %v9573 = vpack.c.b16 %v9277, %v9273
        %v9574 = vpack.c.b16 %v9278, %v9274
        %v9575 = vpack.c.b16 %v9283, %v9279
        %v9576 = vpack.c.b16 %v9284, %v9280
        %v9577 = vpack.c.b16 %v9285, %v9281
        %v9578 = vpack.c.b16 %v9286, %v9282
        %v9579 = vpack.c.b16 %v9291, %v9287
        %v9580 = vpack.c.b16 %v9292, %v9288
        %v9581 = vpack.c.b16 %v9293, %v9289
        %v9582 = vpack.c.b16 %v9294, %v9290
        %v9583 = vpack.c.b16 %v9299, %v9295
        %v9584 = vpack.c.b16 %v9300, %v9296
        %v9585 = vpack.c.b16 %v9301, %v9297
        %v9586 = vpack.c.b16 %v9302, %v9298
        %v9587 = vpack.c.b16 %v9307, %v9303
        %v9588 = vpack.c.b16 %v9308, %v9304
        %v9589 = vpack.c.b16 %v9309, %v9305
        %v9590 = vpack.c.b16 %v9310, %v9306
        %v9591 = vpack.c.b16 %v9315, %v9311
        %v9592 = vpack.c.b16 %v9316, %v9312
        %v9593 = vpack.c.b16 %v9317, %v9313
        %v9594 = vpack.c.b16 %v9318, %v9314
        %v9595 = vpack.c.b16 %v9323, %v9319
        %v9596 = vpack.c.b16 %v9324, %v9320
        %v9597 = vpack.c.b16 %v9325, %v9321
        %v9598 = vpack.c.b16 %v9326, %v9322
        %v9599 = vpack.c.b16 %v9331, %v9327
        %v9600 = vpack.c.b16 %v9332, %v9328
        %v9601 = vpack.c.b16 %v9333, %v9329
        %v9602 = vpack.c.b16 %v9334, %v9330
        %v9603 = vpack.c.b16 %v9339, %v9335
        %v9604 = vpack.c.b16 %v9340, %v9336
        %v9605 = vpack.c.b16 %v9341, %v9337
        %v9606 = vpack.c.b16 %v9342, %v9338
        %v9607 = vpack.c.b16 %v9347, %v9343
        %v9608 = vpack.c.b16 %v9348, %v9344
        %v9609 = vpack.c.b16 %v9349, %v9345
        %v9610 = vpack.c.b16 %v9350, %v9346
        %v9611 = vpack.c.b16 %v9355, %v9351
        %v9612 = vpack.c.b16 %v9356, %v9352
        %v9613 = vpack.c.b16 %v9357, %v9353
        %v9614 = vpack.c.b16 %v9358, %v9354
        %v9872 = vlaneseq
        %v9873 = vshrl.u32 %v9872, 7
        %v9874 = vsub.s32 0, %v9873
        %v9875 = vrot.slane %v8590, %v9874
        %v9876 = vlaneseq
        %v9877 = vshrl.u32 %v9876, 7
        %v9878 = vsub.s32 1, %v9877
        %v9879 = vrot.slane %v8590, %v9878
        %v9880 = vlaneseq
        %v9881 = vshrl.u32 %v9880, 7
        %v9882 = vsub.s32 2, %v9881
        %v9883 = vrot.slane %v8590, %v9882
        %v9884 = vlaneseq
        %v9885 = vshrl.u32 %v9884, 7
        %v9886 = vsub.s32 3, %v9885
        %v9887 = vrot.slane %v8590, %v9886
        %9892 = vmatprep.subr.bf16.mxu0 %v9388
        %9893 = vmatpush1.bf16.msra.mxu0 %v9387
        %9894 = vmatprep.subr.bf16.mxu0 %v9384
        %9895 = vmatpush1.bf16.msra.mxu0 %v9383
        %9896 = vmatprep.subr.bf16.mxu0 %v9380
        %9897 = vmatpush1.bf16.msra.mxu0 %v9379
        %9898 = vmatprep.subr.bf16.mxu0 %v9376
        %9899 = vmatpush1.bf16.msra.mxu0 %v9375
        %9900 = vmatprep.subr.bf16.mxu0 %v9372
        %9901 = vmatpush1.bf16.msra.mxu0 %v9371
        %9902 = vmatprep.subr.bf16.mxu0 %v9368
        %9903 = vmatpush1.bf16.msra.mxu0 %v9367
        %9904 = vmatprep.subr.bf16.mxu0 %v9364
        %9905 = vmatpush1.bf16.msra.mxu0 %v9363
        %9906 = vmatprep.subr.bf16.mxu0 %v9360
        %9907 = vmatpush1.bf16.msra.mxu0 %v9359
        %9908 = vmatprep.subr.bf16.mxu0 %v9420
        %9909 = vmatpush2.bf16.msra.mxu0 %v9419
        %9910 = vmatprep.subr.bf16.mxu0 %v9416
        %9911 = vmatpush2.bf16.msra.mxu0 %v9415
        %9912 = vmatprep.subr.bf16.mxu0 %v9412
        %9913 = vmatpush2.bf16.msra.mxu0 %v9411
        %9914 = vmatprep.subr.bf16.mxu0 %v9408
        %9915 = vmatpush2.bf16.msra.mxu0 %v9407
        %9916 = vmatprep.subr.bf16.mxu0 %v9404
        %9917 = vmatpush2.bf16.msra.mxu0 %v9403
        %9918 = vmatprep.subr.bf16.mxu0 %v9400
        %9919 = vmatpush2.bf16.msra.mxu0 %v9399
        %9920 = vmatprep.subr.bf16.mxu0 %v9396
        %9921 = vmatpush2.bf16.msra.mxu0 %v9395
        %9922 = vmatprep.subr.bf16.mxu0 %v9392
        %9923 = vmatpush2.bf16.msra.mxu0 %v9391
        %9924 = vmatprep.mubr.bf16.mxu0 %v8327
        %9925 = vmatmul.mubr.bf16.gmra.mxu0 %v8326
        %v9926 = vpop.f32.mrf.mxu0
        %v9927 = vadd.f32 %v9875, %v9926
        %v9928 = vpop.f32.mrf.mxu0
        %v9929 = vadd.f32 %v9879, %v9928
        %v9930 = vpop.f32.mrf.mxu0
        %v9931 = vpop.f32.mrf.mxu0
        %9932 = vdwg.mxu0
        %9933 = vmatprep.subr.bf16.mxu0 %v9452
        %9934 = vmatpush1.bf16.msra.mxu0 %v9451
        %9935 = vmatprep.subr.bf16.mxu0 %v9448
        %9936 = vmatpush1.bf16.msra.mxu0 %v9447
        %9937 = vmatprep.subr.bf16.mxu0 %v9444
        %9938 = vmatpush1.bf16.msra.mxu0 %v9443
        %9939 = vmatprep.subr.bf16.mxu0 %v9440
        %9940 = vmatpush1.bf16.msra.mxu0 %v9439
        %9941 = vmatprep.subr.bf16.mxu0 %v9436
        %9942 = vmatpush1.bf16.msra.mxu0 %v9435
        %9943 = vmatprep.subr.bf16.mxu0 %v9432
        %9944 = vmatpush1.bf16.msra.mxu0 %v9431
        %9945 = vmatprep.subr.bf16.mxu0 %v9428
        %9946 = vmatpush1.bf16.msra.mxu0 %v9427
        %9947 = vmatprep.subr.bf16.mxu0 %v9424
        %9948 = vmatpush1.bf16.msra.mxu0 %v9423
        %9949 = vmatprep.subr.bf16.mxu0 %v9484
        %9950 = vmatpush2.bf16.msra.mxu0 %v9483
        %9951 = vmatprep.subr.bf16.mxu0 %v9480
        %9952 = vmatpush2.bf16.msra.mxu0 %v9479
        %9953 = vmatprep.subr.bf16.mxu0 %v9476
        %9954 = vmatpush2.bf16.msra.mxu0 %v9475
        %9955 = vmatprep.subr.bf16.mxu0 %v9472
        %9956 = vmatpush2.bf16.msra.mxu0 %v9471
        %9957 = vmatprep.subr.bf16.mxu0 %v9468
        %9958 = vmatpush2.bf16.msra.mxu0 %v9467
        %9959 = vmatprep.subr.bf16.mxu0 %v9464
        %9960 = vmatpush2.bf16.msra.mxu0 %v9463
        %9961 = vmatprep.subr.bf16.mxu0 %v9460
        %9962 = vmatpush2.bf16.msra.mxu0 %v9459
        %9963 = vmatprep.subr.bf16.mxu0 %v9456
        %9964 = vmatpush2.bf16.msra.mxu0 %v9455
        %9965 = vmatprep.mubr.bf16.mxu0 %v8329
        %9966 = vmatmul.mubr.bf16.gmra.mxu0 %v8328
        %v9967 = vpop.f32.mrf.mxu0
        %v9968 = vadd.f32 %v9927, %v9967
        %v9969 = vpop.f32.mrf.mxu0
        %v9970 = vadd.f32 %v9929, %v9969
        %v9971 = vpop.f32.mrf.mxu0
        %v9972 = vpop.f32.mrf.mxu0
        %9973 = vdwg.mxu0
        %9974 = vmatprep.subr.bf16.mxu0 %v9516
        %9975 = vmatpush1.bf16.msra.mxu0 %v9515
        %9976 = vmatprep.subr.bf16.mxu0 %v9512
        %9977 = vmatpush1.bf16.msra.mxu0 %v9511
        %9978 = vmatprep.subr.bf16.mxu0 %v9508
        %9979 = vmatpush1.bf16.msra.mxu0 %v9507
        %9980 = vmatprep.subr.bf16.mxu0 %v9504
        %9981 = vmatpush1.bf16.msra.mxu0 %v9503
        %9982 = vmatprep.subr.bf16.mxu0 %v9500
        %9983 = vmatpush1.bf16.msra.mxu0 %v9499
        %9984 = vmatprep.subr.bf16.mxu0 %v9496
        %9985 = vmatpush1.bf16.msra.mxu0 %v9495
        %9986 = vmatprep.subr.bf16.mxu0 %v9492
        %9987 = vmatpush1.bf16.msra.mxu0 %v9491
        %9988 = vmatprep.subr.bf16.mxu0 %v9488
        %9989 = vmatpush1.bf16.msra.mxu0 %v9487
        %9990 = vmatprep.subr.bf16.mxu0 %v9548
        %9991 = vmatpush2.bf16.msra.mxu0 %v9547
        %9992 = vmatprep.subr.bf16.mxu0 %v9544
        %9993 = vmatpush2.bf16.msra.mxu0 %v9543
        %9994 = vmatprep.subr.bf16.mxu0 %v9540
        %9995 = vmatpush2.bf16.msra.mxu0 %v9539
        %9996 = vmatprep.subr.bf16.mxu0 %v9536
        %9997 = vmatpush2.bf16.msra.mxu0 %v9535
        %9998 = vmatprep.subr.bf16.mxu0 %v9532
        %9999 = vmatpush2.bf16.msra.mxu0 %v9531
        %10000 = vmatprep.subr.bf16.mxu0 %v9528
        %10001 = vmatpush2.bf16.msra.mxu0 %v9527
        %10002 = vmatprep.subr.bf16.mxu0 %v9524
        %10003 = vmatpush2.bf16.msra.mxu0 %v9523
        %10004 = vmatprep.subr.bf16.mxu0 %v9520
        %10005 = vmatpush2.bf16.msra.mxu0 %v9519
        %10006 = vmatprep.mubr.bf16.mxu0 %v8331
        %10007 = vmatmul.mubr.bf16.gmra.mxu0 %v8330
        %v10008 = vpop.f32.mrf.mxu0
        %v10009 = vadd.f32 %v9968, %v10008
        %v10010 = vpop.f32.mrf.mxu0
        %v10011 = vadd.f32 %v9970, %v10010
        %v10012 = vpop.f32.mrf.mxu0
        %v10013 = vpop.f32.mrf.mxu0
        %10014 = vdwg.mxu0
        %10015 = vmatprep.subr.bf16.mxu0 %v9580
        %10016 = vmatpush1.bf16.msra.mxu0 %v9579
        %10017 = vmatprep.subr.bf16.mxu0 %v9576
        %10018 = vmatpush1.bf16.msra.mxu0 %v9575
        %10019 = vmatprep.subr.bf16.mxu0 %v9572
        %10020 = vmatpush1.bf16.msra.mxu0 %v9571
        %10021 = vmatprep.subr.bf16.mxu0 %v9568
        %10022 = vmatpush1.bf16.msra.mxu0 %v9567
        %10023 = vmatprep.subr.bf16.mxu0 %v9564
        %10024 = vmatpush1.bf16.msra.mxu0 %v9563
        %10025 = vmatprep.subr.bf16.mxu0 %v9560
        %10026 = vmatpush1.bf16.msra.mxu0 %v9559
        %10027 = vmatprep.subr.bf16.mxu0 %v9556
        %10028 = vmatpush1.bf16.msra.mxu0 %v9555
        %10029 = vmatprep.subr.bf16.mxu0 %v9552
        %10030 = vmatpush1.bf16.msra.mxu0 %v9551
        %10031 = vmatprep.subr.bf16.mxu0 %v9612
        %10032 = vmatpush2.bf16.msra.mxu0 %v9611
        %10033 = vmatprep.subr.bf16.mxu0 %v9608
        %10034 = vmatpush2.bf16.msra.mxu0 %v9607
        %10035 = vmatprep.subr.bf16.mxu0 %v9604
        %10036 = vmatpush2.bf16.msra.mxu0 %v9603
        %10037 = vmatprep.subr.bf16.mxu0 %v9600
        %10038 = vmatpush2.bf16.msra.mxu0 %v9599
        %10039 = vmatprep.subr.bf16.mxu0 %v9596
        %10040 = vmatpush2.bf16.msra.mxu0 %v9595
        %10041 = vmatprep.subr.bf16.mxu0 %v9592
        %10042 = vmatpush2.bf16.msra.mxu0 %v9591
        %10043 = vmatprep.subr.bf16.mxu0 %v9588
        %10044 = vmatpush2.bf16.msra.mxu0 %v9587
        %10045 = vmatprep.subr.bf16.mxu0 %v9584
        %10046 = vmatpush2.bf16.msra.mxu0 %v9583
        %10047 = vmatprep.mubr.bf16.mxu0 %v8333
        %10048 = vmatmul.mubr.bf16.gmra.mxu0 %v8332
        %v10049 = vpop.f32.mrf.mxu0
        %v10050 = vadd.f32 %v10009, %v10049
        %v10051 = vpop.f32.mrf.mxu0
        %v10052 = vadd.f32 %v10011, %v10051
        %v10053 = vpop.f32.mrf.mxu0
        %v10054 = vpop.f32.mrf.mxu0
        %10055 = vdwg.mxu0
        %10056 = vmatprep.subr.bf16.mxu0 %v9390
        %10057 = vmatpush1.bf16.msra.mxu0 %v9389
        %10058 = vmatprep.subr.bf16.mxu0 %v9386
        %10059 = vmatpush1.bf16.msra.mxu0 %v9385
        %10060 = vmatprep.subr.bf16.mxu0 %v9382
        %10061 = vmatpush1.bf16.msra.mxu0 %v9381
        %10062 = vmatprep.subr.bf16.mxu0 %v9378
        %10063 = vmatpush1.bf16.msra.mxu0 %v9377
        %10064 = vmatprep.subr.bf16.mxu0 %v9374
        %10065 = vmatpush1.bf16.msra.mxu0 %v9373
        %10066 = vmatprep.subr.bf16.mxu0 %v9370
        %10067 = vmatpush1.bf16.msra.mxu0 %v9369
        %10068 = vmatprep.subr.bf16.mxu0 %v9366
        %10069 = vmatpush1.bf16.msra.mxu0 %v9365
        %10070 = vmatprep.subr.bf16.mxu0 %v9362
        %10071 = vmatpush1.bf16.msra.mxu0 %v9361
        %10072 = vmatprep.subr.bf16.mxu0 %v9422
        %10073 = vmatpush2.bf16.msra.mxu0 %v9421
        %10074 = vmatprep.subr.bf16.mxu0 %v9418
        %10075 = vmatpush2.bf16.msra.mxu0 %v9417
        %10076 = vmatprep.subr.bf16.mxu0 %v9414
        %10077 = vmatpush2.bf16.msra.mxu0 %v9413
        %10078 = vmatprep.subr.bf16.mxu0 %v9410
        %10079 = vmatpush2.bf16.msra.mxu0 %v9409
        %10080 = vmatprep.subr.bf16.mxu0 %v9406
        %10081 = vmatpush2.bf16.msra.mxu0 %v9405
        %10082 = vmatprep.subr.bf16.mxu0 %v9402
        %10083 = vmatpush2.bf16.msra.mxu0 %v9401
        %10084 = vmatprep.subr.bf16.mxu0 %v9398
        %10085 = vmatpush2.bf16.msra.mxu0 %v9397
        %10086 = vmatprep.subr.bf16.mxu0 %v9394
        %10087 = vmatpush2.bf16.msra.mxu0 %v9393
        %10088 = vmatprep.mubr.bf16.mxu0 %v8327
        %10089 = vmatmul.mubr.bf16.gmra.mxu0 %v8326
        %v10090 = vpop.f32.mrf.mxu0
        %v10091 = vadd.f32 %v9883, %v10090
        %v10092 = vpop.f32.mrf.mxu0
        %v10093 = vadd.f32 %v9887, %v10092
        %v10094 = vpop.f32.mrf.mxu0
        %v10095 = vpop.f32.mrf.mxu0
        %10096 = vdwg.mxu0
        %10097 = vmatprep.subr.bf16.mxu0 %v9454
        %10098 = vmatpush1.bf16.msra.mxu0 %v9453
        %10099 = vmatprep.subr.bf16.mxu0 %v9450
        %10100 = vmatpush1.bf16.msra.mxu0 %v9449
        %10101 = vmatprep.subr.bf16.mxu0 %v9446
        %10102 = vmatpush1.bf16.msra.mxu0 %v9445
        %10103 = vmatprep.subr.bf16.mxu0 %v9442
        %10104 = vmatpush1.bf16.msra.mxu0 %v9441
        %10105 = vmatprep.subr.bf16.mxu0 %v9438
        %10106 = vmatpush1.bf16.msra.mxu0 %v9437
        %10107 = vmatprep.subr.bf16.mxu0 %v9434
        %10108 = vmatpush1.bf16.msra.mxu0 %v9433
        %10109 = vmatprep.subr.bf16.mxu0 %v9430
        %10110 = vmatpush1.bf16.msra.mxu0 %v9429
        %10111 = vmatprep.subr.bf16.mxu0 %v9426
        %10112 = vmatpush1.bf16.msra.mxu0 %v9425
        %10113 = vmatprep.subr.bf16.mxu0 %v9486
        %10114 = vmatpush2.bf16.msra.mxu0 %v9485
        %10115 = vmatprep.subr.bf16.mxu0 %v9482
        %10116 = vmatpush2.bf16.msra.mxu0 %v9481
        %10117 = vmatprep.subr.bf16.mxu0 %v9478
        %10118 = vmatpush2.bf16.msra.mxu0 %v9477
        %10119 = vmatprep.subr.bf16.mxu0 %v9474
        %10120 = vmatpush2.bf16.msra.mxu0 %v9473
        %10121 = vmatprep.subr.bf16.mxu0 %v9470
        %10122 = vmatpush2.bf16.msra.mxu0 %v9469
        %10123 = vmatprep.subr.bf16.mxu0 %v9466
        %10124 = vmatpush2.bf16.msra.mxu0 %v9465
        %10125 = vmatprep.subr.bf16.mxu0 %v9462
        %10126 = vmatpush2.bf16.msra.mxu0 %v9461
        %10127 = vmatprep.subr.bf16.mxu0 %v9458
        %10128 = vmatpush2.bf16.msra.mxu0 %v9457
        %10129 = vmatprep.mubr.bf16.mxu0 %v8329
        %10130 = vmatmul.mubr.bf16.gmra.mxu0 %v8328
        %v10131 = vpop.f32.mrf.mxu0
        %v10132 = vadd.f32 %v10091, %v10131
        %v10133 = vpop.f32.mrf.mxu0
        %v10134 = vadd.f32 %v10093, %v10133
        %v10135 = vpop.f32.mrf.mxu0
        %v10136 = vpop.f32.mrf.mxu0
        %10137 = vdwg.mxu0
        %10138 = vmatprep.subr.bf16.mxu0 %v9518
        %10139 = vmatpush1.bf16.msra.mxu0 %v9517
        %10140 = vmatprep.subr.bf16.mxu0 %v9514
        %10141 = vmatpush1.bf16.msra.mxu0 %v9513
        %10142 = vmatprep.subr.bf16.mxu0 %v9510
        %10143 = vmatpush1.bf16.msra.mxu0 %v9509
        %10144 = vmatprep.subr.bf16.mxu0 %v9506
        %10145 = vmatpush1.bf16.msra.mxu0 %v9505
        %10146 = vmatprep.subr.bf16.mxu0 %v9502
        %10147 = vmatpush1.bf16.msra.mxu0 %v9501
        %10148 = vmatprep.subr.bf16.mxu0 %v9498
        %10149 = vmatpush1.bf16.msra.mxu0 %v9497
        %10150 = vmatprep.subr.bf16.mxu0 %v9494
        %10151 = vmatpush1.bf16.msra.mxu0 %v9493
        %10152 = vmatprep.subr.bf16.mxu0 %v9490
        %10153 = vmatpush1.bf16.msra.mxu0 %v9489
        %10154 = vmatprep.subr.bf16.mxu0 %v9550
        %10155 = vmatpush2.bf16.msra.mxu0 %v9549
        %10156 = vmatprep.subr.bf16.mxu0 %v9546
        %10157 = vmatpush2.bf16.msra.mxu0 %v9545
        %10158 = vmatprep.subr.bf16.mxu0 %v9542
        %10159 = vmatpush2.bf16.msra.mxu0 %v9541
        %10160 = vmatprep.subr.bf16.mxu0 %v9538
        %10161 = vmatpush2.bf16.msra.mxu0 %v9537
        %10162 = vmatprep.subr.bf16.mxu0 %v9534
        %10163 = vmatpush2.bf16.msra.mxu0 %v9533
        %10164 = vmatprep.subr.bf16.mxu0 %v9530
        %10165 = vmatpush2.bf16.msra.mxu0 %v9529
        %10166 = vmatprep.subr.bf16.mxu0 %v9526
        %10167 = vmatpush2.bf16.msra.mxu0 %v9525
        %10168 = vmatprep.subr.bf16.mxu0 %v9522
        %10169 = vmatpush2.bf16.msra.mxu0 %v9521
        %10170 = vmatprep.mubr.bf16.mxu0 %v8331
        %10171 = vmatmul.mubr.bf16.gmra.mxu0 %v8330
        %v10172 = vpop.f32.mrf.mxu0
        %v10173 = vadd.f32 %v10132, %v10172
        %v10174 = vpop.f32.mrf.mxu0
        %v10175 = vadd.f32 %v10134, %v10174
        %v10176 = vpop.f32.mrf.mxu0
        %v10177 = vpop.f32.mrf.mxu0
        %10178 = vdwg.mxu0
        %10179 = vmatprep.subr.bf16.mxu0 %v9582
        %10180 = vmatpush1.bf16.msra.mxu0 %v9581
        %10181 = vmatprep.subr.bf16.mxu0 %v9578
        %10182 = vmatpush1.bf16.msra.mxu0 %v9577
        %10183 = vmatprep.subr.bf16.mxu0 %v9574
        %10184 = vmatpush1.bf16.msra.mxu0 %v9573
        %10185 = vmatprep.subr.bf16.mxu0 %v9570
        %10186 = vmatpush1.bf16.msra.mxu0 %v9569
        %10187 = vmatprep.subr.bf16.mxu0 %v9566
        %10188 = vmatpush1.bf16.msra.mxu0 %v9565
        %10189 = vmatprep.subr.bf16.mxu0 %v9562
        %10190 = vmatpush1.bf16.msra.mxu0 %v9561
        %10191 = vmatprep.subr.bf16.mxu0 %v9558
        %10192 = vmatpush1.bf16.msra.mxu0 %v9557
        %10193 = vmatprep.subr.bf16.mxu0 %v9554
        %10194 = vmatpush1.bf16.msra.mxu0 %v9553
        %10195 = vmatprep.subr.bf16.mxu0 %v9614
        %10196 = vmatpush2.bf16.msra.mxu0 %v9613
        %10197 = vmatprep.subr.bf16.mxu0 %v9610
        %10198 = vmatpush2.bf16.msra.mxu0 %v9609
        %10199 = vmatprep.subr.bf16.mxu0 %v9606
        %10200 = vmatpush2.bf16.msra.mxu0 %v9605
        %10201 = vmatprep.subr.bf16.mxu0 %v9602
        %10202 = vmatpush2.bf16.msra.mxu0 %v9601
        %10203 = vmatprep.subr.bf16.mxu0 %v9598
        %10204 = vmatpush2.bf16.msra.mxu0 %v9597
        %10205 = vmatprep.subr.bf16.mxu0 %v9594
        %10206 = vmatpush2.bf16.msra.mxu0 %v9593
        %10207 = vmatprep.subr.bf16.mxu0 %v9590
        %10208 = vmatpush2.bf16.msra.mxu0 %v9589
        %10209 = vmatprep.subr.bf16.mxu0 %v9586
        %10210 = vmatpush2.bf16.msra.mxu0 %v9585
        %10211 = vmatprep.mubr.bf16.mxu0 %v8333
        %10212 = vmatmul.mubr.bf16.gmra.mxu0 %v8332
        %v10213 = vpop.f32.mrf.mxu0
        %v10214 = vadd.f32 %v10173, %v10213
        %v10215 = vpop.f32.mrf.mxu0
        %v10216 = vadd.f32 %v10175, %v10215
        %v10217 = vpop.f32.mrf.mxu0
        %v10218 = vpop.f32.mrf.mxu0
        %10219 = vdwg.mxu0
        %v10220 = vmax.f32 %v10050, 0.0
        %v10221 = vmax.f32 %v10052, 0.0
        %v10222 = vmax.f32 %v10214, 0.0
        %v10223 = vmax.f32 %v10216, 0.0
        %v10224 = vpack.c.bf16 %v10220, %v10220
        %v10225 = vpack.c.bf16 %v10221, %v10221
        %v10226 = vpack.c.bf16 %v10222, %v10222
        %v10227 = vpack.c.bf16 %v10223, %v10223
        %v10228 = vld [vmem:[%s6] sm:$0xff]
        %v10229 = vld [vmem:[%s6 + $0x8] sm:$0xff]
        %v10230 = vld [vmem:[%s6 + $0x10] sm:$0xff]
        %v10231 = vld [vmem:[%s6 + $0x18] sm:$0xff]
        %v10232 = vld [vmem:[%s6 + $0x20] sm:$0xff]
        %v10233 = vld [vmem:[%s6 + $0x28] sm:$0xff]
        %v10234 = vld [vmem:[%s6 + $0x30] sm:$0xff]
        %v10235 = vld [vmem:[%s6 + $0x38] sm:$0xff]
        %v10236 = vld [vmem:[%s6 + $0x40] sm:$0xff]
        %v10237 = vld [vmem:[%s6 + $0x48] sm:$0xff]
        %v10238 = vld [vmem:[%s6 + $0x50] sm:$0xff]
        %v10239 = vld [vmem:[%s6 + $0x58] sm:$0xff]
        %v10240 = vld [vmem:[%s6 + $0x60] sm:$0xff]
        %v10241 = vld [vmem:[%s6 + $0x68] sm:$0xff]
        %v10242 = vld [vmem:[%s6 + $0x70] sm:$0xff]
        %v10243 = vld [vmem:[%s6 + $0x78] sm:$0xff]
        %v10244 = vld [vmem:[%s6 + $0x80] sm:$0xff]
        %v10245 = vld [vmem:[%s6 + $0x88] sm:$0xff]
        %v10246 = vld [vmem:[%s6 + $0x90] sm:$0xff]
        %v10247 = vld [vmem:[%s6 + $0x98] sm:$0xff]
        %v10248 = vld [vmem:[%s6 + $0xa0] sm:$0xff]
        %v10249 = vld [vmem:[%s6 + $0xa8] sm:$0xff]
        %v10250 = vld [vmem:[%s6 + $0xb0] sm:$0xff]
        %v10251 = vld [vmem:[%s6 + $0xb8] sm:$0xff]
        %v10252 = vld [vmem:[%s6 + $0xc0] sm:$0xff]
        %v10253 = vld [vmem:[%s6 + $0xc8] sm:$0xff]
        %v10254 = vld [vmem:[%s6 + $0xd0] sm:$0xff]
        %v10255 = vld [vmem:[%s6 + $0xd8] sm:$0xff]
        %v10256 = vld [vmem:[%s6 + $0xe0] sm:$0xff]
        %v10257 = vld [vmem:[%s6 + $0xe8] sm:$0xff]
        %v10258 = vld [vmem:[%s6 + $0xf0] sm:$0xff]
        %v10259 = vld [vmem:[%s6 + $0xf8] sm:$0xff]
        %v10260 = vld [vmem:[%s6 + $0x100] sm:$0xff]
        %v10261 = vld [vmem:[%s6 + $0x108] sm:$0xff]
        %v10262 = vld [vmem:[%s6 + $0x110] sm:$0xff]
        %v10263 = vld [vmem:[%s6 + $0x118] sm:$0xff]
        %v10264 = vld [vmem:[%s6 + $0x120] sm:$0xff]
        %v10265 = vld [vmem:[%s6 + $0x128] sm:$0xff]
        %v10266 = vld [vmem:[%s6 + $0x130] sm:$0xff]
        %v10267 = vld [vmem:[%s6 + $0x138] sm:$0xff]
        %v10268 = vld [vmem:[%s6 + $0x140] sm:$0xff]
        %v10269 = vld [vmem:[%s6 + $0x148] sm:$0xff]
        %v10270 = vld [vmem:[%s6 + $0x150] sm:$0xff]
        %v10271 = vld [vmem:[%s6 + $0x158] sm:$0xff]
        %v10272 = vld [vmem:[%s6 + $0x160] sm:$0xff]
        %v10273 = vld [vmem:[%s6 + $0x168] sm:$0xff]
        %v10274 = vld [vmem:[%s6 + $0x170] sm:$0xff]
        %v10275 = vld [vmem:[%s6 + $0x178] sm:$0xff]
        %v10276 = vld [vmem:[%s6 + $0x180] sm:$0xff]
        %v10277 = vld [vmem:[%s6 + $0x188] sm:$0xff]
        %v10278 = vld [vmem:[%s6 + $0x190] sm:$0xff]
        %v10279 = vld [vmem:[%s6 + $0x198] sm:$0xff]
        %v10280 = vld [vmem:[%s6 + $0x1a0] sm:$0xff]
        %v10281 = vld [vmem:[%s6 + $0x1a8] sm:$0xff]
        %v10282 = vld [vmem:[%s6 + $0x1b0] sm:$0xff]
        %v10283 = vld [vmem:[%s6 + $0x1b8] sm:$0xff]
        %v10284 = vld [vmem:[%s6 + $0x1c0] sm:$0xff]
        %v10285 = vld [vmem:[%s6 + $0x1c8] sm:$0xff]
        %v10286 = vld [vmem:[%s6 + $0x1d0] sm:$0xff]
        %v10287 = vld [vmem:[%s6 + $0x1d8] sm:$0xff]
        %v10288 = vld [vmem:[%s6 + $0x1e0] sm:$0xff]
        %v10289 = vld [vmem:[%s6 + $0x1e8] sm:$0xff]
        %v10290 = vld [vmem:[%s6 + $0x1f0] sm:$0xff]
        %v10291 = vld [vmem:[%s6 + $0x1f8] sm:$0xff]
        %v10292 = vld [vmem:[%s1 + $0xe] sm:$0x3]
        %v10357 = vunpack.c.l.b16 %v10228
        %v10358 = vunpack.c.h.b16 %v10228
        %v10359 = vunpack.c.l.b16 %v10229
        %v10360 = vunpack.c.h.b16 %v10229
        %v10361 = vunpack.c.l.b16 %v10230
        %v10362 = vunpack.c.h.b16 %v10230
        %v10363 = vunpack.c.l.b16 %v10231
        %v10364 = vunpack.c.h.b16 %v10231
        %v10365 = vunpack.c.l.b16 %v10232
        %v10366 = vunpack.c.h.b16 %v10232
        %v10367 = vunpack.c.l.b16 %v10233
        %v10368 = vunpack.c.h.b16 %v10233
        %v10369 = vunpack.c.l.b16 %v10234
        %v10370 = vunpack.c.h.b16 %v10234
        %v10371 = vunpack.c.l.b16 %v10235
        %v10372 = vunpack.c.h.b16 %v10235
        %v10373 = vunpack.c.l.b16 %v10236
        %v10374 = vunpack.c.h.b16 %v10236
        %v10375 = vunpack.c.l.b16 %v10237
        %v10376 = vunpack.c.h.b16 %v10237
        %v10377 = vunpack.c.l.b16 %v10238
        %v10378 = vunpack.c.h.b16 %v10238
        %v10379 = vunpack.c.l.b16 %v10239
        %v10380 = vunpack.c.h.b16 %v10239
        %v10381 = vunpack.c.l.b16 %v10240
        %v10382 = vunpack.c.h.b16 %v10240
        %v10383 = vunpack.c.l.b16 %v10241
        %v10384 = vunpack.c.h.b16 %v10241
        %v10385 = vunpack.c.l.b16 %v10242
        %v10386 = vunpack.c.h.b16 %v10242
        %v10387 = vunpack.c.l.b16 %v10243
        %v10388 = vunpack.c.h.b16 %v10243
        %v10389 = vunpack.c.l.b16 %v10244
        %v10390 = vunpack.c.h.b16 %v10244
        %v10391 = vunpack.c.l.b16 %v10245
        %v10392 = vunpack.c.h.b16 %v10245
        %v10393 = vunpack.c.l.b16 %v10246
        %v10394 = vunpack.c.h.b16 %v10246
        %v10395 = vunpack.c.l.b16 %v10247
        %v10396 = vunpack.c.h.b16 %v10247
        %v10397 = vunpack.c.l.b16 %v10248
        %v10398 = vunpack.c.h.b16 %v10248
        %v10399 = vunpack.c.l.b16 %v10249
        %v10400 = vunpack.c.h.b16 %v10249
        %v10401 = vunpack.c.l.b16 %v10250
        %v10402 = vunpack.c.h.b16 %v10250
        %v10403 = vunpack.c.l.b16 %v10251
        %v10404 = vunpack.c.h.b16 %v10251
        %v10405 = vunpack.c.l.b16 %v10252
        %v10406 = vunpack.c.h.b16 %v10252
        %v10407 = vunpack.c.l.b16 %v10253
        %v10408 = vunpack.c.h.b16 %v10253
        %v10409 = vunpack.c.l.b16 %v10254
        %v10410 = vunpack.c.h.b16 %v10254
        %v10411 = vunpack.c.l.b16 %v10255
        %v10412 = vunpack.c.h.b16 %v10255
        %v10413 = vunpack.c.l.b16 %v10256
        %v10414 = vunpack.c.h.b16 %v10256
        %v10415 = vunpack.c.l.b16 %v10257
        %v10416 = vunpack.c.h.b16 %v10257
        %v10417 = vunpack.c.l.b16 %v10258
        %v10418 = vunpack.c.h.b16 %v10258
        %v10419 = vunpack.c.l.b16 %v10259
        %v10420 = vunpack.c.h.b16 %v10259
        %v10421 = vunpack.c.l.b16 %v10260
        %v10422 = vunpack.c.h.b16 %v10260
        %v10423 = vunpack.c.l.b16 %v10261
        %v10424 = vunpack.c.h.b16 %v10261
        %v10425 = vunpack.c.l.b16 %v10262
        %v10426 = vunpack.c.h.b16 %v10262
        %v10427 = vunpack.c.l.b16 %v10263
        %v10428 = vunpack.c.h.b16 %v10263
        %v10429 = vunpack.c.l.b16 %v10264
        %v10430 = vunpack.c.h.b16 %v10264
        %v10431 = vunpack.c.l.b16 %v10265
        %v10432 = vunpack.c.h.b16 %v10265
        %v10433 = vunpack.c.l.b16 %v10266
        %v10434 = vunpack.c.h.b16 %v10266
        %v10435 = vunpack.c.l.b16 %v10267
        %v10436 = vunpack.c.h.b16 %v10267
        %v10437 = vunpack.c.l.b16 %v10268
        %v10438 = vunpack.c.h.b16 %v10268
        %v10439 = vunpack.c.l.b16 %v10269
        %v10440 = vunpack.c.h.b16 %v10269
        %v10441 = vunpack.c.l.b16 %v10270
        %v10442 = vunpack.c.h.b16 %v10270
        %v10443 = vunpack.c.l.b16 %v10271
        %v10444 = vunpack.c.h.b16 %v10271
        %v10445 = vunpack.c.l.b16 %v10272
        %v10446 = vunpack.c.h.b16 %v10272
        %v10447 = vunpack.c.l.b16 %v10273
        %v10448 = vunpack.c.h.b16 %v10273
        %v10449 = vunpack.c.l.b16 %v10274
        %v10450 = vunpack.c.h.b16 %v10274
        %v10451 = vunpack.c.l.b16 %v10275
        %v10452 = vunpack.c.h.b16 %v10275
        %v10453 = vunpack.c.l.b16 %v10276
        %v10454 = vunpack.c.h.b16 %v10276
        %v10455 = vunpack.c.l.b16 %v10277
        %v10456 = vunpack.c.h.b16 %v10277
        %v10457 = vunpack.c.l.b16 %v10278
        %v10458 = vunpack.c.h.b16 %v10278
        %v10459 = vunpack.c.l.b16 %v10279
        %v10460 = vunpack.c.h.b16 %v10279
        %v10461 = vunpack.c.l.b16 %v10280
        %v10462 = vunpack.c.h.b16 %v10280
        %v10463 = vunpack.c.l.b16 %v10281
        %v10464 = vunpack.c.h.b16 %v10281
        %v10465 = vunpack.c.l.b16 %v10282
        %v10466 = vunpack.c.h.b16 %v10282
        %v10467 = vunpack.c.l.b16 %v10283
        %v10468 = vunpack.c.h.b16 %v10283
        %v10469 = vunpack.c.l.b16 %v10284
        %v10470 = vunpack.c.h.b16 %v10284
        %v10471 = vunpack.c.l.b16 %v10285
        %v10472 = vunpack.c.h.b16 %v10285
        %v10473 = vunpack.c.l.b16 %v10286
        %v10474 = vunpack.c.h.b16 %v10286
        %v10475 = vunpack.c.l.b16 %v10287
        %v10476 = vunpack.c.h.b16 %v10287
        %v10477 = vunpack.c.l.b16 %v10288
        %v10478 = vunpack.c.h.b16 %v10288
        %v10479 = vunpack.c.l.b16 %v10289
        %v10480 = vunpack.c.h.b16 %v10289
        %v10481 = vunpack.c.l.b16 %v10290
        %v10482 = vunpack.c.h.b16 %v10290
        %v10483 = vunpack.c.l.b16 %v10291
        %v10484 = vunpack.c.h.b16 %v10291
        %v10485 = vpack.c.b16 %v10359, %v10357
        %v10486 = vpack.c.b16 %v10360, %v10358
        %v10487 = vpack.c.b16 %v10363, %v10361
        %v10488 = vpack.c.b16 %v10364, %v10362
        %v10489 = vpack.c.b16 %v10367, %v10365
        %v10490 = vpack.c.b16 %v10368, %v10366
        %v10491 = vpack.c.b16 %v10371, %v10369
        %v10492 = vpack.c.b16 %v10372, %v10370
        %v10493 = vpack.c.b16 %v10375, %v10373
        %v10494 = vpack.c.b16 %v10376, %v10374
        %v10495 = vpack.c.b16 %v10379, %v10377
        %v10496 = vpack.c.b16 %v10380, %v10378
        %v10497 = vpack.c.b16 %v10383, %v10381
        %v10498 = vpack.c.b16 %v10384, %v10382
        %v10499 = vpack.c.b16 %v10387, %v10385
        %v10500 = vpack.c.b16 %v10388, %v10386
        %v10501 = vpack.c.b16 %v10391, %v10389
        %v10502 = vpack.c.b16 %v10392, %v10390
        %v10503 = vpack.c.b16 %v10395, %v10393
        %v10504 = vpack.c.b16 %v10396, %v10394
        %v10505 = vpack.c.b16 %v10399, %v10397
        %v10506 = vpack.c.b16 %v10400, %v10398
        %v10507 = vpack.c.b16 %v10403, %v10401
        %v10508 = vpack.c.b16 %v10404, %v10402
        %v10509 = vpack.c.b16 %v10407, %v10405
        %v10510 = vpack.c.b16 %v10408, %v10406
        %v10511 = vpack.c.b16 %v10411, %v10409
        %v10512 = vpack.c.b16 %v10412, %v10410
        %v10513 = vpack.c.b16 %v10415, %v10413
        %v10514 = vpack.c.b16 %v10416, %v10414
        %v10515 = vpack.c.b16 %v10419, %v10417
        %v10516 = vpack.c.b16 %v10420, %v10418
        %v10517 = vpack.c.b16 %v10423, %v10421
        %v10518 = vpack.c.b16 %v10424, %v10422
        %v10519 = vpack.c.b16 %v10427, %v10425
        %v10520 = vpack.c.b16 %v10428, %v10426
        %v10521 = vpack.c.b16 %v10431, %v10429
        %v10522 = vpack.c.b16 %v10432, %v10430
        %v10523 = vpack.c.b16 %v10435, %v10433
        %v10524 = vpack.c.b16 %v10436, %v10434
        %v10525 = vpack.c.b16 %v10439, %v10437
        %v10526 = vpack.c.b16 %v10440, %v10438
        %v10527 = vpack.c.b16 %v10443, %v10441
        %v10528 = vpack.c.b16 %v10444, %v10442
        %v10529 = vpack.c.b16 %v10447, %v10445
        %v10530 = vpack.c.b16 %v10448, %v10446
        %v10531 = vpack.c.b16 %v10451, %v10449
        %v10532 = vpack.c.b16 %v10452, %v10450
        %v10533 = vpack.c.b16 %v10455, %v10453
        %v10534 = vpack.c.b16 %v10456, %v10454
        %v10535 = vpack.c.b16 %v10459, %v10457
        %v10536 = vpack.c.b16 %v10460, %v10458
        %v10537 = vpack.c.b16 %v10463, %v10461
        %v10538 = vpack.c.b16 %v10464, %v10462
        %v10539 = vpack.c.b16 %v10467, %v10465
        %v10540 = vpack.c.b16 %v10468, %v10466
        %v10541 = vpack.c.b16 %v10471, %v10469
        %v10542 = vpack.c.b16 %v10472, %v10470
        %v10543 = vpack.c.b16 %v10475, %v10473
        %v10544 = vpack.c.b16 %v10476, %v10474
        %v10545 = vpack.c.b16 %v10479, %v10477
        %v10546 = vpack.c.b16 %v10480, %v10478
        %v10547 = vpack.c.b16 %v10483, %v10481
        %v10548 = vpack.c.b16 %v10484, %v10482
        %v10614 = vlaneseq
        %v10615 = vshrl.u32 %v10614, 7
        %v10616 = vsub.s32 0, %v10615
        %v10617 = vrot.slane %v10292, %v10616
        %v10618 = vlaneseq
        %v10619 = vshrl.u32 %v10618, 7
        %v10620 = vsub.s32 1, %v10619
        %v10621 = vrot.slane %v10292, %v10620
        %10624 = vmatprep.subr.bf16.mxu0 %v10500
        %10625 = vmatpush1.bf16.msra.mxu0 %v10499
        %10626 = vmatprep.subr.bf16.mxu0 %v10498
        %10627 = vmatpush1.bf16.msra.mxu0 %v10497
        %10628 = vmatprep.subr.bf16.mxu0 %v10496
        %10629 = vmatpush1.bf16.msra.mxu0 %v10495
        %10630 = vmatprep.subr.bf16.mxu0 %v10494
        %10631 = vmatpush1.bf16.msra.mxu0 %v10493
        %10632 = vmatprep.subr.bf16.mxu0 %v10492
        %10633 = vmatpush1.bf16.msra.mxu0 %v10491
        %10634 = vmatprep.subr.bf16.mxu0 %v10490
        %10635 = vmatpush1.bf16.msra.mxu0 %v10489
        %10636 = vmatprep.subr.bf16.mxu0 %v10488
        %10637 = vmatpush1.bf16.msra.mxu0 %v10487
        %10638 = vmatprep.subr.bf16.mxu0 %v10486
        %10639 = vmatpush1.bf16.msra.mxu0 %v10485
        %10640 = vmatprep.subr.bf16.mxu0 %v10516
        %10641 = vmatpush2.bf16.msra.mxu0 %v10515
        %10642 = vmatprep.subr.bf16.mxu0 %v10514
        %10643 = vmatpush2.bf16.msra.mxu0 %v10513
        %10644 = vmatprep.subr.bf16.mxu0 %v10512
        %10645 = vmatpush2.bf16.msra.mxu0 %v10511
        %10646 = vmatprep.subr.bf16.mxu0 %v10510
        %10647 = vmatpush2.bf16.msra.mxu0 %v10509
        %10648 = vmatprep.subr.bf16.mxu0 %v10508
        %10649 = vmatpush2.bf16.msra.mxu0 %v10507
        %10650 = vmatprep.subr.bf16.mxu0 %v10506
        %10651 = vmatpush2.bf16.msra.mxu0 %v10505
        %10652 = vmatprep.subr.bf16.mxu0 %v10504
        %10653 = vmatpush2.bf16.msra.mxu0 %v10503
        %10654 = vmatprep.subr.bf16.mxu0 %v10502
        %10655 = vmatpush2.bf16.msra.mxu0 %v10501
        %10656 = vmatprep.mubr.bf16.mxu0 %v10225
        %10657 = vmatmul.mubr.bf16.gmra.mxu0 %v10224
        %v10658 = vpop.f32.mrf.mxu0
        %v10659 = vadd.f32 %v10617, %v10658
        %v10660 = vpop.f32.mrf.mxu0
        %v10661 = vadd.f32 %v10621, %v10660
        %v10662 = vpop.f32.mrf.mxu0
        %v10663 = vpop.f32.mrf.mxu0
        %10664 = vdwg.mxu0
        %10665 = vmatprep.subr.bf16.mxu0 %v10532
        %10666 = vmatpush1.bf16.msra.mxu0 %v10531
        %10667 = vmatprep.subr.bf16.mxu0 %v10530
        %10668 = vmatpush1.bf16.msra.mxu0 %v10529
        %10669 = vmatprep.subr.bf16.mxu0 %v10528
        %10670 = vmatpush1.bf16.msra.mxu0 %v10527
        %10671 = vmatprep.subr.bf16.mxu0 %v10526
        %10672 = vmatpush1.bf16.msra.mxu0 %v10525
        %10673 = vmatprep.subr.bf16.mxu0 %v10524
        %10674 = vmatpush1.bf16.msra.mxu0 %v10523
        %10675 = vmatprep.subr.bf16.mxu0 %v10522
        %10676 = vmatpush1.bf16.msra.mxu0 %v10521
        %10677 = vmatprep.subr.bf16.mxu0 %v10520
        %10678 = vmatpush1.bf16.msra.mxu0 %v10519
        %10679 = vmatprep.subr.bf16.mxu0 %v10518
        %10680 = vmatpush1.bf16.msra.mxu0 %v10517
        %10681 = vmatprep.subr.bf16.mxu0 %v10548
        %10682 = vmatpush2.bf16.msra.mxu0 %v10547
        %10683 = vmatprep.subr.bf16.mxu0 %v10546
        %10684 = vmatpush2.bf16.msra.mxu0 %v10545
        %10685 = vmatprep.subr.bf16.mxu0 %v10544
        %10686 = vmatpush2.bf16.msra.mxu0 %v10543
        %10687 = vmatprep.subr.bf16.mxu0 %v10542
        %10688 = vmatpush2.bf16.msra.mxu0 %v10541
        %10689 = vmatprep.subr.bf16.mxu0 %v10540
        %10690 = vmatpush2.bf16.msra.mxu0 %v10539
        %10691 = vmatprep.subr.bf16.mxu0 %v10538
        %10692 = vmatpush2.bf16.msra.mxu0 %v10537
        %10693 = vmatprep.subr.bf16.mxu0 %v10536
        %10694 = vmatpush2.bf16.msra.mxu0 %v10535
        %10695 = vmatprep.subr.bf16.mxu0 %v10534
        %10696 = vmatpush2.bf16.msra.mxu0 %v10533
        %10697 = vmatprep.mubr.bf16.mxu0 %v10227
        %10698 = vmatmul.mubr.bf16.gmra.mxu0 %v10226
        %v10699 = vpop.f32.mrf.mxu0
        %v10700 = vadd.f32 %v10659, %v10699
        %v10701 = vpop.f32.mrf.mxu0
        %v10702 = vadd.f32 %v10661, %v10701
        %v10703 = vpop.f32.mrf.mxu0
        %v10704 = vpop.f32.mrf.mxu0
        %10705 = vdwg.mxu0
        %v10706 = vmax.f32 %v10700, 0.0
        %v10707 = vmax.f32 %v10702, 0.0
        %v10708 = vld [vmem:[%s7] sm:$0xff]
        %v10709 = vld [vmem:[%s7 + $0x8] sm:$0xff]
        %v10710 = vld [vmem:[%s7 + $0x10] sm:$0xff]
        %v10711 = vld [vmem:[%s7 + $0x18] sm:$0xff]
        %v10712 = vld [vmem:[%s7 + $0x20] sm:$0xff]
        %v10713 = vld [vmem:[%s7 + $0x28] sm:$0xff]
        %v10714 = vld [vmem:[%s7 + $0x30] sm:$0xff]
        %v10715 = vld [vmem:[%s7 + $0x38] sm:$0xff]
        %v10716 = vld [vmem:[%s7 + $0x40] sm:$0xff]
        %v10717 = vld [vmem:[%s7 + $0x48] sm:$0xff]
        %v10718 = vld [vmem:[%s7 + $0x50] sm:$0xff]
        %v10719 = vld [vmem:[%s7 + $0x58] sm:$0xff]
        %v10720 = vld [vmem:[%s7 + $0x60] sm:$0xff]
        %v10721 = vld [vmem:[%s7 + $0x68] sm:$0xff]
        %v10722 = vld [vmem:[%s7 + $0x70] sm:$0xff]
        %v10723 = vld [vmem:[%s7 + $0x78] sm:$0xff]
        %v10724 = vld [vmem:[%s7 + $0x80] sm:$0xff]
        %v10725 = vld [vmem:[%s7 + $0x88] sm:$0xff]
        %v10726 = vld [vmem:[%s7 + $0x90] sm:$0xff]
        %v10727 = vld [vmem:[%s7 + $0x98] sm:$0xff]
        %v10728 = vld [vmem:[%s7 + $0xa0] sm:$0xff]
        %v10729 = vld [vmem:[%s7 + $0xa8] sm:$0xff]
        %v10730 = vld [vmem:[%s7 + $0xb0] sm:$0xff]
        %v10731 = vld [vmem:[%s7 + $0xb8] sm:$0xff]
        %v10732 = vld [vmem:[%s7 + $0xc0] sm:$0xff]
        %v10733 = vld [vmem:[%s7 + $0xc8] sm:$0xff]
        %v10734 = vld [vmem:[%s7 + $0xd0] sm:$0xff]
        %v10735 = vld [vmem:[%s7 + $0xd8] sm:$0xff]
        %v10736 = vld [vmem:[%s7 + $0xe0] sm:$0xff]
        %v10737 = vld [vmem:[%s7 + $0xe8] sm:$0xff]
        %v10738 = vld [vmem:[%s7 + $0xf0] sm:$0xff]
        %v10739 = vld [vmem:[%s7 + $0xf8] sm:$0xff]
        %v10740 = vld [vmem:[%s1 + $0x10] sm:$0x1]
        %10741 = vmatprep.subr.mxu0 0.0
        %10742 = vmatpush1.msra.mxu0 %v10723
        %10743 = vmatprep.subr.mxu0 0.0
        %10744 = vmatpush1.msra.mxu0 %v10722
        %10745 = vmatprep.subr.mxu0 0.0
        %10746 = vmatpush1.msra.mxu0 %v10721
        %10747 = vmatprep.subr.mxu0 0.0
        %10748 = vmatpush1.msra.mxu0 %v10720
        %10749 = vmatprep.subr.mxu0 0.0
        %10750 = vmatpush1.msra.mxu0 %v10719
        %10751 = vmatprep.subr.mxu0 0.0
        %10752 = vmatpush1.msra.mxu0 %v10718
        %10753 = vmatprep.subr.mxu0 0.0
        %10754 = vmatpush1.msra.mxu0 %v10717
        %10755 = vmatprep.subr.mxu0 0.0
        %10756 = vmatpush1.msra.mxu0 %v10716
        %10757 = vmatprep.subr.mxu0 0.0
        %10758 = vmatpush1.msra.mxu0 %v10715
        %10759 = vmatprep.subr.mxu0 0.0
        %10760 = vmatpush1.msra.mxu0 %v10714
        %10761 = vmatprep.subr.mxu0 0.0
        %10762 = vmatpush1.msra.mxu0 %v10713
        %10763 = vmatprep.subr.mxu0 0.0
        %10764 = vmatpush1.msra.mxu0 %v10712
        %10765 = vmatprep.subr.mxu0 0.0
        %10766 = vmatpush1.msra.mxu0 %v10711
        %10767 = vmatprep.subr.mxu0 0.0
        %10768 = vmatpush1.msra.mxu0 %v10710
        %10769 = vmatprep.subr.mxu0 0.0
        %10770 = vmatpush1.msra.mxu0 %v10709
        %10771 = vmatprep.subr.mxu0 0.0
        %10772 = vmatpush1.msra.mxu0 %v10708
        %10773 = vmatprep.subr.mxu0 0.0
        %10774 = vmatpush2.msra.mxu0 %v10739
        %10775 = vmatprep.subr.mxu0 0.0
        %10776 = vmatpush2.msra.mxu0 %v10738
        %10777 = vmatprep.subr.mxu0 0.0
        %10778 = vmatpush2.msra.mxu0 %v10737
        %10779 = vmatprep.subr.mxu0 0.0
        %10780 = vmatpush2.msra.mxu0 %v10736
        %10781 = vmatprep.subr.mxu0 0.0
        %10782 = vmatpush2.msra.mxu0 %v10735
        %10783 = vmatprep.subr.mxu0 0.0
        %10784 = vmatpush2.msra.mxu0 %v10734
        %10785 = vmatprep.subr.mxu0 0.0
        %10786 = vmatpush2.msra.mxu0 %v10733
        %10787 = vmatprep.subr.mxu0 0.0
        %10788 = vmatpush2.msra.mxu0 %v10732
        %10789 = vmatprep.subr.mxu0 0.0
        %10790 = vmatpush2.msra.mxu0 %v10731
        %10791 = vmatprep.subr.mxu0 0.0
        %10792 = vmatpush2.msra.mxu0 %v10730
        %10793 = vmatprep.subr.mxu0 0.0
        %10794 = vmatpush2.msra.mxu0 %v10729
        %10795 = vmatprep.subr.mxu0 0.0
        %10796 = vmatpush2.msra.mxu0 %v10728
        %10797 = vmatprep.subr.mxu0 0.0
        %10798 = vmatpush2.msra.mxu0 %v10727
        %10799 = vmatprep.subr.mxu0 0.0
        %10800 = vmatpush2.msra.mxu0 %v10726
        %10801 = vmatprep.subr.mxu0 0.0
        %10802 = vmatpush2.msra.mxu0 %v10725
        %10803 = vmatprep.subr.mxu0 0.0
        %10804 = vmatpush2.msra.mxu0 %v10724
        %10805 = vmatprep.mubr.f32.mxu0 %v10707
        %10806 = vmatmul.mubr.f32.gmra.mxu0 %v10706
        %v10807 = vpop.f32.mrf.mxu0
        %v10808 = vadd.f32 %v10740, %v10807
        %v10809 = vpop.f32.mrf.mxu0
        %10810 = vdwg.mxu0
        %10811 = vst [vmem:[%s329] sm:$0x1] %v10808
      $region60: #{transformer_forward.1} parent=51 // pred_fallthru
        _
      %p10812 = scmp.lt.s32.totalorder %s23, 1
      %s10813 = scalar_select %p10812, %s23, 1
      %s10814 = scalar_lea.vmem %s8, %s10813
      // Predicated region
      $region61: #{transformer_forward.1} parent=51 // pred_check
        %p10815 = pneg %p224
      $region62: #{transformer_forward.1} parent=51 // pred_check_branch
        %10817 = sbr.rel (%p10815) target = $region64
      $region63: #{transformer_forward.1} parent=51 // pred_region
        _
      $region64: #{transformer_forward.1} parent=51 // pred_fallthru
        _
    $region52: #{transformer_forward.1} parent=5 // pred_fallthru
      _
    %p10818 = scmp.le.s32.totalorder 2, %s14
    // Predicated region
    $region65: #{transformer_forward.1} parent=5 // pred_check
      %p10819 = pneg %p10818
    $region66: #{transformer_forward.1} parent=5 // pred_check_branch
      %10821 = sbr.rel (%p10819) target = $region68
    $region67: #{transformer_forward.1} parent=5 // pred_region
      %s10822 = ssub.s32 %s14, 2
      // Predicated region
      $region69: #{transformer_forward.1} parent=67 // pred_check
        %p10823 = pneg %p230
      $region70: #{transformer_forward.1} parent=67 // pred_check_branch
        %10825 = sbr.rel (%p10823) target = $region72
      $region71: #{transformer_forward.1} parent=67 // pred_region
        %p10826 = scmp.lt.s32.totalorder %s25, 1
        %s10827 = scalar_select %p10826, %s25, 1
        %s10828 = scalar_lea.vmem %s8, %s10827
      $region72: #{transformer_forward.1} parent=67 // pred_fallthru
        _
    $region68: #{transformer_forward.1} parent=5 // pred_fallthru
      _
  $region6: #{transformer_forward.1} parent=0 // loop_footer
    %s18 = sadd.s32 1, %s14
  $region7: #{transformer_forward.1} parent=0 // loop_footer_branch
    %13 = sbr.rel target = $region3
  $region8: #{transformer_forward.1} parent=0 // loop_exit
    _

</llo_original>
